<compile_context>
chip_gen: v7x
topology: tpu7x:2x2x1
jax: 0.10.0
libtpu: 0.0.40
codegen_flags: <defaults>
</compile_context>

<pallas_src>
import math
import functools

import numpy as np
import jax
import jax.numpy as jnp
from jax.experimental import pallas as pl
from jax.experimental.pallas import tpu as pltpu


def _embedder_kernel(x_ref, w_ref, phase_ref, out_ref, *, precision):
    """Body: one MXU matmul (2*pi and freqs pre-folded into W), +phase (VPU),
    sin (EUP), one lane-dense store."""
    arg = jnp.dot(x_ref[...], w_ref[...],
                  preferred_element_type=jnp.float32,
                  precision=precision)                        # (tr, PACK*out_dim)
    out_ref[...] = jnp.sin(arg + phase_ref[...]).astype(out_ref.dtype)


def _round_up(v, m):
    return ((v + m - 1) // m) * m


def _is_multi_tensorcore():
    """True on chips with >1 TensorCore per device (v7x)."""
    try:
        kind = jax.devices()[0].device_kind.lower()
    except Exception:
        return False
    return ("v7" in kind) or ("7x" in kind)


def _choose_tile_rows(R, cap, multi_core):
    """Packed rows per grid step."""
    if R <= 8:
        return 8
    tr = min(cap, _round_up(R, 8))
    if multi_core:
        # Aim for >= 4 grid steps (>= 2 per TensorCore) so each core
        # double-buffers its output writeback, but never shrink the tile
        # below 64 packed rows just to split.
        quarter = _round_up(-(-R // 4), 8)
        if quarter >= 64:
            tr = min(tr, quarter)
    return tr


def embedder_reference(x, *, min_freq_exp=0.0, max_freq_exp=4.0, num_freqs=6):
    """Plain-JAX mirror of the PyTorch forward (also the small-batch path)."""
    x = jnp.asarray(x, jnp.float32)
    scaled = 2.0 * math.pi * x
    freqs = 2.0 ** jnp.linspace(min_freq_exp, max_freq_exp, num_freqs,
                                dtype=jnp.float32)
    si = scaled[..., None] * freqs
    si = si.reshape(*si.shape[:-2], -1)
    return jnp.sin(jnp.concatenate([si, si + math.pi / 2.0], axis=-1))


def embedder_forward(x, *, min_freq_exp=0.0, max_freq_exp=4.0, num_freqs=6,
                     tile_rows=512, precision=jax.lax.Precision.HIGHEST,
                     out_dtype=jnp.float32, min_pallas_rows=4096):
    """Pallas Embedder.forward for arbitrary leading dims.

    `tile_rows` = packed rows per grid step (1 packed row = PACK original
    rows; PACK=32 for D=4, so the default processes 16384 rows per step).
    Batches smaller than `min_pallas_rows` take a fused plain-JAX path.
    """
    x = jnp.asarray(x, jnp.float32)
    *lead, D = x.shape
    F = int(num_freqs)
    out_dim = D * F * 2
    B = int(np.prod(lead)) if lead else 1

    # ---- small-batch bypass: launch + padding overhead dwarfs the work ----
    if B < int(min_pallas_rows):
        ref = embedder_reference(x, min_freq_exp=min_freq_exp,
                                 max_freq_exp=max_freq_exp, num_freqs=F)
        return ref.astype(out_dtype)

    # ---- packing: make the input tile lane-dense (PACK*D == 128 for D=4) ---
    PACK = (128 // D) if (128 % D == 0) else 8

    # ---- tiling ------------------------------------------------------------
    R = -(-B // PACK)                                        # packed rows
    tr = _choose_tile_rows(R, int(tile_rows), _is_multi_tensorcore())
    R_pad = _round_up(R, tr)
    B_pad = R_pad * PACK

    x2d = x.reshape(B, D)
    if B_pad != B:                                           # pad only if needed
        x2d = jnp.pad(x2d, ((0, B_pad - B), (0, 0)))
    xp = x2d.reshape(R_pad, PACK * D)                        # free reshape

    # ---- constants: block-diagonal frequency matrix (2*pi folded in, f64
    #      host math, single cast to f32) + phase row --------------------------
    exps = np.linspace(float(min_freq_exp), float(max_freq_exp), F,
                       dtype=np.float64)
    coeffs = (2.0 * np.pi) * np.exp2(exps)                   # (F,) float64

    # Exact 0/coeff selection reproducing torch's reshape+concat ordering:
    #   out[:, d*F + f]       = x[:, d] * 2*pi*freqs[f]        (sin)
    #   out[:, D*F + d*F + f] = x[:, d] * 2*pi*freqs[f]        (sin(.+pi/2))
    w_small = np.zeros((D, out_dim), np.float64)
    for d in range(D):
        w_small[d, d * F:(d + 1) * F] = coeffs
        w_small[d, D * F + d * F:D * F + (d + 1) * F] = coeffs
    w_packed = np.zeros((PACK * D, PACK * out_dim), np.float64)
    for p in range(PACK):
        w_packed[p * D:(p + 1) * D, p * out_dim:(p + 1) * out_dim] = w_small
    W = jnp.asarray(w_packed.astype(np.float32))             # (PACK*D, PACK*out_dim)

    phase_small = np.concatenate([np.zeros(D * F, np.float32),
                                  np.full(D * F, np.pi / 2.0, np.float32)])
    phase = jnp.asarray(np.tile(phase_small, PACK)[None, :]) # (1, PACK*out_dim)

    kernel = functools.partial(_embedder_kernel, precision=precision)

    out_p = pl.pallas_call(
        kernel,
        out_shape=jax.ShapeDtypeStruct((R_pad, PACK * out_dim), out_dtype),
        grid_spec=pltpu.PrefetchScalarGridSpec(
            num_scalar_prefetch=0,
            grid=(R_pad // tr,),
            in_specs=[
                pl.BlockSpec((tr, PACK * D), lambda i: (i, 0)),
                pl.BlockSpec((PACK * D, PACK * out_dim), lambda i: (0, 0)),
                pl.BlockSpec((1, PACK * out_dim), lambda i: (0, 0)),
            ],
            out_specs=pl.BlockSpec((tr, PACK * out_dim), lambda i: (i, 0)),
        ),
        compiler_params=pltpu.CompilerParams(
            dimension_semantics=("parallel",)),
    )(xp, W, phase)

    out = out_p.reshape(B_pad, out_dim)                      # free reshape
    if B_pad != B:
        out = out[:B]
    return out.reshape(*lead, out_dim)


if __name__ == "__main__":
    key = jax.random.PRNGKey(0)

    # Small shape matching the module: (batch=2, seq=8) observations, D=4.
    x = jax.random.uniform(key, (2, 8, 4), dtype=jnp.float32,
                           minval=-1.0, maxval=1.0)
    ref = embedder_reference(x)

    # Force the Pallas path at this small shape (exercise the kernel once).
    out = jax.block_until_ready(embedder_forward(x, min_pallas_rows=0))
    assert out.shape == ref.shape == (2, 8, 48), out.shape
    assert jnp.allclose(out, ref, atol=2e-4, rtol=1e-4), float(
        jnp.max(jnp.abs(out - ref)))

    # Default dispatch: small batch takes the fused plain-JAX bypass path.
    out_bypass = jax.block_until_ready(embedder_forward(x))
    assert out_bypass.shape == ref.shape
    assert jnp.allclose(out_bypass, ref, atol=2e-4, rtol=1e-4)

    # Larger batch: kernel dispatch, multi-step grid, no-padding fast path.
    x2 = jax.random.uniform(jax.random.PRNGKey(1), (32768, 4),
                            dtype=jnp.float32, minval=-1.0, maxval=1.0)
    out2 = jax.block_until_ready(embedder_forward(x2))       # (32768, 48)
    ref2 = embedder_reference(x2)
    assert out2.shape == ref2.shape == (32768, 48), out2.shape
    assert jnp.allclose(out2, ref2, atol=2e-4, rtol=1e-4), float(
        jnp.max(jnp.abs(out2 - ref2)))

    print("KERNEL_OK")
</pallas_src>

<mosaic_0001>
module attributes {stable_mosaic.version = 11 : i64} {
  func.func @_embedder_kernel(%arg0: i32, %arg1: memref<8x128xf32, #tpu.memory_space<vmem>>, %arg2: memref<128x1536xf32, #tpu.memory_space<vmem>>, %arg3: memref<1x1536xf32, #tpu.memory_space<vmem>>, %arg4: memref<8x1536xf32, #tpu.memory_space<vmem>>) attributes {dimension_semantics = [#tpu.dimension_semantics<parallel>], iteration_bounds = array<i64: 1>, scalar_prefetch = 0 : i64, scratch_operands = 0 : i64, tpu.core_type = #tpu.core_type<tc>, window_params = [{transform_indices = @transform_0, window_bounds = array<i64: 8, 128>}, {pipeline_mode = #tpu.pipeline_mode<synchronous>, transform_indices = @transform_1, window_bounds = array<i64: 128, 1536>}, {pipeline_mode = #tpu.pipeline_mode<synchronous>, transform_indices = @transform_2, window_bounds = array<i64: 1, 1536>}, {transform_indices = @transform_3, window_bounds = array<i64: 8, 1536>}]} {
    %c0 = arith.constant 0 : index
    %c0_0 = arith.constant 0 : index
    %0 = vector.load %arg1[%c0, %c0_0] : memref<8x128xf32, #tpu.memory_space<vmem>>, vector<8x128xf32>
    %c0_1 = arith.constant 0 : index
    %c0_2 = arith.constant 0 : index
    %1 = vector.load %arg2[%c0_1, %c0_2] : memref<128x1536xf32, #tpu.memory_space<vmem>>, vector<128x1536xf32>
    %cst = arith.constant dense<0.000000e+00> : vector<8x1536xf32>
    %2 = tpu.matmul %0, %1, %cst {dimension_numbers = #tpu.dot_dimension_numbers<[1], [0], [0], [1], [0, 0, 1, 1], [], []>, precision = #tpu.contract_precision<fp32>} : vector<8x128xf32>, vector<128x1536xf32>, vector<8x1536xf32> -> vector<8x1536xf32>
    %c0_3 = arith.constant 0 : index
    %c0_4 = arith.constant 0 : index
    %3 = vector.load %arg3[%c0_3, %c0_4] : memref<1x1536xf32, #tpu.memory_space<vmem>>, vector<1x1536xf32>
    %4 = vector.broadcast %3 : vector<1x1536xf32> to vector<8x1536xf32>
    %5 = arith.addf %2, %4 : vector<8x1536xf32>
    %6 = math.sin %5 : vector<8x1536xf32>
    %c0_5 = arith.constant 0 : index
    %c0_6 = arith.constant 0 : index
    %7 = vector.load %arg4[%c0_5, %c0_6] : memref<8x1536xf32, #tpu.memory_space<vmem>>, vector<8x1536xf32>
    tpu.vector_store %arg4[%c0_5, %c0_6], %6 {strides = array<i32>} : memref<8x1536xf32, #tpu.memory_space<vmem>>, vector<8x1536xf32>,
    return
  }
  func.func @transform_0(%arg0: i32) -> (i32, i32) {
    %c0_i32 = arith.constant 0 : i32
    %c0_i32_0 = arith.constant 0 : i32
    return %arg0, %c0_i32 : i32, i32
  }
  func.func @transform_1(%arg0: i32) -> (i32, i32) {
    %c0_i32 = arith.constant 0 : i32
    %c0_i32_0 = arith.constant 0 : i32
    %c0_i32_1 = arith.constant 0 : i32
    return %c0_i32, %c0_i32_0 : i32, i32
  }
  func.func @transform_2(%arg0: i32) -> (i32, i32) {
    %c0_i32 = arith.constant 0 : i32
    %c0_i32_0 = arith.constant 0 : i32
    %c0_i32_1 = arith.constant 0 : i32
    return %c0_i32, %c0_i32_0 : i32, i32
  }
  func.func @transform_3(%arg0: i32) -> (i32, i32) {
    %c0_i32 = arith.constant 0 : i32
    %c0_i32_0 = arith.constant 0 : i32
    return %arg0, %c0_i32 : i32, i32
  }
}

</mosaic_0001>

<llo_original>
// kernel: tpu_custom_call.1
$region0: #{tpu_custom_call.1}
  #allocation0 [shape = 'u32[]', space=smem, size = 0x4, offset = 0x4, fixed_abs, tag = 'smem constant byte address 0x4 - core index']
  #allocation1 [shape = 'u32[144,128]{1,0:T(1,128)}', space=vmem, size = 0x12000, scoped, tag = 'internal scratch']
  %s0 = inlined_call_operand.hbm [shape: f32[8,128], index: 0, kind: input, shape index: {}]
  %s1 = inlined_call_operand.hbm [shape: f32[128,1536], index: 1, kind: input, shape index: {}]
  %s2 = inlined_call_operand.hbm [shape: f32[1,1536], index: 2, kind: input, shape index: {}]
  %s3 = inlined_call_operand.hbm [shape: f32[8,1536], index: 3, kind: output, shape index: {}]
  %s4 = sld [smem:[#allocation0]]
  $region34: #{tpu_custom_call.1} parent=0
    _
  %s6 = ssub.s32 1, %s4
  %s7 = scalar_select 0, %s6, %s4
  $region1: #{tpu_custom_call.1} parent=0
    #allocation2 [shape = 'u8[4096]{0}', space=vmem, size = 0x1000, scoped, tag = 'input window, operand 0, single buffered']
    #allocation3 [shape = 's32[1]{0}', space=sflag, size = 0x4, scoped, tag = 'scoped memory for tpu_custom_call.1']
    #allocation4 [shape = 's32[1]{0}', space=sflag, size = 0x4, scoped, tag = 'scoped memory for tpu_custom_call.1']
    #allocation5 [shape = 'u8[786432]{0}', space=vmem, size = 0xc0000, scoped, tag = 'input window, operand 1, single buffered']
    #allocation6 [shape = 's32[1]{0}', space=sflag, size = 0x4, scoped, tag = 'scoped memory for tpu_custom_call.1']
    #allocation7 [shape = 'u8[6144]{0}', space=vmem, size = 0x1800, scoped, tag = 'input window, operand 2, single buffered']
    #allocation8 [shape = 'u8[49152]{0}', space=vmem, size = 0xc000, scoped, tag = 'output window, operand 0, single buffered']
    %8 = vsyncpa [#allocation3], 0
    %9 = vsyncpa [#allocation6], 0
    %10 = vsyncpa [#allocation4], 0
    // Predicated region
    $region2: #{tpu_custom_call.1} parent=1 // pred_check
      _
    $region3: #{tpu_custom_call.1} parent=1 // pred_check_branch
      %12 = sbr.rel (0) target = $region5
    $region4: #{tpu_custom_call.1} parent=1 // pred_region
      %s14 = ssub.s32 128, 128
      %15 = vsyncadd [#allocation3], %s14
      %s17 = sshll.u32 [#allocation2], 4
      %s18 = int_to_ptr.vmem [resolvable:$true] %s17
      %20 = dma.hbm_to_vmem [thread:$0]  %s0, 128, %s18, [#allocation3]
    $region5: #{tpu_custom_call.1} parent=1 // pred_fallthru
      _
    // Predicated region
    $region6: #{tpu_custom_call.1} parent=1 // pred_check
      _
    $region7: #{tpu_custom_call.1} parent=1 // pred_check_branch
      %22 = sbr.rel (0) target = $region9
    $region8: #{tpu_custom_call.1} parent=1 // pred_region
      %s24 = ssub.s32 24576, 24576
      %25 = vsyncadd [#allocation6], %s24
      %s26 = sshll.u32 [#allocation5], 4
      %s27 = int_to_ptr.vmem [resolvable:$true] %s26
      %32 = dma.hbm_to_vmem [thread:$0]  %s1, 24576, %s27, [#allocation6], 1536, 1536, 96
    $region9: #{tpu_custom_call.1} parent=1 // pred_fallthru
      _
    // Predicated region
    $region10: #{tpu_custom_call.1} parent=1 // pred_check
      _
    $region11: #{tpu_custom_call.1} parent=1 // pred_check_branch
      %34 = sbr.rel (0) target = $region13
    $region12: #{tpu_custom_call.1} parent=1 // pred_region
      %s36 = ssub.s32 192, 192
      %37 = vsyncadd [#allocation6], %s36
      %s39 = sshll.u32 [#allocation7], 4
      %s40 = int_to_ptr.vmem [resolvable:$true] %s39
      %42 = dma.hbm_to_vmem [thread:$0]  %s2, 192, %s40, [#allocation6]
    $region13: #{tpu_custom_call.1} parent=1 // pred_fallthru
      _
    // Predicated region
    $region14: #{tpu_custom_call.1} parent=1 // pred_check
      _
    $region15: #{tpu_custom_call.1} parent=1 // pred_check_branch
      %44 = sbr.rel (0) target = $region17
    $region16: #{tpu_custom_call.1} parent=1 // pred_region
      %45 = dma.done [#allocation3], 128
    $region17: #{tpu_custom_call.1} parent=1 // pred_fallthru
      _
    // Predicated region
    $region18: #{tpu_custom_call.1} parent=1 // pred_check
      _
    $region19: #{tpu_custom_call.1} parent=1 // pred_check_branch
      %47 = sbr.rel (0) target = $region21
    $region20: #{tpu_custom_call.1} parent=1 // pred_region
      %48 = dma.done [#allocation6], 24576
    $region21: #{tpu_custom_call.1} parent=1 // pred_fallthru
      _
    // Predicated region
    $region22: #{tpu_custom_call.1} parent=1 // pred_check
      _
    $region23: #{tpu_custom_call.1} parent=1 // pred_check_branch
      %50 = sbr.rel (0) target = $region25
    $region24: #{tpu_custom_call.1} parent=1 // pred_region
      %51 = dma.done [#allocation6], 192
    $region25: #{tpu_custom_call.1} parent=1 // pred_fallthru
      _
    %v52 = vld [vmem:[#allocation2] sm:$0xff]
    %v53 = vld [vmem:[#allocation5] sm:$0xff]
    %v54 = vld [vmem:[#allocation5 + $0x8] sm:$0xff]
    %v55 = vld [vmem:[#allocation5 + $0x10] sm:$0xff]
    %v56 = vld [vmem:[#allocation5 + $0x18] sm:$0xff]
    %v57 = vld [vmem:[#allocation5 + $0x20] sm:$0xff]
    %v58 = vld [vmem:[#allocation5 + $0x28] sm:$0xff]
    %v59 = vld [vmem:[#allocation5 + $0x30] sm:$0xff]
    %v60 = vld [vmem:[#allocation5 + $0x38] sm:$0xff]
    %v61 = vld [vmem:[#allocation5 + $0x40] sm:$0xff]
    %v62 = vld [vmem:[#allocation5 + $0x48] sm:$0xff]
    %v63 = vld [vmem:[#allocation5 + $0x50] sm:$0xff]
    %v64 = vld [vmem:[#allocation5 + $0x58] sm:$0xff]
    %v65 = vld [vmem:[#allocation5 + $0x60] sm:$0xff]
    %v66 = vld [vmem:[#allocation5 + $0x68] sm:$0xff]
    %v67 = vld [vmem:[#allocation5 + $0x70] sm:$0xff]
    %v68 = vld [vmem:[#allocation5 + $0x78] sm:$0xff]
    %v69 = vld [vmem:[#allocation5 + $0x80] sm:$0xff]
    %v70 = vld [vmem:[#allocation5 + $0x88] sm:$0xff]
    %v71 = vld [vmem:[#allocation5 + $0x90] sm:$0xff]
    %v72 = vld [vmem:[#allocation5 + $0x98] sm:$0xff]
    %v73 = vld [vmem:[#allocation5 + $0xa0] sm:$0xff]
    %v74 = vld [vmem:[#allocation5 + $0xa8] sm:$0xff]
    %v75 = vld [vmem:[#allocation5 + $0xb0] sm:$0xff]
    %v76 = vld [vmem:[#allocation5 + $0xb8] sm:$0xff]
    %v77 = vld [vmem:[#allocation5 + $0xc0] sm:$0xff]
    %v78 = vld [vmem:[#allocation5 + $0xc8] sm:$0xff]
    %v79 = vld [vmem:[#allocation5 + $0xd0] sm:$0xff]
    %v80 = vld [vmem:[#allocation5 + $0xd8] sm:$0xff]
    %v81 = vld [vmem:[#allocation5 + $0xe0] sm:$0xff]
    %v82 = vld [vmem:[#allocation5 + $0xe8] sm:$0xff]
    %v83 = vld [vmem:[#allocation5 + $0xf0] sm:$0xff]
    %v84 = vld [vmem:[#allocation5 + $0xf8] sm:$0xff]
    %v85 = vld [vmem:[#allocation5 + $0x100] sm:$0xff]
    %v86 = vld [vmem:[#allocation5 + $0x108] sm:$0xff]
    %v87 = vld [vmem:[#allocation5 + $0x110] sm:$0xff]
    %v88 = vld [vmem:[#allocation5 + $0x118] sm:$0xff]
    %v89 = vld [vmem:[#allocation5 + $0x120] sm:$0xff]
    %v90 = vld [vmem:[#allocation5 + $0x128] sm:$0xff]
    %v91 = vld [vmem:[#allocation5 + $0x130] sm:$0xff]
    %v92 = vld [vmem:[#allocation5 + $0x138] sm:$0xff]
    %v93 = vld [vmem:[#allocation5 + $0x140] sm:$0xff]
    %v94 = vld [vmem:[#allocation5 + $0x148] sm:$0xff]
    %v95 = vld [vmem:[#allocation5 + $0x150] sm:$0xff]
    %v96 = vld [vmem:[#allocation5 + $0x158] sm:$0xff]
    %v97 = vld [vmem:[#allocation5 + $0x160] sm:$0xff]
    %v98 = vld [vmem:[#allocation5 + $0x168] sm:$0xff]
    %v99 = vld [vmem:[#allocation5 + $0x170] sm:$0xff]
    %v100 = vld [vmem:[#allocation5 + $0x178] sm:$0xff]
    %v101 = vld [vmem:[#allocation5 + $0x180] sm:$0xff]
    %v102 = vld [vmem:[#allocation5 + $0x188] sm:$0xff]
    %v103 = vld [vmem:[#allocation5 + $0x190] sm:$0xff]
    %v104 = vld [vmem:[#allocation5 + $0x198] sm:$0xff]
    %v105 = vld [vmem:[#allocation5 + $0x1a0] sm:$0xff]
    %v106 = vld [vmem:[#allocation5 + $0x1a8] sm:$0xff]
    %v107 = vld [vmem:[#allocation5 + $0x1b0] sm:$0xff]
    %v108 = vld [vmem:[#allocation5 + $0x1b8] sm:$0xff]
    %v109 = vld [vmem:[#allocation5 + $0x1c0] sm:$0xff]
    %v110 = vld [vmem:[#allocation5 + $0x1c8] sm:$0xff]
    %v111 = vld [vmem:[#allocation5 + $0x1d0] sm:$0xff]
    %v112 = vld [vmem:[#allocation5 + $0x1d8] sm:$0xff]
    %v113 = vld [vmem:[#allocation5 + $0x1e0] sm:$0xff]
    %v114 = vld [vmem:[#allocation5 + $0x1e8] sm:$0xff]
    %v115 = vld [vmem:[#allocation5 + $0x1f0] sm:$0xff]
    %v116 = vld [vmem:[#allocation5 + $0x1f8] sm:$0xff]
    %v117 = vld [vmem:[#allocation5 + $0x200] sm:$0xff]
    %v118 = vld [vmem:[#allocation5 + $0x208] sm:$0xff]
    %v119 = vld [vmem:[#allocation5 + $0x210] sm:$0xff]
    %v120 = vld [vmem:[#allocation5 + $0x218] sm:$0xff]
    %v121 = vld [vmem:[#allocation5 + $0x220] sm:$0xff]
    %v122 = vld [vmem:[#allocation5 + $0x228] sm:$0xff]
    %v123 = vld [vmem:[#allocation5 + $0x230] sm:$0xff]
    %v124 = vld [vmem:[#allocation5 + $0x238] sm:$0xff]
    %v125 = vld [vmem:[#allocation5 + $0x240] sm:$0xff]
    %v126 = vld [vmem:[#allocation5 + $0x248] sm:$0xff]
    %v127 = vld [vmem:[#allocation5 + $0x250] sm:$0xff]
    %v128 = vld [vmem:[#allocation5 + $0x258] sm:$0xff]
    %v129 = vld [vmem:[#allocation5 + $0x260] sm:$0xff]
    %v130 = vld [vmem:[#allocation5 + $0x268] sm:$0xff]
    %v131 = vld [vmem:[#allocation5 + $0x270] sm:$0xff]
    %v132 = vld [vmem:[#allocation5 + $0x278] sm:$0xff]
    %v133 = vld [vmem:[#allocation5 + $0x280] sm:$0xff]
    %v134 = vld [vmem:[#allocation5 + $0x288] sm:$0xff]
    %v135 = vld [vmem:[#allocation5 + $0x290] sm:$0xff]
    %v136 = vld [vmem:[#allocation5 + $0x298] sm:$0xff]
    %v137 = vld [vmem:[#allocation5 + $0x2a0] sm:$0xff]
    %v138 = vld [vmem:[#allocation5 + $0x2a8] sm:$0xff]
    %v139 = vld [vmem:[#allocation5 + $0x2b0] sm:$0xff]
    %v140 = vld [vmem:[#allocation5 + $0x2b8] sm:$0xff]
    %v141 = vld [vmem:[#allocation5 + $0x2c0] sm:$0xff]
    %v142 = vld [vmem:[#allocation5 + $0x2c8] sm:$0xff]
    %v143 = vld [vmem:[#allocation5 + $0x2d0] sm:$0xff]
    %v144 = vld [vmem:[#allocation5 + $0x2d8] sm:$0xff]
    %v145 = vld [vmem:[#allocation5 + $0x2e0] sm:$0xff]
    %v146 = vld [vmem:[#allocation5 + $0x2e8] sm:$0xff]
    %v147 = vld [vmem:[#allocation5 + $0x2f0] sm:$0xff]
    %v148 = vld [vmem:[#allocation5 + $0x2f8] sm:$0xff]
    %v149 = vld [vmem:[#allocation5 + $0x300] sm:$0xff]
    %v150 = vld [vmem:[#allocation5 + $0x308] sm:$0xff]
    %v151 = vld [vmem:[#allocation5 + $0x310] sm:$0xff]
    %v152 = vld [vmem:[#allocation5 + $0x318] sm:$0xff]
    %v153 = vld [vmem:[#allocation5 + $0x320] sm:$0xff]
    %v154 = vld [vmem:[#allocation5 + $0x328] sm:$0xff]
    %v155 = vld [vmem:[#allocation5 + $0x330] sm:$0xff]
    %v156 = vld [vmem:[#allocation5 + $0x338] sm:$0xff]
    %v157 = vld [vmem:[#allocation5 + $0x340] sm:$0xff]
    %v158 = vld [vmem:[#allocation5 + $0x348] sm:$0xff]
    %v159 = vld [vmem:[#allocation5 + $0x350] sm:$0xff]
    %v160 = vld [vmem:[#allocation5 + $0x358] sm:$0xff]
    %v161 = vld [vmem:[#allocation5 + $0x360] sm:$0xff]
    %v162 = vld [vmem:[#allocation5 + $0x368] sm:$0xff]
    %v163 = vld [vmem:[#allocation5 + $0x370] sm:$0xff]
    %v164 = vld [vmem:[#allocation5 + $0x378] sm:$0xff]
    %v165 = vld [vmem:[#allocation5 + $0x380] sm:$0xff]
    %v166 = vld [vmem:[#allocation5 + $0x388] sm:$0xff]
    %v167 = vld [vmem:[#allocation5 + $0x390] sm:$0xff]
    %v168 = vld [vmem:[#allocation5 + $0x398] sm:$0xff]
    %v169 = vld [vmem:[#allocation5 + $0x3a0] sm:$0xff]
    %v170 = vld [vmem:[#allocation5 + $0x3a8] sm:$0xff]
    %v171 = vld [vmem:[#allocation5 + $0x3b0] sm:$0xff]
    %v172 = vld [vmem:[#allocation5 + $0x3b8] sm:$0xff]
    %v173 = vld [vmem:[#allocation5 + $0x3c0] sm:$0xff]
    %v174 = vld [vmem:[#allocation5 + $0x3c8] sm:$0xff]
    %v175 = vld [vmem:[#allocation5 + $0x3d0] sm:$0xff]
    %v176 = vld [vmem:[#allocation5 + $0x3d8] sm:$0xff]
    %v177 = vld [vmem:[#allocation5 + $0x3e0] sm:$0xff]
    %v178 = vld [vmem:[#allocation5 + $0x3e8] sm:$0xff]
    %v179 = vld [vmem:[#allocation5 + $0x3f0] sm:$0xff]
    %v180 = vld [vmem:[#allocation5 + $0x3f8] sm:$0xff]
    %v181 = vld [vmem:[#allocation5 + $0x400] sm:$0xff]
    %v182 = vld [vmem:[#allocation5 + $0x408] sm:$0xff]
    %v183 = vld [vmem:[#allocation5 + $0x410] sm:$0xff]
    %v184 = vld [vmem:[#allocation5 + $0x418] sm:$0xff]
    %v185 = vld [vmem:[#allocation5 + $0x420] sm:$0xff]
    %v186 = vld [vmem:[#allocation5 + $0x428] sm:$0xff]
    %v187 = vld [vmem:[#allocation5 + $0x430] sm:$0xff]
    %v188 = vld [vmem:[#allocation5 + $0x438] sm:$0xff]
    %v189 = vld [vmem:[#allocation5 + $0x440] sm:$0xff]
    %v190 = vld [vmem:[#allocation5 + $0x448] sm:$0xff]
    %v191 = vld [vmem:[#allocation5 + $0x450] sm:$0xff]
    %v192 = vld [vmem:[#allocation5 + $0x458] sm:$0xff]
    %v193 = vld [vmem:[#allocation5 + $0x460] sm:$0xff]
    %v194 = vld [vmem:[#allocation5 + $0x468] sm:$0xff]
    %v195 = vld [vmem:[#allocation5 + $0x470] sm:$0xff]
    %v196 = vld [vmem:[#allocation5 + $0x478] sm:$0xff]
    %v197 = vld [vmem:[#allocation5 + $0x480] sm:$0xff]
    %v198 = vld [vmem:[#allocation5 + $0x488] sm:$0xff]
    %v199 = vld [vmem:[#allocation5 + $0x490] sm:$0xff]
    %v200 = vld [vmem:[#allocation5 + $0x498] sm:$0xff]
    %v201 = vld [vmem:[#allocation5 + $0x4a0] sm:$0xff]
    %v202 = vld [vmem:[#allocation5 + $0x4a8] sm:$0xff]
    %v203 = vld [vmem:[#allocation5 + $0x4b0] sm:$0xff]
    %v204 = vld [vmem:[#allocation5 + $0x4b8] sm:$0xff]
    %v205 = vld [vmem:[#allocation5 + $0x4c0] sm:$0xff]
    %v206 = vld [vmem:[#allocation5 + $0x4c8] sm:$0xff]
    %v207 = vld [vmem:[#allocation5 + $0x4d0] sm:$0xff]
    %v208 = vld [vmem:[#allocation5 + $0x4d8] sm:$0xff]
    %v209 = vld [vmem:[#allocation5 + $0x4e0] sm:$0xff]
    %v210 = vld [vmem:[#allocation5 + $0x4e8] sm:$0xff]
    %v211 = vld [vmem:[#allocation5 + $0x4f0] sm:$0xff]
    %v212 = vld [vmem:[#allocation5 + $0x4f8] sm:$0xff]
    %v213 = vld [vmem:[#allocation5 + $0x500] sm:$0xff]
    %v214 = vld [vmem:[#allocation5 + $0x508] sm:$0xff]
    %v215 = vld [vmem:[#allocation5 + $0x510] sm:$0xff]
    %v216 = vld [vmem:[#allocation5 + $0x518] sm:$0xff]
    %v217 = vld [vmem:[#allocation5 + $0x520] sm:$0xff]
    %v218 = vld [vmem:[#allocation5 + $0x528] sm:$0xff]
    %v219 = vld [vmem:[#allocation5 + $0x530] sm:$0xff]
    %v220 = vld [vmem:[#allocation5 + $0x538] sm:$0xff]
    %v221 = vld [vmem:[#allocation5 + $0x540] sm:$0xff]
    %v222 = vld [vmem:[#allocation5 + $0x548] sm:$0xff]
    %v223 = vld [vmem:[#allocation5 + $0x550] sm:$0xff]
    %v224 = vld [vmem:[#allocation5 + $0x558] sm:$0xff]
    %v225 = vld [vmem:[#allocation5 + $0x560] sm:$0xff]
    %v226 = vld [vmem:[#allocation5 + $0x568] sm:$0xff]
    %v227 = vld [vmem:[#allocation5 + $0x570] sm:$0xff]
    %v228 = vld [vmem:[#allocation5 + $0x578] sm:$0xff]
    %v229 = vld [vmem:[#allocation5 + $0x580] sm:$0xff]
    %v230 = vld [vmem:[#allocation5 + $0x588] sm:$0xff]
    %v231 = vld [vmem:[#allocation5 + $0x590] sm:$0xff]
    %v232 = vld [vmem:[#allocation5 + $0x598] sm:$0xff]
    %v233 = vld [vmem:[#allocation5 + $0x5a0] sm:$0xff]
    %v234 = vld [vmem:[#allocation5 + $0x5a8] sm:$0xff]
    %v235 = vld [vmem:[#allocation5 + $0x5b0] sm:$0xff]
    %v236 = vld [vmem:[#allocation5 + $0x5b8] sm:$0xff]
    %v237 = vld [vmem:[#allocation5 + $0x5c0] sm:$0xff]
    %v238 = vld [vmem:[#allocation5 + $0x5c8] sm:$0xff]
    %v239 = vld [vmem:[#allocation5 + $0x5d0] sm:$0xff]
    %v240 = vld [vmem:[#allocation5 + $0x5d8] sm:$0xff]
    %v241 = vld [vmem:[#allocation5 + $0x5e0] sm:$0xff]
    %v242 = vld [vmem:[#allocation5 + $0x5e8] sm:$0xff]
    %v243 = vld [vmem:[#allocation5 + $0x5f0] sm:$0xff]
    %v244 = vld [vmem:[#allocation5 + $0x5f8] sm:$0xff]
    %v245 = vld [vmem:[#allocation7] sm:$0xff]
    %v246 = vld [vmem:[#allocation7 + $0x8] sm:$0xf]
    %v249 = vlaneseq
    %v250 = vshrl.u32 %v249, 7
    %v251 = vsub.s32 0, %v250
    %v252 = vrot.slane %v245, %v251
    %v253 = vlaneseq
    %v254 = vshrl.u32 %v253, 7
    %v255 = vsub.s32 1, %v254
    %v256 = vrot.slane %v245, %v255
    %v257 = vlaneseq
    %v258 = vshrl.u32 %v257, 7
    %v259 = vsub.s32 2, %v258
    %v260 = vrot.slane %v245, %v259
    %v261 = vlaneseq
    %v262 = vshrl.u32 %v261, 7
    %v263 = vsub.s32 3, %v262
    %v264 = vrot.slane %v245, %v263
    %v265 = vlaneseq
    %v266 = vshrl.u32 %v265, 7
    %v267 = vsub.s32 4, %v266
    %v268 = vrot.slane %v245, %v267
    %v269 = vlaneseq
    %v270 = vshrl.u32 %v269, 7
    %v271 = vsub.s32 5, %v270
    %v272 = vrot.slane %v245, %v271
    %v273 = vlaneseq
    %v274 = vshrl.u32 %v273, 7
    %v275 = vsub.s32 6, %v274
    %v276 = vrot.slane %v245, %v275
    %v277 = vlaneseq
    %v278 = vshrl.u32 %v277, 7
    %v279 = vsub.s32 7, %v278
    %v280 = vrot.slane %v245, %v279
    %v281 = vlaneseq
    %v282 = vshrl.u32 %v281, 7
    %v283 = vsub.s32 0, %v282
    %v284 = vrot.slane %v246, %v283
    %v285 = vlaneseq
    %v286 = vshrl.u32 %v285, 7
    %v287 = vsub.s32 1, %v286
    %v288 = vrot.slane %v246, %v287
    %v289 = vlaneseq
    %v290 = vshrl.u32 %v289, 7
    %v291 = vsub.s32 2, %v290
    %v292 = vrot.slane %v246, %v291
    %v293 = vlaneseq
    %v294 = vshrl.u32 %v293, 7
    %v295 = vsub.s32 3, %v294
    %v296 = vrot.slane %v246, %v295
    %v309 = vand.u32 %v54, 4294901760
    %310 = vmatprep.subr.mxu0 %v309
    %v311 = vand.u32 %v53, 4294901760
    %312 = vmatpush1.msra.mxu0 %v311
    %v313 = vand.u32 %v66, 4294901760
    %314 = vmatprep.subr.mxu0 %v313
    %v315 = vand.u32 %v65, 4294901760
    %316 = vmatpush1.msra.mxu0 %v315
    %v317 = vand.u32 %v78, 4294901760
    %318 = vmatprep.subr.mxu0 %v317
    %v319 = vand.u32 %v77, 4294901760
    %320 = vmatpush1.msra.mxu0 %v319
    %v321 = vand.u32 %v90, 4294901760
    %322 = vmatprep.subr.mxu0 %v321
    %v323 = vand.u32 %v89, 4294901760
    %324 = vmatpush1.msra.mxu0 %v323
    %v325 = vand.u32 %v102, 4294901760
    %326 = vmatprep.subr.mxu0 %v325
    %v327 = vand.u32 %v101, 4294901760
    %328 = vmatpush1.msra.mxu0 %v327
    %v329 = vand.u32 %v114, 4294901760
    %330 = vmatprep.subr.mxu0 %v329
    %v331 = vand.u32 %v113, 4294901760
    %332 = vmatpush1.msra.mxu0 %v331
    %v333 = vand.u32 %v126, 4294901760
    %334 = vmatprep.subr.mxu0 %v333
    %v335 = vand.u32 %v125, 4294901760
    %336 = vmatpush1.msra.mxu0 %v335
    %v337 = vand.u32 %v138, 4294901760
    %338 = vmatprep.subr.mxu0 %v337
    %v339 = vand.u32 %v137, 4294901760
    %340 = vmatpush1.msra.mxu0 %v339
    %v341 = vand.u32 %v150, 4294901760
    %342 = vmatprep.subr.mxu0 %v341
    %v343 = vand.u32 %v149, 4294901760
    %344 = vmatpush1.msra.mxu0 %v343
    %v345 = vand.u32 %v162, 4294901760
    %346 = vmatprep.subr.mxu0 %v345
    %v347 = vand.u32 %v161, 4294901760
    %348 = vmatpush1.msra.mxu0 %v347
    %v349 = vand.u32 %v174, 4294901760
    %350 = vmatprep.subr.mxu0 %v349
    %v351 = vand.u32 %v173, 4294901760
    %352 = vmatpush1.msra.mxu0 %v351
    %v353 = vand.u32 %v186, 4294901760
    %354 = vmatprep.subr.mxu0 %v353
    %v355 = vand.u32 %v185, 4294901760
    %356 = vmatpush1.msra.mxu0 %v355
    %v357 = vand.u32 %v198, 4294901760
    %358 = vmatprep.subr.mxu0 %v357
    %v359 = vand.u32 %v197, 4294901760
    %360 = vmatpush1.msra.mxu0 %v359
    %v361 = vand.u32 %v210, 4294901760
    %362 = vmatprep.subr.mxu0 %v361
    %v363 = vand.u32 %v209, 4294901760
    %364 = vmatpush1.msra.mxu0 %v363
    %v365 = vand.u32 %v222, 4294901760
    %366 = vmatprep.subr.mxu0 %v365
    %v367 = vand.u32 %v221, 4294901760
    %368 = vmatpush1.msra.mxu0 %v367
    %v369 = vand.u32 %v234, 4294901760
    %370 = vmatprep.subr.mxu0 %v369
    %v371 = vand.u32 %v233, 4294901760
    %372 = vmatpush1.msra.mxu0 %v371
    %373 = vmatprep.subr.mxu0 0.0
    %374 = vmatpush1.msra.mxu0 0.0
    %375 = vmatprep.subr.mxu0 0.0
    %376 = vmatpush1.msra.mxu0 0.0
    %377 = vmatprep.subr.mxu0 0.0
    %378 = vmatpush1.msra.mxu0 0.0
    %379 = vmatprep.subr.mxu0 0.0
    %380 = vmatpush1.msra.mxu0 0.0
    %381 = vmatprep.subr.mxu0 0.0
    %382 = vmatpush1.msra.mxu0 0.0
    %383 = vmatprep.subr.mxu0 0.0
    %384 = vmatpush1.msra.mxu0 0.0
    %385 = vmatprep.subr.mxu0 0.0
    %386 = vmatpush1.msra.mxu0 0.0
    %387 = vmatprep.subr.mxu0 0.0
    %388 = vmatpush1.msra.mxu0 0.0
    %389 = vmatprep.subr.mxu0 0.0
    %390 = vmatpush1.msra.mxu0 0.0
    %391 = vmatprep.subr.mxu0 0.0
    %392 = vmatpush1.msra.mxu0 0.0
    %393 = vmatprep.subr.mxu0 0.0
    %394 = vmatpush1.msra.mxu0 0.0
    %395 = vmatprep.subr.mxu0 0.0
    %396 = vmatpush1.msra.mxu0 0.0
    %397 = vmatprep.subr.mxu0 0.0
    %398 = vmatpush1.msra.mxu0 0.0
    %399 = vmatprep.subr.mxu0 0.0
    %400 = vmatpush1.msra.mxu0 0.0
    %401 = vmatprep.subr.mxu0 0.0
    %402 = vmatpush1.msra.mxu0 0.0
    %403 = vmatprep.subr.mxu0 0.0
    %404 = vmatpush1.msra.mxu0 0.0
    %405 = vmatprep.mubr.f32.mxu0 0.0
    %v406 = vand.u32 %v52, 4294901760
    %v407 = vsub.f32 %v52, %v406
    %v408 = vand.u32 %v407, 4294901760
    %v409 = vsub.f32 %v407, %v408
    %v410 = vand.u32 %v409, 4294901760
    %411 = vmatmul.mubr.f32.gmra.mrb[0].mxu0 %v410
    %v412 = vpop.f32.mrb[0].mxu0
    %v413 = vadd.f32 %v252, %v412
    %v414 = vpop.f32.mrb[0].mxu0
    %v415 = vadd.f32 %v256, %v414
    %416 = vdwg.mxu0
    %v417 = vand.u32 %v54, 4294901760
    %v418 = vsub.f32 %v54, %v417
    %v419 = vand.u32 %v418, 4294901760
    %v420 = vsub.f32 %v418, %v419
    %v421 = vand.u32 %v420, 4294901760
    %422 = vmatprep.subr.mxu0 %v421
    %v423 = vand.u32 %v53, 4294901760
    %v424 = vsub.f32 %v53, %v423
    %v425 = vand.u32 %v424, 4294901760
    %v426 = vsub.f32 %v424, %v425
    %v427 = vand.u32 %v426, 4294901760
    %428 = vmatpush1.msra.mxu0 %v427
    %v429 = vand.u32 %v66, 4294901760
    %v430 = vsub.f32 %v66, %v429
    %v431 = vand.u32 %v430, 4294901760
    %v432 = vsub.f32 %v430, %v431
    %v433 = vand.u32 %v432, 4294901760
    %434 = vmatprep.subr.mxu0 %v433
    %v435 = vand.u32 %v65, 4294901760
    %v436 = vsub.f32 %v65, %v435
    %v437 = vand.u32 %v436, 4294901760
    %v438 = vsub.f32 %v436, %v437
    %v439 = vand.u32 %v438, 4294901760
    %440 = vmatpush1.msra.mxu0 %v439
    %v441 = vand.u32 %v78, 4294901760
    %v442 = vsub.f32 %v78, %v441
    %v443 = vand.u32 %v442, 4294901760
    %v444 = vsub.f32 %v442, %v443
    %v445 = vand.u32 %v444, 4294901760
    %446 = vmatprep.subr.mxu0 %v445
    %v447 = vand.u32 %v77, 4294901760
    %v448 = vsub.f32 %v77, %v447
    %v449 = vand.u32 %v448, 4294901760
    %v450 = vsub.f32 %v448, %v449
    %v451 = vand.u32 %v450, 4294901760
    %452 = vmatpush1.msra.mxu0 %v451
    %v453 = vand.u32 %v90, 4294901760
    %v454 = vsub.f32 %v90, %v453
    %v455 = vand.u32 %v454, 4294901760
    %v456 = vsub.f32 %v454, %v455
    %v457 = vand.u32 %v456, 4294901760
    %458 = vmatprep.subr.mxu0 %v457
    %v459 = vand.u32 %v89, 4294901760
    %v460 = vsub.f32 %v89, %v459
    %v461 = vand.u32 %v460, 4294901760
    %v462 = vsub.f32 %v460, %v461
    %v463 = vand.u32 %v462, 4294901760
    %464 = vmatpush1.msra.mxu0 %v463
    %v465 = vand.u32 %v102, 4294901760
    %v466 = vsub.f32 %v102, %v465
    %v467 = vand.u32 %v466, 4294901760
    %v468 = vsub.f32 %v466, %v467
    %v469 = vand.u32 %v468, 4294901760
    %470 = vmatprep.subr.mxu0 %v469
    %v471 = vand.u32 %v101, 4294901760
    %v472 = vsub.f32 %v101, %v471
    %v473 = vand.u32 %v472, 4294901760
    %v474 = vsub.f32 %v472, %v473
    %v475 = vand.u32 %v474, 4294901760
    %476 = vmatpush1.msra.mxu0 %v475
    %v477 = vand.u32 %v114, 4294901760
    %v478 = vsub.f32 %v114, %v477
    %v479 = vand.u32 %v478, 4294901760
    %v480 = vsub.f32 %v478, %v479
    %v481 = vand.u32 %v480, 4294901760
    %482 = vmatprep.subr.mxu0 %v481
    %v483 = vand.u32 %v113, 4294901760
    %v484 = vsub.f32 %v113, %v483
    %v485 = vand.u32 %v484, 4294901760
    %v486 = vsub.f32 %v484, %v485
    %v487 = vand.u32 %v486, 4294901760
    %488 = vmatpush1.msra.mxu0 %v487
    %v489 = vand.u32 %v126, 4294901760
    %v490 = vsub.f32 %v126, %v489
    %v491 = vand.u32 %v490, 4294901760
    %v492 = vsub.f32 %v490, %v491
    %v493 = vand.u32 %v492, 4294901760
    %494 = vmatprep.subr.mxu0 %v493
    %v495 = vand.u32 %v125, 4294901760
    %v496 = vsub.f32 %v125, %v495
    %v497 = vand.u32 %v496, 4294901760
    %v498 = vsub.f32 %v496, %v497
    %v499 = vand.u32 %v498, 4294901760
    %500 = vmatpush1.msra.mxu0 %v499
    %v501 = vand.u32 %v138, 4294901760
    %v502 = vsub.f32 %v138, %v501
    %v503 = vand.u32 %v502, 4294901760
    %v504 = vsub.f32 %v502, %v503
    %v505 = vand.u32 %v504, 4294901760
    %506 = vmatprep.subr.mxu0 %v505
    %v507 = vand.u32 %v137, 4294901760
    %v508 = vsub.f32 %v137, %v507
    %v509 = vand.u32 %v508, 4294901760
    %v510 = vsub.f32 %v508, %v509
    %v511 = vand.u32 %v510, 4294901760
    %512 = vmatpush1.msra.mxu0 %v511
    %v513 = vand.u32 %v150, 4294901760
    %v514 = vsub.f32 %v150, %v513
    %v515 = vand.u32 %v514, 4294901760
    %v516 = vsub.f32 %v514, %v515
    %v517 = vand.u32 %v516, 4294901760
    %518 = vmatprep.subr.mxu0 %v517
    %v519 = vand.u32 %v149, 4294901760
    %v520 = vsub.f32 %v149, %v519
    %v521 = vand.u32 %v520, 4294901760
    %v522 = vsub.f32 %v520, %v521
    %v523 = vand.u32 %v522, 4294901760
    %524 = vmatpush1.msra.mxu0 %v523
    %v525 = vand.u32 %v162, 4294901760
    %v526 = vsub.f32 %v162, %v525
    %v527 = vand.u32 %v526, 4294901760
    %v528 = vsub.f32 %v526, %v527
    %v529 = vand.u32 %v528, 4294901760
    %530 = vmatprep.subr.mxu0 %v529
    %v531 = vand.u32 %v161, 4294901760
    %v532 = vsub.f32 %v161, %v531
    %v533 = vand.u32 %v532, 4294901760
    %v534 = vsub.f32 %v532, %v533
    %v535 = vand.u32 %v534, 4294901760
    %536 = vmatpush1.msra.mxu0 %v535
    %v537 = vand.u32 %v174, 4294901760
    %v538 = vsub.f32 %v174, %v537
    %v539 = vand.u32 %v538, 4294901760
    %v540 = vsub.f32 %v538, %v539
    %v541 = vand.u32 %v540, 4294901760
    %542 = vmatprep.subr.mxu0 %v541
    %v543 = vand.u32 %v173, 4294901760
    %v544 = vsub.f32 %v173, %v543
    %v545 = vand.u32 %v544, 4294901760
    %v546 = vsub.f32 %v544, %v545
    %v547 = vand.u32 %v546, 4294901760
    %548 = vmatpush1.msra.mxu0 %v547
    %v549 = vand.u32 %v186, 4294901760
    %v550 = vsub.f32 %v186, %v549
    %v551 = vand.u32 %v550, 4294901760
    %v552 = vsub.f32 %v550, %v551
    %v553 = vand.u32 %v552, 4294901760
    %554 = vmatprep.subr.mxu0 %v553
    %v555 = vand.u32 %v185, 4294901760
    %v556 = vsub.f32 %v185, %v555
    %v557 = vand.u32 %v556, 4294901760
    %v558 = vsub.f32 %v556, %v557
    %v559 = vand.u32 %v558, 4294901760
    %560 = vmatpush1.msra.mxu0 %v559
    %v561 = vand.u32 %v198, 4294901760
    %v562 = vsub.f32 %v198, %v561
    %v563 = vand.u32 %v562, 4294901760
    %v564 = vsub.f32 %v562, %v563
    %v565 = vand.u32 %v564, 4294901760
    %566 = vmatprep.subr.mxu0 %v565
    %v567 = vand.u32 %v197, 4294901760
    %v568 = vsub.f32 %v197, %v567
    %v569 = vand.u32 %v568, 4294901760
    %v570 = vsub.f32 %v568, %v569
    %v571 = vand.u32 %v570, 4294901760
    %572 = vmatpush1.msra.mxu0 %v571
    %v573 = vand.u32 %v210, 4294901760
    %v574 = vsub.f32 %v210, %v573
    %v575 = vand.u32 %v574, 4294901760
    %v576 = vsub.f32 %v574, %v575
    %v577 = vand.u32 %v576, 4294901760
    %578 = vmatprep.subr.mxu0 %v577
    %v579 = vand.u32 %v209, 4294901760
    %v580 = vsub.f32 %v209, %v579
    %v581 = vand.u32 %v580, 4294901760
    %v582 = vsub.f32 %v580, %v581
    %v583 = vand.u32 %v582, 4294901760
    %584 = vmatpush1.msra.mxu0 %v583
    %v585 = vand.u32 %v222, 4294901760
    %v586 = vsub.f32 %v222, %v585
    %v587 = vand.u32 %v586, 4294901760
    %v588 = vsub.f32 %v586, %v587
    %v589 = vand.u32 %v588, 4294901760
    %590 = vmatprep.subr.mxu0 %v589
    %v591 = vand.u32 %v221, 4294901760
    %v592 = vsub.f32 %v221, %v591
    %v593 = vand.u32 %v592, 4294901760
    %v594 = vsub.f32 %v592, %v593
    %v595 = vand.u32 %v594, 4294901760
    %596 = vmatpush1.msra.mxu0 %v595
    %v597 = vand.u32 %v234, 4294901760
    %v598 = vsub.f32 %v234, %v597
    %v599 = vand.u32 %v598, 4294901760
    %v600 = vsub.f32 %v598, %v599
    %v601 = vand.u32 %v600, 4294901760
    %602 = vmatprep.subr.mxu0 %v601
    %v603 = vand.u32 %v233, 4294901760
    %v604 = vsub.f32 %v233, %v603
    %v605 = vand.u32 %v604, 4294901760
    %v606 = vsub.f32 %v604, %v605
    %v607 = vand.u32 %v606, 4294901760
    %608 = vmatpush1.msra.mxu0 %v607
    %609 = vmatprep.subr.mxu0 0.0
    %610 = vmatpush1.msra.mxu0 0.0
    %611 = vmatprep.subr.mxu0 0.0
    %612 = vmatpush1.msra.mxu0 0.0
    %613 = vmatprep.subr.mxu0 0.0
    %614 = vmatpush1.msra.mxu0 0.0
    %615 = vmatprep.subr.mxu0 0.0
    %616 = vmatpush1.msra.mxu0 0.0
    %617 = vmatprep.subr.mxu0 0.0
    %618 = vmatpush1.msra.mxu0 0.0
    %619 = vmatprep.subr.mxu0 0.0
    %620 = vmatpush1.msra.mxu0 0.0
    %621 = vmatprep.subr.mxu0 0.0
    %622 = vmatpush1.msra.mxu0 0.0
    %623 = vmatprep.subr.mxu0 0.0
    %624 = vmatpush1.msra.mxu0 0.0
    %625 = vmatprep.subr.mxu0 0.0
    %626 = vmatpush1.msra.mxu0 0.0
    %627 = vmatprep.subr.mxu0 0.0
    %628 = vmatpush1.msra.mxu0 0.0
    %629 = vmatprep.subr.mxu0 0.0
    %630 = vmatpush1.msra.mxu0 0.0
    %631 = vmatprep.subr.mxu0 0.0
    %632 = vmatpush1.msra.mxu0 0.0
    %633 = vmatprep.subr.mxu0 0.0
    %634 = vmatpush1.msra.mxu0 0.0
    %635 = vmatprep.subr.mxu0 0.0
    %636 = vmatpush1.msra.mxu0 0.0
    %637 = vmatprep.subr.mxu0 0.0
    %638 = vmatpush1.msra.mxu0 0.0
    %639 = vmatprep.subr.mxu0 0.0
    %640 = vmatpush1.msra.mxu0 0.0
    %641 = vmatprep.mubr.f32.mxu0 0.0
    %v642 = vand.u32 %v52, 4294901760
    %643 = vmatmul.mubr.f32.gmra.mrb[0].mxu0 %v642
    %v644 = vpop.f32.mrb[0].mxu0
    %v645 = vadd.f32 %v413, %v644
    %v646 = vpop.f32.mrb[0].mxu0
    %v647 = vadd.f32 %v415, %v646
    %648 = vdwg.mxu0
    %v649 = vand.u32 %v54, 4294901760
    %v650 = vsub.f32 %v54, %v649
    %651 = vmatprep.subr.mxu0 %v650
    %v652 = vand.u32 %v53, 4294901760
    %v653 = vsub.f32 %v53, %v652
    %654 = vmatpush1.msra.mxu0 %v653
    %v655 = vand.u32 %v66, 4294901760
    %v656 = vsub.f32 %v66, %v655
    %657 = vmatprep.subr.mxu0 %v656
    %v658 = vand.u32 %v65, 4294901760
    %v659 = vsub.f32 %v65, %v658
    %660 = vmatpush1.msra.mxu0 %v659
    %v661 = vand.u32 %v78, 4294901760
    %v662 = vsub.f32 %v78, %v661
    %663 = vmatprep.subr.mxu0 %v662
    %v664 = vand.u32 %v77, 4294901760
    %v665 = vsub.f32 %v77, %v664
    %666 = vmatpush1.msra.mxu0 %v665
    %v667 = vand.u32 %v90, 4294901760
    %v668 = vsub.f32 %v90, %v667
    %669 = vmatprep.subr.mxu0 %v668
    %v670 = vand.u32 %v89, 4294901760
    %v671 = vsub.f32 %v89, %v670
    %672 = vmatpush1.msra.mxu0 %v671
    %v673 = vand.u32 %v102, 4294901760
    %v674 = vsub.f32 %v102, %v673
    %675 = vmatprep.subr.mxu0 %v674
    %v676 = vand.u32 %v101, 4294901760
    %v677 = vsub.f32 %v101, %v676
    %678 = vmatpush1.msra.mxu0 %v677
    %v679 = vand.u32 %v114, 4294901760
    %v680 = vsub.f32 %v114, %v679
    %681 = vmatprep.subr.mxu0 %v680
    %v682 = vand.u32 %v113, 4294901760
    %v683 = vsub.f32 %v113, %v682
    %684 = vmatpush1.msra.mxu0 %v683
    %v685 = vand.u32 %v126, 4294901760
    %v686 = vsub.f32 %v126, %v685
    %687 = vmatprep.subr.mxu0 %v686
    %v688 = vand.u32 %v125, 4294901760
    %v689 = vsub.f32 %v125, %v688
    %690 = vmatpush1.msra.mxu0 %v689
    %v691 = vand.u32 %v138, 4294901760
    %v692 = vsub.f32 %v138, %v691
    %693 = vmatprep.subr.mxu0 %v692
    %v694 = vand.u32 %v137, 4294901760
    %v695 = vsub.f32 %v137, %v694
    %696 = vmatpush1.msra.mxu0 %v695
    %v697 = vand.u32 %v150, 4294901760
    %v698 = vsub.f32 %v150, %v697
    %699 = vmatprep.subr.mxu0 %v698
    %v700 = vand.u32 %v149, 4294901760
    %v701 = vsub.f32 %v149, %v700
    %702 = vmatpush1.msra.mxu0 %v701
    %v703 = vand.u32 %v162, 4294901760
    %v704 = vsub.f32 %v162, %v703
    %705 = vmatprep.subr.mxu0 %v704
    %v706 = vand.u32 %v161, 4294901760
    %v707 = vsub.f32 %v161, %v706
    %708 = vmatpush1.msra.mxu0 %v707
    %v709 = vand.u32 %v174, 4294901760
    %v710 = vsub.f32 %v174, %v709
    %711 = vmatprep.subr.mxu0 %v710
    %v712 = vand.u32 %v173, 4294901760
    %v713 = vsub.f32 %v173, %v712
    %714 = vmatpush1.msra.mxu0 %v713
    %v715 = vand.u32 %v186, 4294901760
    %v716 = vsub.f32 %v186, %v715
    %717 = vmatprep.subr.mxu0 %v716
    %v718 = vand.u32 %v185, 4294901760
    %v719 = vsub.f32 %v185, %v718
    %720 = vmatpush1.msra.mxu0 %v719
    %v721 = vand.u32 %v198, 4294901760
    %v722 = vsub.f32 %v198, %v721
    %723 = vmatprep.subr.mxu0 %v722
    %v724 = vand.u32 %v197, 4294901760
    %v725 = vsub.f32 %v197, %v724
    %726 = vmatpush1.msra.mxu0 %v725
    %v727 = vand.u32 %v210, 4294901760
    %v728 = vsub.f32 %v210, %v727
    %729 = vmatprep.subr.mxu0 %v728
    %v730 = vand.u32 %v209, 4294901760
    %v731 = vsub.f32 %v209, %v730
    %732 = vmatpush1.msra.mxu0 %v731
    %v733 = vand.u32 %v222, 4294901760
    %v734 = vsub.f32 %v222, %v733
    %735 = vmatprep.subr.mxu0 %v734
    %v736 = vand.u32 %v221, 4294901760
    %v737 = vsub.f32 %v221, %v736
    %738 = vmatpush1.msra.mxu0 %v737
    %v739 = vand.u32 %v234, 4294901760
    %v740 = vsub.f32 %v234, %v739
    %741 = vmatprep.subr.mxu0 %v740
    %v742 = vand.u32 %v233, 4294901760
    %v743 = vsub.f32 %v233, %v742
    %744 = vmatpush1.msra.mxu0 %v743
    %745 = vmatprep.subr.mxu0 0.0
    %746 = vmatpush1.msra.mxu0 0.0
    %747 = vmatprep.subr.mxu0 0.0
    %748 = vmatpush1.msra.mxu0 0.0
    %749 = vmatprep.subr.mxu0 0.0
    %750 = vmatpush1.msra.mxu0 0.0
    %751 = vmatprep.subr.mxu0 0.0
    %752 = vmatpush1.msra.mxu0 0.0
    %753 = vmatprep.subr.mxu0 0.0
    %754 = vmatpush1.msra.mxu0 0.0
    %755 = vmatprep.subr.mxu0 0.0
    %756 = vmatpush1.msra.mxu0 0.0
    %757 = vmatprep.subr.mxu0 0.0
    %758 = vmatpush1.msra.mxu0 0.0
    %759 = vmatprep.subr.mxu0 0.0
    %760 = vmatpush1.msra.mxu0 0.0
    %761 = vmatprep.subr.mxu0 0.0
    %762 = vmatpush1.msra.mxu0 0.0
    %763 = vmatprep.subr.mxu0 0.0
    %764 = vmatpush1.msra.mxu0 0.0
    %765 = vmatprep.subr.mxu0 0.0
    %766 = vmatpush1.msra.mxu0 0.0
    %767 = vmatprep.subr.mxu0 0.0
    %768 = vmatpush1.msra.mxu0 0.0
    %769 = vmatprep.subr.mxu0 0.0
    %770 = vmatpush1.msra.mxu0 0.0
    %771 = vmatprep.subr.mxu0 0.0
    %772 = vmatpush1.msra.mxu0 0.0
    %773 = vmatprep.subr.mxu0 0.0
    %774 = vmatpush1.msra.mxu0 0.0
    %775 = vmatprep.subr.mxu0 0.0
    %776 = vmatpush1.msra.mxu0 0.0
    %777 = vmatprep.mubr.f32.mxu0 0.0
    %v778 = vand.u32 %v52, 4294901760
    %v779 = vsub.f32 %v52, %v778
    %780 = vmatmul.mubr.f32.gmra.mrb[0].mxu0 %v779
    %v781 = vpop.f32.mrb[0].mxu0
    %v782 = vadd.f32 %v645, %v781
    %v783 = vpop.f32.mrb[0].mxu0
    %v784 = vadd.f32 %v647, %v783
    %785 = vdwg.mxu0
    %v786 = vand.u32 %v54, 4294901760
    %787 = vmatprep.subr.mxu0 %v786
    %v788 = vand.u32 %v53, 4294901760
    %789 = vmatpush1.msra.mxu0 %v788
    %v790 = vand.u32 %v66, 4294901760
    %791 = vmatprep.subr.mxu0 %v790
    %v792 = vand.u32 %v65, 4294901760
    %793 = vmatpush1.msra.mxu0 %v792
    %v794 = vand.u32 %v78, 4294901760
    %795 = vmatprep.subr.mxu0 %v794
    %v796 = vand.u32 %v77, 4294901760
    %797 = vmatpush1.msra.mxu0 %v796
    %v798 = vand.u32 %v90, 4294901760
    %799 = vmatprep.subr.mxu0 %v798
    %v800 = vand.u32 %v89, 4294901760
    %801 = vmatpush1.msra.mxu0 %v800
    %v802 = vand.u32 %v102, 4294901760
    %803 = vmatprep.subr.mxu0 %v802
    %v804 = vand.u32 %v101, 4294901760
    %805 = vmatpush1.msra.mxu0 %v804
    %v806 = vand.u32 %v114, 4294901760
    %807 = vmatprep.subr.mxu0 %v806
    %v808 = vand.u32 %v113, 4294901760
    %809 = vmatpush1.msra.mxu0 %v808
    %v810 = vand.u32 %v126, 4294901760
    %811 = vmatprep.subr.mxu0 %v810
    %v812 = vand.u32 %v125, 4294901760
    %813 = vmatpush1.msra.mxu0 %v812
    %v814 = vand.u32 %v138, 4294901760
    %815 = vmatprep.subr.mxu0 %v814
    %v816 = vand.u32 %v137, 4294901760
    %817 = vmatpush1.msra.mxu0 %v816
    %v818 = vand.u32 %v150, 4294901760
    %819 = vmatprep.subr.mxu0 %v818
    %v820 = vand.u32 %v149, 4294901760
    %821 = vmatpush1.msra.mxu0 %v820
    %v822 = vand.u32 %v162, 4294901760
    %823 = vmatprep.subr.mxu0 %v822
    %v824 = vand.u32 %v161, 4294901760
    %825 = vmatpush1.msra.mxu0 %v824
    %v826 = vand.u32 %v174, 4294901760
    %827 = vmatprep.subr.mxu0 %v826
    %v828 = vand.u32 %v173, 4294901760
    %829 = vmatpush1.msra.mxu0 %v828
    %v830 = vand.u32 %v186, 4294901760
    %831 = vmatprep.subr.mxu0 %v830
    %v832 = vand.u32 %v185, 4294901760
    %833 = vmatpush1.msra.mxu0 %v832
    %v834 = vand.u32 %v198, 4294901760
    %835 = vmatprep.subr.mxu0 %v834
    %v836 = vand.u32 %v197, 4294901760
    %837 = vmatpush1.msra.mxu0 %v836
    %v838 = vand.u32 %v210, 4294901760
    %839 = vmatprep.subr.mxu0 %v838
    %v840 = vand.u32 %v209, 4294901760
    %841 = vmatpush1.msra.mxu0 %v840
    %v842 = vand.u32 %v222, 4294901760
    %843 = vmatprep.subr.mxu0 %v842
    %v844 = vand.u32 %v221, 4294901760
    %845 = vmatpush1.msra.mxu0 %v844
    %v846 = vand.u32 %v234, 4294901760
    %847 = vmatprep.subr.mxu0 %v846
    %v848 = vand.u32 %v233, 4294901760
    %849 = vmatpush1.msra.mxu0 %v848
    %850 = vmatprep.subr.mxu0 0.0
    %851 = vmatpush1.msra.mxu0 0.0
    %852 = vmatprep.subr.mxu0 0.0
    %853 = vmatpush1.msra.mxu0 0.0
    %854 = vmatprep.subr.mxu0 0.0
    %855 = vmatpush1.msra.mxu0 0.0
    %856 = vmatprep.subr.mxu0 0.0
    %857 = vmatpush1.msra.mxu0 0.0
    %858 = vmatprep.subr.mxu0 0.0
    %859 = vmatpush1.msra.mxu0 0.0
    %860 = vmatprep.subr.mxu0 0.0
    %861 = vmatpush1.msra.mxu0 0.0
    %862 = vmatprep.subr.mxu0 0.0
    %863 = vmatpush1.msra.mxu0 0.0
    %864 = vmatprep.subr.mxu0 0.0
    %865 = vmatpush1.msra.mxu0 0.0
    %866 = vmatprep.subr.mxu0 0.0
    %867 = vmatpush1.msra.mxu0 0.0
    %868 = vmatprep.subr.mxu0 0.0
    %869 = vmatpush1.msra.mxu0 0.0
    %870 = vmatprep.subr.mxu0 0.0
    %871 = vmatpush1.msra.mxu0 0.0
    %872 = vmatprep.subr.mxu0 0.0
    %873 = vmatpush1.msra.mxu0 0.0
    %874 = vmatprep.subr.mxu0 0.0
    %875 = vmatpush1.msra.mxu0 0.0
    %876 = vmatprep.subr.mxu0 0.0
    %877 = vmatpush1.msra.mxu0 0.0
    %878 = vmatprep.subr.mxu0 0.0
    %879 = vmatpush1.msra.mxu0 0.0
    %880 = vmatprep.subr.mxu0 0.0
    %881 = vmatpush1.msra.mxu0 0.0
    %882 = vmatprep.mubr.f32.mxu0 0.0
    %v883 = vand.u32 %v52, 4294901760
    %v884 = vsub.f32 %v52, %v883
    %v885 = vand.u32 %v884, 4294901760
    %886 = vmatmul.mubr.f32.gmra.mrb[0].mxu0 %v885
    %v887 = vpop.f32.mrb[0].mxu0
    %v888 = vadd.f32 %v782, %v887
    %v889 = vpop.f32.mrb[0].mxu0
    %v890 = vadd.f32 %v784, %v889
    %891 = vdwg.mxu0
    %v892 = vand.u32 %v54, 4294901760
    %v893 = vsub.f32 %v54, %v892
    %v894 = vand.u32 %v893, 4294901760
    %895 = vmatprep.subr.mxu0 %v894
    %v896 = vand.u32 %v53, 4294901760
    %v897 = vsub.f32 %v53, %v896
    %v898 = vand.u32 %v897, 4294901760
    %899 = vmatpush1.msra.mxu0 %v898
    %v900 = vand.u32 %v66, 4294901760
    %v901 = vsub.f32 %v66, %v900
    %v902 = vand.u32 %v901, 4294901760
    %903 = vmatprep.subr.mxu0 %v902
    %v904 = vand.u32 %v65, 4294901760
    %v905 = vsub.f32 %v65, %v904
    %v906 = vand.u32 %v905, 4294901760
    %907 = vmatpush1.msra.mxu0 %v906
    %v908 = vand.u32 %v78, 4294901760
    %v909 = vsub.f32 %v78, %v908
    %v910 = vand.u32 %v909, 4294901760
    %911 = vmatprep.subr.mxu0 %v910
    %v912 = vand.u32 %v77, 4294901760
    %v913 = vsub.f32 %v77, %v912
    %v914 = vand.u32 %v913, 4294901760
    %915 = vmatpush1.msra.mxu0 %v914
    %v916 = vand.u32 %v90, 4294901760
    %v917 = vsub.f32 %v90, %v916
    %v918 = vand.u32 %v917, 4294901760
    %919 = vmatprep.subr.mxu0 %v918
    %v920 = vand.u32 %v89, 4294901760
    %v921 = vsub.f32 %v89, %v920
    %v922 = vand.u32 %v921, 4294901760
    %923 = vmatpush1.msra.mxu0 %v922
    %v924 = vand.u32 %v102, 4294901760
    %v925 = vsub.f32 %v102, %v924
    %v926 = vand.u32 %v925, 4294901760
    %927 = vmatprep.subr.mxu0 %v926
    %v928 = vand.u32 %v101, 4294901760
    %v929 = vsub.f32 %v101, %v928
    %v930 = vand.u32 %v929, 4294901760
    %931 = vmatpush1.msra.mxu0 %v930
    %v932 = vand.u32 %v114, 4294901760
    %v933 = vsub.f32 %v114, %v932
    %v934 = vand.u32 %v933, 4294901760
    %935 = vmatprep.subr.mxu0 %v934
    %v936 = vand.u32 %v113, 4294901760
    %v937 = vsub.f32 %v113, %v936
    %v938 = vand.u32 %v937, 4294901760
    %939 = vmatpush1.msra.mxu0 %v938
    %v940 = vand.u32 %v126, 4294901760
    %v941 = vsub.f32 %v126, %v940
    %v942 = vand.u32 %v941, 4294901760
    %943 = vmatprep.subr.mxu0 %v942
    %v944 = vand.u32 %v125, 4294901760
    %v945 = vsub.f32 %v125, %v944
    %v946 = vand.u32 %v945, 4294901760
    %947 = vmatpush1.msra.mxu0 %v946
    %v948 = vand.u32 %v138, 4294901760
    %v949 = vsub.f32 %v138, %v948
    %v950 = vand.u32 %v949, 4294901760
    %951 = vmatprep.subr.mxu0 %v950
    %v952 = vand.u32 %v137, 4294901760
    %v953 = vsub.f32 %v137, %v952
    %v954 = vand.u32 %v953, 4294901760
    %955 = vmatpush1.msra.mxu0 %v954
    %v956 = vand.u32 %v150, 4294901760
    %v957 = vsub.f32 %v150, %v956
    %v958 = vand.u32 %v957, 4294901760
    %959 = vmatprep.subr.mxu0 %v958
    %v960 = vand.u32 %v149, 4294901760
    %v961 = vsub.f32 %v149, %v960
    %v962 = vand.u32 %v961, 4294901760
    %963 = vmatpush1.msra.mxu0 %v962
    %v964 = vand.u32 %v162, 4294901760
    %v965 = vsub.f32 %v162, %v964
    %v966 = vand.u32 %v965, 4294901760
    %967 = vmatprep.subr.mxu0 %v966
    %v968 = vand.u32 %v161, 4294901760
    %v969 = vsub.f32 %v161, %v968
    %v970 = vand.u32 %v969, 4294901760
    %971 = vmatpush1.msra.mxu0 %v970
    %v972 = vand.u32 %v174, 4294901760
    %v973 = vsub.f32 %v174, %v972
    %v974 = vand.u32 %v973, 4294901760
    %975 = vmatprep.subr.mxu0 %v974
    %v976 = vand.u32 %v173, 4294901760
    %v977 = vsub.f32 %v173, %v976
    %v978 = vand.u32 %v977, 4294901760
    %979 = vmatpush1.msra.mxu0 %v978
    %v980 = vand.u32 %v186, 4294901760
    %v981 = vsub.f32 %v186, %v980
    %v982 = vand.u32 %v981, 4294901760
    %983 = vmatprep.subr.mxu0 %v982
    %v984 = vand.u32 %v185, 4294901760
    %v985 = vsub.f32 %v185, %v984
    %v986 = vand.u32 %v985, 4294901760
    %987 = vmatpush1.msra.mxu0 %v986
    %v988 = vand.u32 %v198, 4294901760
    %v989 = vsub.f32 %v198, %v988
    %v990 = vand.u32 %v989, 4294901760
    %991 = vmatprep.subr.mxu0 %v990
    %v992 = vand.u32 %v197, 4294901760
    %v993 = vsub.f32 %v197, %v992
    %v994 = vand.u32 %v993, 4294901760
    %995 = vmatpush1.msra.mxu0 %v994
    %v996 = vand.u32 %v210, 4294901760
    %v997 = vsub.f32 %v210, %v996
    %v998 = vand.u32 %v997, 4294901760
    %999 = vmatprep.subr.mxu0 %v998
    %v1000 = vand.u32 %v209, 4294901760
    %v1001 = vsub.f32 %v209, %v1000
    %v1002 = vand.u32 %v1001, 4294901760
    %1003 = vmatpush1.msra.mxu0 %v1002
    %v1004 = vand.u32 %v222, 4294901760
    %v1005 = vsub.f32 %v222, %v1004
    %v1006 = vand.u32 %v1005, 4294901760
    %1007 = vmatprep.subr.mxu0 %v1006
    %v1008 = vand.u32 %v221, 4294901760
    %v1009 = vsub.f32 %v221, %v1008
    %v1010 = vand.u32 %v1009, 4294901760
    %1011 = vmatpush1.msra.mxu0 %v1010
    %v1012 = vand.u32 %v234, 4294901760
    %v1013 = vsub.f32 %v234, %v1012
    %v1014 = vand.u32 %v1013, 4294901760
    %1015 = vmatprep.subr.mxu0 %v1014
    %v1016 = vand.u32 %v233, 4294901760
    %v1017 = vsub.f32 %v233, %v1016
    %v1018 = vand.u32 %v1017, 4294901760
    %1019 = vmatpush1.msra.mxu0 %v1018
    %1020 = vmatprep.subr.mxu0 0.0
    %1021 = vmatpush1.msra.mxu0 0.0
    %1022 = vmatprep.subr.mxu0 0.0
    %1023 = vmatpush1.msra.mxu0 0.0
    %1024 = vmatprep.subr.mxu0 0.0
    %1025 = vmatpush1.msra.mxu0 0.0
    %1026 = vmatprep.subr.mxu0 0.0
    %1027 = vmatpush1.msra.mxu0 0.0
    %1028 = vmatprep.subr.mxu0 0.0
    %1029 = vmatpush1.msra.mxu0 0.0
    %1030 = vmatprep.subr.mxu0 0.0
    %1031 = vmatpush1.msra.mxu0 0.0
    %1032 = vmatprep.subr.mxu0 0.0
    %1033 = vmatpush1.msra.mxu0 0.0
    %1034 = vmatprep.subr.mxu0 0.0
    %1035 = vmatpush1.msra.mxu0 0.0
    %1036 = vmatprep.subr.mxu0 0.0
    %1037 = vmatpush1.msra.mxu0 0.0
    %1038 = vmatprep.subr.mxu0 0.0
    %1039 = vmatpush1.msra.mxu0 0.0
    %1040 = vmatprep.subr.mxu0 0.0
    %1041 = vmatpush1.msra.mxu0 0.0
    %1042 = vmatprep.subr.mxu0 0.0
    %1043 = vmatpush1.msra.mxu0 0.0
    %1044 = vmatprep.subr.mxu0 0.0
    %1045 = vmatpush1.msra.mxu0 0.0
    %1046 = vmatprep.subr.mxu0 0.0
    %1047 = vmatpush1.msra.mxu0 0.0
    %1048 = vmatprep.subr.mxu0 0.0
    %1049 = vmatpush1.msra.mxu0 0.0
    %1050 = vmatprep.subr.mxu0 0.0
    %1051 = vmatpush1.msra.mxu0 0.0
    %1052 = vmatprep.mubr.f32.mxu0 0.0
    %v1053 = vand.u32 %v52, 4294901760
    %1054 = vmatmul.mubr.f32.gmra.mrb[0].mxu0 %v1053
    %v1055 = vpop.f32.mrb[0].mxu0
    %v1056 = vadd.f32 %v888, %v1055
    %v1057 = vpop.f32.mrb[0].mxu0
    %v1058 = vadd.f32 %v890, %v1057
    %1059 = vdwg.mxu0
    %v1060 = vand.u32 %v54, 4294901760
    %1061 = vmatprep.subr.mxu0 %v1060
    %v1062 = vand.u32 %v53, 4294901760
    %1063 = vmatpush1.msra.mxu0 %v1062
    %v1064 = vand.u32 %v66, 4294901760
    %1065 = vmatprep.subr.mxu0 %v1064
    %v1066 = vand.u32 %v65, 4294901760
    %1067 = vmatpush1.msra.mxu0 %v1066
    %v1068 = vand.u32 %v78, 4294901760
    %1069 = vmatprep.subr.mxu0 %v1068
    %v1070 = vand.u32 %v77, 4294901760
    %1071 = vmatpush1.msra.mxu0 %v1070
    %v1072 = vand.u32 %v90, 4294901760
    %1073 = vmatprep.subr.mxu0 %v1072
    %v1074 = vand.u32 %v89, 4294901760
    %1075 = vmatpush1.msra.mxu0 %v1074
    %v1076 = vand.u32 %v102, 4294901760
    %1077 = vmatprep.subr.mxu0 %v1076
    %v1078 = vand.u32 %v101, 4294901760
    %1079 = vmatpush1.msra.mxu0 %v1078
    %v1080 = vand.u32 %v114, 4294901760
    %1081 = vmatprep.subr.mxu0 %v1080
    %v1082 = vand.u32 %v113, 4294901760
    %1083 = vmatpush1.msra.mxu0 %v1082
    %v1084 = vand.u32 %v126, 4294901760
    %1085 = vmatprep.subr.mxu0 %v1084
    %v1086 = vand.u32 %v125, 4294901760
    %1087 = vmatpush1.msra.mxu0 %v1086
    %v1088 = vand.u32 %v138, 4294901760
    %1089 = vmatprep.subr.mxu0 %v1088
    %v1090 = vand.u32 %v137, 4294901760
    %1091 = vmatpush1.msra.mxu0 %v1090
    %v1092 = vand.u32 %v150, 4294901760
    %1093 = vmatprep.subr.mxu0 %v1092
    %v1094 = vand.u32 %v149, 4294901760
    %1095 = vmatpush1.msra.mxu0 %v1094
    %v1096 = vand.u32 %v162, 4294901760
    %1097 = vmatprep.subr.mxu0 %v1096
    %v1098 = vand.u32 %v161, 4294901760
    %1099 = vmatpush1.msra.mxu0 %v1098
    %v1100 = vand.u32 %v174, 4294901760
    %1101 = vmatprep.subr.mxu0 %v1100
    %v1102 = vand.u32 %v173, 4294901760
    %1103 = vmatpush1.msra.mxu0 %v1102
    %v1104 = vand.u32 %v186, 4294901760
    %1105 = vmatprep.subr.mxu0 %v1104
    %v1106 = vand.u32 %v185, 4294901760
    %1107 = vmatpush1.msra.mxu0 %v1106
    %v1108 = vand.u32 %v198, 4294901760
    %1109 = vmatprep.subr.mxu0 %v1108
    %v1110 = vand.u32 %v197, 4294901760
    %1111 = vmatpush1.msra.mxu0 %v1110
    %v1112 = vand.u32 %v210, 4294901760
    %1113 = vmatprep.subr.mxu0 %v1112
    %v1114 = vand.u32 %v209, 4294901760
    %1115 = vmatpush1.msra.mxu0 %v1114
    %v1116 = vand.u32 %v222, 4294901760
    %1117 = vmatprep.subr.mxu0 %v1116
    %v1118 = vand.u32 %v221, 4294901760
    %1119 = vmatpush1.msra.mxu0 %v1118
    %v1120 = vand.u32 %v234, 4294901760
    %1121 = vmatprep.subr.mxu0 %v1120
    %v1122 = vand.u32 %v233, 4294901760
    %1123 = vmatpush1.msra.mxu0 %v1122
    %1124 = vmatprep.subr.mxu0 0.0
    %1125 = vmatpush1.msra.mxu0 0.0
    %1126 = vmatprep.subr.mxu0 0.0
    %1127 = vmatpush1.msra.mxu0 0.0
    %1128 = vmatprep.subr.mxu0 0.0
    %1129 = vmatpush1.msra.mxu0 0.0
    %1130 = vmatprep.subr.mxu0 0.0
    %1131 = vmatpush1.msra.mxu0 0.0
    %1132 = vmatprep.subr.mxu0 0.0
    %1133 = vmatpush1.msra.mxu0 0.0
    %1134 = vmatprep.subr.mxu0 0.0
    %1135 = vmatpush1.msra.mxu0 0.0
    %1136 = vmatprep.subr.mxu0 0.0
    %1137 = vmatpush1.msra.mxu0 0.0
    %1138 = vmatprep.subr.mxu0 0.0
    %1139 = vmatpush1.msra.mxu0 0.0
    %1140 = vmatprep.subr.mxu0 0.0
    %1141 = vmatpush1.msra.mxu0 0.0
    %1142 = vmatprep.subr.mxu0 0.0
    %1143 = vmatpush1.msra.mxu0 0.0
    %1144 = vmatprep.subr.mxu0 0.0
    %1145 = vmatpush1.msra.mxu0 0.0
    %1146 = vmatprep.subr.mxu0 0.0
    %1147 = vmatpush1.msra.mxu0 0.0
    %1148 = vmatprep.subr.mxu0 0.0
    %1149 = vmatpush1.msra.mxu0 0.0
    %1150 = vmatprep.subr.mxu0 0.0
    %1151 = vmatpush1.msra.mxu0 0.0
    %1152 = vmatprep.subr.mxu0 0.0
    %1153 = vmatpush1.msra.mxu0 0.0
    %1154 = vmatprep.subr.mxu0 0.0
    %1155 = vmatpush1.msra.mxu0 0.0
    %1156 = vmatprep.mubr.f32.mxu0 0.0
    %v1157 = vand.u32 %v52, 4294901760
    %1158 = vmatmul.mubr.f32.gmra.mrb[0].mxu0 %v1157
    %v1159 = vpop.f32.mrb[0].mxu0
    %v1160 = vadd.f32 %v1056, %v1159
    %v1161 = vpop.f32.mrb[0].mxu0
    %v1162 = vadd.f32 %v1058, %v1161
    %1163 = vdwg.mxu0
    %v1164 = vand.u32 %v56, 4294901760
    %1165 = vmatprep.subr.mxu0 %v1164
    %v1166 = vand.u32 %v55, 4294901760
    %1167 = vmatpush1.msra.mxu0 %v1166
    %v1168 = vand.u32 %v68, 4294901760
    %1169 = vmatprep.subr.mxu0 %v1168
    %v1170 = vand.u32 %v67, 4294901760
    %1171 = vmatpush1.msra.mxu0 %v1170
    %v1172 = vand.u32 %v80, 4294901760
    %1173 = vmatprep.subr.mxu0 %v1172
    %v1174 = vand.u32 %v79, 4294901760
    %1175 = vmatpush1.msra.mxu0 %v1174
    %v1176 = vand.u32 %v92, 4294901760
    %1177 = vmatprep.subr.mxu0 %v1176
    %v1178 = vand.u32 %v91, 4294901760
    %1179 = vmatpush1.msra.mxu0 %v1178
    %v1180 = vand.u32 %v104, 4294901760
    %1181 = vmatprep.subr.mxu0 %v1180
    %v1182 = vand.u32 %v103, 4294901760
    %1183 = vmatpush1.msra.mxu0 %v1182
    %v1184 = vand.u32 %v116, 4294901760
    %1185 = vmatprep.subr.mxu0 %v1184
    %v1186 = vand.u32 %v115, 4294901760
    %1187 = vmatpush1.msra.mxu0 %v1186
    %v1188 = vand.u32 %v128, 4294901760
    %1189 = vmatprep.subr.mxu0 %v1188
    %v1190 = vand.u32 %v127, 4294901760
    %1191 = vmatpush1.msra.mxu0 %v1190
    %v1192 = vand.u32 %v140, 4294901760
    %1193 = vmatprep.subr.mxu0 %v1192
    %v1194 = vand.u32 %v139, 4294901760
    %1195 = vmatpush1.msra.mxu0 %v1194
    %v1196 = vand.u32 %v152, 4294901760
    %1197 = vmatprep.subr.mxu0 %v1196
    %v1198 = vand.u32 %v151, 4294901760
    %1199 = vmatpush1.msra.mxu0 %v1198
    %v1200 = vand.u32 %v164, 4294901760
    %1201 = vmatprep.subr.mxu0 %v1200
    %v1202 = vand.u32 %v163, 4294901760
    %1203 = vmatpush1.msra.mxu0 %v1202
    %v1204 = vand.u32 %v176, 4294901760
    %1205 = vmatprep.subr.mxu0 %v1204
    %v1206 = vand.u32 %v175, 4294901760
    %1207 = vmatpush1.msra.mxu0 %v1206
    %v1208 = vand.u32 %v188, 4294901760
    %1209 = vmatprep.subr.mxu0 %v1208
    %v1210 = vand.u32 %v187, 4294901760
    %1211 = vmatpush1.msra.mxu0 %v1210
    %v1212 = vand.u32 %v200, 4294901760
    %1213 = vmatprep.subr.mxu0 %v1212
    %v1214 = vand.u32 %v199, 4294901760
    %1215 = vmatpush1.msra.mxu0 %v1214
    %v1216 = vand.u32 %v212, 4294901760
    %1217 = vmatprep.subr.mxu0 %v1216
    %v1218 = vand.u32 %v211, 4294901760
    %1219 = vmatpush1.msra.mxu0 %v1218
    %v1220 = vand.u32 %v224, 4294901760
    %1221 = vmatprep.subr.mxu0 %v1220
    %v1222 = vand.u32 %v223, 4294901760
    %1223 = vmatpush1.msra.mxu0 %v1222
    %v1224 = vand.u32 %v236, 4294901760
    %1225 = vmatprep.subr.mxu0 %v1224
    %v1226 = vand.u32 %v235, 4294901760
    %1227 = vmatpush1.msra.mxu0 %v1226
    %1228 = vmatprep.subr.mxu0 0.0
    %1229 = vmatpush1.msra.mxu0 0.0
    %1230 = vmatprep.subr.mxu0 0.0
    %1231 = vmatpush1.msra.mxu0 0.0
    %1232 = vmatprep.subr.mxu0 0.0
    %1233 = vmatpush1.msra.mxu0 0.0
    %1234 = vmatprep.subr.mxu0 0.0
    %1235 = vmatpush1.msra.mxu0 0.0
    %1236 = vmatprep.subr.mxu0 0.0
    %1237 = vmatpush1.msra.mxu0 0.0
    %1238 = vmatprep.subr.mxu0 0.0
    %1239 = vmatpush1.msra.mxu0 0.0
    %1240 = vmatprep.subr.mxu0 0.0
    %1241 = vmatpush1.msra.mxu0 0.0
    %1242 = vmatprep.subr.mxu0 0.0
    %1243 = vmatpush1.msra.mxu0 0.0
    %1244 = vmatprep.subr.mxu0 0.0
    %1245 = vmatpush1.msra.mxu0 0.0
    %1246 = vmatprep.subr.mxu0 0.0
    %1247 = vmatpush1.msra.mxu0 0.0
    %1248 = vmatprep.subr.mxu0 0.0
    %1249 = vmatpush1.msra.mxu0 0.0
    %1250 = vmatprep.subr.mxu0 0.0
    %1251 = vmatpush1.msra.mxu0 0.0
    %1252 = vmatprep.subr.mxu0 0.0
    %1253 = vmatpush1.msra.mxu0 0.0
    %1254 = vmatprep.subr.mxu0 0.0
    %1255 = vmatpush1.msra.mxu0 0.0
    %1256 = vmatprep.subr.mxu0 0.0
    %1257 = vmatpush1.msra.mxu0 0.0
    %1258 = vmatprep.subr.mxu0 0.0
    %1259 = vmatpush1.msra.mxu0 0.0
    %1260 = vmatprep.mubr.f32.mxu0 0.0
    %v1261 = vand.u32 %v52, 4294901760
    %v1262 = vsub.f32 %v52, %v1261
    %v1263 = vand.u32 %v1262, 4294901760
    %v1264 = vsub.f32 %v1262, %v1263
    %v1265 = vand.u32 %v1264, 4294901760
    %1266 = vmatmul.mubr.f32.gmra.mrb[0].mxu0 %v1265
    %v1267 = vpop.f32.mrb[0].mxu0
    %v1268 = vadd.f32 %v260, %v1267
    %v1269 = vpop.f32.mrb[0].mxu0
    %v1270 = vadd.f32 %v264, %v1269
    %1271 = vdwg.mxu0
    %v1272 = vand.u32 %v56, 4294901760
    %v1273 = vsub.f32 %v56, %v1272
    %v1274 = vand.u32 %v1273, 4294901760
    %v1275 = vsub.f32 %v1273, %v1274
    %v1276 = vand.u32 %v1275, 4294901760
    %1277 = vmatprep.subr.mxu0 %v1276
    %v1278 = vand.u32 %v55, 4294901760
    %v1279 = vsub.f32 %v55, %v1278
    %v1280 = vand.u32 %v1279, 4294901760
    %v1281 = vsub.f32 %v1279, %v1280
    %v1282 = vand.u32 %v1281, 4294901760
    %1283 = vmatpush1.msra.mxu0 %v1282
    %v1284 = vand.u32 %v68, 4294901760
    %v1285 = vsub.f32 %v68, %v1284
    %v1286 = vand.u32 %v1285, 4294901760
    %v1287 = vsub.f32 %v1285, %v1286
    %v1288 = vand.u32 %v1287, 4294901760
    %1289 = vmatprep.subr.mxu0 %v1288
    %v1290 = vand.u32 %v67, 4294901760
    %v1291 = vsub.f32 %v67, %v1290
    %v1292 = vand.u32 %v1291, 4294901760
    %v1293 = vsub.f32 %v1291, %v1292
    %v1294 = vand.u32 %v1293, 4294901760
    %1295 = vmatpush1.msra.mxu0 %v1294
    %v1296 = vand.u32 %v80, 4294901760
    %v1297 = vsub.f32 %v80, %v1296
    %v1298 = vand.u32 %v1297, 4294901760
    %v1299 = vsub.f32 %v1297, %v1298
    %v1300 = vand.u32 %v1299, 4294901760
    %1301 = vmatprep.subr.mxu0 %v1300
    %v1302 = vand.u32 %v79, 4294901760
    %v1303 = vsub.f32 %v79, %v1302
    %v1304 = vand.u32 %v1303, 4294901760
    %v1305 = vsub.f32 %v1303, %v1304
    %v1306 = vand.u32 %v1305, 4294901760
    %1307 = vmatpush1.msra.mxu0 %v1306
    %v1308 = vand.u32 %v92, 4294901760
    %v1309 = vsub.f32 %v92, %v1308
    %v1310 = vand.u32 %v1309, 4294901760
    %v1311 = vsub.f32 %v1309, %v1310
    %v1312 = vand.u32 %v1311, 4294901760
    %1313 = vmatprep.subr.mxu0 %v1312
    %v1314 = vand.u32 %v91, 4294901760
    %v1315 = vsub.f32 %v91, %v1314
    %v1316 = vand.u32 %v1315, 4294901760
    %v1317 = vsub.f32 %v1315, %v1316
    %v1318 = vand.u32 %v1317, 4294901760
    %1319 = vmatpush1.msra.mxu0 %v1318
    %v1320 = vand.u32 %v104, 4294901760
    %v1321 = vsub.f32 %v104, %v1320
    %v1322 = vand.u32 %v1321, 4294901760
    %v1323 = vsub.f32 %v1321, %v1322
    %v1324 = vand.u32 %v1323, 4294901760
    %1325 = vmatprep.subr.mxu0 %v1324
    %v1326 = vand.u32 %v103, 4294901760
    %v1327 = vsub.f32 %v103, %v1326
    %v1328 = vand.u32 %v1327, 4294901760
    %v1329 = vsub.f32 %v1327, %v1328
    %v1330 = vand.u32 %v1329, 4294901760
    %1331 = vmatpush1.msra.mxu0 %v1330
    %v1332 = vand.u32 %v116, 4294901760
    %v1333 = vsub.f32 %v116, %v1332
    %v1334 = vand.u32 %v1333, 4294901760
    %v1335 = vsub.f32 %v1333, %v1334
    %v1336 = vand.u32 %v1335, 4294901760
    %1337 = vmatprep.subr.mxu0 %v1336
    %v1338 = vand.u32 %v115, 4294901760
    %v1339 = vsub.f32 %v115, %v1338
    %v1340 = vand.u32 %v1339, 4294901760
    %v1341 = vsub.f32 %v1339, %v1340
    %v1342 = vand.u32 %v1341, 4294901760
    %1343 = vmatpush1.msra.mxu0 %v1342
    %v1344 = vand.u32 %v128, 4294901760
    %v1345 = vsub.f32 %v128, %v1344
    %v1346 = vand.u32 %v1345, 4294901760
    %v1347 = vsub.f32 %v1345, %v1346
    %v1348 = vand.u32 %v1347, 4294901760
    %1349 = vmatprep.subr.mxu0 %v1348
    %v1350 = vand.u32 %v127, 4294901760
    %v1351 = vsub.f32 %v127, %v1350
    %v1352 = vand.u32 %v1351, 4294901760
    %v1353 = vsub.f32 %v1351, %v1352
    %v1354 = vand.u32 %v1353, 4294901760
    %1355 = vmatpush1.msra.mxu0 %v1354
    %v1356 = vand.u32 %v140, 4294901760
    %v1357 = vsub.f32 %v140, %v1356
    %v1358 = vand.u32 %v1357, 4294901760
    %v1359 = vsub.f32 %v1357, %v1358
    %v1360 = vand.u32 %v1359, 4294901760
    %1361 = vmatprep.subr.mxu0 %v1360
    %v1362 = vand.u32 %v139, 4294901760
    %v1363 = vsub.f32 %v139, %v1362
    %v1364 = vand.u32 %v1363, 4294901760
    %v1365 = vsub.f32 %v1363, %v1364
    %v1366 = vand.u32 %v1365, 4294901760
    %1367 = vmatpush1.msra.mxu0 %v1366
    %v1368 = vand.u32 %v152, 4294901760
    %v1369 = vsub.f32 %v152, %v1368
    %v1370 = vand.u32 %v1369, 4294901760
    %v1371 = vsub.f32 %v1369, %v1370
    %v1372 = vand.u32 %v1371, 4294901760
    %1373 = vmatprep.subr.mxu0 %v1372
    %v1374 = vand.u32 %v151, 4294901760
    %v1375 = vsub.f32 %v151, %v1374
    %v1376 = vand.u32 %v1375, 4294901760
    %v1377 = vsub.f32 %v1375, %v1376
    %v1378 = vand.u32 %v1377, 4294901760
    %1379 = vmatpush1.msra.mxu0 %v1378
    %v1380 = vand.u32 %v164, 4294901760
    %v1381 = vsub.f32 %v164, %v1380
    %v1382 = vand.u32 %v1381, 4294901760
    %v1383 = vsub.f32 %v1381, %v1382
    %v1384 = vand.u32 %v1383, 4294901760
    %1385 = vmatprep.subr.mxu0 %v1384
    %v1386 = vand.u32 %v163, 4294901760
    %v1387 = vsub.f32 %v163, %v1386
    %v1388 = vand.u32 %v1387, 4294901760
    %v1389 = vsub.f32 %v1387, %v1388
    %v1390 = vand.u32 %v1389, 4294901760
    %1391 = vmatpush1.msra.mxu0 %v1390
    %v1392 = vand.u32 %v176, 4294901760
    %v1393 = vsub.f32 %v176, %v1392
    %v1394 = vand.u32 %v1393, 4294901760
    %v1395 = vsub.f32 %v1393, %v1394
    %v1396 = vand.u32 %v1395, 4294901760
    %1397 = vmatprep.subr.mxu0 %v1396
    %v1398 = vand.u32 %v175, 4294901760
    %v1399 = vsub.f32 %v175, %v1398
    %v1400 = vand.u32 %v1399, 4294901760
    %v1401 = vsub.f32 %v1399, %v1400
    %v1402 = vand.u32 %v1401, 4294901760
    %1403 = vmatpush1.msra.mxu0 %v1402
    %v1404 = vand.u32 %v188, 4294901760
    %v1405 = vsub.f32 %v188, %v1404
    %v1406 = vand.u32 %v1405, 4294901760
    %v1407 = vsub.f32 %v1405, %v1406
    %v1408 = vand.u32 %v1407, 4294901760
    %1409 = vmatprep.subr.mxu0 %v1408
    %v1410 = vand.u32 %v187, 4294901760
    %v1411 = vsub.f32 %v187, %v1410
    %v1412 = vand.u32 %v1411, 4294901760
    %v1413 = vsub.f32 %v1411, %v1412
    %v1414 = vand.u32 %v1413, 4294901760
    %1415 = vmatpush1.msra.mxu0 %v1414
    %v1416 = vand.u32 %v200, 4294901760
    %v1417 = vsub.f32 %v200, %v1416
    %v1418 = vand.u32 %v1417, 4294901760
    %v1419 = vsub.f32 %v1417, %v1418
    %v1420 = vand.u32 %v1419, 4294901760
    %1421 = vmatprep.subr.mxu0 %v1420
    %v1422 = vand.u32 %v199, 4294901760
    %v1423 = vsub.f32 %v199, %v1422
    %v1424 = vand.u32 %v1423, 4294901760
    %v1425 = vsub.f32 %v1423, %v1424
    %v1426 = vand.u32 %v1425, 4294901760
    %1427 = vmatpush1.msra.mxu0 %v1426
    %v1428 = vand.u32 %v212, 4294901760
    %v1429 = vsub.f32 %v212, %v1428
    %v1430 = vand.u32 %v1429, 4294901760
    %v1431 = vsub.f32 %v1429, %v1430
    %v1432 = vand.u32 %v1431, 4294901760
    %1433 = vmatprep.subr.mxu0 %v1432
    %v1434 = vand.u32 %v211, 4294901760
    %v1435 = vsub.f32 %v211, %v1434
    %v1436 = vand.u32 %v1435, 4294901760
    %v1437 = vsub.f32 %v1435, %v1436
    %v1438 = vand.u32 %v1437, 4294901760
    %1439 = vmatpush1.msra.mxu0 %v1438
    %v1440 = vand.u32 %v224, 4294901760
    %v1441 = vsub.f32 %v224, %v1440
    %v1442 = vand.u32 %v1441, 4294901760
    %v1443 = vsub.f32 %v1441, %v1442
    %v1444 = vand.u32 %v1443, 4294901760
    %1445 = vmatprep.subr.mxu0 %v1444
    %v1446 = vand.u32 %v223, 4294901760
    %v1447 = vsub.f32 %v223, %v1446
    %v1448 = vand.u32 %v1447, 4294901760
    %v1449 = vsub.f32 %v1447, %v1448
    %v1450 = vand.u32 %v1449, 4294901760
    %1451 = vmatpush1.msra.mxu0 %v1450
    %v1452 = vand.u32 %v236, 4294901760
    %v1453 = vsub.f32 %v236, %v1452
    %v1454 = vand.u32 %v1453, 4294901760
    %v1455 = vsub.f32 %v1453, %v1454
    %v1456 = vand.u32 %v1455, 4294901760
    %1457 = vmatprep.subr.mxu0 %v1456
    %v1458 = vand.u32 %v235, 4294901760
    %v1459 = vsub.f32 %v235, %v1458
    %v1460 = vand.u32 %v1459, 4294901760
    %v1461 = vsub.f32 %v1459, %v1460
    %v1462 = vand.u32 %v1461, 4294901760
    %1463 = vmatpush1.msra.mxu0 %v1462
    %1464 = vmatprep.subr.mxu0 0.0
    %1465 = vmatpush1.msra.mxu0 0.0
    %1466 = vmatprep.subr.mxu0 0.0
    %1467 = vmatpush1.msra.mxu0 0.0
    %1468 = vmatprep.subr.mxu0 0.0
    %1469 = vmatpush1.msra.mxu0 0.0
    %1470 = vmatprep.subr.mxu0 0.0
    %1471 = vmatpush1.msra.mxu0 0.0
    %1472 = vmatprep.subr.mxu0 0.0
    %1473 = vmatpush1.msra.mxu0 0.0
    %1474 = vmatprep.subr.mxu0 0.0
    %1475 = vmatpush1.msra.mxu0 0.0
    %1476 = vmatprep.subr.mxu0 0.0
    %1477 = vmatpush1.msra.mxu0 0.0
    %1478 = vmatprep.subr.mxu0 0.0
    %1479 = vmatpush1.msra.mxu0 0.0
    %1480 = vmatprep.subr.mxu0 0.0
    %1481 = vmatpush1.msra.mxu0 0.0
    %1482 = vmatprep.subr.mxu0 0.0
    %1483 = vmatpush1.msra.mxu0 0.0
    %1484 = vmatprep.subr.mxu0 0.0
    %1485 = vmatpush1.msra.mxu0 0.0
    %1486 = vmatprep.subr.mxu0 0.0
    %1487 = vmatpush1.msra.mxu0 0.0
    %1488 = vmatprep.subr.mxu0 0.0
    %1489 = vmatpush1.msra.mxu0 0.0
    %1490 = vmatprep.subr.mxu0 0.0
    %1491 = vmatpush1.msra.mxu0 0.0
    %1492 = vmatprep.subr.mxu0 0.0
    %1493 = vmatpush1.msra.mxu0 0.0
    %1494 = vmatprep.subr.mxu0 0.0
    %1495 = vmatpush1.msra.mxu0 0.0
    %1496 = vmatprep.mubr.f32.mxu0 0.0
    %v1497 = vand.u32 %v52, 4294901760
    %1498 = vmatmul.mubr.f32.gmra.mrb[0].mxu0 %v1497
    %v1499 = vpop.f32.mrb[0].mxu0
    %v1500 = vadd.f32 %v1268, %v1499
    %v1501 = vpop.f32.mrb[0].mxu0
    %v1502 = vadd.f32 %v1270, %v1501
    %1503 = vdwg.mxu0
    %v1504 = vand.u32 %v56, 4294901760
    %v1505 = vsub.f32 %v56, %v1504
    %1506 = vmatprep.subr.mxu0 %v1505
    %v1507 = vand.u32 %v55, 4294901760
    %v1508 = vsub.f32 %v55, %v1507
    %1509 = vmatpush1.msra.mxu0 %v1508
    %v1510 = vand.u32 %v68, 4294901760
    %v1511 = vsub.f32 %v68, %v1510
    %1512 = vmatprep.subr.mxu0 %v1511
    %v1513 = vand.u32 %v67, 4294901760
    %v1514 = vsub.f32 %v67, %v1513
    %1515 = vmatpush1.msra.mxu0 %v1514
    %v1516 = vand.u32 %v80, 4294901760
    %v1517 = vsub.f32 %v80, %v1516
    %1518 = vmatprep.subr.mxu0 %v1517
    %v1519 = vand.u32 %v79, 4294901760
    %v1520 = vsub.f32 %v79, %v1519
    %1521 = vmatpush1.msra.mxu0 %v1520
    %v1522 = vand.u32 %v92, 4294901760
    %v1523 = vsub.f32 %v92, %v1522
    %1524 = vmatprep.subr.mxu0 %v1523
    %v1525 = vand.u32 %v91, 4294901760
    %v1526 = vsub.f32 %v91, %v1525
    %1527 = vmatpush1.msra.mxu0 %v1526
    %v1528 = vand.u32 %v104, 4294901760
    %v1529 = vsub.f32 %v104, %v1528
    %1530 = vmatprep.subr.mxu0 %v1529
    %v1531 = vand.u32 %v103, 4294901760
    %v1532 = vsub.f32 %v103, %v1531
    %1533 = vmatpush1.msra.mxu0 %v1532
    %v1534 = vand.u32 %v116, 4294901760
    %v1535 = vsub.f32 %v116, %v1534
    %1536 = vmatprep.subr.mxu0 %v1535
    %v1537 = vand.u32 %v115, 4294901760
    %v1538 = vsub.f32 %v115, %v1537
    %1539 = vmatpush1.msra.mxu0 %v1538
    %v1540 = vand.u32 %v128, 4294901760
    %v1541 = vsub.f32 %v128, %v1540
    %1542 = vmatprep.subr.mxu0 %v1541
    %v1543 = vand.u32 %v127, 4294901760
    %v1544 = vsub.f32 %v127, %v1543
    %1545 = vmatpush1.msra.mxu0 %v1544
    %v1546 = vand.u32 %v140, 4294901760
    %v1547 = vsub.f32 %v140, %v1546
    %1548 = vmatprep.subr.mxu0 %v1547
    %v1549 = vand.u32 %v139, 4294901760
    %v1550 = vsub.f32 %v139, %v1549
    %1551 = vmatpush1.msra.mxu0 %v1550
    %v1552 = vand.u32 %v152, 4294901760
    %v1553 = vsub.f32 %v152, %v1552
    %1554 = vmatprep.subr.mxu0 %v1553
    %v1555 = vand.u32 %v151, 4294901760
    %v1556 = vsub.f32 %v151, %v1555
    %1557 = vmatpush1.msra.mxu0 %v1556
    %v1558 = vand.u32 %v164, 4294901760
    %v1559 = vsub.f32 %v164, %v1558
    %1560 = vmatprep.subr.mxu0 %v1559
    %v1561 = vand.u32 %v163, 4294901760
    %v1562 = vsub.f32 %v163, %v1561
    %1563 = vmatpush1.msra.mxu0 %v1562
    %v1564 = vand.u32 %v176, 4294901760
    %v1565 = vsub.f32 %v176, %v1564
    %1566 = vmatprep.subr.mxu0 %v1565
    %v1567 = vand.u32 %v175, 4294901760
    %v1568 = vsub.f32 %v175, %v1567
    %1569 = vmatpush1.msra.mxu0 %v1568
    %v1570 = vand.u32 %v188, 4294901760
    %v1571 = vsub.f32 %v188, %v1570
    %1572 = vmatprep.subr.mxu0 %v1571
    %v1573 = vand.u32 %v187, 4294901760
    %v1574 = vsub.f32 %v187, %v1573
    %1575 = vmatpush1.msra.mxu0 %v1574
    %v1576 = vand.u32 %v200, 4294901760
    %v1577 = vsub.f32 %v200, %v1576
    %1578 = vmatprep.subr.mxu0 %v1577
    %v1579 = vand.u32 %v199, 4294901760
    %v1580 = vsub.f32 %v199, %v1579
    %1581 = vmatpush1.msra.mxu0 %v1580
    %v1582 = vand.u32 %v212, 4294901760
    %v1583 = vsub.f32 %v212, %v1582
    %1584 = vmatprep.subr.mxu0 %v1583
    %v1585 = vand.u32 %v211, 4294901760
    %v1586 = vsub.f32 %v211, %v1585
    %1587 = vmatpush1.msra.mxu0 %v1586
    %v1588 = vand.u32 %v224, 4294901760
    %v1589 = vsub.f32 %v224, %v1588
    %1590 = vmatprep.subr.mxu0 %v1589
    %v1591 = vand.u32 %v223, 4294901760
    %v1592 = vsub.f32 %v223, %v1591
    %1593 = vmatpush1.msra.mxu0 %v1592
    %v1594 = vand.u32 %v236, 4294901760
    %v1595 = vsub.f32 %v236, %v1594
    %1596 = vmatprep.subr.mxu0 %v1595
    %v1597 = vand.u32 %v235, 4294901760
    %v1598 = vsub.f32 %v235, %v1597
    %1599 = vmatpush1.msra.mxu0 %v1598
    %1600 = vmatprep.subr.mxu0 0.0
    %1601 = vmatpush1.msra.mxu0 0.0
    %1602 = vmatprep.subr.mxu0 0.0
    %1603 = vmatpush1.msra.mxu0 0.0
    %1604 = vmatprep.subr.mxu0 0.0
    %1605 = vmatpush1.msra.mxu0 0.0
    %1606 = vmatprep.subr.mxu0 0.0
    %1607 = vmatpush1.msra.mxu0 0.0
    %1608 = vmatprep.subr.mxu0 0.0
    %1609 = vmatpush1.msra.mxu0 0.0
    %1610 = vmatprep.subr.mxu0 0.0
    %1611 = vmatpush1.msra.mxu0 0.0
    %1612 = vmatprep.subr.mxu0 0.0
    %1613 = vmatpush1.msra.mxu0 0.0
    %1614 = vmatprep.subr.mxu0 0.0
    %1615 = vmatpush1.msra.mxu0 0.0
    %1616 = vmatprep.subr.mxu0 0.0
    %1617 = vmatpush1.msra.mxu0 0.0
    %1618 = vmatprep.subr.mxu0 0.0
    %1619 = vmatpush1.msra.mxu0 0.0
    %1620 = vmatprep.subr.mxu0 0.0
    %1621 = vmatpush1.msra.mxu0 0.0
    %1622 = vmatprep.subr.mxu0 0.0
    %1623 = vmatpush1.msra.mxu0 0.0
    %1624 = vmatprep.subr.mxu0 0.0
    %1625 = vmatpush1.msra.mxu0 0.0
    %1626 = vmatprep.subr.mxu0 0.0
    %1627 = vmatpush1.msra.mxu0 0.0
    %1628 = vmatprep.subr.mxu0 0.0
    %1629 = vmatpush1.msra.mxu0 0.0
    %1630 = vmatprep.subr.mxu0 0.0
    %1631 = vmatpush1.msra.mxu0 0.0
    %1632 = vmatprep.mubr.f32.mxu0 0.0
    %v1633 = vand.u32 %v52, 4294901760
    %v1634 = vsub.f32 %v52, %v1633
    %1635 = vmatmul.mubr.f32.gmra.mrb[0].mxu0 %v1634
    %v1636 = vpop.f32.mrb[0].mxu0
    %v1637 = vadd.f32 %v1500, %v1636
    %v1638 = vpop.f32.mrb[0].mxu0
    %v1639 = vadd.f32 %v1502, %v1638
    %1640 = vdwg.mxu0
    %v1641 = vand.u32 %v56, 4294901760
    %1642 = vmatprep.subr.mxu0 %v1641
    %v1643 = vand.u32 %v55, 4294901760
    %1644 = vmatpush1.msra.mxu0 %v1643
    %v1645 = vand.u32 %v68, 4294901760
    %1646 = vmatprep.subr.mxu0 %v1645
    %v1647 = vand.u32 %v67, 4294901760
    %1648 = vmatpush1.msra.mxu0 %v1647
    %v1649 = vand.u32 %v80, 4294901760
    %1650 = vmatprep.subr.mxu0 %v1649
    %v1651 = vand.u32 %v79, 4294901760
    %1652 = vmatpush1.msra.mxu0 %v1651
    %v1653 = vand.u32 %v92, 4294901760
    %1654 = vmatprep.subr.mxu0 %v1653
    %v1655 = vand.u32 %v91, 4294901760
    %1656 = vmatpush1.msra.mxu0 %v1655
    %v1657 = vand.u32 %v104, 4294901760
    %1658 = vmatprep.subr.mxu0 %v1657
    %v1659 = vand.u32 %v103, 4294901760
    %1660 = vmatpush1.msra.mxu0 %v1659
    %v1661 = vand.u32 %v116, 4294901760
    %1662 = vmatprep.subr.mxu0 %v1661
    %v1663 = vand.u32 %v115, 4294901760
    %1664 = vmatpush1.msra.mxu0 %v1663
    %v1665 = vand.u32 %v128, 4294901760
    %1666 = vmatprep.subr.mxu0 %v1665
    %v1667 = vand.u32 %v127, 4294901760
    %1668 = vmatpush1.msra.mxu0 %v1667
    %v1669 = vand.u32 %v140, 4294901760
    %1670 = vmatprep.subr.mxu0 %v1669
    %v1671 = vand.u32 %v139, 4294901760
    %1672 = vmatpush1.msra.mxu0 %v1671
    %v1673 = vand.u32 %v152, 4294901760
    %1674 = vmatprep.subr.mxu0 %v1673
    %v1675 = vand.u32 %v151, 4294901760
    %1676 = vmatpush1.msra.mxu0 %v1675
    %v1677 = vand.u32 %v164, 4294901760
    %1678 = vmatprep.subr.mxu0 %v1677
    %v1679 = vand.u32 %v163, 4294901760
    %1680 = vmatpush1.msra.mxu0 %v1679
    %v1681 = vand.u32 %v176, 4294901760
    %1682 = vmatprep.subr.mxu0 %v1681
    %v1683 = vand.u32 %v175, 4294901760
    %1684 = vmatpush1.msra.mxu0 %v1683
    %v1685 = vand.u32 %v188, 4294901760
    %1686 = vmatprep.subr.mxu0 %v1685
    %v1687 = vand.u32 %v187, 4294901760
    %1688 = vmatpush1.msra.mxu0 %v1687
    %v1689 = vand.u32 %v200, 4294901760
    %1690 = vmatprep.subr.mxu0 %v1689
    %v1691 = vand.u32 %v199, 4294901760
    %1692 = vmatpush1.msra.mxu0 %v1691
    %v1693 = vand.u32 %v212, 4294901760
    %1694 = vmatprep.subr.mxu0 %v1693
    %v1695 = vand.u32 %v211, 4294901760
    %1696 = vmatpush1.msra.mxu0 %v1695
    %v1697 = vand.u32 %v224, 4294901760
    %1698 = vmatprep.subr.mxu0 %v1697
    %v1699 = vand.u32 %v223, 4294901760
    %1700 = vmatpush1.msra.mxu0 %v1699
    %v1701 = vand.u32 %v236, 4294901760
    %1702 = vmatprep.subr.mxu0 %v1701
    %v1703 = vand.u32 %v235, 4294901760
    %1704 = vmatpush1.msra.mxu0 %v1703
    %1705 = vmatprep.subr.mxu0 0.0
    %1706 = vmatpush1.msra.mxu0 0.0
    %1707 = vmatprep.subr.mxu0 0.0
    %1708 = vmatpush1.msra.mxu0 0.0
    %1709 = vmatprep.subr.mxu0 0.0
    %1710 = vmatpush1.msra.mxu0 0.0
    %1711 = vmatprep.subr.mxu0 0.0
    %1712 = vmatpush1.msra.mxu0 0.0
    %1713 = vmatprep.subr.mxu0 0.0
    %1714 = vmatpush1.msra.mxu0 0.0
    %1715 = vmatprep.subr.mxu0 0.0
    %1716 = vmatpush1.msra.mxu0 0.0
    %1717 = vmatprep.subr.mxu0 0.0
    %1718 = vmatpush1.msra.mxu0 0.0
    %1719 = vmatprep.subr.mxu0 0.0
    %1720 = vmatpush1.msra.mxu0 0.0
    %1721 = vmatprep.subr.mxu0 0.0
    %1722 = vmatpush1.msra.mxu0 0.0
    %1723 = vmatprep.subr.mxu0 0.0
    %1724 = vmatpush1.msra.mxu0 0.0
    %1725 = vmatprep.subr.mxu0 0.0
    %1726 = vmatpush1.msra.mxu0 0.0
    %1727 = vmatprep.subr.mxu0 0.0
    %1728 = vmatpush1.msra.mxu0 0.0
    %1729 = vmatprep.subr.mxu0 0.0
    %1730 = vmatpush1.msra.mxu0 0.0
    %1731 = vmatprep.subr.mxu0 0.0
    %1732 = vmatpush1.msra.mxu0 0.0
    %1733 = vmatprep.subr.mxu0 0.0
    %1734 = vmatpush1.msra.mxu0 0.0
    %1735 = vmatprep.subr.mxu0 0.0
    %1736 = vmatpush1.msra.mxu0 0.0
    %1737 = vmatprep.mubr.f32.mxu0 0.0
    %v1738 = vand.u32 %v52, 4294901760
    %v1739 = vsub.f32 %v52, %v1738
    %v1740 = vand.u32 %v1739, 4294901760
    %1741 = vmatmul.mubr.f32.gmra.mrb[0].mxu0 %v1740
    %v1742 = vpop.f32.mrb[0].mxu0
    %v1743 = vadd.f32 %v1637, %v1742
    %v1744 = vpop.f32.mrb[0].mxu0
    %v1745 = vadd.f32 %v1639, %v1744
    %1746 = vdwg.mxu0
    %v1747 = vand.u32 %v56, 4294901760
    %v1748 = vsub.f32 %v56, %v1747
    %v1749 = vand.u32 %v1748, 4294901760
    %1750 = vmatprep.subr.mxu0 %v1749
    %v1751 = vand.u32 %v55, 4294901760
    %v1752 = vsub.f32 %v55, %v1751
    %v1753 = vand.u32 %v1752, 4294901760
    %1754 = vmatpush1.msra.mxu0 %v1753
    %v1755 = vand.u32 %v68, 4294901760
    %v1756 = vsub.f32 %v68, %v1755
    %v1757 = vand.u32 %v1756, 4294901760
    %1758 = vmatprep.subr.mxu0 %v1757
    %v1759 = vand.u32 %v67, 4294901760
    %v1760 = vsub.f32 %v67, %v1759
    %v1761 = vand.u32 %v1760, 4294901760
    %1762 = vmatpush1.msra.mxu0 %v1761
    %v1763 = vand.u32 %v80, 4294901760
    %v1764 = vsub.f32 %v80, %v1763
    %v1765 = vand.u32 %v1764, 4294901760
    %1766 = vmatprep.subr.mxu0 %v1765
    %v1767 = vand.u32 %v79, 4294901760
    %v1768 = vsub.f32 %v79, %v1767
    %v1769 = vand.u32 %v1768, 4294901760
    %1770 = vmatpush1.msra.mxu0 %v1769
    %v1771 = vand.u32 %v92, 4294901760
    %v1772 = vsub.f32 %v92, %v1771
    %v1773 = vand.u32 %v1772, 4294901760
    %1774 = vmatprep.subr.mxu0 %v1773
    %v1775 = vand.u32 %v91, 4294901760
    %v1776 = vsub.f32 %v91, %v1775
    %v1777 = vand.u32 %v1776, 4294901760
    %1778 = vmatpush1.msra.mxu0 %v1777
    %v1779 = vand.u32 %v104, 4294901760
    %v1780 = vsub.f32 %v104, %v1779
    %v1781 = vand.u32 %v1780, 4294901760
    %1782 = vmatprep.subr.mxu0 %v1781
    %v1783 = vand.u32 %v103, 4294901760
    %v1784 = vsub.f32 %v103, %v1783
    %v1785 = vand.u32 %v1784, 4294901760
    %1786 = vmatpush1.msra.mxu0 %v1785
    %v1787 = vand.u32 %v116, 4294901760
    %v1788 = vsub.f32 %v116, %v1787
    %v1789 = vand.u32 %v1788, 4294901760
    %1790 = vmatprep.subr.mxu0 %v1789
    %v1791 = vand.u32 %v115, 4294901760
    %v1792 = vsub.f32 %v115, %v1791
    %v1793 = vand.u32 %v1792, 4294901760
    %1794 = vmatpush1.msra.mxu0 %v1793
    %v1795 = vand.u32 %v128, 4294901760
    %v1796 = vsub.f32 %v128, %v1795
    %v1797 = vand.u32 %v1796, 4294901760
    %1798 = vmatprep.subr.mxu0 %v1797
    %v1799 = vand.u32 %v127, 4294901760
    %v1800 = vsub.f32 %v127, %v1799
    %v1801 = vand.u32 %v1800, 4294901760
    %1802 = vmatpush1.msra.mxu0 %v1801
    %v1803 = vand.u32 %v140, 4294901760
    %v1804 = vsub.f32 %v140, %v1803
    %v1805 = vand.u32 %v1804, 4294901760
    %1806 = vmatprep.subr.mxu0 %v1805
    %v1807 = vand.u32 %v139, 4294901760
    %v1808 = vsub.f32 %v139, %v1807
    %v1809 = vand.u32 %v1808, 4294901760
    %1810 = vmatpush1.msra.mxu0 %v1809
    %v1811 = vand.u32 %v152, 4294901760
    %v1812 = vsub.f32 %v152, %v1811
    %v1813 = vand.u32 %v1812, 4294901760
    %1814 = vmatprep.subr.mxu0 %v1813
    %v1815 = vand.u32 %v151, 4294901760
    %v1816 = vsub.f32 %v151, %v1815
    %v1817 = vand.u32 %v1816, 4294901760
    %1818 = vmatpush1.msra.mxu0 %v1817
    %v1819 = vand.u32 %v164, 4294901760
    %v1820 = vsub.f32 %v164, %v1819
    %v1821 = vand.u32 %v1820, 4294901760
    %1822 = vmatprep.subr.mxu0 %v1821
    %v1823 = vand.u32 %v163, 4294901760
    %v1824 = vsub.f32 %v163, %v1823
    %v1825 = vand.u32 %v1824, 4294901760
    %1826 = vmatpush1.msra.mxu0 %v1825
    %v1827 = vand.u32 %v176, 4294901760
    %v1828 = vsub.f32 %v176, %v1827
    %v1829 = vand.u32 %v1828, 4294901760
    %1830 = vmatprep.subr.mxu0 %v1829
    %v1831 = vand.u32 %v175, 4294901760
    %v1832 = vsub.f32 %v175, %v1831
    %v1833 = vand.u32 %v1832, 4294901760
    %1834 = vmatpush1.msra.mxu0 %v1833
    %v1835 = vand.u32 %v188, 4294901760
    %v1836 = vsub.f32 %v188, %v1835
    %v1837 = vand.u32 %v1836, 4294901760
    %1838 = vmatprep.subr.mxu0 %v1837
    %v1839 = vand.u32 %v187, 4294901760
    %v1840 = vsub.f32 %v187, %v1839
    %v1841 = vand.u32 %v1840, 4294901760
    %1842 = vmatpush1.msra.mxu0 %v1841
    %v1843 = vand.u32 %v200, 4294901760
    %v1844 = vsub.f32 %v200, %v1843
    %v1845 = vand.u32 %v1844, 4294901760
    %1846 = vmatprep.subr.mxu0 %v1845
    %v1847 = vand.u32 %v199, 4294901760
    %v1848 = vsub.f32 %v199, %v1847
    %v1849 = vand.u32 %v1848, 4294901760
    %1850 = vmatpush1.msra.mxu0 %v1849
    %v1851 = vand.u32 %v212, 4294901760
    %v1852 = vsub.f32 %v212, %v1851
    %v1853 = vand.u32 %v1852, 4294901760
    %1854 = vmatprep.subr.mxu0 %v1853
    %v1855 = vand.u32 %v211, 4294901760
    %v1856 = vsub.f32 %v211, %v1855
    %v1857 = vand.u32 %v1856, 4294901760
    %1858 = vmatpush1.msra.mxu0 %v1857
    %v1859 = vand.u32 %v224, 4294901760
    %v1860 = vsub.f32 %v224, %v1859
    %v1861 = vand.u32 %v1860, 4294901760
    %1862 = vmatprep.subr.mxu0 %v1861
    %v1863 = vand.u32 %v223, 4294901760
    %v1864 = vsub.f32 %v223, %v1863
    %v1865 = vand.u32 %v1864, 4294901760
    %1866 = vmatpush1.msra.mxu0 %v1865
    %v1867 = vand.u32 %v236, 4294901760
    %v1868 = vsub.f32 %v236, %v1867
    %v1869 = vand.u32 %v1868, 4294901760
    %1870 = vmatprep.subr.mxu0 %v1869
    %v1871 = vand.u32 %v235, 4294901760
    %v1872 = vsub.f32 %v235, %v1871
    %v1873 = vand.u32 %v1872, 4294901760
    %1874 = vmatpush1.msra.mxu0 %v1873
    %1875 = vmatprep.subr.mxu0 0.0
    %1876 = vmatpush1.msra.mxu0 0.0
    %1877 = vmatprep.subr.mxu0 0.0
    %1878 = vmatpush1.msra.mxu0 0.0
    %1879 = vmatprep.subr.mxu0 0.0
    %1880 = vmatpush1.msra.mxu0 0.0
    %1881 = vmatprep.subr.mxu0 0.0
    %1882 = vmatpush1.msra.mxu0 0.0
    %1883 = vmatprep.subr.mxu0 0.0
    %1884 = vmatpush1.msra.mxu0 0.0
    %1885 = vmatprep.subr.mxu0 0.0
    %1886 = vmatpush1.msra.mxu0 0.0
    %1887 = vmatprep.subr.mxu0 0.0
    %1888 = vmatpush1.msra.mxu0 0.0
    %1889 = vmatprep.subr.mxu0 0.0
    %1890 = vmatpush1.msra.mxu0 0.0
    %1891 = vmatprep.subr.mxu0 0.0
    %1892 = vmatpush1.msra.mxu0 0.0
    %1893 = vmatprep.subr.mxu0 0.0
    %1894 = vmatpush1.msra.mxu0 0.0
    %1895 = vmatprep.subr.mxu0 0.0
    %1896 = vmatpush1.msra.mxu0 0.0
    %1897 = vmatprep.subr.mxu0 0.0
    %1898 = vmatpush1.msra.mxu0 0.0
    %1899 = vmatprep.subr.mxu0 0.0
    %1900 = vmatpush1.msra.mxu0 0.0
    %1901 = vmatprep.subr.mxu0 0.0
    %1902 = vmatpush1.msra.mxu0 0.0
    %1903 = vmatprep.subr.mxu0 0.0
    %1904 = vmatpush1.msra.mxu0 0.0
    %1905 = vmatprep.subr.mxu0 0.0
    %1906 = vmatpush1.msra.mxu0 0.0
    %1907 = vmatprep.mubr.f32.mxu0 0.0
    %v1908 = vand.u32 %v52, 4294901760
    %1909 = vmatmul.mubr.f32.gmra.mrb[0].mxu0 %v1908
    %v1910 = vpop.f32.mrb[0].mxu0
    %v1911 = vadd.f32 %v1743, %v1910
    %v1912 = vpop.f32.mrb[0].mxu0
    %v1913 = vadd.f32 %v1745, %v1912
    %1914 = vdwg.mxu0
    %v1915 = vand.u32 %v56, 4294901760
    %1916 = vmatprep.subr.mxu0 %v1915
    %v1917 = vand.u32 %v55, 4294901760
    %1918 = vmatpush1.msra.mxu0 %v1917
    %v1919 = vand.u32 %v68, 4294901760
    %1920 = vmatprep.subr.mxu0 %v1919
    %v1921 = vand.u32 %v67, 4294901760
    %1922 = vmatpush1.msra.mxu0 %v1921
    %v1923 = vand.u32 %v80, 4294901760
    %1924 = vmatprep.subr.mxu0 %v1923
    %v1925 = vand.u32 %v79, 4294901760
    %1926 = vmatpush1.msra.mxu0 %v1925
    %v1927 = vand.u32 %v92, 4294901760
    %1928 = vmatprep.subr.mxu0 %v1927
    %v1929 = vand.u32 %v91, 4294901760
    %1930 = vmatpush1.msra.mxu0 %v1929
    %v1931 = vand.u32 %v104, 4294901760
    %1932 = vmatprep.subr.mxu0 %v1931
    %v1933 = vand.u32 %v103, 4294901760
    %1934 = vmatpush1.msra.mxu0 %v1933
    %v1935 = vand.u32 %v116, 4294901760
    %1936 = vmatprep.subr.mxu0 %v1935
    %v1937 = vand.u32 %v115, 4294901760
    %1938 = vmatpush1.msra.mxu0 %v1937
    %v1939 = vand.u32 %v128, 4294901760
    %1940 = vmatprep.subr.mxu0 %v1939
    %v1941 = vand.u32 %v127, 4294901760
    %1942 = vmatpush1.msra.mxu0 %v1941
    %v1943 = vand.u32 %v140, 4294901760
    %1944 = vmatprep.subr.mxu0 %v1943
    %v1945 = vand.u32 %v139, 4294901760
    %1946 = vmatpush1.msra.mxu0 %v1945
    %v1947 = vand.u32 %v152, 4294901760
    %1948 = vmatprep.subr.mxu0 %v1947
    %v1949 = vand.u32 %v151, 4294901760
    %1950 = vmatpush1.msra.mxu0 %v1949
    %v1951 = vand.u32 %v164, 4294901760
    %1952 = vmatprep.subr.mxu0 %v1951
    %v1953 = vand.u32 %v163, 4294901760
    %1954 = vmatpush1.msra.mxu0 %v1953
    %v1955 = vand.u32 %v176, 4294901760
    %1956 = vmatprep.subr.mxu0 %v1955
    %v1957 = vand.u32 %v175, 4294901760
    %1958 = vmatpush1.msra.mxu0 %v1957
    %v1959 = vand.u32 %v188, 4294901760
    %1960 = vmatprep.subr.mxu0 %v1959
    %v1961 = vand.u32 %v187, 4294901760
    %1962 = vmatpush1.msra.mxu0 %v1961
    %v1963 = vand.u32 %v200, 4294901760
    %1964 = vmatprep.subr.mxu0 %v1963
    %v1965 = vand.u32 %v199, 4294901760
    %1966 = vmatpush1.msra.mxu0 %v1965
    %v1967 = vand.u32 %v212, 4294901760
    %1968 = vmatprep.subr.mxu0 %v1967
    %v1969 = vand.u32 %v211, 4294901760
    %1970 = vmatpush1.msra.mxu0 %v1969
    %v1971 = vand.u32 %v224, 4294901760
    %1972 = vmatprep.subr.mxu0 %v1971
    %v1973 = vand.u32 %v223, 4294901760
    %1974 = vmatpush1.msra.mxu0 %v1973
    %v1975 = vand.u32 %v236, 4294901760
    %1976 = vmatprep.subr.mxu0 %v1975
    %v1977 = vand.u32 %v235, 4294901760
    %1978 = vmatpush1.msra.mxu0 %v1977
    %1979 = vmatprep.subr.mxu0 0.0
    %1980 = vmatpush1.msra.mxu0 0.0
    %1981 = vmatprep.subr.mxu0 0.0
    %1982 = vmatpush1.msra.mxu0 0.0
    %1983 = vmatprep.subr.mxu0 0.0
    %1984 = vmatpush1.msra.mxu0 0.0
    %1985 = vmatprep.subr.mxu0 0.0
    %1986 = vmatpush1.msra.mxu0 0.0
    %1987 = vmatprep.subr.mxu0 0.0
    %1988 = vmatpush1.msra.mxu0 0.0
    %1989 = vmatprep.subr.mxu0 0.0
    %1990 = vmatpush1.msra.mxu0 0.0
    %1991 = vmatprep.subr.mxu0 0.0
    %1992 = vmatpush1.msra.mxu0 0.0
    %1993 = vmatprep.subr.mxu0 0.0
    %1994 = vmatpush1.msra.mxu0 0.0
    %1995 = vmatprep.subr.mxu0 0.0
    %1996 = vmatpush1.msra.mxu0 0.0
    %1997 = vmatprep.subr.mxu0 0.0
    %1998 = vmatpush1.msra.mxu0 0.0
    %1999 = vmatprep.subr.mxu0 0.0
    %2000 = vmatpush1.msra.mxu0 0.0
    %2001 = vmatprep.subr.mxu0 0.0
    %2002 = vmatpush1.msra.mxu0 0.0
    %2003 = vmatprep.subr.mxu0 0.0
    %2004 = vmatpush1.msra.mxu0 0.0
    %2005 = vmatprep.subr.mxu0 0.0
    %2006 = vmatpush1.msra.mxu0 0.0
    %2007 = vmatprep.subr.mxu0 0.0
    %2008 = vmatpush1.msra.mxu0 0.0
    %2009 = vmatprep.subr.mxu0 0.0
    %2010 = vmatpush1.msra.mxu0 0.0
    %2011 = vmatprep.mubr.f32.mxu0 0.0
    %v2012 = vand.u32 %v52, 4294901760
    %2013 = vmatmul.mubr.f32.gmra.mrb[0].mxu0 %v2012
    %v2014 = vpop.f32.mrb[0].mxu0
    %v2015 = vadd.f32 %v1911, %v2014
    %v2016 = vpop.f32.mrb[0].mxu0
    %v2017 = vadd.f32 %v1913, %v2016
    %2018 = vdwg.mxu0
    %v2019 = vand.u32 %v58, 4294901760
    %2020 = vmatprep.subr.mxu0 %v2019
    %v2021 = vand.u32 %v57, 4294901760
    %2022 = vmatpush1.msra.mxu0 %v2021
    %v2023 = vand.u32 %v70, 4294901760
    %2024 = vmatprep.subr.mxu0 %v2023
    %v2025 = vand.u32 %v69, 4294901760
    %2026 = vmatpush1.msra.mxu0 %v2025
    %v2027 = vand.u32 %v82, 4294901760
    %2028 = vmatprep.subr.mxu0 %v2027
    %v2029 = vand.u32 %v81, 4294901760
    %2030 = vmatpush1.msra.mxu0 %v2029
    %v2031 = vand.u32 %v94, 4294901760
    %2032 = vmatprep.subr.mxu0 %v2031
    %v2033 = vand.u32 %v93, 4294901760
    %2034 = vmatpush1.msra.mxu0 %v2033
    %v2035 = vand.u32 %v106, 4294901760
    %2036 = vmatprep.subr.mxu0 %v2035
    %v2037 = vand.u32 %v105, 4294901760
    %2038 = vmatpush1.msra.mxu0 %v2037
    %v2039 = vand.u32 %v118, 4294901760
    %2040 = vmatprep.subr.mxu0 %v2039
    %v2041 = vand.u32 %v117, 4294901760
    %2042 = vmatpush1.msra.mxu0 %v2041
    %v2043 = vand.u32 %v130, 4294901760
    %2044 = vmatprep.subr.mxu0 %v2043
    %v2045 = vand.u32 %v129, 4294901760
    %2046 = vmatpush1.msra.mxu0 %v2045
    %v2047 = vand.u32 %v142, 4294901760
    %2048 = vmatprep.subr.mxu0 %v2047
    %v2049 = vand.u32 %v141, 4294901760
    %2050 = vmatpush1.msra.mxu0 %v2049
    %v2051 = vand.u32 %v154, 4294901760
    %2052 = vmatprep.subr.mxu0 %v2051
    %v2053 = vand.u32 %v153, 4294901760
    %2054 = vmatpush1.msra.mxu0 %v2053
    %v2055 = vand.u32 %v166, 4294901760
    %2056 = vmatprep.subr.mxu0 %v2055
    %v2057 = vand.u32 %v165, 4294901760
    %2058 = vmatpush1.msra.mxu0 %v2057
    %v2059 = vand.u32 %v178, 4294901760
    %2060 = vmatprep.subr.mxu0 %v2059
    %v2061 = vand.u32 %v177, 4294901760
    %2062 = vmatpush1.msra.mxu0 %v2061
    %v2063 = vand.u32 %v190, 4294901760
    %2064 = vmatprep.subr.mxu0 %v2063
    %v2065 = vand.u32 %v189, 4294901760
    %2066 = vmatpush1.msra.mxu0 %v2065
    %v2067 = vand.u32 %v202, 4294901760
    %2068 = vmatprep.subr.mxu0 %v2067
    %v2069 = vand.u32 %v201, 4294901760
    %2070 = vmatpush1.msra.mxu0 %v2069
    %v2071 = vand.u32 %v214, 4294901760
    %2072 = vmatprep.subr.mxu0 %v2071
    %v2073 = vand.u32 %v213, 4294901760
    %2074 = vmatpush1.msra.mxu0 %v2073
    %v2075 = vand.u32 %v226, 4294901760
    %2076 = vmatprep.subr.mxu0 %v2075
    %v2077 = vand.u32 %v225, 4294901760
    %2078 = vmatpush1.msra.mxu0 %v2077
    %v2079 = vand.u32 %v238, 4294901760
    %2080 = vmatprep.subr.mxu0 %v2079
    %v2081 = vand.u32 %v237, 4294901760
    %2082 = vmatpush1.msra.mxu0 %v2081
    %2083 = vmatprep.subr.mxu0 0.0
    %2084 = vmatpush1.msra.mxu0 0.0
    %2085 = vmatprep.subr.mxu0 0.0
    %2086 = vmatpush1.msra.mxu0 0.0
    %2087 = vmatprep.subr.mxu0 0.0
    %2088 = vmatpush1.msra.mxu0 0.0
    %2089 = vmatprep.subr.mxu0 0.0
    %2090 = vmatpush1.msra.mxu0 0.0
    %2091 = vmatprep.subr.mxu0 0.0
    %2092 = vmatpush1.msra.mxu0 0.0
    %2093 = vmatprep.subr.mxu0 0.0
    %2094 = vmatpush1.msra.mxu0 0.0
    %2095 = vmatprep.subr.mxu0 0.0
    %2096 = vmatpush1.msra.mxu0 0.0
    %2097 = vmatprep.subr.mxu0 0.0
    %2098 = vmatpush1.msra.mxu0 0.0
    %2099 = vmatprep.subr.mxu0 0.0
    %2100 = vmatpush1.msra.mxu0 0.0
    %2101 = vmatprep.subr.mxu0 0.0
    %2102 = vmatpush1.msra.mxu0 0.0
    %2103 = vmatprep.subr.mxu0 0.0
    %2104 = vmatpush1.msra.mxu0 0.0
    %2105 = vmatprep.subr.mxu0 0.0
    %2106 = vmatpush1.msra.mxu0 0.0
    %2107 = vmatprep.subr.mxu0 0.0
    %2108 = vmatpush1.msra.mxu0 0.0
    %2109 = vmatprep.subr.mxu0 0.0
    %2110 = vmatpush1.msra.mxu0 0.0
    %2111 = vmatprep.subr.mxu0 0.0
    %2112 = vmatpush1.msra.mxu0 0.0
    %2113 = vmatprep.subr.mxu0 0.0
    %2114 = vmatpush1.msra.mxu0 0.0
    %2115 = vmatprep.mubr.f32.mxu0 0.0
    %v2116 = vand.u32 %v52, 4294901760
    %v2117 = vsub.f32 %v52, %v2116
    %v2118 = vand.u32 %v2117, 4294901760
    %v2119 = vsub.f32 %v2117, %v2118
    %v2120 = vand.u32 %v2119, 4294901760
    %2121 = vmatmul.mubr.f32.gmra.mrb[0].mxu0 %v2120
    %v2122 = vpop.f32.mrb[0].mxu0
    %v2123 = vadd.f32 %v268, %v2122
    %v2124 = vpop.f32.mrb[0].mxu0
    %v2125 = vadd.f32 %v272, %v2124
    %2126 = vdwg.mxu0
    %v2127 = vand.u32 %v58, 4294901760
    %v2128 = vsub.f32 %v58, %v2127
    %v2129 = vand.u32 %v2128, 4294901760
    %v2130 = vsub.f32 %v2128, %v2129
    %v2131 = vand.u32 %v2130, 4294901760
    %2132 = vmatprep.subr.mxu0 %v2131
    %v2133 = vand.u32 %v57, 4294901760
    %v2134 = vsub.f32 %v57, %v2133
    %v2135 = vand.u32 %v2134, 4294901760
    %v2136 = vsub.f32 %v2134, %v2135
    %v2137 = vand.u32 %v2136, 4294901760
    %2138 = vmatpush1.msra.mxu0 %v2137
    %v2139 = vand.u32 %v70, 4294901760
    %v2140 = vsub.f32 %v70, %v2139
    %v2141 = vand.u32 %v2140, 4294901760
    %v2142 = vsub.f32 %v2140, %v2141
    %v2143 = vand.u32 %v2142, 4294901760
    %2144 = vmatprep.subr.mxu0 %v2143
    %v2145 = vand.u32 %v69, 4294901760
    %v2146 = vsub.f32 %v69, %v2145
    %v2147 = vand.u32 %v2146, 4294901760
    %v2148 = vsub.f32 %v2146, %v2147
    %v2149 = vand.u32 %v2148, 4294901760
    %2150 = vmatpush1.msra.mxu0 %v2149
    %v2151 = vand.u32 %v82, 4294901760
    %v2152 = vsub.f32 %v82, %v2151
    %v2153 = vand.u32 %v2152, 4294901760
    %v2154 = vsub.f32 %v2152, %v2153
    %v2155 = vand.u32 %v2154, 4294901760
    %2156 = vmatprep.subr.mxu0 %v2155
    %v2157 = vand.u32 %v81, 4294901760
    %v2158 = vsub.f32 %v81, %v2157
    %v2159 = vand.u32 %v2158, 4294901760
    %v2160 = vsub.f32 %v2158, %v2159
    %v2161 = vand.u32 %v2160, 4294901760
    %2162 = vmatpush1.msra.mxu0 %v2161
    %v2163 = vand.u32 %v94, 4294901760
    %v2164 = vsub.f32 %v94, %v2163
    %v2165 = vand.u32 %v2164, 4294901760
    %v2166 = vsub.f32 %v2164, %v2165
    %v2167 = vand.u32 %v2166, 4294901760
    %2168 = vmatprep.subr.mxu0 %v2167
    %v2169 = vand.u32 %v93, 4294901760
    %v2170 = vsub.f32 %v93, %v2169
    %v2171 = vand.u32 %v2170, 4294901760
    %v2172 = vsub.f32 %v2170, %v2171
    %v2173 = vand.u32 %v2172, 4294901760
    %2174 = vmatpush1.msra.mxu0 %v2173
    %v2175 = vand.u32 %v106, 4294901760
    %v2176 = vsub.f32 %v106, %v2175
    %v2177 = vand.u32 %v2176, 4294901760
    %v2178 = vsub.f32 %v2176, %v2177
    %v2179 = vand.u32 %v2178, 4294901760
    %2180 = vmatprep.subr.mxu0 %v2179
    %v2181 = vand.u32 %v105, 4294901760
    %v2182 = vsub.f32 %v105, %v2181
    %v2183 = vand.u32 %v2182, 4294901760
    %v2184 = vsub.f32 %v2182, %v2183
    %v2185 = vand.u32 %v2184, 4294901760
    %2186 = vmatpush1.msra.mxu0 %v2185
    %v2187 = vand.u32 %v118, 4294901760
    %v2188 = vsub.f32 %v118, %v2187
    %v2189 = vand.u32 %v2188, 4294901760
    %v2190 = vsub.f32 %v2188, %v2189
    %v2191 = vand.u32 %v2190, 4294901760
    %2192 = vmatprep.subr.mxu0 %v2191
    %v2193 = vand.u32 %v117, 4294901760
    %v2194 = vsub.f32 %v117, %v2193
    %v2195 = vand.u32 %v2194, 4294901760
    %v2196 = vsub.f32 %v2194, %v2195
    %v2197 = vand.u32 %v2196, 4294901760
    %2198 = vmatpush1.msra.mxu0 %v2197
    %v2199 = vand.u32 %v130, 4294901760
    %v2200 = vsub.f32 %v130, %v2199
    %v2201 = vand.u32 %v2200, 4294901760
    %v2202 = vsub.f32 %v2200, %v2201
    %v2203 = vand.u32 %v2202, 4294901760
    %2204 = vmatprep.subr.mxu0 %v2203
    %v2205 = vand.u32 %v129, 4294901760
    %v2206 = vsub.f32 %v129, %v2205
    %v2207 = vand.u32 %v2206, 4294901760
    %v2208 = vsub.f32 %v2206, %v2207
    %v2209 = vand.u32 %v2208, 4294901760
    %2210 = vmatpush1.msra.mxu0 %v2209
    %v2211 = vand.u32 %v142, 4294901760
    %v2212 = vsub.f32 %v142, %v2211
    %v2213 = vand.u32 %v2212, 4294901760
    %v2214 = vsub.f32 %v2212, %v2213
    %v2215 = vand.u32 %v2214, 4294901760
    %2216 = vmatprep.subr.mxu0 %v2215
    %v2217 = vand.u32 %v141, 4294901760
    %v2218 = vsub.f32 %v141, %v2217
    %v2219 = vand.u32 %v2218, 4294901760
    %v2220 = vsub.f32 %v2218, %v2219
    %v2221 = vand.u32 %v2220, 4294901760
    %2222 = vmatpush1.msra.mxu0 %v2221
    %v2223 = vand.u32 %v154, 4294901760
    %v2224 = vsub.f32 %v154, %v2223
    %v2225 = vand.u32 %v2224, 4294901760
    %v2226 = vsub.f32 %v2224, %v2225
    %v2227 = vand.u32 %v2226, 4294901760
    %2228 = vmatprep.subr.mxu0 %v2227
    %v2229 = vand.u32 %v153, 4294901760
    %v2230 = vsub.f32 %v153, %v2229
    %v2231 = vand.u32 %v2230, 4294901760
    %v2232 = vsub.f32 %v2230, %v2231
    %v2233 = vand.u32 %v2232, 4294901760
    %2234 = vmatpush1.msra.mxu0 %v2233
    %v2235 = vand.u32 %v166, 4294901760
    %v2236 = vsub.f32 %v166, %v2235
    %v2237 = vand.u32 %v2236, 4294901760
    %v2238 = vsub.f32 %v2236, %v2237
    %v2239 = vand.u32 %v2238, 4294901760
    %2240 = vmatprep.subr.mxu0 %v2239
    %v2241 = vand.u32 %v165, 4294901760
    %v2242 = vsub.f32 %v165, %v2241
    %v2243 = vand.u32 %v2242, 4294901760
    %v2244 = vsub.f32 %v2242, %v2243
    %v2245 = vand.u32 %v2244, 4294901760
    %2246 = vmatpush1.msra.mxu0 %v2245
    %v2247 = vand.u32 %v178, 4294901760
    %v2248 = vsub.f32 %v178, %v2247
    %v2249 = vand.u32 %v2248, 4294901760
    %v2250 = vsub.f32 %v2248, %v2249
    %v2251 = vand.u32 %v2250, 4294901760
    %2252 = vmatprep.subr.mxu0 %v2251
    %v2253 = vand.u32 %v177, 4294901760
    %v2254 = vsub.f32 %v177, %v2253
    %v2255 = vand.u32 %v2254, 4294901760
    %v2256 = vsub.f32 %v2254, %v2255
    %v2257 = vand.u32 %v2256, 4294901760
    %2258 = vmatpush1.msra.mxu0 %v2257
    %v2259 = vand.u32 %v190, 4294901760
    %v2260 = vsub.f32 %v190, %v2259
    %v2261 = vand.u32 %v2260, 4294901760
    %v2262 = vsub.f32 %v2260, %v2261
    %v2263 = vand.u32 %v2262, 4294901760
    %2264 = vmatprep.subr.mxu0 %v2263
    %v2265 = vand.u32 %v189, 4294901760
    %v2266 = vsub.f32 %v189, %v2265
    %v2267 = vand.u32 %v2266, 4294901760
    %v2268 = vsub.f32 %v2266, %v2267
    %v2269 = vand.u32 %v2268, 4294901760
    %2270 = vmatpush1.msra.mxu0 %v2269
    %v2271 = vand.u32 %v202, 4294901760
    %v2272 = vsub.f32 %v202, %v2271
    %v2273 = vand.u32 %v2272, 4294901760
    %v2274 = vsub.f32 %v2272, %v2273
    %v2275 = vand.u32 %v2274, 4294901760
    %2276 = vmatprep.subr.mxu0 %v2275
    %v2277 = vand.u32 %v201, 4294901760
    %v2278 = vsub.f32 %v201, %v2277
    %v2279 = vand.u32 %v2278, 4294901760
    %v2280 = vsub.f32 %v2278, %v2279
    %v2281 = vand.u32 %v2280, 4294901760
    %2282 = vmatpush1.msra.mxu0 %v2281
    %v2283 = vand.u32 %v214, 4294901760
    %v2284 = vsub.f32 %v214, %v2283
    %v2285 = vand.u32 %v2284, 4294901760
    %v2286 = vsub.f32 %v2284, %v2285
    %v2287 = vand.u32 %v2286, 4294901760
    %2288 = vmatprep.subr.mxu0 %v2287
    %v2289 = vand.u32 %v213, 4294901760
    %v2290 = vsub.f32 %v213, %v2289
    %v2291 = vand.u32 %v2290, 4294901760
    %v2292 = vsub.f32 %v2290, %v2291
    %v2293 = vand.u32 %v2292, 4294901760
    %2294 = vmatpush1.msra.mxu0 %v2293
    %v2295 = vand.u32 %v226, 4294901760
    %v2296 = vsub.f32 %v226, %v2295
    %v2297 = vand.u32 %v2296, 4294901760
    %v2298 = vsub.f32 %v2296, %v2297
    %v2299 = vand.u32 %v2298, 4294901760
    %2300 = vmatprep.subr.mxu0 %v2299
    %v2301 = vand.u32 %v225, 4294901760
    %v2302 = vsub.f32 %v225, %v2301
    %v2303 = vand.u32 %v2302, 4294901760
    %v2304 = vsub.f32 %v2302, %v2303
    %v2305 = vand.u32 %v2304, 4294901760
    %2306 = vmatpush1.msra.mxu0 %v2305
    %v2307 = vand.u32 %v238, 4294901760
    %v2308 = vsub.f32 %v238, %v2307
    %v2309 = vand.u32 %v2308, 4294901760
    %v2310 = vsub.f32 %v2308, %v2309
    %v2311 = vand.u32 %v2310, 4294901760
    %2312 = vmatprep.subr.mxu0 %v2311
    %v2313 = vand.u32 %v237, 4294901760
    %v2314 = vsub.f32 %v237, %v2313
    %v2315 = vand.u32 %v2314, 4294901760
    %v2316 = vsub.f32 %v2314, %v2315
    %v2317 = vand.u32 %v2316, 4294901760
    %2318 = vmatpush1.msra.mxu0 %v2317
    %2319 = vmatprep.subr.mxu0 0.0
    %2320 = vmatpush1.msra.mxu0 0.0
    %2321 = vmatprep.subr.mxu0 0.0
    %2322 = vmatpush1.msra.mxu0 0.0
    %2323 = vmatprep.subr.mxu0 0.0
    %2324 = vmatpush1.msra.mxu0 0.0
    %2325 = vmatprep.subr.mxu0 0.0
    %2326 = vmatpush1.msra.mxu0 0.0
    %2327 = vmatprep.subr.mxu0 0.0
    %2328 = vmatpush1.msra.mxu0 0.0
    %2329 = vmatprep.subr.mxu0 0.0
    %2330 = vmatpush1.msra.mxu0 0.0
    %2331 = vmatprep.subr.mxu0 0.0
    %2332 = vmatpush1.msra.mxu0 0.0
    %2333 = vmatprep.subr.mxu0 0.0
    %2334 = vmatpush1.msra.mxu0 0.0
    %2335 = vmatprep.subr.mxu0 0.0
    %2336 = vmatpush1.msra.mxu0 0.0
    %2337 = vmatprep.subr.mxu0 0.0
    %2338 = vmatpush1.msra.mxu0 0.0
    %2339 = vmatprep.subr.mxu0 0.0
    %2340 = vmatpush1.msra.mxu0 0.0
    %2341 = vmatprep.subr.mxu0 0.0
    %2342 = vmatpush1.msra.mxu0 0.0
    %2343 = vmatprep.subr.mxu0 0.0
    %2344 = vmatpush1.msra.mxu0 0.0
    %2345 = vmatprep.subr.mxu0 0.0
    %2346 = vmatpush1.msra.mxu0 0.0
    %2347 = vmatprep.subr.mxu0 0.0
    %2348 = vmatpush1.msra.mxu0 0.0
    %2349 = vmatprep.subr.mxu0 0.0
    %2350 = vmatpush1.msra.mxu0 0.0
    %2351 = vmatprep.mubr.f32.mxu0 0.0
    %v2352 = vand.u32 %v52, 4294901760
    %2353 = vmatmul.mubr.f32.gmra.mrb[0].mxu0 %v2352
    %v2354 = vpop.f32.mrb[0].mxu0
    %v2355 = vadd.f32 %v2123, %v2354
    %v2356 = vpop.f32.mrb[0].mxu0
    %v2357 = vadd.f32 %v2125, %v2356
    %2358 = vdwg.mxu0
    %v2359 = vand.u32 %v58, 4294901760
    %v2360 = vsub.f32 %v58, %v2359
    %2361 = vmatprep.subr.mxu0 %v2360
    %v2362 = vand.u32 %v57, 4294901760
    %v2363 = vsub.f32 %v57, %v2362
    %2364 = vmatpush1.msra.mxu0 %v2363
    %v2365 = vand.u32 %v70, 4294901760
    %v2366 = vsub.f32 %v70, %v2365
    %2367 = vmatprep.subr.mxu0 %v2366
    %v2368 = vand.u32 %v69, 4294901760
    %v2369 = vsub.f32 %v69, %v2368
    %2370 = vmatpush1.msra.mxu0 %v2369
    %v2371 = vand.u32 %v82, 4294901760
    %v2372 = vsub.f32 %v82, %v2371
    %2373 = vmatprep.subr.mxu0 %v2372
    %v2374 = vand.u32 %v81, 4294901760
    %v2375 = vsub.f32 %v81, %v2374
    %2376 = vmatpush1.msra.mxu0 %v2375
    %v2377 = vand.u32 %v94, 4294901760
    %v2378 = vsub.f32 %v94, %v2377
    %2379 = vmatprep.subr.mxu0 %v2378
    %v2380 = vand.u32 %v93, 4294901760
    %v2381 = vsub.f32 %v93, %v2380
    %2382 = vmatpush1.msra.mxu0 %v2381
    %v2383 = vand.u32 %v106, 4294901760
    %v2384 = vsub.f32 %v106, %v2383
    %2385 = vmatprep.subr.mxu0 %v2384
    %v2386 = vand.u32 %v105, 4294901760
    %v2387 = vsub.f32 %v105, %v2386
    %2388 = vmatpush1.msra.mxu0 %v2387
    %v2389 = vand.u32 %v118, 4294901760
    %v2390 = vsub.f32 %v118, %v2389
    %2391 = vmatprep.subr.mxu0 %v2390
    %v2392 = vand.u32 %v117, 4294901760
    %v2393 = vsub.f32 %v117, %v2392
    %2394 = vmatpush1.msra.mxu0 %v2393
    %v2395 = vand.u32 %v130, 4294901760
    %v2396 = vsub.f32 %v130, %v2395
    %2397 = vmatprep.subr.mxu0 %v2396
    %v2398 = vand.u32 %v129, 4294901760
    %v2399 = vsub.f32 %v129, %v2398
    %2400 = vmatpush1.msra.mxu0 %v2399
    %v2401 = vand.u32 %v142, 4294901760
    %v2402 = vsub.f32 %v142, %v2401
    %2403 = vmatprep.subr.mxu0 %v2402
    %v2404 = vand.u32 %v141, 4294901760
    %v2405 = vsub.f32 %v141, %v2404
    %2406 = vmatpush1.msra.mxu0 %v2405
    %v2407 = vand.u32 %v154, 4294901760
    %v2408 = vsub.f32 %v154, %v2407
    %2409 = vmatprep.subr.mxu0 %v2408
    %v2410 = vand.u32 %v153, 4294901760
    %v2411 = vsub.f32 %v153, %v2410
    %2412 = vmatpush1.msra.mxu0 %v2411
    %v2413 = vand.u32 %v166, 4294901760
    %v2414 = vsub.f32 %v166, %v2413
    %2415 = vmatprep.subr.mxu0 %v2414
    %v2416 = vand.u32 %v165, 4294901760
    %v2417 = vsub.f32 %v165, %v2416
    %2418 = vmatpush1.msra.mxu0 %v2417
    %v2419 = vand.u32 %v178, 4294901760
    %v2420 = vsub.f32 %v178, %v2419
    %2421 = vmatprep.subr.mxu0 %v2420
    %v2422 = vand.u32 %v177, 4294901760
    %v2423 = vsub.f32 %v177, %v2422
    %2424 = vmatpush1.msra.mxu0 %v2423
    %v2425 = vand.u32 %v190, 4294901760
    %v2426 = vsub.f32 %v190, %v2425
    %2427 = vmatprep.subr.mxu0 %v2426
    %v2428 = vand.u32 %v189, 4294901760
    %v2429 = vsub.f32 %v189, %v2428
    %2430 = vmatpush1.msra.mxu0 %v2429
    %v2431 = vand.u32 %v202, 4294901760
    %v2432 = vsub.f32 %v202, %v2431
    %2433 = vmatprep.subr.mxu0 %v2432
    %v2434 = vand.u32 %v201, 4294901760
    %v2435 = vsub.f32 %v201, %v2434
    %2436 = vmatpush1.msra.mxu0 %v2435
    %v2437 = vand.u32 %v214, 4294901760
    %v2438 = vsub.f32 %v214, %v2437
    %2439 = vmatprep.subr.mxu0 %v2438
    %v2440 = vand.u32 %v213, 4294901760
    %v2441 = vsub.f32 %v213, %v2440
    %2442 = vmatpush1.msra.mxu0 %v2441
    %v2443 = vand.u32 %v226, 4294901760
    %v2444 = vsub.f32 %v226, %v2443
    %2445 = vmatprep.subr.mxu0 %v2444
    %v2446 = vand.u32 %v225, 4294901760
    %v2447 = vsub.f32 %v225, %v2446
    %2448 = vmatpush1.msra.mxu0 %v2447
    %v2449 = vand.u32 %v238, 4294901760
    %v2450 = vsub.f32 %v238, %v2449
    %2451 = vmatprep.subr.mxu0 %v2450
    %v2452 = vand.u32 %v237, 4294901760
    %v2453 = vsub.f32 %v237, %v2452
    %2454 = vmatpush1.msra.mxu0 %v2453
    %2455 = vmatprep.subr.mxu0 0.0
    %2456 = vmatpush1.msra.mxu0 0.0
    %2457 = vmatprep.subr.mxu0 0.0
    %2458 = vmatpush1.msra.mxu0 0.0
    %2459 = vmatprep.subr.mxu0 0.0
    %2460 = vmatpush1.msra.mxu0 0.0
    %2461 = vmatprep.subr.mxu0 0.0
    %2462 = vmatpush1.msra.mxu0 0.0
    %2463 = vmatprep.subr.mxu0 0.0
    %2464 = vmatpush1.msra.mxu0 0.0
    %2465 = vmatprep.subr.mxu0 0.0
    %2466 = vmatpush1.msra.mxu0 0.0
    %2467 = vmatprep.subr.mxu0 0.0
    %2468 = vmatpush1.msra.mxu0 0.0
    %2469 = vmatprep.subr.mxu0 0.0
    %2470 = vmatpush1.msra.mxu0 0.0
    %2471 = vmatprep.subr.mxu0 0.0
    %2472 = vmatpush1.msra.mxu0 0.0
    %2473 = vmatprep.subr.mxu0 0.0
    %2474 = vmatpush1.msra.mxu0 0.0
    %2475 = vmatprep.subr.mxu0 0.0
    %2476 = vmatpush1.msra.mxu0 0.0
    %2477 = vmatprep.subr.mxu0 0.0
    %2478 = vmatpush1.msra.mxu0 0.0
    %2479 = vmatprep.subr.mxu0 0.0
    %2480 = vmatpush1.msra.mxu0 0.0
    %2481 = vmatprep.subr.mxu0 0.0
    %2482 = vmatpush1.msra.mxu0 0.0
    %2483 = vmatprep.subr.mxu0 0.0
    %2484 = vmatpush1.msra.mxu0 0.0
    %2485 = vmatprep.subr.mxu0 0.0
    %2486 = vmatpush1.msra.mxu0 0.0
    %2487 = vmatprep.mubr.f32.mxu0 0.0
    %v2488 = vand.u32 %v52, 4294901760
    %v2489 = vsub.f32 %v52, %v2488
    %2490 = vmatmul.mubr.f32.gmra.mrb[0].mxu0 %v2489
    %v2491 = vpop.f32.mrb[0].mxu0
    %v2492 = vadd.f32 %v2355, %v2491
    %v2493 = vpop.f32.mrb[0].mxu0
    %v2494 = vadd.f32 %v2357, %v2493
    %2495 = vdwg.mxu0
    %v2496 = vand.u32 %v58, 4294901760
    %2497 = vmatprep.subr.mxu0 %v2496
    %v2498 = vand.u32 %v57, 4294901760
    %2499 = vmatpush1.msra.mxu0 %v2498
    %v2500 = vand.u32 %v70, 4294901760
    %2501 = vmatprep.subr.mxu0 %v2500
    %v2502 = vand.u32 %v69, 4294901760
    %2503 = vmatpush1.msra.mxu0 %v2502
    %v2504 = vand.u32 %v82, 4294901760
    %2505 = vmatprep.subr.mxu0 %v2504
    %v2506 = vand.u32 %v81, 4294901760
    %2507 = vmatpush1.msra.mxu0 %v2506
    %v2508 = vand.u32 %v94, 4294901760
    %2509 = vmatprep.subr.mxu0 %v2508
    %v2510 = vand.u32 %v93, 4294901760
    %2511 = vmatpush1.msra.mxu0 %v2510
    %v2512 = vand.u32 %v106, 4294901760
    %2513 = vmatprep.subr.mxu0 %v2512
    %v2514 = vand.u32 %v105, 4294901760
    %2515 = vmatpush1.msra.mxu0 %v2514
    %v2516 = vand.u32 %v118, 4294901760
    %2517 = vmatprep.subr.mxu0 %v2516
    %v2518 = vand.u32 %v117, 4294901760
    %2519 = vmatpush1.msra.mxu0 %v2518
    %v2520 = vand.u32 %v130, 4294901760
    %2521 = vmatprep.subr.mxu0 %v2520
    %v2522 = vand.u32 %v129, 4294901760
    %2523 = vmatpush1.msra.mxu0 %v2522
    %v2524 = vand.u32 %v142, 4294901760
    %2525 = vmatprep.subr.mxu0 %v2524
    %v2526 = vand.u32 %v141, 4294901760
    %2527 = vmatpush1.msra.mxu0 %v2526
    %v2528 = vand.u32 %v154, 4294901760
    %2529 = vmatprep.subr.mxu0 %v2528
    %v2530 = vand.u32 %v153, 4294901760
    %2531 = vmatpush1.msra.mxu0 %v2530
    %v2532 = vand.u32 %v166, 4294901760
    %2533 = vmatprep.subr.mxu0 %v2532
    %v2534 = vand.u32 %v165, 4294901760
    %2535 = vmatpush1.msra.mxu0 %v2534
    %v2536 = vand.u32 %v178, 4294901760
    %2537 = vmatprep.subr.mxu0 %v2536
    %v2538 = vand.u32 %v177, 4294901760
    %2539 = vmatpush1.msra.mxu0 %v2538
    %v2540 = vand.u32 %v190, 4294901760
    %2541 = vmatprep.subr.mxu0 %v2540
    %v2542 = vand.u32 %v189, 4294901760
    %2543 = vmatpush1.msra.mxu0 %v2542
    %v2544 = vand.u32 %v202, 4294901760
    %2545 = vmatprep.subr.mxu0 %v2544
    %v2546 = vand.u32 %v201, 4294901760
    %2547 = vmatpush1.msra.mxu0 %v2546
    %v2548 = vand.u32 %v214, 4294901760
    %2549 = vmatprep.subr.mxu0 %v2548
    %v2550 = vand.u32 %v213, 4294901760
    %2551 = vmatpush1.msra.mxu0 %v2550
    %v2552 = vand.u32 %v226, 4294901760
    %2553 = vmatprep.subr.mxu0 %v2552
    %v2554 = vand.u32 %v225, 4294901760
    %2555 = vmatpush1.msra.mxu0 %v2554
    %v2556 = vand.u32 %v238, 4294901760
    %2557 = vmatprep.subr.mxu0 %v2556
    %v2558 = vand.u32 %v237, 4294901760
    %2559 = vmatpush1.msra.mxu0 %v2558
    %2560 = vmatprep.subr.mxu0 0.0
    %2561 = vmatpush1.msra.mxu0 0.0
    %2562 = vmatprep.subr.mxu0 0.0
    %2563 = vmatpush1.msra.mxu0 0.0
    %2564 = vmatprep.subr.mxu0 0.0
    %2565 = vmatpush1.msra.mxu0 0.0
    %2566 = vmatprep.subr.mxu0 0.0
    %2567 = vmatpush1.msra.mxu0 0.0
    %2568 = vmatprep.subr.mxu0 0.0
    %2569 = vmatpush1.msra.mxu0 0.0
    %2570 = vmatprep.subr.mxu0 0.0
    %2571 = vmatpush1.msra.mxu0 0.0
    %2572 = vmatprep.subr.mxu0 0.0
    %2573 = vmatpush1.msra.mxu0 0.0
    %2574 = vmatprep.subr.mxu0 0.0
    %2575 = vmatpush1.msra.mxu0 0.0
    %2576 = vmatprep.subr.mxu0 0.0
    %2577 = vmatpush1.msra.mxu0 0.0
    %2578 = vmatprep.subr.mxu0 0.0
    %2579 = vmatpush1.msra.mxu0 0.0
    %2580 = vmatprep.subr.mxu0 0.0
    %2581 = vmatpush1.msra.mxu0 0.0
    %2582 = vmatprep.subr.mxu0 0.0
    %2583 = vmatpush1.msra.mxu0 0.0
    %2584 = vmatprep.subr.mxu0 0.0
    %2585 = vmatpush1.msra.mxu0 0.0
    %2586 = vmatprep.subr.mxu0 0.0
    %2587 = vmatpush1.msra.mxu0 0.0
    %2588 = vmatprep.subr.mxu0 0.0
    %2589 = vmatpush1.msra.mxu0 0.0
    %2590 = vmatprep.subr.mxu0 0.0
    %2591 = vmatpush1.msra.mxu0 0.0
    %2592 = vmatprep.mubr.f32.mxu0 0.0
    %v2593 = vand.u32 %v52, 4294901760
    %v2594 = vsub.f32 %v52, %v2593
    %v2595 = vand.u32 %v2594, 4294901760
    %2596 = vmatmul.mubr.f32.gmra.mrb[0].mxu0 %v2595
    %v2597 = vpop.f32.mrb[0].mxu0
    %v2598 = vadd.f32 %v2492, %v2597
    %v2599 = vpop.f32.mrb[0].mxu0
    %v2600 = vadd.f32 %v2494, %v2599
    %2601 = vdwg.mxu0
    %v2602 = vand.u32 %v58, 4294901760
    %v2603 = vsub.f32 %v58, %v2602
    %v2604 = vand.u32 %v2603, 4294901760
    %2605 = vmatprep.subr.mxu0 %v2604
    %v2606 = vand.u32 %v57, 4294901760
    %v2607 = vsub.f32 %v57, %v2606
    %v2608 = vand.u32 %v2607, 4294901760
    %2609 = vmatpush1.msra.mxu0 %v2608
    %v2610 = vand.u32 %v70, 4294901760
    %v2611 = vsub.f32 %v70, %v2610
    %v2612 = vand.u32 %v2611, 4294901760
    %2613 = vmatprep.subr.mxu0 %v2612
    %v2614 = vand.u32 %v69, 4294901760
    %v2615 = vsub.f32 %v69, %v2614
    %v2616 = vand.u32 %v2615, 4294901760
    %2617 = vmatpush1.msra.mxu0 %v2616
    %v2618 = vand.u32 %v82, 4294901760
    %v2619 = vsub.f32 %v82, %v2618
    %v2620 = vand.u32 %v2619, 4294901760
    %2621 = vmatprep.subr.mxu0 %v2620
    %v2622 = vand.u32 %v81, 4294901760
    %v2623 = vsub.f32 %v81, %v2622
    %v2624 = vand.u32 %v2623, 4294901760
    %2625 = vmatpush1.msra.mxu0 %v2624
    %v2626 = vand.u32 %v94, 4294901760
    %v2627 = vsub.f32 %v94, %v2626
    %v2628 = vand.u32 %v2627, 4294901760
    %2629 = vmatprep.subr.mxu0 %v2628
    %v2630 = vand.u32 %v93, 4294901760
    %v2631 = vsub.f32 %v93, %v2630
    %v2632 = vand.u32 %v2631, 4294901760
    %2633 = vmatpush1.msra.mxu0 %v2632
    %v2634 = vand.u32 %v106, 4294901760
    %v2635 = vsub.f32 %v106, %v2634
    %v2636 = vand.u32 %v2635, 4294901760
    %2637 = vmatprep.subr.mxu0 %v2636
    %v2638 = vand.u32 %v105, 4294901760
    %v2639 = vsub.f32 %v105, %v2638
    %v2640 = vand.u32 %v2639, 4294901760
    %2641 = vmatpush1.msra.mxu0 %v2640
    %v2642 = vand.u32 %v118, 4294901760
    %v2643 = vsub.f32 %v118, %v2642
    %v2644 = vand.u32 %v2643, 4294901760
    %2645 = vmatprep.subr.mxu0 %v2644
    %v2646 = vand.u32 %v117, 4294901760
    %v2647 = vsub.f32 %v117, %v2646
    %v2648 = vand.u32 %v2647, 4294901760
    %2649 = vmatpush1.msra.mxu0 %v2648
    %v2650 = vand.u32 %v130, 4294901760
    %v2651 = vsub.f32 %v130, %v2650
    %v2652 = vand.u32 %v2651, 4294901760
    %2653 = vmatprep.subr.mxu0 %v2652
    %v2654 = vand.u32 %v129, 4294901760
    %v2655 = vsub.f32 %v129, %v2654
    %v2656 = vand.u32 %v2655, 4294901760
    %2657 = vmatpush1.msra.mxu0 %v2656
    %v2658 = vand.u32 %v142, 4294901760
    %v2659 = vsub.f32 %v142, %v2658
    %v2660 = vand.u32 %v2659, 4294901760
    %2661 = vmatprep.subr.mxu0 %v2660
    %v2662 = vand.u32 %v141, 4294901760
    %v2663 = vsub.f32 %v141, %v2662
    %v2664 = vand.u32 %v2663, 4294901760
    %2665 = vmatpush1.msra.mxu0 %v2664
    %v2666 = vand.u32 %v154, 4294901760
    %v2667 = vsub.f32 %v154, %v2666
    %v2668 = vand.u32 %v2667, 4294901760
    %2669 = vmatprep.subr.mxu0 %v2668
    %v2670 = vand.u32 %v153, 4294901760
    %v2671 = vsub.f32 %v153, %v2670
    %v2672 = vand.u32 %v2671, 4294901760
    %2673 = vmatpush1.msra.mxu0 %v2672
    %v2674 = vand.u32 %v166, 4294901760
    %v2675 = vsub.f32 %v166, %v2674
    %v2676 = vand.u32 %v2675, 4294901760
    %2677 = vmatprep.subr.mxu0 %v2676
    %v2678 = vand.u32 %v165, 4294901760
    %v2679 = vsub.f32 %v165, %v2678
    %v2680 = vand.u32 %v2679, 4294901760
    %2681 = vmatpush1.msra.mxu0 %v2680
    %v2682 = vand.u32 %v178, 4294901760
    %v2683 = vsub.f32 %v178, %v2682
    %v2684 = vand.u32 %v2683, 4294901760
    %2685 = vmatprep.subr.mxu0 %v2684
    %v2686 = vand.u32 %v177, 4294901760
    %v2687 = vsub.f32 %v177, %v2686
    %v2688 = vand.u32 %v2687, 4294901760
    %2689 = vmatpush1.msra.mxu0 %v2688
    %v2690 = vand.u32 %v190, 4294901760
    %v2691 = vsub.f32 %v190, %v2690
    %v2692 = vand.u32 %v2691, 4294901760
    %2693 = vmatprep.subr.mxu0 %v2692
    %v2694 = vand.u32 %v189, 4294901760
    %v2695 = vsub.f32 %v189, %v2694
    %v2696 = vand.u32 %v2695, 4294901760
    %2697 = vmatpush1.msra.mxu0 %v2696
    %v2698 = vand.u32 %v202, 4294901760
    %v2699 = vsub.f32 %v202, %v2698
    %v2700 = vand.u32 %v2699, 4294901760
    %2701 = vmatprep.subr.mxu0 %v2700
    %v2702 = vand.u32 %v201, 4294901760
    %v2703 = vsub.f32 %v201, %v2702
    %v2704 = vand.u32 %v2703, 4294901760
    %2705 = vmatpush1.msra.mxu0 %v2704
    %v2706 = vand.u32 %v214, 4294901760
    %v2707 = vsub.f32 %v214, %v2706
    %v2708 = vand.u32 %v2707, 4294901760
    %2709 = vmatprep.subr.mxu0 %v2708
    %v2710 = vand.u32 %v213, 4294901760
    %v2711 = vsub.f32 %v213, %v2710
    %v2712 = vand.u32 %v2711, 4294901760
    %2713 = vmatpush1.msra.mxu0 %v2712
    %v2714 = vand.u32 %v226, 4294901760
    %v2715 = vsub.f32 %v226, %v2714
    %v2716 = vand.u32 %v2715, 4294901760
    %2717 = vmatprep.subr.mxu0 %v2716
    %v2718 = vand.u32 %v225, 4294901760
    %v2719 = vsub.f32 %v225, %v2718
    %v2720 = vand.u32 %v2719, 4294901760
    %2721 = vmatpush1.msra.mxu0 %v2720
    %v2722 = vand.u32 %v238, 4294901760
    %v2723 = vsub.f32 %v238, %v2722
    %v2724 = vand.u32 %v2723, 4294901760
    %2725 = vmatprep.subr.mxu0 %v2724
    %v2726 = vand.u32 %v237, 4294901760
    %v2727 = vsub.f32 %v237, %v2726
    %v2728 = vand.u32 %v2727, 4294901760
    %2729 = vmatpush1.msra.mxu0 %v2728
    %2730 = vmatprep.subr.mxu0 0.0
    %2731 = vmatpush1.msra.mxu0 0.0
    %2732 = vmatprep.subr.mxu0 0.0
    %2733 = vmatpush1.msra.mxu0 0.0
    %2734 = vmatprep.subr.mxu0 0.0
    %2735 = vmatpush1.msra.mxu0 0.0
    %2736 = vmatprep.subr.mxu0 0.0
    %2737 = vmatpush1.msra.mxu0 0.0
    %2738 = vmatprep.subr.mxu0 0.0
    %2739 = vmatpush1.msra.mxu0 0.0
    %2740 = vmatprep.subr.mxu0 0.0
    %2741 = vmatpush1.msra.mxu0 0.0
    %2742 = vmatprep.subr.mxu0 0.0
    %2743 = vmatpush1.msra.mxu0 0.0
    %2744 = vmatprep.subr.mxu0 0.0
    %2745 = vmatpush1.msra.mxu0 0.0
    %2746 = vmatprep.subr.mxu0 0.0
    %2747 = vmatpush1.msra.mxu0 0.0
    %2748 = vmatprep.subr.mxu0 0.0
    %2749 = vmatpush1.msra.mxu0 0.0
    %2750 = vmatprep.subr.mxu0 0.0
    %2751 = vmatpush1.msra.mxu0 0.0
    %2752 = vmatprep.subr.mxu0 0.0
    %2753 = vmatpush1.msra.mxu0 0.0
    %2754 = vmatprep.subr.mxu0 0.0
    %2755 = vmatpush1.msra.mxu0 0.0
    %2756 = vmatprep.subr.mxu0 0.0
    %2757 = vmatpush1.msra.mxu0 0.0
    %2758 = vmatprep.subr.mxu0 0.0
    %2759 = vmatpush1.msra.mxu0 0.0
    %2760 = vmatprep.subr.mxu0 0.0
    %2761 = vmatpush1.msra.mxu0 0.0
    %2762 = vmatprep.mubr.f32.mxu0 0.0
    %v2763 = vand.u32 %v52, 4294901760
    %2764 = vmatmul.mubr.f32.gmra.mrb[0].mxu0 %v2763
    %v2765 = vpop.f32.mrb[0].mxu0
    %v2766 = vadd.f32 %v2598, %v2765
    %v2767 = vpop.f32.mrb[0].mxu0
    %v2768 = vadd.f32 %v2600, %v2767
    %2769 = vdwg.mxu0
    %v2770 = vand.u32 %v58, 4294901760
    %2771 = vmatprep.subr.mxu0 %v2770
    %v2772 = vand.u32 %v57, 4294901760
    %2773 = vmatpush1.msra.mxu0 %v2772
    %v2774 = vand.u32 %v70, 4294901760
    %2775 = vmatprep.subr.mxu0 %v2774
    %v2776 = vand.u32 %v69, 4294901760
    %2777 = vmatpush1.msra.mxu0 %v2776
    %v2778 = vand.u32 %v82, 4294901760
    %2779 = vmatprep.subr.mxu0 %v2778
    %v2780 = vand.u32 %v81, 4294901760
    %2781 = vmatpush1.msra.mxu0 %v2780
    %v2782 = vand.u32 %v94, 4294901760
    %2783 = vmatprep.subr.mxu0 %v2782
    %v2784 = vand.u32 %v93, 4294901760
    %2785 = vmatpush1.msra.mxu0 %v2784
    %v2786 = vand.u32 %v106, 4294901760
    %2787 = vmatprep.subr.mxu0 %v2786
    %v2788 = vand.u32 %v105, 4294901760
    %2789 = vmatpush1.msra.mxu0 %v2788
    %v2790 = vand.u32 %v118, 4294901760
    %2791 = vmatprep.subr.mxu0 %v2790
    %v2792 = vand.u32 %v117, 4294901760
    %2793 = vmatpush1.msra.mxu0 %v2792
    %v2794 = vand.u32 %v130, 4294901760
    %2795 = vmatprep.subr.mxu0 %v2794
    %v2796 = vand.u32 %v129, 4294901760
    %2797 = vmatpush1.msra.mxu0 %v2796
    %v2798 = vand.u32 %v142, 4294901760
    %2799 = vmatprep.subr.mxu0 %v2798
    %v2800 = vand.u32 %v141, 4294901760
    %2801 = vmatpush1.msra.mxu0 %v2800
    %v2802 = vand.u32 %v154, 4294901760
    %2803 = vmatprep.subr.mxu0 %v2802
    %v2804 = vand.u32 %v153, 4294901760
    %2805 = vmatpush1.msra.mxu0 %v2804
    %v2806 = vand.u32 %v166, 4294901760
    %2807 = vmatprep.subr.mxu0 %v2806
    %v2808 = vand.u32 %v165, 4294901760
    %2809 = vmatpush1.msra.mxu0 %v2808
    %v2810 = vand.u32 %v178, 4294901760
    %2811 = vmatprep.subr.mxu0 %v2810
    %v2812 = vand.u32 %v177, 4294901760
    %2813 = vmatpush1.msra.mxu0 %v2812
    %v2814 = vand.u32 %v190, 4294901760
    %2815 = vmatprep.subr.mxu0 %v2814
    %v2816 = vand.u32 %v189, 4294901760
    %2817 = vmatpush1.msra.mxu0 %v2816
    %v2818 = vand.u32 %v202, 4294901760
    %2819 = vmatprep.subr.mxu0 %v2818
    %v2820 = vand.u32 %v201, 4294901760
    %2821 = vmatpush1.msra.mxu0 %v2820
    %v2822 = vand.u32 %v214, 4294901760
    %2823 = vmatprep.subr.mxu0 %v2822
    %v2824 = vand.u32 %v213, 4294901760
    %2825 = vmatpush1.msra.mxu0 %v2824
    %v2826 = vand.u32 %v226, 4294901760
    %2827 = vmatprep.subr.mxu0 %v2826
    %v2828 = vand.u32 %v225, 4294901760
    %2829 = vmatpush1.msra.mxu0 %v2828
    %v2830 = vand.u32 %v238, 4294901760
    %2831 = vmatprep.subr.mxu0 %v2830
    %v2832 = vand.u32 %v237, 4294901760
    %2833 = vmatpush1.msra.mxu0 %v2832
    %2834 = vmatprep.subr.mxu0 0.0
    %2835 = vmatpush1.msra.mxu0 0.0
    %2836 = vmatprep.subr.mxu0 0.0
    %2837 = vmatpush1.msra.mxu0 0.0
    %2838 = vmatprep.subr.mxu0 0.0
    %2839 = vmatpush1.msra.mxu0 0.0
    %2840 = vmatprep.subr.mxu0 0.0
    %2841 = vmatpush1.msra.mxu0 0.0
    %2842 = vmatprep.subr.mxu0 0.0
    %2843 = vmatpush1.msra.mxu0 0.0
    %2844 = vmatprep.subr.mxu0 0.0
    %2845 = vmatpush1.msra.mxu0 0.0
    %2846 = vmatprep.subr.mxu0 0.0
    %2847 = vmatpush1.msra.mxu0 0.0
    %2848 = vmatprep.subr.mxu0 0.0
    %2849 = vmatpush1.msra.mxu0 0.0
    %2850 = vmatprep.subr.mxu0 0.0
    %2851 = vmatpush1.msra.mxu0 0.0
    %2852 = vmatprep.subr.mxu0 0.0
    %2853 = vmatpush1.msra.mxu0 0.0
    %2854 = vmatprep.subr.mxu0 0.0
    %2855 = vmatpush1.msra.mxu0 0.0
    %2856 = vmatprep.subr.mxu0 0.0
    %2857 = vmatpush1.msra.mxu0 0.0
    %2858 = vmatprep.subr.mxu0 0.0
    %2859 = vmatpush1.msra.mxu0 0.0
    %2860 = vmatprep.subr.mxu0 0.0
    %2861 = vmatpush1.msra.mxu0 0.0
    %2862 = vmatprep.subr.mxu0 0.0
    %2863 = vmatpush1.msra.mxu0 0.0
    %2864 = vmatprep.subr.mxu0 0.0
    %2865 = vmatpush1.msra.mxu0 0.0
    %2866 = vmatprep.mubr.f32.mxu0 0.0
    %v2867 = vand.u32 %v52, 4294901760
    %2868 = vmatmul.mubr.f32.gmra.mrb[0].mxu0 %v2867
    %v2869 = vpop.f32.mrb[0].mxu0
    %v2870 = vadd.f32 %v2766, %v2869
    %v2871 = vpop.f32.mrb[0].mxu0
    %v2872 = vadd.f32 %v2768, %v2871
    %2873 = vdwg.mxu0
    %v2874 = vand.u32 %v60, 4294901760
    %2875 = vmatprep.subr.mxu0 %v2874
    %v2876 = vand.u32 %v59, 4294901760
    %2877 = vmatpush1.msra.mxu0 %v2876
    %v2878 = vand.u32 %v72, 4294901760
    %2879 = vmatprep.subr.mxu0 %v2878
    %v2880 = vand.u32 %v71, 4294901760
    %2881 = vmatpush1.msra.mxu0 %v2880
    %v2882 = vand.u32 %v84, 4294901760
    %2883 = vmatprep.subr.mxu0 %v2882
    %v2884 = vand.u32 %v83, 4294901760
    %2885 = vmatpush1.msra.mxu0 %v2884
    %v2886 = vand.u32 %v96, 4294901760
    %2887 = vmatprep.subr.mxu0 %v2886
    %v2888 = vand.u32 %v95, 4294901760
    %2889 = vmatpush1.msra.mxu0 %v2888
    %v2890 = vand.u32 %v108, 4294901760
    %2891 = vmatprep.subr.mxu0 %v2890
    %v2892 = vand.u32 %v107, 4294901760
    %2893 = vmatpush1.msra.mxu0 %v2892
    %v2894 = vand.u32 %v120, 4294901760
    %2895 = vmatprep.subr.mxu0 %v2894
    %v2896 = vand.u32 %v119, 4294901760
    %2897 = vmatpush1.msra.mxu0 %v2896
    %v2898 = vand.u32 %v132, 4294901760
    %2899 = vmatprep.subr.mxu0 %v2898
    %v2900 = vand.u32 %v131, 4294901760
    %2901 = vmatpush1.msra.mxu0 %v2900
    %v2902 = vand.u32 %v144, 4294901760
    %2903 = vmatprep.subr.mxu0 %v2902
    %v2904 = vand.u32 %v143, 4294901760
    %2905 = vmatpush1.msra.mxu0 %v2904
    %v2906 = vand.u32 %v156, 4294901760
    %2907 = vmatprep.subr.mxu0 %v2906
    %v2908 = vand.u32 %v155, 4294901760
    %2909 = vmatpush1.msra.mxu0 %v2908
    %v2910 = vand.u32 %v168, 4294901760
    %2911 = vmatprep.subr.mxu0 %v2910
    %v2912 = vand.u32 %v167, 4294901760
    %2913 = vmatpush1.msra.mxu0 %v2912
    %v2914 = vand.u32 %v180, 4294901760
    %2915 = vmatprep.subr.mxu0 %v2914
    %v2916 = vand.u32 %v179, 4294901760
    %2917 = vmatpush1.msra.mxu0 %v2916
    %v2918 = vand.u32 %v192, 4294901760
    %2919 = vmatprep.subr.mxu0 %v2918
    %v2920 = vand.u32 %v191, 4294901760
    %2921 = vmatpush1.msra.mxu0 %v2920
    %v2922 = vand.u32 %v204, 4294901760
    %2923 = vmatprep.subr.mxu0 %v2922
    %v2924 = vand.u32 %v203, 4294901760
    %2925 = vmatpush1.msra.mxu0 %v2924
    %v2926 = vand.u32 %v216, 4294901760
    %2927 = vmatprep.subr.mxu0 %v2926
    %v2928 = vand.u32 %v215, 4294901760
    %2929 = vmatpush1.msra.mxu0 %v2928
    %v2930 = vand.u32 %v228, 4294901760
    %2931 = vmatprep.subr.mxu0 %v2930
    %v2932 = vand.u32 %v227, 4294901760
    %2933 = vmatpush1.msra.mxu0 %v2932
    %v2934 = vand.u32 %v240, 4294901760
    %2935 = vmatprep.subr.mxu0 %v2934
    %v2936 = vand.u32 %v239, 4294901760
    %2937 = vmatpush1.msra.mxu0 %v2936
    %2938 = vmatprep.subr.mxu0 0.0
    %2939 = vmatpush1.msra.mxu0 0.0
    %2940 = vmatprep.subr.mxu0 0.0
    %2941 = vmatpush1.msra.mxu0 0.0
    %2942 = vmatprep.subr.mxu0 0.0
    %2943 = vmatpush1.msra.mxu0 0.0
    %2944 = vmatprep.subr.mxu0 0.0
    %2945 = vmatpush1.msra.mxu0 0.0
    %2946 = vmatprep.subr.mxu0 0.0
    %2947 = vmatpush1.msra.mxu0 0.0
    %2948 = vmatprep.subr.mxu0 0.0
    %2949 = vmatpush1.msra.mxu0 0.0
    %2950 = vmatprep.subr.mxu0 0.0
    %2951 = vmatpush1.msra.mxu0 0.0
    %2952 = vmatprep.subr.mxu0 0.0
    %2953 = vmatpush1.msra.mxu0 0.0
    %2954 = vmatprep.subr.mxu0 0.0
    %2955 = vmatpush1.msra.mxu0 0.0
    %2956 = vmatprep.subr.mxu0 0.0
    %2957 = vmatpush1.msra.mxu0 0.0
    %2958 = vmatprep.subr.mxu0 0.0
    %2959 = vmatpush1.msra.mxu0 0.0
    %2960 = vmatprep.subr.mxu0 0.0
    %2961 = vmatpush1.msra.mxu0 0.0
    %2962 = vmatprep.subr.mxu0 0.0
    %2963 = vmatpush1.msra.mxu0 0.0
    %2964 = vmatprep.subr.mxu0 0.0
    %2965 = vmatpush1.msra.mxu0 0.0
    %2966 = vmatprep.subr.mxu0 0.0
    %2967 = vmatpush1.msra.mxu0 0.0
    %2968 = vmatprep.subr.mxu0 0.0
    %2969 = vmatpush1.msra.mxu0 0.0
    %2970 = vmatprep.mubr.f32.mxu0 0.0
    %v2971 = vand.u32 %v52, 4294901760
    %v2972 = vsub.f32 %v52, %v2971
    %v2973 = vand.u32 %v2972, 4294901760
    %v2974 = vsub.f32 %v2972, %v2973
    %v2975 = vand.u32 %v2974, 4294901760
    %2976 = vmatmul.mubr.f32.gmra.mrb[0].mxu0 %v2975
    %v2977 = vpop.f32.mrb[0].mxu0
    %v2978 = vadd.f32 %v276, %v2977
    %v2979 = vpop.f32.mrb[0].mxu0
    %v2980 = vadd.f32 %v280, %v2979
    %2981 = vdwg.mxu0
    %v2982 = vand.u32 %v60, 4294901760
    %v2983 = vsub.f32 %v60, %v2982
    %v2984 = vand.u32 %v2983, 4294901760
    %v2985 = vsub.f32 %v2983, %v2984
    %v2986 = vand.u32 %v2985, 4294901760
    %2987 = vmatprep.subr.mxu0 %v2986
    %v2988 = vand.u32 %v59, 4294901760
    %v2989 = vsub.f32 %v59, %v2988
    %v2990 = vand.u32 %v2989, 4294901760
    %v2991 = vsub.f32 %v2989, %v2990
    %v2992 = vand.u32 %v2991, 4294901760
    %2993 = vmatpush1.msra.mxu0 %v2992
    %v2994 = vand.u32 %v72, 4294901760
    %v2995 = vsub.f32 %v72, %v2994
    %v2996 = vand.u32 %v2995, 4294901760
    %v2997 = vsub.f32 %v2995, %v2996
    %v2998 = vand.u32 %v2997, 4294901760
    %2999 = vmatprep.subr.mxu0 %v2998
    %v3000 = vand.u32 %v71, 4294901760
    %v3001 = vsub.f32 %v71, %v3000
    %v3002 = vand.u32 %v3001, 4294901760
    %v3003 = vsub.f32 %v3001, %v3002
    %v3004 = vand.u32 %v3003, 4294901760
    %3005 = vmatpush1.msra.mxu0 %v3004
    %v3006 = vand.u32 %v84, 4294901760
    %v3007 = vsub.f32 %v84, %v3006
    %v3008 = vand.u32 %v3007, 4294901760
    %v3009 = vsub.f32 %v3007, %v3008
    %v3010 = vand.u32 %v3009, 4294901760
    %3011 = vmatprep.subr.mxu0 %v3010
    %v3012 = vand.u32 %v83, 4294901760
    %v3013 = vsub.f32 %v83, %v3012
    %v3014 = vand.u32 %v3013, 4294901760
    %v3015 = vsub.f32 %v3013, %v3014
    %v3016 = vand.u32 %v3015, 4294901760
    %3017 = vmatpush1.msra.mxu0 %v3016
    %v3018 = vand.u32 %v96, 4294901760
    %v3019 = vsub.f32 %v96, %v3018
    %v3020 = vand.u32 %v3019, 4294901760
    %v3021 = vsub.f32 %v3019, %v3020
    %v3022 = vand.u32 %v3021, 4294901760
    %3023 = vmatprep.subr.mxu0 %v3022
    %v3024 = vand.u32 %v95, 4294901760
    %v3025 = vsub.f32 %v95, %v3024
    %v3026 = vand.u32 %v3025, 4294901760
    %v3027 = vsub.f32 %v3025, %v3026
    %v3028 = vand.u32 %v3027, 4294901760
    %3029 = vmatpush1.msra.mxu0 %v3028
    %v3030 = vand.u32 %v108, 4294901760
    %v3031 = vsub.f32 %v108, %v3030
    %v3032 = vand.u32 %v3031, 4294901760
    %v3033 = vsub.f32 %v3031, %v3032
    %v3034 = vand.u32 %v3033, 4294901760
    %3035 = vmatprep.subr.mxu0 %v3034
    %v3036 = vand.u32 %v107, 4294901760
    %v3037 = vsub.f32 %v107, %v3036
    %v3038 = vand.u32 %v3037, 4294901760
    %v3039 = vsub.f32 %v3037, %v3038
    %v3040 = vand.u32 %v3039, 4294901760
    %3041 = vmatpush1.msra.mxu0 %v3040
    %v3042 = vand.u32 %v120, 4294901760
    %v3043 = vsub.f32 %v120, %v3042
    %v3044 = vand.u32 %v3043, 4294901760
    %v3045 = vsub.f32 %v3043, %v3044
    %v3046 = vand.u32 %v3045, 4294901760
    %3047 = vmatprep.subr.mxu0 %v3046
    %v3048 = vand.u32 %v119, 4294901760
    %v3049 = vsub.f32 %v119, %v3048
    %v3050 = vand.u32 %v3049, 4294901760
    %v3051 = vsub.f32 %v3049, %v3050
    %v3052 = vand.u32 %v3051, 4294901760
    %3053 = vmatpush1.msra.mxu0 %v3052
    %v3054 = vand.u32 %v132, 4294901760
    %v3055 = vsub.f32 %v132, %v3054
    %v3056 = vand.u32 %v3055, 4294901760
    %v3057 = vsub.f32 %v3055, %v3056
    %v3058 = vand.u32 %v3057, 4294901760
    %3059 = vmatprep.subr.mxu0 %v3058
    %v3060 = vand.u32 %v131, 4294901760
    %v3061 = vsub.f32 %v131, %v3060
    %v3062 = vand.u32 %v3061, 4294901760
    %v3063 = vsub.f32 %v3061, %v3062
    %v3064 = vand.u32 %v3063, 4294901760
    %3065 = vmatpush1.msra.mxu0 %v3064
    %v3066 = vand.u32 %v144, 4294901760
    %v3067 = vsub.f32 %v144, %v3066
    %v3068 = vand.u32 %v3067, 4294901760
    %v3069 = vsub.f32 %v3067, %v3068
    %v3070 = vand.u32 %v3069, 4294901760
    %3071 = vmatprep.subr.mxu0 %v3070
    %v3072 = vand.u32 %v143, 4294901760
    %v3073 = vsub.f32 %v143, %v3072
    %v3074 = vand.u32 %v3073, 4294901760
    %v3075 = vsub.f32 %v3073, %v3074
    %v3076 = vand.u32 %v3075, 4294901760
    %3077 = vmatpush1.msra.mxu0 %v3076
    %v3078 = vand.u32 %v156, 4294901760
    %v3079 = vsub.f32 %v156, %v3078
    %v3080 = vand.u32 %v3079, 4294901760
    %v3081 = vsub.f32 %v3079, %v3080
    %v3082 = vand.u32 %v3081, 4294901760
    %3083 = vmatprep.subr.mxu0 %v3082
    %v3084 = vand.u32 %v155, 4294901760
    %v3085 = vsub.f32 %v155, %v3084
    %v3086 = vand.u32 %v3085, 4294901760
    %v3087 = vsub.f32 %v3085, %v3086
    %v3088 = vand.u32 %v3087, 4294901760
    %3089 = vmatpush1.msra.mxu0 %v3088
    %v3090 = vand.u32 %v168, 4294901760
    %v3091 = vsub.f32 %v168, %v3090
    %v3092 = vand.u32 %v3091, 4294901760
    %v3093 = vsub.f32 %v3091, %v3092
    %v3094 = vand.u32 %v3093, 4294901760
    %3095 = vmatprep.subr.mxu0 %v3094
    %v3096 = vand.u32 %v167, 4294901760
    %v3097 = vsub.f32 %v167, %v3096
    %v3098 = vand.u32 %v3097, 4294901760
    %v3099 = vsub.f32 %v3097, %v3098
    %v3100 = vand.u32 %v3099, 4294901760
    %3101 = vmatpush1.msra.mxu0 %v3100
    %v3102 = vand.u32 %v180, 4294901760
    %v3103 = vsub.f32 %v180, %v3102
    %v3104 = vand.u32 %v3103, 4294901760
    %v3105 = vsub.f32 %v3103, %v3104
    %v3106 = vand.u32 %v3105, 4294901760
    %3107 = vmatprep.subr.mxu0 %v3106
    %v3108 = vand.u32 %v179, 4294901760
    %v3109 = vsub.f32 %v179, %v3108
    %v3110 = vand.u32 %v3109, 4294901760
    %v3111 = vsub.f32 %v3109, %v3110
    %v3112 = vand.u32 %v3111, 4294901760
    %3113 = vmatpush1.msra.mxu0 %v3112
    %v3114 = vand.u32 %v192, 4294901760
    %v3115 = vsub.f32 %v192, %v3114
    %v3116 = vand.u32 %v3115, 4294901760
    %v3117 = vsub.f32 %v3115, %v3116
    %v3118 = vand.u32 %v3117, 4294901760
    %3119 = vmatprep.subr.mxu0 %v3118
    %v3120 = vand.u32 %v191, 4294901760
    %v3121 = vsub.f32 %v191, %v3120
    %v3122 = vand.u32 %v3121, 4294901760
    %v3123 = vsub.f32 %v3121, %v3122
    %v3124 = vand.u32 %v3123, 4294901760
    %3125 = vmatpush1.msra.mxu0 %v3124
    %v3126 = vand.u32 %v204, 4294901760
    %v3127 = vsub.f32 %v204, %v3126
    %v3128 = vand.u32 %v3127, 4294901760
    %v3129 = vsub.f32 %v3127, %v3128
    %v3130 = vand.u32 %v3129, 4294901760
    %3131 = vmatprep.subr.mxu0 %v3130
    %v3132 = vand.u32 %v203, 4294901760
    %v3133 = vsub.f32 %v203, %v3132
    %v3134 = vand.u32 %v3133, 4294901760
    %v3135 = vsub.f32 %v3133, %v3134
    %v3136 = vand.u32 %v3135, 4294901760
    %3137 = vmatpush1.msra.mxu0 %v3136
    %v3138 = vand.u32 %v216, 4294901760
    %v3139 = vsub.f32 %v216, %v3138
    %v3140 = vand.u32 %v3139, 4294901760
    %v3141 = vsub.f32 %v3139, %v3140
    %v3142 = vand.u32 %v3141, 4294901760
    %3143 = vmatprep.subr.mxu0 %v3142
    %v3144 = vand.u32 %v215, 4294901760
    %v3145 = vsub.f32 %v215, %v3144
    %v3146 = vand.u32 %v3145, 4294901760
    %v3147 = vsub.f32 %v3145, %v3146
    %v3148 = vand.u32 %v3147, 4294901760
    %3149 = vmatpush1.msra.mxu0 %v3148
    %v3150 = vand.u32 %v228, 4294901760
    %v3151 = vsub.f32 %v228, %v3150
    %v3152 = vand.u32 %v3151, 4294901760
    %v3153 = vsub.f32 %v3151, %v3152
    %v3154 = vand.u32 %v3153, 4294901760
    %3155 = vmatprep.subr.mxu0 %v3154
    %v3156 = vand.u32 %v227, 4294901760
    %v3157 = vsub.f32 %v227, %v3156
    %v3158 = vand.u32 %v3157, 4294901760
    %v3159 = vsub.f32 %v3157, %v3158
    %v3160 = vand.u32 %v3159, 4294901760
    %3161 = vmatpush1.msra.mxu0 %v3160
    %v3162 = vand.u32 %v240, 4294901760
    %v3163 = vsub.f32 %v240, %v3162
    %v3164 = vand.u32 %v3163, 4294901760
    %v3165 = vsub.f32 %v3163, %v3164
    %v3166 = vand.u32 %v3165, 4294901760
    %3167 = vmatprep.subr.mxu0 %v3166
    %v3168 = vand.u32 %v239, 4294901760
    %v3169 = vsub.f32 %v239, %v3168
    %v3170 = vand.u32 %v3169, 4294901760
    %v3171 = vsub.f32 %v3169, %v3170
    %v3172 = vand.u32 %v3171, 4294901760
    %3173 = vmatpush1.msra.mxu0 %v3172
    %3174 = vmatprep.subr.mxu0 0.0
    %3175 = vmatpush1.msra.mxu0 0.0
    %3176 = vmatprep.subr.mxu0 0.0
    %3177 = vmatpush1.msra.mxu0 0.0
    %3178 = vmatprep.subr.mxu0 0.0
    %3179 = vmatpush1.msra.mxu0 0.0
    %3180 = vmatprep.subr.mxu0 0.0
    %3181 = vmatpush1.msra.mxu0 0.0
    %3182 = vmatprep.subr.mxu0 0.0
    %3183 = vmatpush1.msra.mxu0 0.0
    %3184 = vmatprep.subr.mxu0 0.0
    %3185 = vmatpush1.msra.mxu0 0.0
    %3186 = vmatprep.subr.mxu0 0.0
    %3187 = vmatpush1.msra.mxu0 0.0
    %3188 = vmatprep.subr.mxu0 0.0
    %3189 = vmatpush1.msra.mxu0 0.0
    %3190 = vmatprep.subr.mxu0 0.0
    %3191 = vmatpush1.msra.mxu0 0.0
    %3192 = vmatprep.subr.mxu0 0.0
    %3193 = vmatpush1.msra.mxu0 0.0
    %3194 = vmatprep.subr.mxu0 0.0
    %3195 = vmatpush1.msra.mxu0 0.0
    %3196 = vmatprep.subr.mxu0 0.0
    %3197 = vmatpush1.msra.mxu0 0.0
    %3198 = vmatprep.subr.mxu0 0.0
    %3199 = vmatpush1.msra.mxu0 0.0
    %3200 = vmatprep.subr.mxu0 0.0
    %3201 = vmatpush1.msra.mxu0 0.0
    %3202 = vmatprep.subr.mxu0 0.0
    %3203 = vmatpush1.msra.mxu0 0.0
    %3204 = vmatprep.subr.mxu0 0.0
    %3205 = vmatpush1.msra.mxu0 0.0
    %3206 = vmatprep.mubr.f32.mxu0 0.0
    %v3207 = vand.u32 %v52, 4294901760
    %3208 = vmatmul.mubr.f32.gmra.mrb[0].mxu0 %v3207
    %v3209 = vpop.f32.mrb[0].mxu0
    %v3210 = vadd.f32 %v2978, %v3209
    %v3211 = vpop.f32.mrb[0].mxu0
    %v3212 = vadd.f32 %v2980, %v3211
    %3213 = vdwg.mxu0
    %v3214 = vand.u32 %v60, 4294901760
    %v3215 = vsub.f32 %v60, %v3214
    %3216 = vmatprep.subr.mxu0 %v3215
    %v3217 = vand.u32 %v59, 4294901760
    %v3218 = vsub.f32 %v59, %v3217
    %3219 = vmatpush1.msra.mxu0 %v3218
    %v3220 = vand.u32 %v72, 4294901760
    %v3221 = vsub.f32 %v72, %v3220
    %3222 = vmatprep.subr.mxu0 %v3221
    %v3223 = vand.u32 %v71, 4294901760
    %v3224 = vsub.f32 %v71, %v3223
    %3225 = vmatpush1.msra.mxu0 %v3224
    %v3226 = vand.u32 %v84, 4294901760
    %v3227 = vsub.f32 %v84, %v3226
    %3228 = vmatprep.subr.mxu0 %v3227
    %v3229 = vand.u32 %v83, 4294901760
    %v3230 = vsub.f32 %v83, %v3229
    %3231 = vmatpush1.msra.mxu0 %v3230
    %v3232 = vand.u32 %v96, 4294901760
    %v3233 = vsub.f32 %v96, %v3232
    %3234 = vmatprep.subr.mxu0 %v3233
    %v3235 = vand.u32 %v95, 4294901760
    %v3236 = vsub.f32 %v95, %v3235
    %3237 = vmatpush1.msra.mxu0 %v3236
    %v3238 = vand.u32 %v108, 4294901760
    %v3239 = vsub.f32 %v108, %v3238
    %3240 = vmatprep.subr.mxu0 %v3239
    %v3241 = vand.u32 %v107, 4294901760
    %v3242 = vsub.f32 %v107, %v3241
    %3243 = vmatpush1.msra.mxu0 %v3242
    %v3244 = vand.u32 %v120, 4294901760
    %v3245 = vsub.f32 %v120, %v3244
    %3246 = vmatprep.subr.mxu0 %v3245
    %v3247 = vand.u32 %v119, 4294901760
    %v3248 = vsub.f32 %v119, %v3247
    %3249 = vmatpush1.msra.mxu0 %v3248
    %v3250 = vand.u32 %v132, 4294901760
    %v3251 = vsub.f32 %v132, %v3250
    %3252 = vmatprep.subr.mxu0 %v3251
    %v3253 = vand.u32 %v131, 4294901760
    %v3254 = vsub.f32 %v131, %v3253
    %3255 = vmatpush1.msra.mxu0 %v3254
    %v3256 = vand.u32 %v144, 4294901760
    %v3257 = vsub.f32 %v144, %v3256
    %3258 = vmatprep.subr.mxu0 %v3257
    %v3259 = vand.u32 %v143, 4294901760
    %v3260 = vsub.f32 %v143, %v3259
    %3261 = vmatpush1.msra.mxu0 %v3260
    %v3262 = vand.u32 %v156, 4294901760
    %v3263 = vsub.f32 %v156, %v3262
    %3264 = vmatprep.subr.mxu0 %v3263
    %v3265 = vand.u32 %v155, 4294901760
    %v3266 = vsub.f32 %v155, %v3265
    %3267 = vmatpush1.msra.mxu0 %v3266
    %v3268 = vand.u32 %v168, 4294901760
    %v3269 = vsub.f32 %v168, %v3268
    %3270 = vmatprep.subr.mxu0 %v3269
    %v3271 = vand.u32 %v167, 4294901760
    %v3272 = vsub.f32 %v167, %v3271
    %3273 = vmatpush1.msra.mxu0 %v3272
    %v3274 = vand.u32 %v180, 4294901760
    %v3275 = vsub.f32 %v180, %v3274
    %3276 = vmatprep.subr.mxu0 %v3275
    %v3277 = vand.u32 %v179, 4294901760
    %v3278 = vsub.f32 %v179, %v3277
    %3279 = vmatpush1.msra.mxu0 %v3278
    %v3280 = vand.u32 %v192, 4294901760
    %v3281 = vsub.f32 %v192, %v3280
    %3282 = vmatprep.subr.mxu0 %v3281
    %v3283 = vand.u32 %v191, 4294901760
    %v3284 = vsub.f32 %v191, %v3283
    %3285 = vmatpush1.msra.mxu0 %v3284
    %v3286 = vand.u32 %v204, 4294901760
    %v3287 = vsub.f32 %v204, %v3286
    %3288 = vmatprep.subr.mxu0 %v3287
    %v3289 = vand.u32 %v203, 4294901760
    %v3290 = vsub.f32 %v203, %v3289
    %3291 = vmatpush1.msra.mxu0 %v3290
    %v3292 = vand.u32 %v216, 4294901760
    %v3293 = vsub.f32 %v216, %v3292
    %3294 = vmatprep.subr.mxu0 %v3293
    %v3295 = vand.u32 %v215, 4294901760
    %v3296 = vsub.f32 %v215, %v3295
    %3297 = vmatpush1.msra.mxu0 %v3296
    %v3298 = vand.u32 %v228, 4294901760
    %v3299 = vsub.f32 %v228, %v3298
    %3300 = vmatprep.subr.mxu0 %v3299
    %v3301 = vand.u32 %v227, 4294901760
    %v3302 = vsub.f32 %v227, %v3301
    %3303 = vmatpush1.msra.mxu0 %v3302
    %v3304 = vand.u32 %v240, 4294901760
    %v3305 = vsub.f32 %v240, %v3304
    %3306 = vmatprep.subr.mxu0 %v3305
    %v3307 = vand.u32 %v239, 4294901760
    %v3308 = vsub.f32 %v239, %v3307
    %3309 = vmatpush1.msra.mxu0 %v3308
    %3310 = vmatprep.subr.mxu0 0.0
    %3311 = vmatpush1.msra.mxu0 0.0
    %3312 = vmatprep.subr.mxu0 0.0
    %3313 = vmatpush1.msra.mxu0 0.0
    %3314 = vmatprep.subr.mxu0 0.0
    %3315 = vmatpush1.msra.mxu0 0.0
    %3316 = vmatprep.subr.mxu0 0.0
    %3317 = vmatpush1.msra.mxu0 0.0
    %3318 = vmatprep.subr.mxu0 0.0
    %3319 = vmatpush1.msra.mxu0 0.0
    %3320 = vmatprep.subr.mxu0 0.0
    %3321 = vmatpush1.msra.mxu0 0.0
    %3322 = vmatprep.subr.mxu0 0.0
    %3323 = vmatpush1.msra.mxu0 0.0
    %3324 = vmatprep.subr.mxu0 0.0
    %3325 = vmatpush1.msra.mxu0 0.0
    %3326 = vmatprep.subr.mxu0 0.0
    %3327 = vmatpush1.msra.mxu0 0.0
    %3328 = vmatprep.subr.mxu0 0.0
    %3329 = vmatpush1.msra.mxu0 0.0
    %3330 = vmatprep.subr.mxu0 0.0
    %3331 = vmatpush1.msra.mxu0 0.0
    %3332 = vmatprep.subr.mxu0 0.0
    %3333 = vmatpush1.msra.mxu0 0.0
    %3334 = vmatprep.subr.mxu0 0.0
    %3335 = vmatpush1.msra.mxu0 0.0
    %3336 = vmatprep.subr.mxu0 0.0
    %3337 = vmatpush1.msra.mxu0 0.0
    %3338 = vmatprep.subr.mxu0 0.0
    %3339 = vmatpush1.msra.mxu0 0.0
    %3340 = vmatprep.subr.mxu0 0.0
    %3341 = vmatpush1.msra.mxu0 0.0
    %3342 = vmatprep.mubr.f32.mxu0 0.0
    %v3343 = vand.u32 %v52, 4294901760
    %v3344 = vsub.f32 %v52, %v3343
    %3345 = vmatmul.mubr.f32.gmra.mrb[0].mxu0 %v3344
    %v3346 = vpop.f32.mrb[0].mxu0
    %v3347 = vadd.f32 %v3210, %v3346
    %v3348 = vpop.f32.mrb[0].mxu0
    %v3349 = vadd.f32 %v3212, %v3348
    %3350 = vdwg.mxu0
    %v3351 = vand.u32 %v60, 4294901760
    %3352 = vmatprep.subr.mxu0 %v3351
    %v3353 = vand.u32 %v59, 4294901760
    %3354 = vmatpush1.msra.mxu0 %v3353
    %v3355 = vand.u32 %v72, 4294901760
    %3356 = vmatprep.subr.mxu0 %v3355
    %v3357 = vand.u32 %v71, 4294901760
    %3358 = vmatpush1.msra.mxu0 %v3357
    %v3359 = vand.u32 %v84, 4294901760
    %3360 = vmatprep.subr.mxu0 %v3359
    %v3361 = vand.u32 %v83, 4294901760
    %3362 = vmatpush1.msra.mxu0 %v3361
    %v3363 = vand.u32 %v96, 4294901760
    %3364 = vmatprep.subr.mxu0 %v3363
    %v3365 = vand.u32 %v95, 4294901760
    %3366 = vmatpush1.msra.mxu0 %v3365
    %v3367 = vand.u32 %v108, 4294901760
    %3368 = vmatprep.subr.mxu0 %v3367
    %v3369 = vand.u32 %v107, 4294901760
    %3370 = vmatpush1.msra.mxu0 %v3369
    %v3371 = vand.u32 %v120, 4294901760
    %3372 = vmatprep.subr.mxu0 %v3371
    %v3373 = vand.u32 %v119, 4294901760
    %3374 = vmatpush1.msra.mxu0 %v3373
    %v3375 = vand.u32 %v132, 4294901760
    %3376 = vmatprep.subr.mxu0 %v3375
    %v3377 = vand.u32 %v131, 4294901760
    %3378 = vmatpush1.msra.mxu0 %v3377
    %v3379 = vand.u32 %v144, 4294901760
    %3380 = vmatprep.subr.mxu0 %v3379
    %v3381 = vand.u32 %v143, 4294901760
    %3382 = vmatpush1.msra.mxu0 %v3381
    %v3383 = vand.u32 %v156, 4294901760
    %3384 = vmatprep.subr.mxu0 %v3383
    %v3385 = vand.u32 %v155, 4294901760
    %3386 = vmatpush1.msra.mxu0 %v3385
    %v3387 = vand.u32 %v168, 4294901760
    %3388 = vmatprep.subr.mxu0 %v3387
    %v3389 = vand.u32 %v167, 4294901760
    %3390 = vmatpush1.msra.mxu0 %v3389
    %v3391 = vand.u32 %v180, 4294901760
    %3392 = vmatprep.subr.mxu0 %v3391
    %v3393 = vand.u32 %v179, 4294901760
    %3394 = vmatpush1.msra.mxu0 %v3393
    %v3395 = vand.u32 %v192, 4294901760
    %3396 = vmatprep.subr.mxu0 %v3395
    %v3397 = vand.u32 %v191, 4294901760
    %3398 = vmatpush1.msra.mxu0 %v3397
    %v3399 = vand.u32 %v204, 4294901760
    %3400 = vmatprep.subr.mxu0 %v3399
    %v3401 = vand.u32 %v203, 4294901760
    %3402 = vmatpush1.msra.mxu0 %v3401
    %v3403 = vand.u32 %v216, 4294901760
    %3404 = vmatprep.subr.mxu0 %v3403
    %v3405 = vand.u32 %v215, 4294901760
    %3406 = vmatpush1.msra.mxu0 %v3405
    %v3407 = vand.u32 %v228, 4294901760
    %3408 = vmatprep.subr.mxu0 %v3407
    %v3409 = vand.u32 %v227, 4294901760
    %3410 = vmatpush1.msra.mxu0 %v3409
    %v3411 = vand.u32 %v240, 4294901760
    %3412 = vmatprep.subr.mxu0 %v3411
    %v3413 = vand.u32 %v239, 4294901760
    %3414 = vmatpush1.msra.mxu0 %v3413
    %3415 = vmatprep.subr.mxu0 0.0
    %3416 = vmatpush1.msra.mxu0 0.0
    %3417 = vmatprep.subr.mxu0 0.0
    %3418 = vmatpush1.msra.mxu0 0.0
    %3419 = vmatprep.subr.mxu0 0.0
    %3420 = vmatpush1.msra.mxu0 0.0
    %3421 = vmatprep.subr.mxu0 0.0
    %3422 = vmatpush1.msra.mxu0 0.0
    %3423 = vmatprep.subr.mxu0 0.0
    %3424 = vmatpush1.msra.mxu0 0.0
    %3425 = vmatprep.subr.mxu0 0.0
    %3426 = vmatpush1.msra.mxu0 0.0
    %3427 = vmatprep.subr.mxu0 0.0
    %3428 = vmatpush1.msra.mxu0 0.0
    %3429 = vmatprep.subr.mxu0 0.0
    %3430 = vmatpush1.msra.mxu0 0.0
    %3431 = vmatprep.subr.mxu0 0.0
    %3432 = vmatpush1.msra.mxu0 0.0
    %3433 = vmatprep.subr.mxu0 0.0
    %3434 = vmatpush1.msra.mxu0 0.0
    %3435 = vmatprep.subr.mxu0 0.0
    %3436 = vmatpush1.msra.mxu0 0.0
    %3437 = vmatprep.subr.mxu0 0.0
    %3438 = vmatpush1.msra.mxu0 0.0
    %3439 = vmatprep.subr.mxu0 0.0
    %3440 = vmatpush1.msra.mxu0 0.0
    %3441 = vmatprep.subr.mxu0 0.0
    %3442 = vmatpush1.msra.mxu0 0.0
    %3443 = vmatprep.subr.mxu0 0.0
    %3444 = vmatpush1.msra.mxu0 0.0
    %3445 = vmatprep.subr.mxu0 0.0
    %3446 = vmatpush1.msra.mxu0 0.0
    %3447 = vmatprep.mubr.f32.mxu0 0.0
    %v3448 = vand.u32 %v52, 4294901760
    %v3449 = vsub.f32 %v52, %v3448
    %v3450 = vand.u32 %v3449, 4294901760
    %3451 = vmatmul.mubr.f32.gmra.mrb[0].mxu0 %v3450
    %v3452 = vpop.f32.mrb[0].mxu0
    %v3453 = vadd.f32 %v3347, %v3452
    %v3454 = vpop.f32.mrb[0].mxu0
    %v3455 = vadd.f32 %v3349, %v3454
    %3456 = vdwg.mxu0
    %v3457 = vand.u32 %v60, 4294901760
    %v3458 = vsub.f32 %v60, %v3457
    %v3459 = vand.u32 %v3458, 4294901760
    %3460 = vmatprep.subr.mxu0 %v3459
    %v3461 = vand.u32 %v59, 4294901760
    %v3462 = vsub.f32 %v59, %v3461
    %v3463 = vand.u32 %v3462, 4294901760
    %3464 = vmatpush1.msra.mxu0 %v3463
    %v3465 = vand.u32 %v72, 4294901760
    %v3466 = vsub.f32 %v72, %v3465
    %v3467 = vand.u32 %v3466, 4294901760
    %3468 = vmatprep.subr.mxu0 %v3467
    %v3469 = vand.u32 %v71, 4294901760
    %v3470 = vsub.f32 %v71, %v3469
    %v3471 = vand.u32 %v3470, 4294901760
    %3472 = vmatpush1.msra.mxu0 %v3471
    %v3473 = vand.u32 %v84, 4294901760
    %v3474 = vsub.f32 %v84, %v3473
    %v3475 = vand.u32 %v3474, 4294901760
    %3476 = vmatprep.subr.mxu0 %v3475
    %v3477 = vand.u32 %v83, 4294901760
    %v3478 = vsub.f32 %v83, %v3477
    %v3479 = vand.u32 %v3478, 4294901760
    %3480 = vmatpush1.msra.mxu0 %v3479
    %v3481 = vand.u32 %v96, 4294901760
    %v3482 = vsub.f32 %v96, %v3481
    %v3483 = vand.u32 %v3482, 4294901760
    %3484 = vmatprep.subr.mxu0 %v3483
    %v3485 = vand.u32 %v95, 4294901760
    %v3486 = vsub.f32 %v95, %v3485
    %v3487 = vand.u32 %v3486, 4294901760
    %3488 = vmatpush1.msra.mxu0 %v3487
    %v3489 = vand.u32 %v108, 4294901760
    %v3490 = vsub.f32 %v108, %v3489
    %v3491 = vand.u32 %v3490, 4294901760
    %3492 = vmatprep.subr.mxu0 %v3491
    %v3493 = vand.u32 %v107, 4294901760
    %v3494 = vsub.f32 %v107, %v3493
    %v3495 = vand.u32 %v3494, 4294901760
    %3496 = vmatpush1.msra.mxu0 %v3495
    %v3497 = vand.u32 %v120, 4294901760
    %v3498 = vsub.f32 %v120, %v3497
    %v3499 = vand.u32 %v3498, 4294901760
    %3500 = vmatprep.subr.mxu0 %v3499
    %v3501 = vand.u32 %v119, 4294901760
    %v3502 = vsub.f32 %v119, %v3501
    %v3503 = vand.u32 %v3502, 4294901760
    %3504 = vmatpush1.msra.mxu0 %v3503
    %v3505 = vand.u32 %v132, 4294901760
    %v3506 = vsub.f32 %v132, %v3505
    %v3507 = vand.u32 %v3506, 4294901760
    %3508 = vmatprep.subr.mxu0 %v3507
    %v3509 = vand.u32 %v131, 4294901760
    %v3510 = vsub.f32 %v131, %v3509
    %v3511 = vand.u32 %v3510, 4294901760
    %3512 = vmatpush1.msra.mxu0 %v3511
    %v3513 = vand.u32 %v144, 4294901760
    %v3514 = vsub.f32 %v144, %v3513
    %v3515 = vand.u32 %v3514, 4294901760
    %3516 = vmatprep.subr.mxu0 %v3515
    %v3517 = vand.u32 %v143, 4294901760
    %v3518 = vsub.f32 %v143, %v3517
    %v3519 = vand.u32 %v3518, 4294901760
    %3520 = vmatpush1.msra.mxu0 %v3519
    %v3521 = vand.u32 %v156, 4294901760
    %v3522 = vsub.f32 %v156, %v3521
    %v3523 = vand.u32 %v3522, 4294901760
    %3524 = vmatprep.subr.mxu0 %v3523
    %v3525 = vand.u32 %v155, 4294901760
    %v3526 = vsub.f32 %v155, %v3525
    %v3527 = vand.u32 %v3526, 4294901760
    %3528 = vmatpush1.msra.mxu0 %v3527
    %v3529 = vand.u32 %v168, 4294901760
    %v3530 = vsub.f32 %v168, %v3529
    %v3531 = vand.u32 %v3530, 4294901760
    %3532 = vmatprep.subr.mxu0 %v3531
    %v3533 = vand.u32 %v167, 4294901760
    %v3534 = vsub.f32 %v167, %v3533
    %v3535 = vand.u32 %v3534, 4294901760
    %3536 = vmatpush1.msra.mxu0 %v3535
    %v3537 = vand.u32 %v180, 4294901760
    %v3538 = vsub.f32 %v180, %v3537
    %v3539 = vand.u32 %v3538, 4294901760
    %3540 = vmatprep.subr.mxu0 %v3539
    %v3541 = vand.u32 %v179, 4294901760
    %v3542 = vsub.f32 %v179, %v3541
    %v3543 = vand.u32 %v3542, 4294901760
    %3544 = vmatpush1.msra.mxu0 %v3543
    %v3545 = vand.u32 %v192, 4294901760
    %v3546 = vsub.f32 %v192, %v3545
    %v3547 = vand.u32 %v3546, 4294901760
    %3548 = vmatprep.subr.mxu0 %v3547
    %v3549 = vand.u32 %v191, 4294901760
    %v3550 = vsub.f32 %v191, %v3549
    %v3551 = vand.u32 %v3550, 4294901760
    %3552 = vmatpush1.msra.mxu0 %v3551
    %v3553 = vand.u32 %v204, 4294901760
    %v3554 = vsub.f32 %v204, %v3553
    %v3555 = vand.u32 %v3554, 4294901760
    %3556 = vmatprep.subr.mxu0 %v3555
    %v3557 = vand.u32 %v203, 4294901760
    %v3558 = vsub.f32 %v203, %v3557
    %v3559 = vand.u32 %v3558, 4294901760
    %3560 = vmatpush1.msra.mxu0 %v3559
    %v3561 = vand.u32 %v216, 4294901760
    %v3562 = vsub.f32 %v216, %v3561
    %v3563 = vand.u32 %v3562, 4294901760
    %3564 = vmatprep.subr.mxu0 %v3563
    %v3565 = vand.u32 %v215, 4294901760
    %v3566 = vsub.f32 %v215, %v3565
    %v3567 = vand.u32 %v3566, 4294901760
    %3568 = vmatpush1.msra.mxu0 %v3567
    %v3569 = vand.u32 %v228, 4294901760
    %v3570 = vsub.f32 %v228, %v3569
    %v3571 = vand.u32 %v3570, 4294901760
    %3572 = vmatprep.subr.mxu0 %v3571
    %v3573 = vand.u32 %v227, 4294901760
    %v3574 = vsub.f32 %v227, %v3573
    %v3575 = vand.u32 %v3574, 4294901760
    %3576 = vmatpush1.msra.mxu0 %v3575
    %v3577 = vand.u32 %v240, 4294901760
    %v3578 = vsub.f32 %v240, %v3577
    %v3579 = vand.u32 %v3578, 4294901760
    %3580 = vmatprep.subr.mxu0 %v3579
    %v3581 = vand.u32 %v239, 4294901760
    %v3582 = vsub.f32 %v239, %v3581
    %v3583 = vand.u32 %v3582, 4294901760
    %3584 = vmatpush1.msra.mxu0 %v3583
    %3585 = vmatprep.subr.mxu0 0.0
    %3586 = vmatpush1.msra.mxu0 0.0
    %3587 = vmatprep.subr.mxu0 0.0
    %3588 = vmatpush1.msra.mxu0 0.0
    %3589 = vmatprep.subr.mxu0 0.0
    %3590 = vmatpush1.msra.mxu0 0.0
    %3591 = vmatprep.subr.mxu0 0.0
    %3592 = vmatpush1.msra.mxu0 0.0
    %3593 = vmatprep.subr.mxu0 0.0
    %3594 = vmatpush1.msra.mxu0 0.0
    %3595 = vmatprep.subr.mxu0 0.0
    %3596 = vmatpush1.msra.mxu0 0.0
    %3597 = vmatprep.subr.mxu0 0.0
    %3598 = vmatpush1.msra.mxu0 0.0
    %3599 = vmatprep.subr.mxu0 0.0
    %3600 = vmatpush1.msra.mxu0 0.0
    %3601 = vmatprep.subr.mxu0 0.0
    %3602 = vmatpush1.msra.mxu0 0.0
    %3603 = vmatprep.subr.mxu0 0.0
    %3604 = vmatpush1.msra.mxu0 0.0
    %3605 = vmatprep.subr.mxu0 0.0
    %3606 = vmatpush1.msra.mxu0 0.0
    %3607 = vmatprep.subr.mxu0 0.0
    %3608 = vmatpush1.msra.mxu0 0.0
    %3609 = vmatprep.subr.mxu0 0.0
    %3610 = vmatpush1.msra.mxu0 0.0
    %3611 = vmatprep.subr.mxu0 0.0
    %3612 = vmatpush1.msra.mxu0 0.0
    %3613 = vmatprep.subr.mxu0 0.0
    %3614 = vmatpush1.msra.mxu0 0.0
    %3615 = vmatprep.subr.mxu0 0.0
    %3616 = vmatpush1.msra.mxu0 0.0
    %3617 = vmatprep.mubr.f32.mxu0 0.0
    %v3618 = vand.u32 %v52, 4294901760
    %3619 = vmatmul.mubr.f32.gmra.mrb[0].mxu0 %v3618
    %v3620 = vpop.f32.mrb[0].mxu0
    %v3621 = vadd.f32 %v3453, %v3620
    %v3622 = vpop.f32.mrb[0].mxu0
    %v3623 = vadd.f32 %v3455, %v3622
    %3624 = vdwg.mxu0
    %v3625 = vand.u32 %v60, 4294901760
    %3626 = vmatprep.subr.mxu0 %v3625
    %v3627 = vand.u32 %v59, 4294901760
    %3628 = vmatpush1.msra.mxu0 %v3627
    %v3629 = vand.u32 %v72, 4294901760
    %3630 = vmatprep.subr.mxu0 %v3629
    %v3631 = vand.u32 %v71, 4294901760
    %3632 = vmatpush1.msra.mxu0 %v3631
    %v3633 = vand.u32 %v84, 4294901760
    %3634 = vmatprep.subr.mxu0 %v3633
    %v3635 = vand.u32 %v83, 4294901760
    %3636 = vmatpush1.msra.mxu0 %v3635
    %v3637 = vand.u32 %v96, 4294901760
    %3638 = vmatprep.subr.mxu0 %v3637
    %v3639 = vand.u32 %v95, 4294901760
    %3640 = vmatpush1.msra.mxu0 %v3639
    %v3641 = vand.u32 %v108, 4294901760
    %3642 = vmatprep.subr.mxu0 %v3641
    %v3643 = vand.u32 %v107, 4294901760
    %3644 = vmatpush1.msra.mxu0 %v3643
    %v3645 = vand.u32 %v120, 4294901760
    %3646 = vmatprep.subr.mxu0 %v3645
    %v3647 = vand.u32 %v119, 4294901760
    %3648 = vmatpush1.msra.mxu0 %v3647
    %v3649 = vand.u32 %v132, 4294901760
    %3650 = vmatprep.subr.mxu0 %v3649
    %v3651 = vand.u32 %v131, 4294901760
    %3652 = vmatpush1.msra.mxu0 %v3651
    %v3653 = vand.u32 %v144, 4294901760
    %3654 = vmatprep.subr.mxu0 %v3653
    %v3655 = vand.u32 %v143, 4294901760
    %3656 = vmatpush1.msra.mxu0 %v3655
    %v3657 = vand.u32 %v156, 4294901760
    %3658 = vmatprep.subr.mxu0 %v3657
    %v3659 = vand.u32 %v155, 4294901760
    %3660 = vmatpush1.msra.mxu0 %v3659
    %v3661 = vand.u32 %v168, 4294901760
    %3662 = vmatprep.subr.mxu0 %v3661
    %v3663 = vand.u32 %v167, 4294901760
    %3664 = vmatpush1.msra.mxu0 %v3663
    %v3665 = vand.u32 %v180, 4294901760
    %3666 = vmatprep.subr.mxu0 %v3665
    %v3667 = vand.u32 %v179, 4294901760
    %3668 = vmatpush1.msra.mxu0 %v3667
    %v3669 = vand.u32 %v192, 4294901760
    %3670 = vmatprep.subr.mxu0 %v3669
    %v3671 = vand.u32 %v191, 4294901760
    %3672 = vmatpush1.msra.mxu0 %v3671
    %v3673 = vand.u32 %v204, 4294901760
    %3674 = vmatprep.subr.mxu0 %v3673
    %v3675 = vand.u32 %v203, 4294901760
    %3676 = vmatpush1.msra.mxu0 %v3675
    %v3677 = vand.u32 %v216, 4294901760
    %3678 = vmatprep.subr.mxu0 %v3677
    %v3679 = vand.u32 %v215, 4294901760
    %3680 = vmatpush1.msra.mxu0 %v3679
    %v3681 = vand.u32 %v228, 4294901760
    %3682 = vmatprep.subr.mxu0 %v3681
    %v3683 = vand.u32 %v227, 4294901760
    %3684 = vmatpush1.msra.mxu0 %v3683
    %v3685 = vand.u32 %v240, 4294901760
    %3686 = vmatprep.subr.mxu0 %v3685
    %v3687 = vand.u32 %v239, 4294901760
    %3688 = vmatpush1.msra.mxu0 %v3687
    %3689 = vmatprep.subr.mxu0 0.0
    %3690 = vmatpush1.msra.mxu0 0.0
    %3691 = vmatprep.subr.mxu0 0.0
    %3692 = vmatpush1.msra.mxu0 0.0
    %3693 = vmatprep.subr.mxu0 0.0
    %3694 = vmatpush1.msra.mxu0 0.0
    %3695 = vmatprep.subr.mxu0 0.0
    %3696 = vmatpush1.msra.mxu0 0.0
    %3697 = vmatprep.subr.mxu0 0.0
    %3698 = vmatpush1.msra.mxu0 0.0
    %3699 = vmatprep.subr.mxu0 0.0
    %3700 = vmatpush1.msra.mxu0 0.0
    %3701 = vmatprep.subr.mxu0 0.0
    %3702 = vmatpush1.msra.mxu0 0.0
    %3703 = vmatprep.subr.mxu0 0.0
    %3704 = vmatpush1.msra.mxu0 0.0
    %3705 = vmatprep.subr.mxu0 0.0
    %3706 = vmatpush1.msra.mxu0 0.0
    %3707 = vmatprep.subr.mxu0 0.0
    %3708 = vmatpush1.msra.mxu0 0.0
    %3709 = vmatprep.subr.mxu0 0.0
    %3710 = vmatpush1.msra.mxu0 0.0
    %3711 = vmatprep.subr.mxu0 0.0
    %3712 = vmatpush1.msra.mxu0 0.0
    %3713 = vmatprep.subr.mxu0 0.0
    %3714 = vmatpush1.msra.mxu0 0.0
    %3715 = vmatprep.subr.mxu0 0.0
    %3716 = vmatpush1.msra.mxu0 0.0
    %3717 = vmatprep.subr.mxu0 0.0
    %3718 = vmatpush1.msra.mxu0 0.0
    %3719 = vmatprep.subr.mxu0 0.0
    %3720 = vmatpush1.msra.mxu0 0.0
    %3721 = vmatprep.mubr.f32.mxu0 0.0
    %v3722 = vand.u32 %v52, 4294901760
    %3723 = vmatmul.mubr.f32.gmra.mrb[0].mxu0 %v3722
    %v3724 = vpop.f32.mrb[0].mxu0
    %v3725 = vadd.f32 %v3621, %v3724
    %v3726 = vpop.f32.mrb[0].mxu0
    %v3727 = vadd.f32 %v3623, %v3726
    %3728 = vdwg.mxu0
    %v3729 = vand.u32 %v62, 4294901760
    %3730 = vmatprep.subr.mxu0 %v3729
    %v3731 = vand.u32 %v61, 4294901760
    %3732 = vmatpush1.msra.mxu0 %v3731
    %v3733 = vand.u32 %v74, 4294901760
    %3734 = vmatprep.subr.mxu0 %v3733
    %v3735 = vand.u32 %v73, 4294901760
    %3736 = vmatpush1.msra.mxu0 %v3735
    %v3737 = vand.u32 %v86, 4294901760
    %3738 = vmatprep.subr.mxu0 %v3737
    %v3739 = vand.u32 %v85, 4294901760
    %3740 = vmatpush1.msra.mxu0 %v3739
    %v3741 = vand.u32 %v98, 4294901760
    %3742 = vmatprep.subr.mxu0 %v3741
    %v3743 = vand.u32 %v97, 4294901760
    %3744 = vmatpush1.msra.mxu0 %v3743
    %v3745 = vand.u32 %v110, 4294901760
    %3746 = vmatprep.subr.mxu0 %v3745
    %v3747 = vand.u32 %v109, 4294901760
    %3748 = vmatpush1.msra.mxu0 %v3747
    %v3749 = vand.u32 %v122, 4294901760
    %3750 = vmatprep.subr.mxu0 %v3749
    %v3751 = vand.u32 %v121, 4294901760
    %3752 = vmatpush1.msra.mxu0 %v3751
    %v3753 = vand.u32 %v134, 4294901760
    %3754 = vmatprep.subr.mxu0 %v3753
    %v3755 = vand.u32 %v133, 4294901760
    %3756 = vmatpush1.msra.mxu0 %v3755
    %v3757 = vand.u32 %v146, 4294901760
    %3758 = vmatprep.subr.mxu0 %v3757
    %v3759 = vand.u32 %v145, 4294901760
    %3760 = vmatpush1.msra.mxu0 %v3759
    %v3761 = vand.u32 %v158, 4294901760
    %3762 = vmatprep.subr.mxu0 %v3761
    %v3763 = vand.u32 %v157, 4294901760
    %3764 = vmatpush1.msra.mxu0 %v3763
    %v3765 = vand.u32 %v170, 4294901760
    %3766 = vmatprep.subr.mxu0 %v3765
    %v3767 = vand.u32 %v169, 4294901760
    %3768 = vmatpush1.msra.mxu0 %v3767
    %v3769 = vand.u32 %v182, 4294901760
    %3770 = vmatprep.subr.mxu0 %v3769
    %v3771 = vand.u32 %v181, 4294901760
    %3772 = vmatpush1.msra.mxu0 %v3771
    %v3773 = vand.u32 %v194, 4294901760
    %3774 = vmatprep.subr.mxu0 %v3773
    %v3775 = vand.u32 %v193, 4294901760
    %3776 = vmatpush1.msra.mxu0 %v3775
    %v3777 = vand.u32 %v206, 4294901760
    %3778 = vmatprep.subr.mxu0 %v3777
    %v3779 = vand.u32 %v205, 4294901760
    %3780 = vmatpush1.msra.mxu0 %v3779
    %v3781 = vand.u32 %v218, 4294901760
    %3782 = vmatprep.subr.mxu0 %v3781
    %v3783 = vand.u32 %v217, 4294901760
    %3784 = vmatpush1.msra.mxu0 %v3783
    %v3785 = vand.u32 %v230, 4294901760
    %3786 = vmatprep.subr.mxu0 %v3785
    %v3787 = vand.u32 %v229, 4294901760
    %3788 = vmatpush1.msra.mxu0 %v3787
    %v3789 = vand.u32 %v242, 4294901760
    %3790 = vmatprep.subr.mxu0 %v3789
    %v3791 = vand.u32 %v241, 4294901760
    %3792 = vmatpush1.msra.mxu0 %v3791
    %3793 = vmatprep.subr.mxu0 0.0
    %3794 = vmatpush1.msra.mxu0 0.0
    %3795 = vmatprep.subr.mxu0 0.0
    %3796 = vmatpush1.msra.mxu0 0.0
    %3797 = vmatprep.subr.mxu0 0.0
    %3798 = vmatpush1.msra.mxu0 0.0
    %3799 = vmatprep.subr.mxu0 0.0
    %3800 = vmatpush1.msra.mxu0 0.0
    %3801 = vmatprep.subr.mxu0 0.0
    %3802 = vmatpush1.msra.mxu0 0.0
    %3803 = vmatprep.subr.mxu0 0.0
    %3804 = vmatpush1.msra.mxu0 0.0
    %3805 = vmatprep.subr.mxu0 0.0
    %3806 = vmatpush1.msra.mxu0 0.0
    %3807 = vmatprep.subr.mxu0 0.0
    %3808 = vmatpush1.msra.mxu0 0.0
    %3809 = vmatprep.subr.mxu0 0.0
    %3810 = vmatpush1.msra.mxu0 0.0
    %3811 = vmatprep.subr.mxu0 0.0
    %3812 = vmatpush1.msra.mxu0 0.0
    %3813 = vmatprep.subr.mxu0 0.0
    %3814 = vmatpush1.msra.mxu0 0.0
    %3815 = vmatprep.subr.mxu0 0.0
    %3816 = vmatpush1.msra.mxu0 0.0
    %3817 = vmatprep.subr.mxu0 0.0
    %3818 = vmatpush1.msra.mxu0 0.0
    %3819 = vmatprep.subr.mxu0 0.0
    %3820 = vmatpush1.msra.mxu0 0.0
    %3821 = vmatprep.subr.mxu0 0.0
    %3822 = vmatpush1.msra.mxu0 0.0
    %3823 = vmatprep.subr.mxu0 0.0
    %3824 = vmatpush1.msra.mxu0 0.0
    %3825 = vmatprep.mubr.f32.mxu0 0.0
    %v3826 = vand.u32 %v52, 4294901760
    %v3827 = vsub.f32 %v52, %v3826
    %v3828 = vand.u32 %v3827, 4294901760
    %v3829 = vsub.f32 %v3827, %v3828
    %v3830 = vand.u32 %v3829, 4294901760
    %3831 = vmatmul.mubr.f32.gmra.mrb[0].mxu0 %v3830
    %v3832 = vpop.f32.mrb[0].mxu0
    %v3833 = vadd.f32 %v284, %v3832
    %v3834 = vpop.f32.mrb[0].mxu0
    %v3835 = vadd.f32 %v288, %v3834
    %3836 = vdwg.mxu0
    %v3837 = vand.u32 %v62, 4294901760
    %v3838 = vsub.f32 %v62, %v3837
    %v3839 = vand.u32 %v3838, 4294901760
    %v3840 = vsub.f32 %v3838, %v3839
    %v3841 = vand.u32 %v3840, 4294901760
    %3842 = vmatprep.subr.mxu0 %v3841
    %v3843 = vand.u32 %v61, 4294901760
    %v3844 = vsub.f32 %v61, %v3843
    %v3845 = vand.u32 %v3844, 4294901760
    %v3846 = vsub.f32 %v3844, %v3845
    %v3847 = vand.u32 %v3846, 4294901760
    %3848 = vmatpush1.msra.mxu0 %v3847
    %v3849 = vand.u32 %v74, 4294901760
    %v3850 = vsub.f32 %v74, %v3849
    %v3851 = vand.u32 %v3850, 4294901760
    %v3852 = vsub.f32 %v3850, %v3851
    %v3853 = vand.u32 %v3852, 4294901760
    %3854 = vmatprep.subr.mxu0 %v3853
    %v3855 = vand.u32 %v73, 4294901760
    %v3856 = vsub.f32 %v73, %v3855
    %v3857 = vand.u32 %v3856, 4294901760
    %v3858 = vsub.f32 %v3856, %v3857
    %v3859 = vand.u32 %v3858, 4294901760
    %3860 = vmatpush1.msra.mxu0 %v3859
    %v3861 = vand.u32 %v86, 4294901760
    %v3862 = vsub.f32 %v86, %v3861
    %v3863 = vand.u32 %v3862, 4294901760
    %v3864 = vsub.f32 %v3862, %v3863
    %v3865 = vand.u32 %v3864, 4294901760
    %3866 = vmatprep.subr.mxu0 %v3865
    %v3867 = vand.u32 %v85, 4294901760
    %v3868 = vsub.f32 %v85, %v3867
    %v3869 = vand.u32 %v3868, 4294901760
    %v3870 = vsub.f32 %v3868, %v3869
    %v3871 = vand.u32 %v3870, 4294901760
    %3872 = vmatpush1.msra.mxu0 %v3871
    %v3873 = vand.u32 %v98, 4294901760
    %v3874 = vsub.f32 %v98, %v3873
    %v3875 = vand.u32 %v3874, 4294901760
    %v3876 = vsub.f32 %v3874, %v3875
    %v3877 = vand.u32 %v3876, 4294901760
    %3878 = vmatprep.subr.mxu0 %v3877
    %v3879 = vand.u32 %v97, 4294901760
    %v3880 = vsub.f32 %v97, %v3879
    %v3881 = vand.u32 %v3880, 4294901760
    %v3882 = vsub.f32 %v3880, %v3881
    %v3883 = vand.u32 %v3882, 4294901760
    %3884 = vmatpush1.msra.mxu0 %v3883
    %v3885 = vand.u32 %v110, 4294901760
    %v3886 = vsub.f32 %v110, %v3885
    %v3887 = vand.u32 %v3886, 4294901760
    %v3888 = vsub.f32 %v3886, %v3887
    %v3889 = vand.u32 %v3888, 4294901760
    %3890 = vmatprep.subr.mxu0 %v3889
    %v3891 = vand.u32 %v109, 4294901760
    %v3892 = vsub.f32 %v109, %v3891
    %v3893 = vand.u32 %v3892, 4294901760
    %v3894 = vsub.f32 %v3892, %v3893
    %v3895 = vand.u32 %v3894, 4294901760
    %3896 = vmatpush1.msra.mxu0 %v3895
    %v3897 = vand.u32 %v122, 4294901760
    %v3898 = vsub.f32 %v122, %v3897
    %v3899 = vand.u32 %v3898, 4294901760
    %v3900 = vsub.f32 %v3898, %v3899
    %v3901 = vand.u32 %v3900, 4294901760
    %3902 = vmatprep.subr.mxu0 %v3901
    %v3903 = vand.u32 %v121, 4294901760
    %v3904 = vsub.f32 %v121, %v3903
    %v3905 = vand.u32 %v3904, 4294901760
    %v3906 = vsub.f32 %v3904, %v3905
    %v3907 = vand.u32 %v3906, 4294901760
    %3908 = vmatpush1.msra.mxu0 %v3907
    %v3909 = vand.u32 %v134, 4294901760
    %v3910 = vsub.f32 %v134, %v3909
    %v3911 = vand.u32 %v3910, 4294901760
    %v3912 = vsub.f32 %v3910, %v3911
    %v3913 = vand.u32 %v3912, 4294901760
    %3914 = vmatprep.subr.mxu0 %v3913
    %v3915 = vand.u32 %v133, 4294901760
    %v3916 = vsub.f32 %v133, %v3915
    %v3917 = vand.u32 %v3916, 4294901760
    %v3918 = vsub.f32 %v3916, %v3917
    %v3919 = vand.u32 %v3918, 4294901760
    %3920 = vmatpush1.msra.mxu0 %v3919
    %v3921 = vand.u32 %v146, 4294901760
    %v3922 = vsub.f32 %v146, %v3921
    %v3923 = vand.u32 %v3922, 4294901760
    %v3924 = vsub.f32 %v3922, %v3923
    %v3925 = vand.u32 %v3924, 4294901760
    %3926 = vmatprep.subr.mxu0 %v3925
    %v3927 = vand.u32 %v145, 4294901760
    %v3928 = vsub.f32 %v145, %v3927
    %v3929 = vand.u32 %v3928, 4294901760
    %v3930 = vsub.f32 %v3928, %v3929
    %v3931 = vand.u32 %v3930, 4294901760
    %3932 = vmatpush1.msra.mxu0 %v3931
    %v3933 = vand.u32 %v158, 4294901760
    %v3934 = vsub.f32 %v158, %v3933
    %v3935 = vand.u32 %v3934, 4294901760
    %v3936 = vsub.f32 %v3934, %v3935
    %v3937 = vand.u32 %v3936, 4294901760
    %3938 = vmatprep.subr.mxu0 %v3937
    %v3939 = vand.u32 %v157, 4294901760
    %v3940 = vsub.f32 %v157, %v3939
    %v3941 = vand.u32 %v3940, 4294901760
    %v3942 = vsub.f32 %v3940, %v3941
    %v3943 = vand.u32 %v3942, 4294901760
    %3944 = vmatpush1.msra.mxu0 %v3943
    %v3945 = vand.u32 %v170, 4294901760
    %v3946 = vsub.f32 %v170, %v3945
    %v3947 = vand.u32 %v3946, 4294901760
    %v3948 = vsub.f32 %v3946, %v3947
    %v3949 = vand.u32 %v3948, 4294901760
    %3950 = vmatprep.subr.mxu0 %v3949
    %v3951 = vand.u32 %v169, 4294901760
    %v3952 = vsub.f32 %v169, %v3951
    %v3953 = vand.u32 %v3952, 4294901760
    %v3954 = vsub.f32 %v3952, %v3953
    %v3955 = vand.u32 %v3954, 4294901760
    %3956 = vmatpush1.msra.mxu0 %v3955
    %v3957 = vand.u32 %v182, 4294901760
    %v3958 = vsub.f32 %v182, %v3957
    %v3959 = vand.u32 %v3958, 4294901760
    %v3960 = vsub.f32 %v3958, %v3959
    %v3961 = vand.u32 %v3960, 4294901760
    %3962 = vmatprep.subr.mxu0 %v3961
    %v3963 = vand.u32 %v181, 4294901760
    %v3964 = vsub.f32 %v181, %v3963
    %v3965 = vand.u32 %v3964, 4294901760
    %v3966 = vsub.f32 %v3964, %v3965
    %v3967 = vand.u32 %v3966, 4294901760
    %3968 = vmatpush1.msra.mxu0 %v3967
    %v3969 = vand.u32 %v194, 4294901760
    %v3970 = vsub.f32 %v194, %v3969
    %v3971 = vand.u32 %v3970, 4294901760
    %v3972 = vsub.f32 %v3970, %v3971
    %v3973 = vand.u32 %v3972, 4294901760
    %3974 = vmatprep.subr.mxu0 %v3973
    %v3975 = vand.u32 %v193, 4294901760
    %v3976 = vsub.f32 %v193, %v3975
    %v3977 = vand.u32 %v3976, 4294901760
    %v3978 = vsub.f32 %v3976, %v3977
    %v3979 = vand.u32 %v3978, 4294901760
    %3980 = vmatpush1.msra.mxu0 %v3979
    %v3981 = vand.u32 %v206, 4294901760
    %v3982 = vsub.f32 %v206, %v3981
    %v3983 = vand.u32 %v3982, 4294901760
    %v3984 = vsub.f32 %v3982, %v3983
    %v3985 = vand.u32 %v3984, 4294901760
    %3986 = vmatprep.subr.mxu0 %v3985
    %v3987 = vand.u32 %v205, 4294901760
    %v3988 = vsub.f32 %v205, %v3987
    %v3989 = vand.u32 %v3988, 4294901760
    %v3990 = vsub.f32 %v3988, %v3989
    %v3991 = vand.u32 %v3990, 4294901760
    %3992 = vmatpush1.msra.mxu0 %v3991
    %v3993 = vand.u32 %v218, 4294901760
    %v3994 = vsub.f32 %v218, %v3993
    %v3995 = vand.u32 %v3994, 4294901760
    %v3996 = vsub.f32 %v3994, %v3995
    %v3997 = vand.u32 %v3996, 4294901760
    %3998 = vmatprep.subr.mxu0 %v3997
    %v3999 = vand.u32 %v217, 4294901760
    %v4000 = vsub.f32 %v217, %v3999
    %v4001 = vand.u32 %v4000, 4294901760
    %v4002 = vsub.f32 %v4000, %v4001
    %v4003 = vand.u32 %v4002, 4294901760
    %4004 = vmatpush1.msra.mxu0 %v4003
    %v4005 = vand.u32 %v230, 4294901760
    %v4006 = vsub.f32 %v230, %v4005
    %v4007 = vand.u32 %v4006, 4294901760
    %v4008 = vsub.f32 %v4006, %v4007
    %v4009 = vand.u32 %v4008, 4294901760
    %4010 = vmatprep.subr.mxu0 %v4009
    %v4011 = vand.u32 %v229, 4294901760
    %v4012 = vsub.f32 %v229, %v4011
    %v4013 = vand.u32 %v4012, 4294901760
    %v4014 = vsub.f32 %v4012, %v4013
    %v4015 = vand.u32 %v4014, 4294901760
    %4016 = vmatpush1.msra.mxu0 %v4015
    %v4017 = vand.u32 %v242, 4294901760
    %v4018 = vsub.f32 %v242, %v4017
    %v4019 = vand.u32 %v4018, 4294901760
    %v4020 = vsub.f32 %v4018, %v4019
    %v4021 = vand.u32 %v4020, 4294901760
    %4022 = vmatprep.subr.mxu0 %v4021
    %v4023 = vand.u32 %v241, 4294901760
    %v4024 = vsub.f32 %v241, %v4023
    %v4025 = vand.u32 %v4024, 4294901760
    %v4026 = vsub.f32 %v4024, %v4025
    %v4027 = vand.u32 %v4026, 4294901760
    %4028 = vmatpush1.msra.mxu0 %v4027
    %4029 = vmatprep.subr.mxu0 0.0
    %4030 = vmatpush1.msra.mxu0 0.0
    %4031 = vmatprep.subr.mxu0 0.0
    %4032 = vmatpush1.msra.mxu0 0.0
    %4033 = vmatprep.subr.mxu0 0.0
    %4034 = vmatpush1.msra.mxu0 0.0
    %4035 = vmatprep.subr.mxu0 0.0
    %4036 = vmatpush1.msra.mxu0 0.0
    %4037 = vmatprep.subr.mxu0 0.0
    %4038 = vmatpush1.msra.mxu0 0.0
    %4039 = vmatprep.subr.mxu0 0.0
    %4040 = vmatpush1.msra.mxu0 0.0
    %4041 = vmatprep.subr.mxu0 0.0
    %4042 = vmatpush1.msra.mxu0 0.0
    %4043 = vmatprep.subr.mxu0 0.0
    %4044 = vmatpush1.msra.mxu0 0.0
    %4045 = vmatprep.subr.mxu0 0.0
    %4046 = vmatpush1.msra.mxu0 0.0
    %4047 = vmatprep.subr.mxu0 0.0
    %4048 = vmatpush1.msra.mxu0 0.0
    %4049 = vmatprep.subr.mxu0 0.0
    %4050 = vmatpush1.msra.mxu0 0.0
    %4051 = vmatprep.subr.mxu0 0.0
    %4052 = vmatpush1.msra.mxu0 0.0
    %4053 = vmatprep.subr.mxu0 0.0
    %4054 = vmatpush1.msra.mxu0 0.0
    %4055 = vmatprep.subr.mxu0 0.0
    %4056 = vmatpush1.msra.mxu0 0.0
    %4057 = vmatprep.subr.mxu0 0.0
    %4058 = vmatpush1.msra.mxu0 0.0
    %4059 = vmatprep.subr.mxu0 0.0
    %4060 = vmatpush1.msra.mxu0 0.0
    %4061 = vmatprep.mubr.f32.mxu0 0.0
    %v4062 = vand.u32 %v52, 4294901760
    %4063 = vmatmul.mubr.f32.gmra.mrb[0].mxu0 %v4062
    %v4064 = vpop.f32.mrb[0].mxu0
    %v4065 = vadd.f32 %v3833, %v4064
    %v4066 = vpop.f32.mrb[0].mxu0
    %v4067 = vadd.f32 %v3835, %v4066
    %4068 = vdwg.mxu0
    %v4069 = vand.u32 %v62, 4294901760
    %v4070 = vsub.f32 %v62, %v4069
    %4071 = vmatprep.subr.mxu0 %v4070
    %v4072 = vand.u32 %v61, 4294901760
    %v4073 = vsub.f32 %v61, %v4072
    %4074 = vmatpush1.msra.mxu0 %v4073
    %v4075 = vand.u32 %v74, 4294901760
    %v4076 = vsub.f32 %v74, %v4075
    %4077 = vmatprep.subr.mxu0 %v4076
    %v4078 = vand.u32 %v73, 4294901760
    %v4079 = vsub.f32 %v73, %v4078
    %4080 = vmatpush1.msra.mxu0 %v4079
    %v4081 = vand.u32 %v86, 4294901760
    %v4082 = vsub.f32 %v86, %v4081
    %4083 = vmatprep.subr.mxu0 %v4082
    %v4084 = vand.u32 %v85, 4294901760
    %v4085 = vsub.f32 %v85, %v4084
    %4086 = vmatpush1.msra.mxu0 %v4085
    %v4087 = vand.u32 %v98, 4294901760
    %v4088 = vsub.f32 %v98, %v4087
    %4089 = vmatprep.subr.mxu0 %v4088
    %v4090 = vand.u32 %v97, 4294901760
    %v4091 = vsub.f32 %v97, %v4090
    %4092 = vmatpush1.msra.mxu0 %v4091
    %v4093 = vand.u32 %v110, 4294901760
    %v4094 = vsub.f32 %v110, %v4093
    %4095 = vmatprep.subr.mxu0 %v4094
    %v4096 = vand.u32 %v109, 4294901760
    %v4097 = vsub.f32 %v109, %v4096
    %4098 = vmatpush1.msra.mxu0 %v4097
    %v4099 = vand.u32 %v122, 4294901760
    %v4100 = vsub.f32 %v122, %v4099
    %4101 = vmatprep.subr.mxu0 %v4100
    %v4102 = vand.u32 %v121, 4294901760
    %v4103 = vsub.f32 %v121, %v4102
    %4104 = vmatpush1.msra.mxu0 %v4103
    %v4105 = vand.u32 %v134, 4294901760
    %v4106 = vsub.f32 %v134, %v4105
    %4107 = vmatprep.subr.mxu0 %v4106
    %v4108 = vand.u32 %v133, 4294901760
    %v4109 = vsub.f32 %v133, %v4108
    %4110 = vmatpush1.msra.mxu0 %v4109
    %v4111 = vand.u32 %v146, 4294901760
    %v4112 = vsub.f32 %v146, %v4111
    %4113 = vmatprep.subr.mxu0 %v4112
    %v4114 = vand.u32 %v145, 4294901760
    %v4115 = vsub.f32 %v145, %v4114
    %4116 = vmatpush1.msra.mxu0 %v4115
    %v4117 = vand.u32 %v158, 4294901760
    %v4118 = vsub.f32 %v158, %v4117
    %4119 = vmatprep.subr.mxu0 %v4118
    %v4120 = vand.u32 %v157, 4294901760
    %v4121 = vsub.f32 %v157, %v4120
    %4122 = vmatpush1.msra.mxu0 %v4121
    %v4123 = vand.u32 %v170, 4294901760
    %v4124 = vsub.f32 %v170, %v4123
    %4125 = vmatprep.subr.mxu0 %v4124
    %v4126 = vand.u32 %v169, 4294901760
    %v4127 = vsub.f32 %v169, %v4126
    %4128 = vmatpush1.msra.mxu0 %v4127
    %v4129 = vand.u32 %v182, 4294901760
    %v4130 = vsub.f32 %v182, %v4129
    %4131 = vmatprep.subr.mxu0 %v4130
    %v4132 = vand.u32 %v181, 4294901760
    %v4133 = vsub.f32 %v181, %v4132
    %4134 = vmatpush1.msra.mxu0 %v4133
    %v4135 = vand.u32 %v194, 4294901760
    %v4136 = vsub.f32 %v194, %v4135
    %4137 = vmatprep.subr.mxu0 %v4136
    %v4138 = vand.u32 %v193, 4294901760
    %v4139 = vsub.f32 %v193, %v4138
    %4140 = vmatpush1.msra.mxu0 %v4139
    %v4141 = vand.u32 %v206, 4294901760
    %v4142 = vsub.f32 %v206, %v4141
    %4143 = vmatprep.subr.mxu0 %v4142
    %v4144 = vand.u32 %v205, 4294901760
    %v4145 = vsub.f32 %v205, %v4144
    %4146 = vmatpush1.msra.mxu0 %v4145
    %v4147 = vand.u32 %v218, 4294901760
    %v4148 = vsub.f32 %v218, %v4147
    %4149 = vmatprep.subr.mxu0 %v4148
    %v4150 = vand.u32 %v217, 4294901760
    %v4151 = vsub.f32 %v217, %v4150
    %4152 = vmatpush1.msra.mxu0 %v4151
    %v4153 = vand.u32 %v230, 4294901760
    %v4154 = vsub.f32 %v230, %v4153
    %4155 = vmatprep.subr.mxu0 %v4154
    %v4156 = vand.u32 %v229, 4294901760
    %v4157 = vsub.f32 %v229, %v4156
    %4158 = vmatpush1.msra.mxu0 %v4157
    %v4159 = vand.u32 %v242, 4294901760
    %v4160 = vsub.f32 %v242, %v4159
    %4161 = vmatprep.subr.mxu0 %v4160
    %v4162 = vand.u32 %v241, 4294901760
    %v4163 = vsub.f32 %v241, %v4162
    %4164 = vmatpush1.msra.mxu0 %v4163
    %4165 = vmatprep.subr.mxu0 0.0
    %4166 = vmatpush1.msra.mxu0 0.0
    %4167 = vmatprep.subr.mxu0 0.0
    %4168 = vmatpush1.msra.mxu0 0.0
    %4169 = vmatprep.subr.mxu0 0.0
    %4170 = vmatpush1.msra.mxu0 0.0
    %4171 = vmatprep.subr.mxu0 0.0
    %4172 = vmatpush1.msra.mxu0 0.0
    %4173 = vmatprep.subr.mxu0 0.0
    %4174 = vmatpush1.msra.mxu0 0.0
    %4175 = vmatprep.subr.mxu0 0.0
    %4176 = vmatpush1.msra.mxu0 0.0
    %4177 = vmatprep.subr.mxu0 0.0
    %4178 = vmatpush1.msra.mxu0 0.0
    %4179 = vmatprep.subr.mxu0 0.0
    %4180 = vmatpush1.msra.mxu0 0.0
    %4181 = vmatprep.subr.mxu0 0.0
    %4182 = vmatpush1.msra.mxu0 0.0
    %4183 = vmatprep.subr.mxu0 0.0
    %4184 = vmatpush1.msra.mxu0 0.0
    %4185 = vmatprep.subr.mxu0 0.0
    %4186 = vmatpush1.msra.mxu0 0.0
    %4187 = vmatprep.subr.mxu0 0.0
    %4188 = vmatpush1.msra.mxu0 0.0
    %4189 = vmatprep.subr.mxu0 0.0
    %4190 = vmatpush1.msra.mxu0 0.0
    %4191 = vmatprep.subr.mxu0 0.0
    %4192 = vmatpush1.msra.mxu0 0.0
    %4193 = vmatprep.subr.mxu0 0.0
    %4194 = vmatpush1.msra.mxu0 0.0
    %4195 = vmatprep.subr.mxu0 0.0
    %4196 = vmatpush1.msra.mxu0 0.0
    %4197 = vmatprep.mubr.f32.mxu0 0.0
    %v4198 = vand.u32 %v52, 4294901760
    %v4199 = vsub.f32 %v52, %v4198
    %4200 = vmatmul.mubr.f32.gmra.mrb[0].mxu0 %v4199
    %v4201 = vpop.f32.mrb[0].mxu0
    %v4202 = vadd.f32 %v4065, %v4201
    %v4203 = vpop.f32.mrb[0].mxu0
    %v4204 = vadd.f32 %v4067, %v4203
    %4205 = vdwg.mxu0
    %v4206 = vand.u32 %v62, 4294901760
    %4207 = vmatprep.subr.mxu0 %v4206
    %v4208 = vand.u32 %v61, 4294901760
    %4209 = vmatpush1.msra.mxu0 %v4208
    %v4210 = vand.u32 %v74, 4294901760
    %4211 = vmatprep.subr.mxu0 %v4210
    %v4212 = vand.u32 %v73, 4294901760
    %4213 = vmatpush1.msra.mxu0 %v4212
    %v4214 = vand.u32 %v86, 4294901760
    %4215 = vmatprep.subr.mxu0 %v4214
    %v4216 = vand.u32 %v85, 4294901760
    %4217 = vmatpush1.msra.mxu0 %v4216
    %v4218 = vand.u32 %v98, 4294901760
    %4219 = vmatprep.subr.mxu0 %v4218
    %v4220 = vand.u32 %v97, 4294901760
    %4221 = vmatpush1.msra.mxu0 %v4220
    %v4222 = vand.u32 %v110, 4294901760
    %4223 = vmatprep.subr.mxu0 %v4222
    %v4224 = vand.u32 %v109, 4294901760
    %4225 = vmatpush1.msra.mxu0 %v4224
    %v4226 = vand.u32 %v122, 4294901760
    %4227 = vmatprep.subr.mxu0 %v4226
    %v4228 = vand.u32 %v121, 4294901760
    %4229 = vmatpush1.msra.mxu0 %v4228
    %v4230 = vand.u32 %v134, 4294901760
    %4231 = vmatprep.subr.mxu0 %v4230
    %v4232 = vand.u32 %v133, 4294901760
    %4233 = vmatpush1.msra.mxu0 %v4232
    %v4234 = vand.u32 %v146, 4294901760
    %4235 = vmatprep.subr.mxu0 %v4234
    %v4236 = vand.u32 %v145, 4294901760
    %4237 = vmatpush1.msra.mxu0 %v4236
    %v4238 = vand.u32 %v158, 4294901760
    %4239 = vmatprep.subr.mxu0 %v4238
    %v4240 = vand.u32 %v157, 4294901760
    %4241 = vmatpush1.msra.mxu0 %v4240
    %v4242 = vand.u32 %v170, 4294901760
    %4243 = vmatprep.subr.mxu0 %v4242
    %v4244 = vand.u32 %v169, 4294901760
    %4245 = vmatpush1.msra.mxu0 %v4244
    %v4246 = vand.u32 %v182, 4294901760
    %4247 = vmatprep.subr.mxu0 %v4246
    %v4248 = vand.u32 %v181, 4294901760
    %4249 = vmatpush1.msra.mxu0 %v4248
    %v4250 = vand.u32 %v194, 4294901760
    %4251 = vmatprep.subr.mxu0 %v4250
    %v4252 = vand.u32 %v193, 4294901760
    %4253 = vmatpush1.msra.mxu0 %v4252
    %v4254 = vand.u32 %v206, 4294901760
    %4255 = vmatprep.subr.mxu0 %v4254
    %v4256 = vand.u32 %v205, 4294901760
    %4257 = vmatpush1.msra.mxu0 %v4256
    %v4258 = vand.u32 %v218, 4294901760
    %4259 = vmatprep.subr.mxu0 %v4258
    %v4260 = vand.u32 %v217, 4294901760
    %4261 = vmatpush1.msra.mxu0 %v4260
    %v4262 = vand.u32 %v230, 4294901760
    %4263 = vmatprep.subr.mxu0 %v4262
    %v4264 = vand.u32 %v229, 4294901760
    %4265 = vmatpush1.msra.mxu0 %v4264
    %v4266 = vand.u32 %v242, 4294901760
    %4267 = vmatprep.subr.mxu0 %v4266
    %v4268 = vand.u32 %v241, 4294901760
    %4269 = vmatpush1.msra.mxu0 %v4268
    %4270 = vmatprep.subr.mxu0 0.0
    %4271 = vmatpush1.msra.mxu0 0.0
    %4272 = vmatprep.subr.mxu0 0.0
    %4273 = vmatpush1.msra.mxu0 0.0
    %4274 = vmatprep.subr.mxu0 0.0
    %4275 = vmatpush1.msra.mxu0 0.0
    %4276 = vmatprep.subr.mxu0 0.0
    %4277 = vmatpush1.msra.mxu0 0.0
    %4278 = vmatprep.subr.mxu0 0.0
    %4279 = vmatpush1.msra.mxu0 0.0
    %4280 = vmatprep.subr.mxu0 0.0
    %4281 = vmatpush1.msra.mxu0 0.0
    %4282 = vmatprep.subr.mxu0 0.0
    %4283 = vmatpush1.msra.mxu0 0.0
    %4284 = vmatprep.subr.mxu0 0.0
    %4285 = vmatpush1.msra.mxu0 0.0
    %4286 = vmatprep.subr.mxu0 0.0
    %4287 = vmatpush1.msra.mxu0 0.0
    %4288 = vmatprep.subr.mxu0 0.0
    %4289 = vmatpush1.msra.mxu0 0.0
    %4290 = vmatprep.subr.mxu0 0.0
    %4291 = vmatpush1.msra.mxu0 0.0
    %4292 = vmatprep.subr.mxu0 0.0
    %4293 = vmatpush1.msra.mxu0 0.0
    %4294 = vmatprep.subr.mxu0 0.0
    %4295 = vmatpush1.msra.mxu0 0.0
    %4296 = vmatprep.subr.mxu0 0.0
    %4297 = vmatpush1.msra.mxu0 0.0
    %4298 = vmatprep.subr.mxu0 0.0
    %4299 = vmatpush1.msra.mxu0 0.0
    %4300 = vmatprep.subr.mxu0 0.0
    %4301 = vmatpush1.msra.mxu0 0.0
    %4302 = vmatprep.mubr.f32.mxu0 0.0
    %v4303 = vand.u32 %v52, 4294901760
    %v4304 = vsub.f32 %v52, %v4303
    %v4305 = vand.u32 %v4304, 4294901760
    %4306 = vmatmul.mubr.f32.gmra.mrb[0].mxu0 %v4305
    %v4307 = vpop.f32.mrb[0].mxu0
    %v4308 = vadd.f32 %v4202, %v4307
    %v4309 = vpop.f32.mrb[0].mxu0
    %v4310 = vadd.f32 %v4204, %v4309
    %4311 = vdwg.mxu0
    %v4312 = vand.u32 %v62, 4294901760
    %v4313 = vsub.f32 %v62, %v4312
    %v4314 = vand.u32 %v4313, 4294901760
    %4315 = vmatprep.subr.mxu0 %v4314
    %v4316 = vand.u32 %v61, 4294901760
    %v4317 = vsub.f32 %v61, %v4316
    %v4318 = vand.u32 %v4317, 4294901760
    %4319 = vmatpush1.msra.mxu0 %v4318
    %v4320 = vand.u32 %v74, 4294901760
    %v4321 = vsub.f32 %v74, %v4320
    %v4322 = vand.u32 %v4321, 4294901760
    %4323 = vmatprep.subr.mxu0 %v4322
    %v4324 = vand.u32 %v73, 4294901760
    %v4325 = vsub.f32 %v73, %v4324
    %v4326 = vand.u32 %v4325, 4294901760
    %4327 = vmatpush1.msra.mxu0 %v4326
    %v4328 = vand.u32 %v86, 4294901760
    %v4329 = vsub.f32 %v86, %v4328
    %v4330 = vand.u32 %v4329, 4294901760
    %4331 = vmatprep.subr.mxu0 %v4330
    %v4332 = vand.u32 %v85, 4294901760
    %v4333 = vsub.f32 %v85, %v4332
    %v4334 = vand.u32 %v4333, 4294901760
    %4335 = vmatpush1.msra.mxu0 %v4334
    %v4336 = vand.u32 %v98, 4294901760
    %v4337 = vsub.f32 %v98, %v4336
    %v4338 = vand.u32 %v4337, 4294901760
    %4339 = vmatprep.subr.mxu0 %v4338
    %v4340 = vand.u32 %v97, 4294901760
    %v4341 = vsub.f32 %v97, %v4340
    %v4342 = vand.u32 %v4341, 4294901760
    %4343 = vmatpush1.msra.mxu0 %v4342
    %v4344 = vand.u32 %v110, 4294901760
    %v4345 = vsub.f32 %v110, %v4344
    %v4346 = vand.u32 %v4345, 4294901760
    %4347 = vmatprep.subr.mxu0 %v4346
    %v4348 = vand.u32 %v109, 4294901760
    %v4349 = vsub.f32 %v109, %v4348
    %v4350 = vand.u32 %v4349, 4294901760
    %4351 = vmatpush1.msra.mxu0 %v4350
    %v4352 = vand.u32 %v122, 4294901760
    %v4353 = vsub.f32 %v122, %v4352
    %v4354 = vand.u32 %v4353, 4294901760
    %4355 = vmatprep.subr.mxu0 %v4354
    %v4356 = vand.u32 %v121, 4294901760
    %v4357 = vsub.f32 %v121, %v4356
    %v4358 = vand.u32 %v4357, 4294901760
    %4359 = vmatpush1.msra.mxu0 %v4358
    %v4360 = vand.u32 %v134, 4294901760
    %v4361 = vsub.f32 %v134, %v4360
    %v4362 = vand.u32 %v4361, 4294901760
    %4363 = vmatprep.subr.mxu0 %v4362
    %v4364 = vand.u32 %v133, 4294901760
    %v4365 = vsub.f32 %v133, %v4364
    %v4366 = vand.u32 %v4365, 4294901760
    %4367 = vmatpush1.msra.mxu0 %v4366
    %v4368 = vand.u32 %v146, 4294901760
    %v4369 = vsub.f32 %v146, %v4368
    %v4370 = vand.u32 %v4369, 4294901760
    %4371 = vmatprep.subr.mxu0 %v4370
    %v4372 = vand.u32 %v145, 4294901760
    %v4373 = vsub.f32 %v145, %v4372
    %v4374 = vand.u32 %v4373, 4294901760
    %4375 = vmatpush1.msra.mxu0 %v4374
    %v4376 = vand.u32 %v158, 4294901760
    %v4377 = vsub.f32 %v158, %v4376
    %v4378 = vand.u32 %v4377, 4294901760
    %4379 = vmatprep.subr.mxu0 %v4378
    %v4380 = vand.u32 %v157, 4294901760
    %v4381 = vsub.f32 %v157, %v4380
    %v4382 = vand.u32 %v4381, 4294901760
    %4383 = vmatpush1.msra.mxu0 %v4382
    %v4384 = vand.u32 %v170, 4294901760
    %v4385 = vsub.f32 %v170, %v4384
    %v4386 = vand.u32 %v4385, 4294901760
    %4387 = vmatprep.subr.mxu0 %v4386
    %v4388 = vand.u32 %v169, 4294901760
    %v4389 = vsub.f32 %v169, %v4388
    %v4390 = vand.u32 %v4389, 4294901760
    %4391 = vmatpush1.msra.mxu0 %v4390
    %v4392 = vand.u32 %v182, 4294901760
    %v4393 = vsub.f32 %v182, %v4392
    %v4394 = vand.u32 %v4393, 4294901760
    %4395 = vmatprep.subr.mxu0 %v4394
    %v4396 = vand.u32 %v181, 4294901760
    %v4397 = vsub.f32 %v181, %v4396
    %v4398 = vand.u32 %v4397, 4294901760
    %4399 = vmatpush1.msra.mxu0 %v4398
    %v4400 = vand.u32 %v194, 4294901760
    %v4401 = vsub.f32 %v194, %v4400
    %v4402 = vand.u32 %v4401, 4294901760
    %4403 = vmatprep.subr.mxu0 %v4402
    %v4404 = vand.u32 %v193, 4294901760
    %v4405 = vsub.f32 %v193, %v4404
    %v4406 = vand.u32 %v4405, 4294901760
    %4407 = vmatpush1.msra.mxu0 %v4406
    %v4408 = vand.u32 %v206, 4294901760
    %v4409 = vsub.f32 %v206, %v4408
    %v4410 = vand.u32 %v4409, 4294901760
    %4411 = vmatprep.subr.mxu0 %v4410
    %v4412 = vand.u32 %v205, 4294901760
    %v4413 = vsub.f32 %v205, %v4412
    %v4414 = vand.u32 %v4413, 4294901760
    %4415 = vmatpush1.msra.mxu0 %v4414
    %v4416 = vand.u32 %v218, 4294901760
    %v4417 = vsub.f32 %v218, %v4416
    %v4418 = vand.u32 %v4417, 4294901760
    %4419 = vmatprep.subr.mxu0 %v4418
    %v4420 = vand.u32 %v217, 4294901760
    %v4421 = vsub.f32 %v217, %v4420
    %v4422 = vand.u32 %v4421, 4294901760
    %4423 = vmatpush1.msra.mxu0 %v4422
    %v4424 = vand.u32 %v230, 4294901760
    %v4425 = vsub.f32 %v230, %v4424
    %v4426 = vand.u32 %v4425, 4294901760
    %4427 = vmatprep.subr.mxu0 %v4426
    %v4428 = vand.u32 %v229, 4294901760
    %v4429 = vsub.f32 %v229, %v4428
    %v4430 = vand.u32 %v4429, 4294901760
    %4431 = vmatpush1.msra.mxu0 %v4430
    %v4432 = vand.u32 %v242, 4294901760
    %v4433 = vsub.f32 %v242, %v4432
    %v4434 = vand.u32 %v4433, 4294901760
    %4435 = vmatprep.subr.mxu0 %v4434
    %v4436 = vand.u32 %v241, 4294901760
    %v4437 = vsub.f32 %v241, %v4436
    %v4438 = vand.u32 %v4437, 4294901760
    %4439 = vmatpush1.msra.mxu0 %v4438
    %4440 = vmatprep.subr.mxu0 0.0
    %4441 = vmatpush1.msra.mxu0 0.0
    %4442 = vmatprep.subr.mxu0 0.0
    %4443 = vmatpush1.msra.mxu0 0.0
    %4444 = vmatprep.subr.mxu0 0.0
    %4445 = vmatpush1.msra.mxu0 0.0
    %4446 = vmatprep.subr.mxu0 0.0
    %4447 = vmatpush1.msra.mxu0 0.0
    %4448 = vmatprep.subr.mxu0 0.0
    %4449 = vmatpush1.msra.mxu0 0.0
    %4450 = vmatprep.subr.mxu0 0.0
    %4451 = vmatpush1.msra.mxu0 0.0
    %4452 = vmatprep.subr.mxu0 0.0
    %4453 = vmatpush1.msra.mxu0 0.0
    %4454 = vmatprep.subr.mxu0 0.0
    %4455 = vmatpush1.msra.mxu0 0.0
    %4456 = vmatprep.subr.mxu0 0.0
    %4457 = vmatpush1.msra.mxu0 0.0
    %4458 = vmatprep.subr.mxu0 0.0
    %4459 = vmatpush1.msra.mxu0 0.0
    %4460 = vmatprep.subr.mxu0 0.0
    %4461 = vmatpush1.msra.mxu0 0.0
    %4462 = vmatprep.subr.mxu0 0.0
    %4463 = vmatpush1.msra.mxu0 0.0
    %4464 = vmatprep.subr.mxu0 0.0
    %4465 = vmatpush1.msra.mxu0 0.0
    %4466 = vmatprep.subr.mxu0 0.0
    %4467 = vmatpush1.msra.mxu0 0.0
    %4468 = vmatprep.subr.mxu0 0.0
    %4469 = vmatpush1.msra.mxu0 0.0
    %4470 = vmatprep.subr.mxu0 0.0
    %4471 = vmatpush1.msra.mxu0 0.0
    %4472 = vmatprep.mubr.f32.mxu0 0.0
    %v4473 = vand.u32 %v52, 4294901760
    %4474 = vmatmul.mubr.f32.gmra.mrb[0].mxu0 %v4473
    %v4475 = vpop.f32.mrb[0].mxu0
    %v4476 = vadd.f32 %v4308, %v4475
    %v4477 = vpop.f32.mrb[0].mxu0
    %v4478 = vadd.f32 %v4310, %v4477
    %4479 = vdwg.mxu0
    %v4480 = vand.u32 %v62, 4294901760
    %4481 = vmatprep.subr.mxu0 %v4480
    %v4482 = vand.u32 %v61, 4294901760
    %4483 = vmatpush1.msra.mxu0 %v4482
    %v4484 = vand.u32 %v74, 4294901760
    %4485 = vmatprep.subr.mxu0 %v4484
    %v4486 = vand.u32 %v73, 4294901760
    %4487 = vmatpush1.msra.mxu0 %v4486
    %v4488 = vand.u32 %v86, 4294901760
    %4489 = vmatprep.subr.mxu0 %v4488
    %v4490 = vand.u32 %v85, 4294901760
    %4491 = vmatpush1.msra.mxu0 %v4490
    %v4492 = vand.u32 %v98, 4294901760
    %4493 = vmatprep.subr.mxu0 %v4492
    %v4494 = vand.u32 %v97, 4294901760
    %4495 = vmatpush1.msra.mxu0 %v4494
    %v4496 = vand.u32 %v110, 4294901760
    %4497 = vmatprep.subr.mxu0 %v4496
    %v4498 = vand.u32 %v109, 4294901760
    %4499 = vmatpush1.msra.mxu0 %v4498
    %v4500 = vand.u32 %v122, 4294901760
    %4501 = vmatprep.subr.mxu0 %v4500
    %v4502 = vand.u32 %v121, 4294901760
    %4503 = vmatpush1.msra.mxu0 %v4502
    %v4504 = vand.u32 %v134, 4294901760
    %4505 = vmatprep.subr.mxu0 %v4504
    %v4506 = vand.u32 %v133, 4294901760
    %4507 = vmatpush1.msra.mxu0 %v4506
    %v4508 = vand.u32 %v146, 4294901760
    %4509 = vmatprep.subr.mxu0 %v4508
    %v4510 = vand.u32 %v145, 4294901760
    %4511 = vmatpush1.msra.mxu0 %v4510
    %v4512 = vand.u32 %v158, 4294901760
    %4513 = vmatprep.subr.mxu0 %v4512
    %v4514 = vand.u32 %v157, 4294901760
    %4515 = vmatpush1.msra.mxu0 %v4514
    %v4516 = vand.u32 %v170, 4294901760
    %4517 = vmatprep.subr.mxu0 %v4516
    %v4518 = vand.u32 %v169, 4294901760
    %4519 = vmatpush1.msra.mxu0 %v4518
    %v4520 = vand.u32 %v182, 4294901760
    %4521 = vmatprep.subr.mxu0 %v4520
    %v4522 = vand.u32 %v181, 4294901760
    %4523 = vmatpush1.msra.mxu0 %v4522
    %v4524 = vand.u32 %v194, 4294901760
    %4525 = vmatprep.subr.mxu0 %v4524
    %v4526 = vand.u32 %v193, 4294901760
    %4527 = vmatpush1.msra.mxu0 %v4526
    %v4528 = vand.u32 %v206, 4294901760
    %4529 = vmatprep.subr.mxu0 %v4528
    %v4530 = vand.u32 %v205, 4294901760
    %4531 = vmatpush1.msra.mxu0 %v4530
    %v4532 = vand.u32 %v218, 4294901760
    %4533 = vmatprep.subr.mxu0 %v4532
    %v4534 = vand.u32 %v217, 4294901760
    %4535 = vmatpush1.msra.mxu0 %v4534
    %v4536 = vand.u32 %v230, 4294901760
    %4537 = vmatprep.subr.mxu0 %v4536
    %v4538 = vand.u32 %v229, 4294901760
    %4539 = vmatpush1.msra.mxu0 %v4538
    %v4540 = vand.u32 %v242, 4294901760
    %4541 = vmatprep.subr.mxu0 %v4540
    %v4542 = vand.u32 %v241, 4294901760
    %4543 = vmatpush1.msra.mxu0 %v4542
    %4544 = vmatprep.subr.mxu0 0.0
    %4545 = vmatpush1.msra.mxu0 0.0
    %4546 = vmatprep.subr.mxu0 0.0
    %4547 = vmatpush1.msra.mxu0 0.0
    %4548 = vmatprep.subr.mxu0 0.0
    %4549 = vmatpush1.msra.mxu0 0.0
    %4550 = vmatprep.subr.mxu0 0.0
    %4551 = vmatpush1.msra.mxu0 0.0
    %4552 = vmatprep.subr.mxu0 0.0
    %4553 = vmatpush1.msra.mxu0 0.0
    %4554 = vmatprep.subr.mxu0 0.0
    %4555 = vmatpush1.msra.mxu0 0.0
    %4556 = vmatprep.subr.mxu0 0.0
    %4557 = vmatpush1.msra.mxu0 0.0
    %4558 = vmatprep.subr.mxu0 0.0
    %4559 = vmatpush1.msra.mxu0 0.0
    %4560 = vmatprep.subr.mxu0 0.0
    %4561 = vmatpush1.msra.mxu0 0.0
    %4562 = vmatprep.subr.mxu0 0.0
    %4563 = vmatpush1.msra.mxu0 0.0
    %4564 = vmatprep.subr.mxu0 0.0
    %4565 = vmatpush1.msra.mxu0 0.0
    %4566 = vmatprep.subr.mxu0 0.0
    %4567 = vmatpush1.msra.mxu0 0.0
    %4568 = vmatprep.subr.mxu0 0.0
    %4569 = vmatpush1.msra.mxu0 0.0
    %4570 = vmatprep.subr.mxu0 0.0
    %4571 = vmatpush1.msra.mxu0 0.0
    %4572 = vmatprep.subr.mxu0 0.0
    %4573 = vmatpush1.msra.mxu0 0.0
    %4574 = vmatprep.subr.mxu0 0.0
    %4575 = vmatpush1.msra.mxu0 0.0
    %4576 = vmatprep.mubr.f32.mxu0 0.0
    %v4577 = vand.u32 %v52, 4294901760
    %4578 = vmatmul.mubr.f32.gmra.mrb[0].mxu0 %v4577
    %v4579 = vpop.f32.mrb[0].mxu0
    %v4580 = vadd.f32 %v4476, %v4579
    %v4581 = vpop.f32.mrb[0].mxu0
    %v4582 = vadd.f32 %v4478, %v4581
    %4583 = vdwg.mxu0
    %v4584 = vand.u32 %v64, 4294901760
    %4585 = vmatprep.subr.mxu0 %v4584
    %v4586 = vand.u32 %v63, 4294901760
    %4587 = vmatpush1.msra.mxu0 %v4586
    %v4588 = vand.u32 %v76, 4294901760
    %4589 = vmatprep.subr.mxu0 %v4588
    %v4590 = vand.u32 %v75, 4294901760
    %4591 = vmatpush1.msra.mxu0 %v4590
    %v4592 = vand.u32 %v88, 4294901760
    %4593 = vmatprep.subr.mxu0 %v4592
    %v4594 = vand.u32 %v87, 4294901760
    %4595 = vmatpush1.msra.mxu0 %v4594
    %v4596 = vand.u32 %v100, 4294901760
    %4597 = vmatprep.subr.mxu0 %v4596
    %v4598 = vand.u32 %v99, 4294901760
    %4599 = vmatpush1.msra.mxu0 %v4598
    %v4600 = vand.u32 %v112, 4294901760
    %4601 = vmatprep.subr.mxu0 %v4600
    %v4602 = vand.u32 %v111, 4294901760
    %4603 = vmatpush1.msra.mxu0 %v4602
    %v4604 = vand.u32 %v124, 4294901760
    %4605 = vmatprep.subr.mxu0 %v4604
    %v4606 = vand.u32 %v123, 4294901760
    %4607 = vmatpush1.msra.mxu0 %v4606
    %v4608 = vand.u32 %v136, 4294901760
    %4609 = vmatprep.subr.mxu0 %v4608
    %v4610 = vand.u32 %v135, 4294901760
    %4611 = vmatpush1.msra.mxu0 %v4610
    %v4612 = vand.u32 %v148, 4294901760
    %4613 = vmatprep.subr.mxu0 %v4612
    %v4614 = vand.u32 %v147, 4294901760
    %4615 = vmatpush1.msra.mxu0 %v4614
    %v4616 = vand.u32 %v160, 4294901760
    %4617 = vmatprep.subr.mxu0 %v4616
    %v4618 = vand.u32 %v159, 4294901760
    %4619 = vmatpush1.msra.mxu0 %v4618
    %v4620 = vand.u32 %v172, 4294901760
    %4621 = vmatprep.subr.mxu0 %v4620
    %v4622 = vand.u32 %v171, 4294901760
    %4623 = vmatpush1.msra.mxu0 %v4622
    %v4624 = vand.u32 %v184, 4294901760
    %4625 = vmatprep.subr.mxu0 %v4624
    %v4626 = vand.u32 %v183, 4294901760
    %4627 = vmatpush1.msra.mxu0 %v4626
    %v4628 = vand.u32 %v196, 4294901760
    %4629 = vmatprep.subr.mxu0 %v4628
    %v4630 = vand.u32 %v195, 4294901760
    %4631 = vmatpush1.msra.mxu0 %v4630
    %v4632 = vand.u32 %v208, 4294901760
    %4633 = vmatprep.subr.mxu0 %v4632
    %v4634 = vand.u32 %v207, 4294901760
    %4635 = vmatpush1.msra.mxu0 %v4634
    %v4636 = vand.u32 %v220, 4294901760
    %4637 = vmatprep.subr.mxu0 %v4636
    %v4638 = vand.u32 %v219, 4294901760
    %4639 = vmatpush1.msra.mxu0 %v4638
    %v4640 = vand.u32 %v232, 4294901760
    %4641 = vmatprep.subr.mxu0 %v4640
    %v4642 = vand.u32 %v231, 4294901760
    %4643 = vmatpush1.msra.mxu0 %v4642
    %v4644 = vand.u32 %v244, 4294901760
    %4645 = vmatprep.subr.mxu0 %v4644
    %v4646 = vand.u32 %v243, 4294901760
    %4647 = vmatpush1.msra.mxu0 %v4646
    %4648 = vmatprep.subr.mxu0 0.0
    %4649 = vmatpush1.msra.mxu0 0.0
    %4650 = vmatprep.subr.mxu0 0.0
    %4651 = vmatpush1.msra.mxu0 0.0
    %4652 = vmatprep.subr.mxu0 0.0
    %4653 = vmatpush1.msra.mxu0 0.0
    %4654 = vmatprep.subr.mxu0 0.0
    %4655 = vmatpush1.msra.mxu0 0.0
    %4656 = vmatprep.subr.mxu0 0.0
    %4657 = vmatpush1.msra.mxu0 0.0
    %4658 = vmatprep.subr.mxu0 0.0
    %4659 = vmatpush1.msra.mxu0 0.0
    %4660 = vmatprep.subr.mxu0 0.0
    %4661 = vmatpush1.msra.mxu0 0.0
    %4662 = vmatprep.subr.mxu0 0.0
    %4663 = vmatpush1.msra.mxu0 0.0
    %4664 = vmatprep.subr.mxu0 0.0
    %4665 = vmatpush1.msra.mxu0 0.0
    %4666 = vmatprep.subr.mxu0 0.0
    %4667 = vmatpush1.msra.mxu0 0.0
    %4668 = vmatprep.subr.mxu0 0.0
    %4669 = vmatpush1.msra.mxu0 0.0
    %4670 = vmatprep.subr.mxu0 0.0
    %4671 = vmatpush1.msra.mxu0 0.0
    %4672 = vmatprep.subr.mxu0 0.0
    %4673 = vmatpush1.msra.mxu0 0.0
    %4674 = vmatprep.subr.mxu0 0.0
    %4675 = vmatpush1.msra.mxu0 0.0
    %4676 = vmatprep.subr.mxu0 0.0
    %4677 = vmatpush1.msra.mxu0 0.0
    %4678 = vmatprep.subr.mxu0 0.0
    %4679 = vmatpush1.msra.mxu0 0.0
    %4680 = vmatprep.mubr.f32.mxu0 0.0
    %v4681 = vand.u32 %v52, 4294901760
    %v4682 = vsub.f32 %v52, %v4681
    %v4683 = vand.u32 %v4682, 4294901760
    %v4684 = vsub.f32 %v4682, %v4683
    %v4685 = vand.u32 %v4684, 4294901760
    %4686 = vmatmul.mubr.f32.gmra.mrb[0].mxu0 %v4685
    %v4687 = vpop.f32.mrb[0].mxu0
    %v4688 = vadd.f32 %v292, %v4687
    %v4689 = vpop.f32.mrb[0].mxu0
    %v4690 = vadd.f32 %v296, %v4689
    %4691 = vdwg.mxu0
    %v4692 = vand.u32 %v64, 4294901760
    %v4693 = vsub.f32 %v64, %v4692
    %v4694 = vand.u32 %v4693, 4294901760
    %v4695 = vsub.f32 %v4693, %v4694
    %v4696 = vand.u32 %v4695, 4294901760
    %4697 = vmatprep.subr.mxu0 %v4696
    %v4698 = vand.u32 %v63, 4294901760
    %v4699 = vsub.f32 %v63, %v4698
    %v4700 = vand.u32 %v4699, 4294901760
    %v4701 = vsub.f32 %v4699, %v4700
    %v4702 = vand.u32 %v4701, 4294901760
    %4703 = vmatpush1.msra.mxu0 %v4702
    %v4704 = vand.u32 %v76, 4294901760
    %v4705 = vsub.f32 %v76, %v4704
    %v4706 = vand.u32 %v4705, 4294901760
    %v4707 = vsub.f32 %v4705, %v4706
    %v4708 = vand.u32 %v4707, 4294901760
    %4709 = vmatprep.subr.mxu0 %v4708
    %v4710 = vand.u32 %v75, 4294901760
    %v4711 = vsub.f32 %v75, %v4710
    %v4712 = vand.u32 %v4711, 4294901760
    %v4713 = vsub.f32 %v4711, %v4712
    %v4714 = vand.u32 %v4713, 4294901760
    %4715 = vmatpush1.msra.mxu0 %v4714
    %v4716 = vand.u32 %v88, 4294901760
    %v4717 = vsub.f32 %v88, %v4716
    %v4718 = vand.u32 %v4717, 4294901760
    %v4719 = vsub.f32 %v4717, %v4718
    %v4720 = vand.u32 %v4719, 4294901760
    %4721 = vmatprep.subr.mxu0 %v4720
    %v4722 = vand.u32 %v87, 4294901760
    %v4723 = vsub.f32 %v87, %v4722
    %v4724 = vand.u32 %v4723, 4294901760
    %v4725 = vsub.f32 %v4723, %v4724
    %v4726 = vand.u32 %v4725, 4294901760
    %4727 = vmatpush1.msra.mxu0 %v4726
    %v4728 = vand.u32 %v100, 4294901760
    %v4729 = vsub.f32 %v100, %v4728
    %v4730 = vand.u32 %v4729, 4294901760
    %v4731 = vsub.f32 %v4729, %v4730
    %v4732 = vand.u32 %v4731, 4294901760
    %4733 = vmatprep.subr.mxu0 %v4732
    %v4734 = vand.u32 %v99, 4294901760
    %v4735 = vsub.f32 %v99, %v4734
    %v4736 = vand.u32 %v4735, 4294901760
    %v4737 = vsub.f32 %v4735, %v4736
    %v4738 = vand.u32 %v4737, 4294901760
    %4739 = vmatpush1.msra.mxu0 %v4738
    %v4740 = vand.u32 %v112, 4294901760
    %v4741 = vsub.f32 %v112, %v4740
    %v4742 = vand.u32 %v4741, 4294901760
    %v4743 = vsub.f32 %v4741, %v4742
    %v4744 = vand.u32 %v4743, 4294901760
    %4745 = vmatprep.subr.mxu0 %v4744
    %v4746 = vand.u32 %v111, 4294901760
    %v4747 = vsub.f32 %v111, %v4746
    %v4748 = vand.u32 %v4747, 4294901760
    %v4749 = vsub.f32 %v4747, %v4748
    %v4750 = vand.u32 %v4749, 4294901760
    %4751 = vmatpush1.msra.mxu0 %v4750
    %v4752 = vand.u32 %v124, 4294901760
    %v4753 = vsub.f32 %v124, %v4752
    %v4754 = vand.u32 %v4753, 4294901760
    %v4755 = vsub.f32 %v4753, %v4754
    %v4756 = vand.u32 %v4755, 4294901760
    %4757 = vmatprep.subr.mxu0 %v4756
    %v4758 = vand.u32 %v123, 4294901760
    %v4759 = vsub.f32 %v123, %v4758
    %v4760 = vand.u32 %v4759, 4294901760
    %v4761 = vsub.f32 %v4759, %v4760
    %v4762 = vand.u32 %v4761, 4294901760
    %4763 = vmatpush1.msra.mxu0 %v4762
    %v4764 = vand.u32 %v136, 4294901760
    %v4765 = vsub.f32 %v136, %v4764
    %v4766 = vand.u32 %v4765, 4294901760
    %v4767 = vsub.f32 %v4765, %v4766
    %v4768 = vand.u32 %v4767, 4294901760
    %4769 = vmatprep.subr.mxu0 %v4768
    %v4770 = vand.u32 %v135, 4294901760
    %v4771 = vsub.f32 %v135, %v4770
    %v4772 = vand.u32 %v4771, 4294901760
    %v4773 = vsub.f32 %v4771, %v4772
    %v4774 = vand.u32 %v4773, 4294901760
    %4775 = vmatpush1.msra.mxu0 %v4774
    %v4776 = vand.u32 %v148, 4294901760
    %v4777 = vsub.f32 %v148, %v4776
    %v4778 = vand.u32 %v4777, 4294901760
    %v4779 = vsub.f32 %v4777, %v4778
    %v4780 = vand.u32 %v4779, 4294901760
    %4781 = vmatprep.subr.mxu0 %v4780
    %v4782 = vand.u32 %v147, 4294901760
    %v4783 = vsub.f32 %v147, %v4782
    %v4784 = vand.u32 %v4783, 4294901760
    %v4785 = vsub.f32 %v4783, %v4784
    %v4786 = vand.u32 %v4785, 4294901760
    %4787 = vmatpush1.msra.mxu0 %v4786
    %v4788 = vand.u32 %v160, 4294901760
    %v4789 = vsub.f32 %v160, %v4788
    %v4790 = vand.u32 %v4789, 4294901760
    %v4791 = vsub.f32 %v4789, %v4790
    %v4792 = vand.u32 %v4791, 4294901760
    %4793 = vmatprep.subr.mxu0 %v4792
    %v4794 = vand.u32 %v159, 4294901760
    %v4795 = vsub.f32 %v159, %v4794
    %v4796 = vand.u32 %v4795, 4294901760
    %v4797 = vsub.f32 %v4795, %v4796
    %v4798 = vand.u32 %v4797, 4294901760
    %4799 = vmatpush1.msra.mxu0 %v4798
    %v4800 = vand.u32 %v172, 4294901760
    %v4801 = vsub.f32 %v172, %v4800
    %v4802 = vand.u32 %v4801, 4294901760
    %v4803 = vsub.f32 %v4801, %v4802
    %v4804 = vand.u32 %v4803, 4294901760
    %4805 = vmatprep.subr.mxu0 %v4804
    %v4806 = vand.u32 %v171, 4294901760
    %v4807 = vsub.f32 %v171, %v4806
    %v4808 = vand.u32 %v4807, 4294901760
    %v4809 = vsub.f32 %v4807, %v4808
    %v4810 = vand.u32 %v4809, 4294901760
    %4811 = vmatpush1.msra.mxu0 %v4810
    %v4812 = vand.u32 %v184, 4294901760
    %v4813 = vsub.f32 %v184, %v4812
    %v4814 = vand.u32 %v4813, 4294901760
    %v4815 = vsub.f32 %v4813, %v4814
    %v4816 = vand.u32 %v4815, 4294901760
    %4817 = vmatprep.subr.mxu0 %v4816
    %v4818 = vand.u32 %v183, 4294901760
    %v4819 = vsub.f32 %v183, %v4818
    %v4820 = vand.u32 %v4819, 4294901760
    %v4821 = vsub.f32 %v4819, %v4820
    %v4822 = vand.u32 %v4821, 4294901760
    %4823 = vmatpush1.msra.mxu0 %v4822
    %v4824 = vand.u32 %v196, 4294901760
    %v4825 = vsub.f32 %v196, %v4824
    %v4826 = vand.u32 %v4825, 4294901760
    %v4827 = vsub.f32 %v4825, %v4826
    %v4828 = vand.u32 %v4827, 4294901760
    %4829 = vmatprep.subr.mxu0 %v4828
    %v4830 = vand.u32 %v195, 4294901760
    %v4831 = vsub.f32 %v195, %v4830
    %v4832 = vand.u32 %v4831, 4294901760
    %v4833 = vsub.f32 %v4831, %v4832
    %v4834 = vand.u32 %v4833, 4294901760
    %4835 = vmatpush1.msra.mxu0 %v4834
    %v4836 = vand.u32 %v208, 4294901760
    %v4837 = vsub.f32 %v208, %v4836
    %v4838 = vand.u32 %v4837, 4294901760
    %v4839 = vsub.f32 %v4837, %v4838
    %v4840 = vand.u32 %v4839, 4294901760
    %4841 = vmatprep.subr.mxu0 %v4840
    %v4842 = vand.u32 %v207, 4294901760
    %v4843 = vsub.f32 %v207, %v4842
    %v4844 = vand.u32 %v4843, 4294901760
    %v4845 = vsub.f32 %v4843, %v4844
    %v4846 = vand.u32 %v4845, 4294901760
    %4847 = vmatpush1.msra.mxu0 %v4846
    %v4848 = vand.u32 %v220, 4294901760
    %v4849 = vsub.f32 %v220, %v4848
    %v4850 = vand.u32 %v4849, 4294901760
    %v4851 = vsub.f32 %v4849, %v4850
    %v4852 = vand.u32 %v4851, 4294901760
    %4853 = vmatprep.subr.mxu0 %v4852
    %v4854 = vand.u32 %v219, 4294901760
    %v4855 = vsub.f32 %v219, %v4854
    %v4856 = vand.u32 %v4855, 4294901760
    %v4857 = vsub.f32 %v4855, %v4856
    %v4858 = vand.u32 %v4857, 4294901760
    %4859 = vmatpush1.msra.mxu0 %v4858
    %v4860 = vand.u32 %v232, 4294901760
    %v4861 = vsub.f32 %v232, %v4860
    %v4862 = vand.u32 %v4861, 4294901760
    %v4863 = vsub.f32 %v4861, %v4862
    %v4864 = vand.u32 %v4863, 4294901760
    %4865 = vmatprep.subr.mxu0 %v4864
    %v4866 = vand.u32 %v231, 4294901760
    %v4867 = vsub.f32 %v231, %v4866
    %v4868 = vand.u32 %v4867, 4294901760
    %v4869 = vsub.f32 %v4867, %v4868
    %v4870 = vand.u32 %v4869, 4294901760
    %4871 = vmatpush1.msra.mxu0 %v4870
    %v4872 = vand.u32 %v244, 4294901760
    %v4873 = vsub.f32 %v244, %v4872
    %v4874 = vand.u32 %v4873, 4294901760
    %v4875 = vsub.f32 %v4873, %v4874
    %v4876 = vand.u32 %v4875, 4294901760
    %4877 = vmatprep.subr.mxu0 %v4876
    %v4878 = vand.u32 %v243, 4294901760
    %v4879 = vsub.f32 %v243, %v4878
    %v4880 = vand.u32 %v4879, 4294901760
    %v4881 = vsub.f32 %v4879, %v4880
    %v4882 = vand.u32 %v4881, 4294901760
    %4883 = vmatpush1.msra.mxu0 %v4882
    %4884 = vmatprep.subr.mxu0 0.0
    %4885 = vmatpush1.msra.mxu0 0.0
    %4886 = vmatprep.subr.mxu0 0.0
    %4887 = vmatpush1.msra.mxu0 0.0
    %4888 = vmatprep.subr.mxu0 0.0
    %4889 = vmatpush1.msra.mxu0 0.0
    %4890 = vmatprep.subr.mxu0 0.0
    %4891 = vmatpush1.msra.mxu0 0.0
    %4892 = vmatprep.subr.mxu0 0.0
    %4893 = vmatpush1.msra.mxu0 0.0
    %4894 = vmatprep.subr.mxu0 0.0
    %4895 = vmatpush1.msra.mxu0 0.0
    %4896 = vmatprep.subr.mxu0 0.0
    %4897 = vmatpush1.msra.mxu0 0.0
    %4898 = vmatprep.subr.mxu0 0.0
    %4899 = vmatpush1.msra.mxu0 0.0
    %4900 = vmatprep.subr.mxu0 0.0
    %4901 = vmatpush1.msra.mxu0 0.0
    %4902 = vmatprep.subr.mxu0 0.0
    %4903 = vmatpush1.msra.mxu0 0.0
    %4904 = vmatprep.subr.mxu0 0.0
    %4905 = vmatpush1.msra.mxu0 0.0
    %4906 = vmatprep.subr.mxu0 0.0
    %4907 = vmatpush1.msra.mxu0 0.0
    %4908 = vmatprep.subr.mxu0 0.0
    %4909 = vmatpush1.msra.mxu0 0.0
    %4910 = vmatprep.subr.mxu0 0.0
    %4911 = vmatpush1.msra.mxu0 0.0
    %4912 = vmatprep.subr.mxu0 0.0
    %4913 = vmatpush1.msra.mxu0 0.0
    %4914 = vmatprep.subr.mxu0 0.0
    %4915 = vmatpush1.msra.mxu0 0.0
    %4916 = vmatprep.mubr.f32.mxu0 0.0
    %v4917 = vand.u32 %v52, 4294901760
    %4918 = vmatmul.mubr.f32.gmra.mrb[0].mxu0 %v4917
    %v4919 = vpop.f32.mrb[0].mxu0
    %v4920 = vadd.f32 %v4688, %v4919
    %v4921 = vpop.f32.mrb[0].mxu0
    %v4922 = vadd.f32 %v4690, %v4921
    %4923 = vdwg.mxu0
    %v4924 = vand.u32 %v64, 4294901760
    %v4925 = vsub.f32 %v64, %v4924
    %4926 = vmatprep.subr.mxu0 %v4925
    %v4927 = vand.u32 %v63, 4294901760
    %v4928 = vsub.f32 %v63, %v4927
    %4929 = vmatpush1.msra.mxu0 %v4928
    %v4930 = vand.u32 %v76, 4294901760
    %v4931 = vsub.f32 %v76, %v4930
    %4932 = vmatprep.subr.mxu0 %v4931
    %v4933 = vand.u32 %v75, 4294901760
    %v4934 = vsub.f32 %v75, %v4933
    %4935 = vmatpush1.msra.mxu0 %v4934
    %v4936 = vand.u32 %v88, 4294901760
    %v4937 = vsub.f32 %v88, %v4936
    %4938 = vmatprep.subr.mxu0 %v4937
    %v4939 = vand.u32 %v87, 4294901760
    %v4940 = vsub.f32 %v87, %v4939
    %4941 = vmatpush1.msra.mxu0 %v4940
    %v4942 = vand.u32 %v100, 4294901760
    %v4943 = vsub.f32 %v100, %v4942
    %4944 = vmatprep.subr.mxu0 %v4943
    %v4945 = vand.u32 %v99, 4294901760
    %v4946 = vsub.f32 %v99, %v4945
    %4947 = vmatpush1.msra.mxu0 %v4946
    %v4948 = vand.u32 %v112, 4294901760
    %v4949 = vsub.f32 %v112, %v4948
    %4950 = vmatprep.subr.mxu0 %v4949
    %v4951 = vand.u32 %v111, 4294901760
    %v4952 = vsub.f32 %v111, %v4951
    %4953 = vmatpush1.msra.mxu0 %v4952
    %v4954 = vand.u32 %v124, 4294901760
    %v4955 = vsub.f32 %v124, %v4954
    %4956 = vmatprep.subr.mxu0 %v4955
    %v4957 = vand.u32 %v123, 4294901760
    %v4958 = vsub.f32 %v123, %v4957
    %4959 = vmatpush1.msra.mxu0 %v4958
    %v4960 = vand.u32 %v136, 4294901760
    %v4961 = vsub.f32 %v136, %v4960
    %4962 = vmatprep.subr.mxu0 %v4961
    %v4963 = vand.u32 %v135, 4294901760
    %v4964 = vsub.f32 %v135, %v4963
    %4965 = vmatpush1.msra.mxu0 %v4964
    %v4966 = vand.u32 %v148, 4294901760
    %v4967 = vsub.f32 %v148, %v4966
    %4968 = vmatprep.subr.mxu0 %v4967
    %v4969 = vand.u32 %v147, 4294901760
    %v4970 = vsub.f32 %v147, %v4969
    %4971 = vmatpush1.msra.mxu0 %v4970
    %v4972 = vand.u32 %v160, 4294901760
    %v4973 = vsub.f32 %v160, %v4972
    %4974 = vmatprep.subr.mxu0 %v4973
    %v4975 = vand.u32 %v159, 4294901760
    %v4976 = vsub.f32 %v159, %v4975
    %4977 = vmatpush1.msra.mxu0 %v4976
    %v4978 = vand.u32 %v172, 4294901760
    %v4979 = vsub.f32 %v172, %v4978
    %4980 = vmatprep.subr.mxu0 %v4979
    %v4981 = vand.u32 %v171, 4294901760
    %v4982 = vsub.f32 %v171, %v4981
    %4983 = vmatpush1.msra.mxu0 %v4982
    %v4984 = vand.u32 %v184, 4294901760
    %v4985 = vsub.f32 %v184, %v4984
    %4986 = vmatprep.subr.mxu0 %v4985
    %v4987 = vand.u32 %v183, 4294901760
    %v4988 = vsub.f32 %v183, %v4987
    %4989 = vmatpush1.msra.mxu0 %v4988
    %v4990 = vand.u32 %v196, 4294901760
    %v4991 = vsub.f32 %v196, %v4990
    %4992 = vmatprep.subr.mxu0 %v4991
    %v4993 = vand.u32 %v195, 4294901760
    %v4994 = vsub.f32 %v195, %v4993
    %4995 = vmatpush1.msra.mxu0 %v4994
    %v4996 = vand.u32 %v208, 4294901760
    %v4997 = vsub.f32 %v208, %v4996
    %4998 = vmatprep.subr.mxu0 %v4997
    %v4999 = vand.u32 %v207, 4294901760
    %v5000 = vsub.f32 %v207, %v4999
    %5001 = vmatpush1.msra.mxu0 %v5000
    %v5002 = vand.u32 %v220, 4294901760
    %v5003 = vsub.f32 %v220, %v5002
    %5004 = vmatprep.subr.mxu0 %v5003
    %v5005 = vand.u32 %v219, 4294901760
    %v5006 = vsub.f32 %v219, %v5005
    %5007 = vmatpush1.msra.mxu0 %v5006
    %v5008 = vand.u32 %v232, 4294901760
    %v5009 = vsub.f32 %v232, %v5008
    %5010 = vmatprep.subr.mxu0 %v5009
    %v5011 = vand.u32 %v231, 4294901760
    %v5012 = vsub.f32 %v231, %v5011
    %5013 = vmatpush1.msra.mxu0 %v5012
    %v5014 = vand.u32 %v244, 4294901760
    %v5015 = vsub.f32 %v244, %v5014
    %5016 = vmatprep.subr.mxu0 %v5015
    %v5017 = vand.u32 %v243, 4294901760
    %v5018 = vsub.f32 %v243, %v5017
    %5019 = vmatpush1.msra.mxu0 %v5018
    %5020 = vmatprep.subr.mxu0 0.0
    %5021 = vmatpush1.msra.mxu0 0.0
    %5022 = vmatprep.subr.mxu0 0.0
    %5023 = vmatpush1.msra.mxu0 0.0
    %5024 = vmatprep.subr.mxu0 0.0
    %5025 = vmatpush1.msra.mxu0 0.0
    %5026 = vmatprep.subr.mxu0 0.0
    %5027 = vmatpush1.msra.mxu0 0.0
    %5028 = vmatprep.subr.mxu0 0.0
    %5029 = vmatpush1.msra.mxu0 0.0
    %5030 = vmatprep.subr.mxu0 0.0
    %5031 = vmatpush1.msra.mxu0 0.0
    %5032 = vmatprep.subr.mxu0 0.0
    %5033 = vmatpush1.msra.mxu0 0.0
    %5034 = vmatprep.subr.mxu0 0.0
    %5035 = vmatpush1.msra.mxu0 0.0
    %5036 = vmatprep.subr.mxu0 0.0
    %5037 = vmatpush1.msra.mxu0 0.0
    %5038 = vmatprep.subr.mxu0 0.0
    %5039 = vmatpush1.msra.mxu0 0.0
    %5040 = vmatprep.subr.mxu0 0.0
    %5041 = vmatpush1.msra.mxu0 0.0
    %5042 = vmatprep.subr.mxu0 0.0
    %5043 = vmatpush1.msra.mxu0 0.0
    %5044 = vmatprep.subr.mxu0 0.0
    %5045 = vmatpush1.msra.mxu0 0.0
    %5046 = vmatprep.subr.mxu0 0.0
    %5047 = vmatpush1.msra.mxu0 0.0
    %5048 = vmatprep.subr.mxu0 0.0
    %5049 = vmatpush1.msra.mxu0 0.0
    %5050 = vmatprep.subr.mxu0 0.0
    %5051 = vmatpush1.msra.mxu0 0.0
    %5052 = vmatprep.mubr.f32.mxu0 0.0
    %v5053 = vand.u32 %v52, 4294901760
    %v5054 = vsub.f32 %v52, %v5053
    %5055 = vmatmul.mubr.f32.gmra.mrb[0].mxu0 %v5054
    %v5056 = vpop.f32.mrb[0].mxu0
    %v5057 = vadd.f32 %v4920, %v5056
    %v5058 = vpop.f32.mrb[0].mxu0
    %v5059 = vadd.f32 %v4922, %v5058
    %5060 = vdwg.mxu0
    %v5061 = vand.u32 %v64, 4294901760
    %5062 = vmatprep.subr.mxu0 %v5061
    %v5063 = vand.u32 %v63, 4294901760
    %5064 = vmatpush1.msra.mxu0 %v5063
    %v5065 = vand.u32 %v76, 4294901760
    %5066 = vmatprep.subr.mxu0 %v5065
    %v5067 = vand.u32 %v75, 4294901760
    %5068 = vmatpush1.msra.mxu0 %v5067
    %v5069 = vand.u32 %v88, 4294901760
    %5070 = vmatprep.subr.mxu0 %v5069
    %v5071 = vand.u32 %v87, 4294901760
    %5072 = vmatpush1.msra.mxu0 %v5071
    %v5073 = vand.u32 %v100, 4294901760
    %5074 = vmatprep.subr.mxu0 %v5073
    %v5075 = vand.u32 %v99, 4294901760
    %5076 = vmatpush1.msra.mxu0 %v5075
    %v5077 = vand.u32 %v112, 4294901760
    %5078 = vmatprep.subr.mxu0 %v5077
    %v5079 = vand.u32 %v111, 4294901760
    %5080 = vmatpush1.msra.mxu0 %v5079
    %v5081 = vand.u32 %v124, 4294901760
    %5082 = vmatprep.subr.mxu0 %v5081
    %v5083 = vand.u32 %v123, 4294901760
    %5084 = vmatpush1.msra.mxu0 %v5083
    %v5085 = vand.u32 %v136, 4294901760
    %5086 = vmatprep.subr.mxu0 %v5085
    %v5087 = vand.u32 %v135, 4294901760
    %5088 = vmatpush1.msra.mxu0 %v5087
    %v5089 = vand.u32 %v148, 4294901760
    %5090 = vmatprep.subr.mxu0 %v5089
    %v5091 = vand.u32 %v147, 4294901760
    %5092 = vmatpush1.msra.mxu0 %v5091
    %v5093 = vand.u32 %v160, 4294901760
    %5094 = vmatprep.subr.mxu0 %v5093
    %v5095 = vand.u32 %v159, 4294901760
    %5096 = vmatpush1.msra.mxu0 %v5095
    %v5097 = vand.u32 %v172, 4294901760
    %5098 = vmatprep.subr.mxu0 %v5097
    %v5099 = vand.u32 %v171, 4294901760
    %5100 = vmatpush1.msra.mxu0 %v5099
    %v5101 = vand.u32 %v184, 4294901760
    %5102 = vmatprep.subr.mxu0 %v5101
    %v5103 = vand.u32 %v183, 4294901760
    %5104 = vmatpush1.msra.mxu0 %v5103
    %v5105 = vand.u32 %v196, 4294901760
    %5106 = vmatprep.subr.mxu0 %v5105
    %v5107 = vand.u32 %v195, 4294901760
    %5108 = vmatpush1.msra.mxu0 %v5107
    %v5109 = vand.u32 %v208, 4294901760
    %5110 = vmatprep.subr.mxu0 %v5109
    %v5111 = vand.u32 %v207, 4294901760
    %5112 = vmatpush1.msra.mxu0 %v5111
    %v5113 = vand.u32 %v220, 4294901760
    %5114 = vmatprep.subr.mxu0 %v5113
    %v5115 = vand.u32 %v219, 4294901760
    %5116 = vmatpush1.msra.mxu0 %v5115
    %v5117 = vand.u32 %v232, 4294901760
    %5118 = vmatprep.subr.mxu0 %v5117
    %v5119 = vand.u32 %v231, 4294901760
    %5120 = vmatpush1.msra.mxu0 %v5119
    %v5121 = vand.u32 %v244, 4294901760
    %5122 = vmatprep.subr.mxu0 %v5121
    %v5123 = vand.u32 %v243, 4294901760
    %5124 = vmatpush1.msra.mxu0 %v5123
    %5125 = vmatprep.subr.mxu0 0.0
    %5126 = vmatpush1.msra.mxu0 0.0
    %5127 = vmatprep.subr.mxu0 0.0
    %5128 = vmatpush1.msra.mxu0 0.0
    %5129 = vmatprep.subr.mxu0 0.0
    %5130 = vmatpush1.msra.mxu0 0.0
    %5131 = vmatprep.subr.mxu0 0.0
    %5132 = vmatpush1.msra.mxu0 0.0
    %5133 = vmatprep.subr.mxu0 0.0
    %5134 = vmatpush1.msra.mxu0 0.0
    %5135 = vmatprep.subr.mxu0 0.0
    %5136 = vmatpush1.msra.mxu0 0.0
    %5137 = vmatprep.subr.mxu0 0.0
    %5138 = vmatpush1.msra.mxu0 0.0
    %5139 = vmatprep.subr.mxu0 0.0
    %5140 = vmatpush1.msra.mxu0 0.0
    %5141 = vmatprep.subr.mxu0 0.0
    %5142 = vmatpush1.msra.mxu0 0.0
    %5143 = vmatprep.subr.mxu0 0.0
    %5144 = vmatpush1.msra.mxu0 0.0
    %5145 = vmatprep.subr.mxu0 0.0
    %5146 = vmatpush1.msra.mxu0 0.0
    %5147 = vmatprep.subr.mxu0 0.0
    %5148 = vmatpush1.msra.mxu0 0.0
    %5149 = vmatprep.subr.mxu0 0.0
    %5150 = vmatpush1.msra.mxu0 0.0
    %5151 = vmatprep.subr.mxu0 0.0
    %5152 = vmatpush1.msra.mxu0 0.0
    %5153 = vmatprep.subr.mxu0 0.0
    %5154 = vmatpush1.msra.mxu0 0.0
    %5155 = vmatprep.subr.mxu0 0.0
    %5156 = vmatpush1.msra.mxu0 0.0
    %5157 = vmatprep.mubr.f32.mxu0 0.0
    %v5158 = vand.u32 %v52, 4294901760
    %v5159 = vsub.f32 %v52, %v5158
    %v5160 = vand.u32 %v5159, 4294901760
    %5161 = vmatmul.mubr.f32.gmra.mrb[0].mxu0 %v5160
    %v5162 = vpop.f32.mrb[0].mxu0
    %v5163 = vadd.f32 %v5057, %v5162
    %v5164 = vpop.f32.mrb[0].mxu0
    %v5165 = vadd.f32 %v5059, %v5164
    %5166 = vdwg.mxu0
    %v5167 = vand.u32 %v64, 4294901760
    %v5168 = vsub.f32 %v64, %v5167
    %v5169 = vand.u32 %v5168, 4294901760
    %5170 = vmatprep.subr.mxu0 %v5169
    %v5171 = vand.u32 %v63, 4294901760
    %v5172 = vsub.f32 %v63, %v5171
    %v5173 = vand.u32 %v5172, 4294901760
    %5174 = vmatpush1.msra.mxu0 %v5173
    %v5175 = vand.u32 %v76, 4294901760
    %v5176 = vsub.f32 %v76, %v5175
    %v5177 = vand.u32 %v5176, 4294901760
    %5178 = vmatprep.subr.mxu0 %v5177
    %v5179 = vand.u32 %v75, 4294901760
    %v5180 = vsub.f32 %v75, %v5179
    %v5181 = vand.u32 %v5180, 4294901760
    %5182 = vmatpush1.msra.mxu0 %v5181
    %v5183 = vand.u32 %v88, 4294901760
    %v5184 = vsub.f32 %v88, %v5183
    %v5185 = vand.u32 %v5184, 4294901760
    %5186 = vmatprep.subr.mxu0 %v5185
    %v5187 = vand.u32 %v87, 4294901760
    %v5188 = vsub.f32 %v87, %v5187
    %v5189 = vand.u32 %v5188, 4294901760
    %5190 = vmatpush1.msra.mxu0 %v5189
    %v5191 = vand.u32 %v100, 4294901760
    %v5192 = vsub.f32 %v100, %v5191
    %v5193 = vand.u32 %v5192, 4294901760
    %5194 = vmatprep.subr.mxu0 %v5193
    %v5195 = vand.u32 %v99, 4294901760
    %v5196 = vsub.f32 %v99, %v5195
    %v5197 = vand.u32 %v5196, 4294901760
    %5198 = vmatpush1.msra.mxu0 %v5197
    %v5199 = vand.u32 %v112, 4294901760
    %v5200 = vsub.f32 %v112, %v5199
    %v5201 = vand.u32 %v5200, 4294901760
    %5202 = vmatprep.subr.mxu0 %v5201
    %v5203 = vand.u32 %v111, 4294901760
    %v5204 = vsub.f32 %v111, %v5203
    %v5205 = vand.u32 %v5204, 4294901760
    %5206 = vmatpush1.msra.mxu0 %v5205
    %v5207 = vand.u32 %v124, 4294901760
    %v5208 = vsub.f32 %v124, %v5207
    %v5209 = vand.u32 %v5208, 4294901760
    %5210 = vmatprep.subr.mxu0 %v5209
    %v5211 = vand.u32 %v123, 4294901760
    %v5212 = vsub.f32 %v123, %v5211
    %v5213 = vand.u32 %v5212, 4294901760
    %5214 = vmatpush1.msra.mxu0 %v5213
    %v5215 = vand.u32 %v136, 4294901760
    %v5216 = vsub.f32 %v136, %v5215
    %v5217 = vand.u32 %v5216, 4294901760
    %5218 = vmatprep.subr.mxu0 %v5217
    %v5219 = vand.u32 %v135, 4294901760
    %v5220 = vsub.f32 %v135, %v5219
    %v5221 = vand.u32 %v5220, 4294901760
    %5222 = vmatpush1.msra.mxu0 %v5221
    %v5223 = vand.u32 %v148, 4294901760
    %v5224 = vsub.f32 %v148, %v5223
    %v5225 = vand.u32 %v5224, 4294901760
    %5226 = vmatprep.subr.mxu0 %v5225
    %v5227 = vand.u32 %v147, 4294901760
    %v5228 = vsub.f32 %v147, %v5227
    %v5229 = vand.u32 %v5228, 4294901760
    %5230 = vmatpush1.msra.mxu0 %v5229
    %v5231 = vand.u32 %v160, 4294901760
    %v5232 = vsub.f32 %v160, %v5231
    %v5233 = vand.u32 %v5232, 4294901760
    %5234 = vmatprep.subr.mxu0 %v5233
    %v5235 = vand.u32 %v159, 4294901760
    %v5236 = vsub.f32 %v159, %v5235
    %v5237 = vand.u32 %v5236, 4294901760
    %5238 = vmatpush1.msra.mxu0 %v5237
    %v5239 = vand.u32 %v172, 4294901760
    %v5240 = vsub.f32 %v172, %v5239
    %v5241 = vand.u32 %v5240, 4294901760
    %5242 = vmatprep.subr.mxu0 %v5241
    %v5243 = vand.u32 %v171, 4294901760
    %v5244 = vsub.f32 %v171, %v5243
    %v5245 = vand.u32 %v5244, 4294901760
    %5246 = vmatpush1.msra.mxu0 %v5245
    %v5247 = vand.u32 %v184, 4294901760
    %v5248 = vsub.f32 %v184, %v5247
    %v5249 = vand.u32 %v5248, 4294901760
    %5250 = vmatprep.subr.mxu0 %v5249
    %v5251 = vand.u32 %v183, 4294901760
    %v5252 = vsub.f32 %v183, %v5251
    %v5253 = vand.u32 %v5252, 4294901760
    %5254 = vmatpush1.msra.mxu0 %v5253
    %v5255 = vand.u32 %v196, 4294901760
    %v5256 = vsub.f32 %v196, %v5255
    %v5257 = vand.u32 %v5256, 4294901760
    %5258 = vmatprep.subr.mxu0 %v5257
    %v5259 = vand.u32 %v195, 4294901760
    %v5260 = vsub.f32 %v195, %v5259
    %v5261 = vand.u32 %v5260, 4294901760
    %5262 = vmatpush1.msra.mxu0 %v5261
    %v5263 = vand.u32 %v208, 4294901760
    %v5264 = vsub.f32 %v208, %v5263
    %v5265 = vand.u32 %v5264, 4294901760
    %5266 = vmatprep.subr.mxu0 %v5265
    %v5267 = vand.u32 %v207, 4294901760
    %v5268 = vsub.f32 %v207, %v5267
    %v5269 = vand.u32 %v5268, 4294901760
    %5270 = vmatpush1.msra.mxu0 %v5269
    %v5271 = vand.u32 %v220, 4294901760
    %v5272 = vsub.f32 %v220, %v5271
    %v5273 = vand.u32 %v5272, 4294901760
    %5274 = vmatprep.subr.mxu0 %v5273
    %v5275 = vand.u32 %v219, 4294901760
    %v5276 = vsub.f32 %v219, %v5275
    %v5277 = vand.u32 %v5276, 4294901760
    %5278 = vmatpush1.msra.mxu0 %v5277
    %v5279 = vand.u32 %v232, 4294901760
    %v5280 = vsub.f32 %v232, %v5279
    %v5281 = vand.u32 %v5280, 4294901760
    %5282 = vmatprep.subr.mxu0 %v5281
    %v5283 = vand.u32 %v231, 4294901760
    %v5284 = vsub.f32 %v231, %v5283
    %v5285 = vand.u32 %v5284, 4294901760
    %5286 = vmatpush1.msra.mxu0 %v5285
    %v5287 = vand.u32 %v244, 4294901760
    %v5288 = vsub.f32 %v244, %v5287
    %v5289 = vand.u32 %v5288, 4294901760
    %5290 = vmatprep.subr.mxu0 %v5289
    %v5291 = vand.u32 %v243, 4294901760
    %v5292 = vsub.f32 %v243, %v5291
    %v5293 = vand.u32 %v5292, 4294901760
    %5294 = vmatpush1.msra.mxu0 %v5293
    %5295 = vmatprep.subr.mxu0 0.0
    %5296 = vmatpush1.msra.mxu0 0.0
    %5297 = vmatprep.subr.mxu0 0.0
    %5298 = vmatpush1.msra.mxu0 0.0
    %5299 = vmatprep.subr.mxu0 0.0
    %5300 = vmatpush1.msra.mxu0 0.0
    %5301 = vmatprep.subr.mxu0 0.0
    %5302 = vmatpush1.msra.mxu0 0.0
    %5303 = vmatprep.subr.mxu0 0.0
    %5304 = vmatpush1.msra.mxu0 0.0
    %5305 = vmatprep.subr.mxu0 0.0
    %5306 = vmatpush1.msra.mxu0 0.0
    %5307 = vmatprep.subr.mxu0 0.0
    %5308 = vmatpush1.msra.mxu0 0.0
    %5309 = vmatprep.subr.mxu0 0.0
    %5310 = vmatpush1.msra.mxu0 0.0
    %5311 = vmatprep.subr.mxu0 0.0
    %5312 = vmatpush1.msra.mxu0 0.0
    %5313 = vmatprep.subr.mxu0 0.0
    %5314 = vmatpush1.msra.mxu0 0.0
    %5315 = vmatprep.subr.mxu0 0.0
    %5316 = vmatpush1.msra.mxu0 0.0
    %5317 = vmatprep.subr.mxu0 0.0
    %5318 = vmatpush1.msra.mxu0 0.0
    %5319 = vmatprep.subr.mxu0 0.0
    %5320 = vmatpush1.msra.mxu0 0.0
    %5321 = vmatprep.subr.mxu0 0.0
    %5322 = vmatpush1.msra.mxu0 0.0
    %5323 = vmatprep.subr.mxu0 0.0
    %5324 = vmatpush1.msra.mxu0 0.0
    %5325 = vmatprep.subr.mxu0 0.0
    %5326 = vmatpush1.msra.mxu0 0.0
    %5327 = vmatprep.mubr.f32.mxu0 0.0
    %v5328 = vand.u32 %v52, 4294901760
    %5329 = vmatmul.mubr.f32.gmra.mrb[0].mxu0 %v5328
    %v5330 = vpop.f32.mrb[0].mxu0
    %v5331 = vadd.f32 %v5163, %v5330
    %v5332 = vpop.f32.mrb[0].mxu0
    %v5333 = vadd.f32 %v5165, %v5332
    %5334 = vdwg.mxu0
    %v5335 = vand.u32 %v64, 4294901760
    %5336 = vmatprep.subr.mxu0 %v5335
    %v5337 = vand.u32 %v63, 4294901760
    %5338 = vmatpush1.msra.mxu0 %v5337
    %v5339 = vand.u32 %v76, 4294901760
    %5340 = vmatprep.subr.mxu0 %v5339
    %v5341 = vand.u32 %v75, 4294901760
    %5342 = vmatpush1.msra.mxu0 %v5341
    %v5343 = vand.u32 %v88, 4294901760
    %5344 = vmatprep.subr.mxu0 %v5343
    %v5345 = vand.u32 %v87, 4294901760
    %5346 = vmatpush1.msra.mxu0 %v5345
    %v5347 = vand.u32 %v100, 4294901760
    %5348 = vmatprep.subr.mxu0 %v5347
    %v5349 = vand.u32 %v99, 4294901760
    %5350 = vmatpush1.msra.mxu0 %v5349
    %v5351 = vand.u32 %v112, 4294901760
    %5352 = vmatprep.subr.mxu0 %v5351
    %v5353 = vand.u32 %v111, 4294901760
    %5354 = vmatpush1.msra.mxu0 %v5353
    %v5355 = vand.u32 %v124, 4294901760
    %5356 = vmatprep.subr.mxu0 %v5355
    %v5357 = vand.u32 %v123, 4294901760
    %5358 = vmatpush1.msra.mxu0 %v5357
    %v5359 = vand.u32 %v136, 4294901760
    %5360 = vmatprep.subr.mxu0 %v5359
    %v5361 = vand.u32 %v135, 4294901760
    %5362 = vmatpush1.msra.mxu0 %v5361
    %v5363 = vand.u32 %v148, 4294901760
    %5364 = vmatprep.subr.mxu0 %v5363
    %v5365 = vand.u32 %v147, 4294901760
    %5366 = vmatpush1.msra.mxu0 %v5365
    %v5367 = vand.u32 %v160, 4294901760
    %5368 = vmatprep.subr.mxu0 %v5367
    %v5369 = vand.u32 %v159, 4294901760
    %5370 = vmatpush1.msra.mxu0 %v5369
    %v5371 = vand.u32 %v172, 4294901760
    %5372 = vmatprep.subr.mxu0 %v5371
    %v5373 = vand.u32 %v171, 4294901760
    %5374 = vmatpush1.msra.mxu0 %v5373
    %v5375 = vand.u32 %v184, 4294901760
    %5376 = vmatprep.subr.mxu0 %v5375
    %v5377 = vand.u32 %v183, 4294901760
    %5378 = vmatpush1.msra.mxu0 %v5377
    %v5379 = vand.u32 %v196, 4294901760
    %5380 = vmatprep.subr.mxu0 %v5379
    %v5381 = vand.u32 %v195, 4294901760
    %5382 = vmatpush1.msra.mxu0 %v5381
    %v5383 = vand.u32 %v208, 4294901760
    %5384 = vmatprep.subr.mxu0 %v5383
    %v5385 = vand.u32 %v207, 4294901760
    %5386 = vmatpush1.msra.mxu0 %v5385
    %v5387 = vand.u32 %v220, 4294901760
    %5388 = vmatprep.subr.mxu0 %v5387
    %v5389 = vand.u32 %v219, 4294901760
    %5390 = vmatpush1.msra.mxu0 %v5389
    %v5391 = vand.u32 %v232, 4294901760
    %5392 = vmatprep.subr.mxu0 %v5391
    %v5393 = vand.u32 %v231, 4294901760
    %5394 = vmatpush1.msra.mxu0 %v5393
    %v5395 = vand.u32 %v244, 4294901760
    %5396 = vmatprep.subr.mxu0 %v5395
    %v5397 = vand.u32 %v243, 4294901760
    %5398 = vmatpush1.msra.mxu0 %v5397
    %5399 = vmatprep.subr.mxu0 0.0
    %5400 = vmatpush1.msra.mxu0 0.0
    %5401 = vmatprep.subr.mxu0 0.0
    %5402 = vmatpush1.msra.mxu0 0.0
    %5403 = vmatprep.subr.mxu0 0.0
    %5404 = vmatpush1.msra.mxu0 0.0
    %5405 = vmatprep.subr.mxu0 0.0
    %5406 = vmatpush1.msra.mxu0 0.0
    %5407 = vmatprep.subr.mxu0 0.0
    %5408 = vmatpush1.msra.mxu0 0.0
    %5409 = vmatprep.subr.mxu0 0.0
    %5410 = vmatpush1.msra.mxu0 0.0
    %5411 = vmatprep.subr.mxu0 0.0
    %5412 = vmatpush1.msra.mxu0 0.0
    %5413 = vmatprep.subr.mxu0 0.0
    %5414 = vmatpush1.msra.mxu0 0.0
    %5415 = vmatprep.subr.mxu0 0.0
    %5416 = vmatpush1.msra.mxu0 0.0
    %5417 = vmatprep.subr.mxu0 0.0
    %5418 = vmatpush1.msra.mxu0 0.0
    %5419 = vmatprep.subr.mxu0 0.0
    %5420 = vmatpush1.msra.mxu0 0.0
    %5421 = vmatprep.subr.mxu0 0.0
    %5422 = vmatpush1.msra.mxu0 0.0
    %5423 = vmatprep.subr.mxu0 0.0
    %5424 = vmatpush1.msra.mxu0 0.0
    %5425 = vmatprep.subr.mxu0 0.0
    %5426 = vmatpush1.msra.mxu0 0.0
    %5427 = vmatprep.subr.mxu0 0.0
    %5428 = vmatpush1.msra.mxu0 0.0
    %5429 = vmatprep.subr.mxu0 0.0
    %5430 = vmatpush1.msra.mxu0 0.0
    %5431 = vmatprep.mubr.f32.mxu0 0.0
    %v5432 = vand.u32 %v52, 4294901760
    %5433 = vmatmul.mubr.f32.gmra.mrb[0].mxu0 %v5432
    %v5434 = vpop.f32.mrb[0].mxu0
    %v5435 = vadd.f32 %v5331, %v5434
    %v5436 = vpop.f32.mrb[0].mxu0
    %v5437 = vadd.f32 %v5333, %v5436
    %5438 = vdwg.mxu0
    %v5439 = vand.u32 2147483647, %v1160
    %vm5440 = vcmp.le.f32.partialorder %v5439, 0.7853982
    %vm5441 = vcmp.lt.s32.totalorder %v1160, 0
    %v5442 = vand.u32 %v1160, 2139095040
    %v5443 = vshrl.u32 %v5442, 23
    %v5444 = vsub.s32 %v5443, 127
    %v5445 = vand.u32 2147483647, %v1160
    %v5446 = vand.u32 %v5445, 8388607
    %v5447 = vor.u32 %v5446, 8388608
    %v5448 = vsub.s32 0, %v5447
    %v5449 = vadd.s32 %v5444, 1
    %vm5450 = vcmp.gt.s32.totalorder %v5449, 0
    %v5451 = vsel %vm5450, %v5449, 0
    %v5452 = vshrl.u32 %v5451, 5
    %v5453 = vand.u32 %v5451, 31
    %v5454 = vsub.s32 32, %v5453
    %v5455 = vshrl.u32 683565275, %v5454
    %v5456 = vshll.u32 683565275, %v5453
    %v5457 = vshrl.u32 2475754826, %v5454
    %v5458 = vor.u32 %v5456, %v5457
    %v5459 = vshll.u32 2475754826, %v5453
    %v5460 = vshrl.u32 2131351028, %v5454
    %v5461 = vor.u32 %v5459, %v5460
    %v5462 = vshll.u32 2131351028, %v5453
    %v5463 = vshrl.u32 2102212464, %v5454
    %v5464 = vor.u32 %v5462, %v5463
    %v5465 = vshll.u32 2102212464, %v5453
    %v5466 = vshrl.u32 920167782, %v5454
    %v5467 = vor.u32 %v5465, %v5466
    %v5468 = vshll.u32 920167782, %v5453
    %v5469 = vshrl.u32 1326507024, %v5454
    %v5470 = vor.u32 %v5468, %v5469
    %vm5471 = vcmp.lt.s32.totalorder %v5452, 1
    %vm5472 = vcmp.lt.s32.totalorder %v5452, 2
    %vm5473 = vcmp.lt.s32.totalorder %v5452, 3
    %vm5474 = vcmp.lt.s32.totalorder %v5452, 4
    %v5475 = vsel %vm5471, %v5455, %v5458
    %v5476 = vsel %vm5474, %v5464, 2102212464
    %v5477 = vsel %vm5473, %v5461, %v5476
    %v5478 = vsel %vm5472, %v5475, %v5477
    %v5479 = vsel %vm5471, %v5458, %v5461
    %v5480 = vsel %vm5474, %v5467, 920167782
    %v5481 = vsel %vm5473, %v5464, %v5480
    %v5482 = vsel %vm5472, %v5479, %v5481
    %v5483 = vsel %vm5471, %v5461, %v5464
    %v5484 = vsel %vm5474, %v5470, 1326507024
    %v5485 = vsel %vm5473, %v5467, %v5484
    %v5486 = vsel %vm5472, %v5483, %v5485
    %v5487 = vshll.u32 %v5447, 8
    %v5488 = vmul.u32.u64.compose %v5487, %v5486
    %v5489 = vextract.low.u32 %v5488
    %v5490 = vextract.high.u32 %v5488
    %v5491 = vmul.u32.u64.compose %v5487, %v5482
    %v5492 = vextract.low.u32 %v5491
    %v5493 = vextract.high.u32 %v5491
    %v5494 = vmul.u32 %v5487, %v5478
    %v5495 = vadd.s32 %v5490, %v5492
    %vm5496 = vc.u32 %v5490, %v5492
    %v5497 = vadd.s32 %v5493, 1
    %v5498 = vsel %vm5496, %v5497, %v5493
    %v5499 = vadd.s32 %v5494, %v5498
    %v5500 = vadd.s32 %v5499, 536870912
    %v5501 = vshrl.u32 %v5500, 30
    %v5502 = vshll.u32 %v5501, 30
    %v5503 = vsub.s32 %v5499, %v5502
    %vm5504 = vcmp.lt.s32.totalorder %v5503, 0
    %v5505 = vsub.s32 0, %v5503
    %v5506 = vsel %vm5504, %v5505, %v5503
    %v5507 = vclz %v5506
    %v5508 = vsub.s32 %v5507, 2
    %vm5509 = vcmp.gt.s32.totalorder 0, %v5508
    %v5510 = vsel %vm5509, 0, %v5508
    %v5511 = vsub.s32 32, %v5510
    %v5512 = vshll.u32 %v5503, %v5510
    %v5513 = vshrl.u32 %v5495, %v5511
    %v5514 = vor.u32 %v5512, %v5513
    %v5515 = vsub.s32 4294967266, %v5510
    %v5516 = vadd.s32 %v5515, 127
    %v5517 = vshll.u32 %v5516, 23
    %v5518 = vor.u32 4788187, %v5517
    %v5519 = vand.u32 2147483647, %v5518
    %v5521 = vcvt.s32.f32 %v5514
    %v5522 = vmul.f32 %v5521, %v5519
    %v5523 = vxor.u32 %v5522, 2147483648
    %v5524 = vsel %vm5441, %v5523, %v5522
    %v5525 = vsub.s32 4, %v5501
    %v5526 = vsel %vm5441, %v5525, %v5501
    %v5527 = vsel %vm5440, %v1160, %v5524
    %v5528 = vsel %vm5440, 0, %v5526
    %v5529 = vcosq.f32.pop %v5527
    %v5530 = vsinq.f32.pop %v5527
    %vm5531 = vweird.f32 %v1160
    %v5532 = vadd.s32 %v5528, 3
    %v5533 = vand.u32 %v5532, 3
    %vm5534 = vcmp.lt.s32.totalorder %v5533, 2
    %vm5535 = vcmp.eq.s32.totalorder %v5533, 0
    %v5536 = vxor.u32 %v5530, 2147483648
    %v5537 = vsel %vm5535, %v5529, %v5536
    %vm5538 = vcmp.eq.s32.totalorder %v5533, 2
    %v5539 = vxor.u32 %v5529, 2147483648
    %v5540 = vsel %vm5538, %v5539, %v5530
    %v5541 = vsel %vm5534, %v5537, %v5540
    %v5542 = vsel %vm5531, nan, %v5541
    %v5543 = vand.u32 2147483647, %v1162
    %vm5544 = vcmp.le.f32.partialorder %v5543, 0.7853982
    %vm5545 = vcmp.lt.s32.totalorder %v1162, 0
    %v5546 = vand.u32 %v1162, 2139095040
    %v5547 = vshrl.u32 %v5546, 23
    %v5548 = vsub.s32 %v5547, 127
    %v5549 = vand.u32 2147483647, %v1162
    %v5550 = vand.u32 %v5549, 8388607
    %v5551 = vor.u32 %v5550, 8388608
    %v5552 = vsub.s32 0, %v5551
    %v5553 = vadd.s32 %v5548, 1
    %vm5554 = vcmp.gt.s32.totalorder %v5553, 0
    %v5555 = vsel %vm5554, %v5553, 0
    %v5556 = vshrl.u32 %v5555, 5
    %v5557 = vand.u32 %v5555, 31
    %v5558 = vsub.s32 32, %v5557
    %v5559 = vshrl.u32 683565275, %v5558
    %v5560 = vshll.u32 683565275, %v5557
    %v5561 = vshrl.u32 2475754826, %v5558
    %v5562 = vor.u32 %v5560, %v5561
    %v5563 = vshll.u32 2475754826, %v5557
    %v5564 = vshrl.u32 2131351028, %v5558
    %v5565 = vor.u32 %v5563, %v5564
    %v5566 = vshll.u32 2131351028, %v5557
    %v5567 = vshrl.u32 2102212464, %v5558
    %v5568 = vor.u32 %v5566, %v5567
    %v5569 = vshll.u32 2102212464, %v5557
    %v5570 = vshrl.u32 920167782, %v5558
    %v5571 = vor.u32 %v5569, %v5570
    %v5572 = vshll.u32 920167782, %v5557
    %v5573 = vshrl.u32 1326507024, %v5558
    %v5574 = vor.u32 %v5572, %v5573
    %vm5575 = vcmp.lt.s32.totalorder %v5556, 1
    %vm5576 = vcmp.lt.s32.totalorder %v5556, 2
    %vm5577 = vcmp.lt.s32.totalorder %v5556, 3
    %vm5578 = vcmp.lt.s32.totalorder %v5556, 4
    %v5579 = vsel %vm5575, %v5559, %v5562
    %v5580 = vsel %vm5578, %v5568, 2102212464
    %v5581 = vsel %vm5577, %v5565, %v5580
    %v5582 = vsel %vm5576, %v5579, %v5581
    %v5583 = vsel %vm5575, %v5562, %v5565
    %v5584 = vsel %vm5578, %v5571, 920167782
    %v5585 = vsel %vm5577, %v5568, %v5584
    %v5586 = vsel %vm5576, %v5583, %v5585
    %v5587 = vsel %vm5575, %v5565, %v5568
    %v5588 = vsel %vm5578, %v5574, 1326507024
    %v5589 = vsel %vm5577, %v5571, %v5588
    %v5590 = vsel %vm5576, %v5587, %v5589
    %v5591 = vshll.u32 %v5551, 8
    %v5592 = vmul.u32.u64.compose %v5591, %v5590
    %v5593 = vextract.low.u32 %v5592
    %v5594 = vextract.high.u32 %v5592
    %v5595 = vmul.u32.u64.compose %v5591, %v5586
    %v5596 = vextract.low.u32 %v5595
    %v5597 = vextract.high.u32 %v5595
    %v5598 = vmul.u32 %v5591, %v5582
    %v5599 = vadd.s32 %v5594, %v5596
    %vm5600 = vc.u32 %v5594, %v5596
    %v5601 = vadd.s32 %v5597, 1
    %v5602 = vsel %vm5600, %v5601, %v5597
    %v5603 = vadd.s32 %v5598, %v5602
    %v5604 = vadd.s32 %v5603, 536870912
    %v5605 = vshrl.u32 %v5604, 30
    %v5606 = vshll.u32 %v5605, 30
    %v5607 = vsub.s32 %v5603, %v5606
    %vm5608 = vcmp.lt.s32.totalorder %v5607, 0
    %v5609 = vsub.s32 0, %v5607
    %v5610 = vsel %vm5608, %v5609, %v5607
    %v5611 = vclz %v5610
    %v5612 = vsub.s32 %v5611, 2
    %vm5613 = vcmp.gt.s32.totalorder 0, %v5612
    %v5614 = vsel %vm5613, 0, %v5612
    %v5615 = vsub.s32 32, %v5614
    %v5616 = vshll.u32 %v5607, %v5614
    %v5617 = vshrl.u32 %v5599, %v5615
    %v5618 = vor.u32 %v5616, %v5617
    %v5619 = vsub.s32 4294967266, %v5614
    %v5620 = vadd.s32 %v5619, 127
    %v5621 = vshll.u32 %v5620, 23
    %v5622 = vor.u32 4788187, %v5621
    %v5623 = vand.u32 2147483647, %v5622
    %v5625 = vcvt.s32.f32 %v5618
    %v5626 = vmul.f32 %v5625, %v5623
    %v5627 = vxor.u32 %v5626, 2147483648
    %v5628 = vsel %vm5545, %v5627, %v5626
    %v5629 = vsub.s32 4, %v5605
    %v5630 = vsel %vm5545, %v5629, %v5605
    %v5631 = vsel %vm5544, %v1162, %v5628
    %v5632 = vsel %vm5544, 0, %v5630
    %v5633 = vcosq.f32.pop %v5631
    %v5634 = vsinq.f32.pop %v5631
    %vm5635 = vweird.f32 %v1162
    %v5636 = vadd.s32 %v5632, 3
    %v5637 = vand.u32 %v5636, 3
    %vm5638 = vcmp.lt.s32.totalorder %v5637, 2
    %vm5639 = vcmp.eq.s32.totalorder %v5637, 0
    %v5640 = vxor.u32 %v5634, 2147483648
    %v5641 = vsel %vm5639, %v5633, %v5640
    %vm5642 = vcmp.eq.s32.totalorder %v5637, 2
    %v5643 = vxor.u32 %v5633, 2147483648
    %v5644 = vsel %vm5642, %v5643, %v5634
    %v5645 = vsel %vm5638, %v5641, %v5644
    %v5646 = vsel %vm5635, nan, %v5645
    %v5647 = vand.u32 2147483647, %v2015
    %vm5648 = vcmp.le.f32.partialorder %v5647, 0.7853982
    %vm5649 = vcmp.lt.s32.totalorder %v2015, 0
    %v5650 = vand.u32 %v2015, 2139095040
    %v5651 = vshrl.u32 %v5650, 23
    %v5652 = vsub.s32 %v5651, 127
    %v5653 = vand.u32 2147483647, %v2015
    %v5654 = vand.u32 %v5653, 8388607
    %v5655 = vor.u32 %v5654, 8388608
    %v5656 = vsub.s32 0, %v5655
    %v5657 = vadd.s32 %v5652, 1
    %vm5658 = vcmp.gt.s32.totalorder %v5657, 0
    %v5659 = vsel %vm5658, %v5657, 0
    %v5660 = vshrl.u32 %v5659, 5
    %v5661 = vand.u32 %v5659, 31
    %v5662 = vsub.s32 32, %v5661
    %v5663 = vshrl.u32 683565275, %v5662
    %v5664 = vshll.u32 683565275, %v5661
    %v5665 = vshrl.u32 2475754826, %v5662
    %v5666 = vor.u32 %v5664, %v5665
    %v5667 = vshll.u32 2475754826, %v5661
    %v5668 = vshrl.u32 2131351028, %v5662
    %v5669 = vor.u32 %v5667, %v5668
    %v5670 = vshll.u32 2131351028, %v5661
    %v5671 = vshrl.u32 2102212464, %v5662
    %v5672 = vor.u32 %v5670, %v5671
    %v5673 = vshll.u32 2102212464, %v5661
    %v5674 = vshrl.u32 920167782, %v5662
    %v5675 = vor.u32 %v5673, %v5674
    %v5676 = vshll.u32 920167782, %v5661
    %v5677 = vshrl.u32 1326507024, %v5662
    %v5678 = vor.u32 %v5676, %v5677
    %vm5679 = vcmp.lt.s32.totalorder %v5660, 1
    %vm5680 = vcmp.lt.s32.totalorder %v5660, 2
    %vm5681 = vcmp.lt.s32.totalorder %v5660, 3
    %vm5682 = vcmp.lt.s32.totalorder %v5660, 4
    %v5683 = vsel %vm5679, %v5663, %v5666
    %v5684 = vsel %vm5682, %v5672, 2102212464
    %v5685 = vsel %vm5681, %v5669, %v5684
    %v5686 = vsel %vm5680, %v5683, %v5685
    %v5687 = vsel %vm5679, %v5666, %v5669
    %v5688 = vsel %vm5682, %v5675, 920167782
    %v5689 = vsel %vm5681, %v5672, %v5688
    %v5690 = vsel %vm5680, %v5687, %v5689
    %v5691 = vsel %vm5679, %v5669, %v5672
    %v5692 = vsel %vm5682, %v5678, 1326507024
    %v5693 = vsel %vm5681, %v5675, %v5692
    %v5694 = vsel %vm5680, %v5691, %v5693
    %v5695 = vshll.u32 %v5655, 8
    %v5696 = vmul.u32.u64.compose %v5695, %v5694
    %v5697 = vextract.low.u32 %v5696
    %v5698 = vextract.high.u32 %v5696
    %v5699 = vmul.u32.u64.compose %v5695, %v5690
    %v5700 = vextract.low.u32 %v5699
    %v5701 = vextract.high.u32 %v5699
    %v5702 = vmul.u32 %v5695, %v5686
    %v5703 = vadd.s32 %v5698, %v5700
    %vm5704 = vc.u32 %v5698, %v5700
    %v5705 = vadd.s32 %v5701, 1
    %v5706 = vsel %vm5704, %v5705, %v5701
    %v5707 = vadd.s32 %v5702, %v5706
    %v5708 = vadd.s32 %v5707, 536870912
    %v5709 = vshrl.u32 %v5708, 30
    %v5710 = vshll.u32 %v5709, 30
    %v5711 = vsub.s32 %v5707, %v5710
    %vm5712 = vcmp.lt.s32.totalorder %v5711, 0
    %v5713 = vsub.s32 0, %v5711
    %v5714 = vsel %vm5712, %v5713, %v5711
    %v5715 = vclz %v5714
    %v5716 = vsub.s32 %v5715, 2
    %vm5717 = vcmp.gt.s32.totalorder 0, %v5716
    %v5718 = vsel %vm5717, 0, %v5716
    %v5719 = vsub.s32 32, %v5718
    %v5720 = vshll.u32 %v5711, %v5718
    %v5721 = vshrl.u32 %v5703, %v5719
    %v5722 = vor.u32 %v5720, %v5721
    %v5723 = vsub.s32 4294967266, %v5718
    %v5724 = vadd.s32 %v5723, 127
    %v5725 = vshll.u32 %v5724, 23
    %v5726 = vor.u32 4788187, %v5725
    %v5727 = vand.u32 2147483647, %v5726
    %v5729 = vcvt.s32.f32 %v5722
    %v5730 = vmul.f32 %v5729, %v5727
    %v5731 = vxor.u32 %v5730, 2147483648
    %v5732 = vsel %vm5649, %v5731, %v5730
    %v5733 = vsub.s32 4, %v5709
    %v5734 = vsel %vm5649, %v5733, %v5709
    %v5735 = vsel %vm5648, %v2015, %v5732
    %v5736 = vsel %vm5648, 0, %v5734
    %v5737 = vcosq.f32.pop %v5735
    %v5738 = vsinq.f32.pop %v5735
    %vm5739 = vweird.f32 %v2015
    %v5740 = vadd.s32 %v5736, 3
    %v5741 = vand.u32 %v5740, 3
    %vm5742 = vcmp.lt.s32.totalorder %v5741, 2
    %vm5743 = vcmp.eq.s32.totalorder %v5741, 0
    %v5744 = vxor.u32 %v5738, 2147483648
    %v5745 = vsel %vm5743, %v5737, %v5744
    %vm5746 = vcmp.eq.s32.totalorder %v5741, 2
    %v5747 = vxor.u32 %v5737, 2147483648
    %v5748 = vsel %vm5746, %v5747, %v5738
    %v5749 = vsel %vm5742, %v5745, %v5748
    %v5750 = vsel %vm5739, nan, %v5749
    %v5751 = vand.u32 2147483647, %v2017
    %vm5752 = vcmp.le.f32.partialorder %v5751, 0.7853982
    %vm5753 = vcmp.lt.s32.totalorder %v2017, 0
    %v5754 = vand.u32 %v2017, 2139095040
    %v5755 = vshrl.u32 %v5754, 23
    %v5756 = vsub.s32 %v5755, 127
    %v5757 = vand.u32 2147483647, %v2017
    %v5758 = vand.u32 %v5757, 8388607
    %v5759 = vor.u32 %v5758, 8388608
    %v5760 = vsub.s32 0, %v5759
    %v5761 = vadd.s32 %v5756, 1
    %vm5762 = vcmp.gt.s32.totalorder %v5761, 0
    %v5763 = vsel %vm5762, %v5761, 0
    %v5764 = vshrl.u32 %v5763, 5
    %v5765 = vand.u32 %v5763, 31
    %v5766 = vsub.s32 32, %v5765
    %v5767 = vshrl.u32 683565275, %v5766
    %v5768 = vshll.u32 683565275, %v5765
    %v5769 = vshrl.u32 2475754826, %v5766
    %v5770 = vor.u32 %v5768, %v5769
    %v5771 = vshll.u32 2475754826, %v5765
    %v5772 = vshrl.u32 2131351028, %v5766
    %v5773 = vor.u32 %v5771, %v5772
    %v5774 = vshll.u32 2131351028, %v5765
    %v5775 = vshrl.u32 2102212464, %v5766
    %v5776 = vor.u32 %v5774, %v5775
    %v5777 = vshll.u32 2102212464, %v5765
    %v5778 = vshrl.u32 920167782, %v5766
    %v5779 = vor.u32 %v5777, %v5778
    %v5780 = vshll.u32 920167782, %v5765
    %v5781 = vshrl.u32 1326507024, %v5766
    %v5782 = vor.u32 %v5780, %v5781
    %vm5783 = vcmp.lt.s32.totalorder %v5764, 1
    %vm5784 = vcmp.lt.s32.totalorder %v5764, 2
    %vm5785 = vcmp.lt.s32.totalorder %v5764, 3
    %vm5786 = vcmp.lt.s32.totalorder %v5764, 4
    %v5787 = vsel %vm5783, %v5767, %v5770
    %v5788 = vsel %vm5786, %v5776, 2102212464
    %v5789 = vsel %vm5785, %v5773, %v5788
    %v5790 = vsel %vm5784, %v5787, %v5789
    %v5791 = vsel %vm5783, %v5770, %v5773
    %v5792 = vsel %vm5786, %v5779, 920167782
    %v5793 = vsel %vm5785, %v5776, %v5792
    %v5794 = vsel %vm5784, %v5791, %v5793
    %v5795 = vsel %vm5783, %v5773, %v5776
    %v5796 = vsel %vm5786, %v5782, 1326507024
    %v5797 = vsel %vm5785, %v5779, %v5796
    %v5798 = vsel %vm5784, %v5795, %v5797
    %v5799 = vshll.u32 %v5759, 8
    %v5800 = vmul.u32.u64.compose %v5799, %v5798
    %v5801 = vextract.low.u32 %v5800
    %v5802 = vextract.high.u32 %v5800
    %v5803 = vmul.u32.u64.compose %v5799, %v5794
    %v5804 = vextract.low.u32 %v5803
    %v5805 = vextract.high.u32 %v5803
    %v5806 = vmul.u32 %v5799, %v5790
    %v5807 = vadd.s32 %v5802, %v5804
    %vm5808 = vc.u32 %v5802, %v5804
    %v5809 = vadd.s32 %v5805, 1
    %v5810 = vsel %vm5808, %v5809, %v5805
    %v5811 = vadd.s32 %v5806, %v5810
    %v5812 = vadd.s32 %v5811, 536870912
    %v5813 = vshrl.u32 %v5812, 30
    %v5814 = vshll.u32 %v5813, 30
    %v5815 = vsub.s32 %v5811, %v5814
    %vm5816 = vcmp.lt.s32.totalorder %v5815, 0
    %v5817 = vsub.s32 0, %v5815
    %v5818 = vsel %vm5816, %v5817, %v5815
    %v5819 = vclz %v5818
    %v5820 = vsub.s32 %v5819, 2
    %vm5821 = vcmp.gt.s32.totalorder 0, %v5820
    %v5822 = vsel %vm5821, 0, %v5820
    %v5823 = vsub.s32 32, %v5822
    %v5824 = vshll.u32 %v5815, %v5822
    %v5825 = vshrl.u32 %v5807, %v5823
    %v5826 = vor.u32 %v5824, %v5825
    %v5827 = vsub.s32 4294967266, %v5822
    %v5828 = vadd.s32 %v5827, 127
    %v5829 = vshll.u32 %v5828, 23
    %v5830 = vor.u32 4788187, %v5829
    %v5831 = vand.u32 2147483647, %v5830
    %v5833 = vcvt.s32.f32 %v5826
    %v5834 = vmul.f32 %v5833, %v5831
    %v5835 = vxor.u32 %v5834, 2147483648
    %v5836 = vsel %vm5753, %v5835, %v5834
    %v5837 = vsub.s32 4, %v5813
    %v5838 = vsel %vm5753, %v5837, %v5813
    %v5839 = vsel %vm5752, %v2017, %v5836
    %v5840 = vsel %vm5752, 0, %v5838
    %v5841 = vcosq.f32.pop %v5839
    %v5842 = vsinq.f32.pop %v5839
    %vm5843 = vweird.f32 %v2017
    %v5844 = vadd.s32 %v5840, 3
    %v5845 = vand.u32 %v5844, 3
    %vm5846 = vcmp.lt.s32.totalorder %v5845, 2
    %vm5847 = vcmp.eq.s32.totalorder %v5845, 0
    %v5848 = vxor.u32 %v5842, 2147483648
    %v5849 = vsel %vm5847, %v5841, %v5848
    %vm5850 = vcmp.eq.s32.totalorder %v5845, 2
    %v5851 = vxor.u32 %v5841, 2147483648
    %v5852 = vsel %vm5850, %v5851, %v5842
    %v5853 = vsel %vm5846, %v5849, %v5852
    %v5854 = vsel %vm5843, nan, %v5853
    %v5855 = vand.u32 2147483647, %v2870
    %vm5856 = vcmp.le.f32.partialorder %v5855, 0.7853982
    %vm5857 = vcmp.lt.s32.totalorder %v2870, 0
    %v5858 = vand.u32 %v2870, 2139095040
    %v5859 = vshrl.u32 %v5858, 23
    %v5860 = vsub.s32 %v5859, 127
    %v5861 = vand.u32 2147483647, %v2870
    %v5862 = vand.u32 %v5861, 8388607
    %v5863 = vor.u32 %v5862, 8388608
    %v5864 = vsub.s32 0, %v5863
    %v5865 = vadd.s32 %v5860, 1
    %vm5866 = vcmp.gt.s32.totalorder %v5865, 0
    %v5867 = vsel %vm5866, %v5865, 0
    %v5868 = vshrl.u32 %v5867, 5
    %v5869 = vand.u32 %v5867, 31
    %v5870 = vsub.s32 32, %v5869
    %v5871 = vshrl.u32 683565275, %v5870
    %v5872 = vshll.u32 683565275, %v5869
    %v5873 = vshrl.u32 2475754826, %v5870
    %v5874 = vor.u32 %v5872, %v5873
    %v5875 = vshll.u32 2475754826, %v5869
    %v5876 = vshrl.u32 2131351028, %v5870
    %v5877 = vor.u32 %v5875, %v5876
    %v5878 = vshll.u32 2131351028, %v5869
    %v5879 = vshrl.u32 2102212464, %v5870
    %v5880 = vor.u32 %v5878, %v5879
    %v5881 = vshll.u32 2102212464, %v5869
    %v5882 = vshrl.u32 920167782, %v5870
    %v5883 = vor.u32 %v5881, %v5882
    %v5884 = vshll.u32 920167782, %v5869
    %v5885 = vshrl.u32 1326507024, %v5870
    %v5886 = vor.u32 %v5884, %v5885
    %vm5887 = vcmp.lt.s32.totalorder %v5868, 1
    %vm5888 = vcmp.lt.s32.totalorder %v5868, 2
    %vm5889 = vcmp.lt.s32.totalorder %v5868, 3
    %vm5890 = vcmp.lt.s32.totalorder %v5868, 4
    %v5891 = vsel %vm5887, %v5871, %v5874
    %v5892 = vsel %vm5890, %v5880, 2102212464
    %v5893 = vsel %vm5889, %v5877, %v5892
    %v5894 = vsel %vm5888, %v5891, %v5893
    %v5895 = vsel %vm5887, %v5874, %v5877
    %v5896 = vsel %vm5890, %v5883, 920167782
    %v5897 = vsel %vm5889, %v5880, %v5896
    %v5898 = vsel %vm5888, %v5895, %v5897
    %v5899 = vsel %vm5887, %v5877, %v5880
    %v5900 = vsel %vm5890, %v5886, 1326507024
    %v5901 = vsel %vm5889, %v5883, %v5900
    %v5902 = vsel %vm5888, %v5899, %v5901
    %v5903 = vshll.u32 %v5863, 8
    %v5904 = vmul.u32.u64.compose %v5903, %v5902
    %v5905 = vextract.low.u32 %v5904
    %v5906 = vextract.high.u32 %v5904
    %v5907 = vmul.u32.u64.compose %v5903, %v5898
    %v5908 = vextract.low.u32 %v5907
    %v5909 = vextract.high.u32 %v5907
    %v5910 = vmul.u32 %v5903, %v5894
    %v5911 = vadd.s32 %v5906, %v5908
    %vm5912 = vc.u32 %v5906, %v5908
    %v5913 = vadd.s32 %v5909, 1
    %v5914 = vsel %vm5912, %v5913, %v5909
    %v5915 = vadd.s32 %v5910, %v5914
    %v5916 = vadd.s32 %v5915, 536870912
    %v5917 = vshrl.u32 %v5916, 30
    %v5918 = vshll.u32 %v5917, 30
    %v5919 = vsub.s32 %v5915, %v5918
    %vm5920 = vcmp.lt.s32.totalorder %v5919, 0
    %v5921 = vsub.s32 0, %v5919
    %v5922 = vsel %vm5920, %v5921, %v5919
    %v5923 = vclz %v5922
    %v5924 = vsub.s32 %v5923, 2
    %vm5925 = vcmp.gt.s32.totalorder 0, %v5924
    %v5926 = vsel %vm5925, 0, %v5924
    %v5927 = vsub.s32 32, %v5926
    %v5928 = vshll.u32 %v5919, %v5926
    %v5929 = vshrl.u32 %v5911, %v5927
    %v5930 = vor.u32 %v5928, %v5929
    %v5931 = vsub.s32 4294967266, %v5926
    %v5932 = vadd.s32 %v5931, 127
    %v5933 = vshll.u32 %v5932, 23
    %v5934 = vor.u32 4788187, %v5933
    %v5935 = vand.u32 2147483647, %v5934
    %v5937 = vcvt.s32.f32 %v5930
    %v5938 = vmul.f32 %v5937, %v5935
    %v5939 = vxor.u32 %v5938, 2147483648
    %v5940 = vsel %vm5857, %v5939, %v5938
    %v5941 = vsub.s32 4, %v5917
    %v5942 = vsel %vm5857, %v5941, %v5917
    %v5943 = vsel %vm5856, %v2870, %v5940
    %v5944 = vsel %vm5856, 0, %v5942
    %v5945 = vcosq.f32.pop %v5943
    %v5946 = vsinq.f32.pop %v5943
    %vm5947 = vweird.f32 %v2870
    %v5948 = vadd.s32 %v5944, 3
    %v5949 = vand.u32 %v5948, 3
    %vm5950 = vcmp.lt.s32.totalorder %v5949, 2
    %vm5951 = vcmp.eq.s32.totalorder %v5949, 0
    %v5952 = vxor.u32 %v5946, 2147483648
    %v5953 = vsel %vm5951, %v5945, %v5952
    %vm5954 = vcmp.eq.s32.totalorder %v5949, 2
    %v5955 = vxor.u32 %v5945, 2147483648
    %v5956 = vsel %vm5954, %v5955, %v5946
    %v5957 = vsel %vm5950, %v5953, %v5956
    %v5958 = vsel %vm5947, nan, %v5957
    %v5959 = vand.u32 2147483647, %v2872
    %vm5960 = vcmp.le.f32.partialorder %v5959, 0.7853982
    %vm5961 = vcmp.lt.s32.totalorder %v2872, 0
    %v5962 = vand.u32 %v2872, 2139095040
    %v5963 = vshrl.u32 %v5962, 23
    %v5964 = vsub.s32 %v5963, 127
    %v5965 = vand.u32 2147483647, %v2872
    %v5966 = vand.u32 %v5965, 8388607
    %v5967 = vor.u32 %v5966, 8388608
    %v5968 = vsub.s32 0, %v5967
    %v5969 = vadd.s32 %v5964, 1
    %vm5970 = vcmp.gt.s32.totalorder %v5969, 0
    %v5971 = vsel %vm5970, %v5969, 0
    %v5972 = vshrl.u32 %v5971, 5
    %v5973 = vand.u32 %v5971, 31
    %v5974 = vsub.s32 32, %v5973
    %v5975 = vshrl.u32 683565275, %v5974
    %v5976 = vshll.u32 683565275, %v5973
    %v5977 = vshrl.u32 2475754826, %v5974
    %v5978 = vor.u32 %v5976, %v5977
    %v5979 = vshll.u32 2475754826, %v5973
    %v5980 = vshrl.u32 2131351028, %v5974
    %v5981 = vor.u32 %v5979, %v5980
    %v5982 = vshll.u32 2131351028, %v5973
    %v5983 = vshrl.u32 2102212464, %v5974
    %v5984 = vor.u32 %v5982, %v5983
    %v5985 = vshll.u32 2102212464, %v5973
    %v5986 = vshrl.u32 920167782, %v5974
    %v5987 = vor.u32 %v5985, %v5986
    %v5988 = vshll.u32 920167782, %v5973
    %v5989 = vshrl.u32 1326507024, %v5974
    %v5990 = vor.u32 %v5988, %v5989
    %vm5991 = vcmp.lt.s32.totalorder %v5972, 1
    %vm5992 = vcmp.lt.s32.totalorder %v5972, 2
    %vm5993 = vcmp.lt.s32.totalorder %v5972, 3
    %vm5994 = vcmp.lt.s32.totalorder %v5972, 4
    %v5995 = vsel %vm5991, %v5975, %v5978
    %v5996 = vsel %vm5994, %v5984, 2102212464
    %v5997 = vsel %vm5993, %v5981, %v5996
    %v5998 = vsel %vm5992, %v5995, %v5997
    %v5999 = vsel %vm5991, %v5978, %v5981
    %v6000 = vsel %vm5994, %v5987, 920167782
    %v6001 = vsel %vm5993, %v5984, %v6000
    %v6002 = vsel %vm5992, %v5999, %v6001
    %v6003 = vsel %vm5991, %v5981, %v5984
    %v6004 = vsel %vm5994, %v5990, 1326507024
    %v6005 = vsel %vm5993, %v5987, %v6004
    %v6006 = vsel %vm5992, %v6003, %v6005
    %v6007 = vshll.u32 %v5967, 8
    %v6008 = vmul.u32.u64.compose %v6007, %v6006
    %v6009 = vextract.low.u32 %v6008
    %v6010 = vextract.high.u32 %v6008
    %v6011 = vmul.u32.u64.compose %v6007, %v6002
    %v6012 = vextract.low.u32 %v6011
    %v6013 = vextract.high.u32 %v6011
    %v6014 = vmul.u32 %v6007, %v5998
    %v6015 = vadd.s32 %v6010, %v6012
    %vm6016 = vc.u32 %v6010, %v6012
    %v6017 = vadd.s32 %v6013, 1
    %v6018 = vsel %vm6016, %v6017, %v6013
    %v6019 = vadd.s32 %v6014, %v6018
    %v6020 = vadd.s32 %v6019, 536870912
    %v6021 = vshrl.u32 %v6020, 30
    %v6022 = vshll.u32 %v6021, 30
    %v6023 = vsub.s32 %v6019, %v6022
    %vm6024 = vcmp.lt.s32.totalorder %v6023, 0
    %v6025 = vsub.s32 0, %v6023
    %v6026 = vsel %vm6024, %v6025, %v6023
    %v6027 = vclz %v6026
    %v6028 = vsub.s32 %v6027, 2
    %vm6029 = vcmp.gt.s32.totalorder 0, %v6028
    %v6030 = vsel %vm6029, 0, %v6028
    %v6031 = vsub.s32 32, %v6030
    %v6032 = vshll.u32 %v6023, %v6030
    %v6033 = vshrl.u32 %v6015, %v6031
    %v6034 = vor.u32 %v6032, %v6033
    %v6035 = vsub.s32 4294967266, %v6030
    %v6036 = vadd.s32 %v6035, 127
    %v6037 = vshll.u32 %v6036, 23
    %v6038 = vor.u32 4788187, %v6037
    %v6039 = vand.u32 2147483647, %v6038
    %v6041 = vcvt.s32.f32 %v6034
    %v6042 = vmul.f32 %v6041, %v6039
    %v6043 = vxor.u32 %v6042, 2147483648
    %v6044 = vsel %vm5961, %v6043, %v6042
    %v6045 = vsub.s32 4, %v6021
    %v6046 = vsel %vm5961, %v6045, %v6021
    %v6047 = vsel %vm5960, %v2872, %v6044
    %v6048 = vsel %vm5960, 0, %v6046
    %v6049 = vcosq.f32.pop %v6047
    %v6050 = vsinq.f32.pop %v6047
    %vm6051 = vweird.f32 %v2872
    %v6052 = vadd.s32 %v6048, 3
    %v6053 = vand.u32 %v6052, 3
    %vm6054 = vcmp.lt.s32.totalorder %v6053, 2
    %vm6055 = vcmp.eq.s32.totalorder %v6053, 0
    %v6056 = vxor.u32 %v6050, 2147483648
    %v6057 = vsel %vm6055, %v6049, %v6056
    %vm6058 = vcmp.eq.s32.totalorder %v6053, 2
    %v6059 = vxor.u32 %v6049, 2147483648
    %v6060 = vsel %vm6058, %v6059, %v6050
    %v6061 = vsel %vm6054, %v6057, %v6060
    %v6062 = vsel %vm6051, nan, %v6061
    %v6063 = vand.u32 2147483647, %v3725
    %vm6064 = vcmp.le.f32.partialorder %v6063, 0.7853982
    %vm6065 = vcmp.lt.s32.totalorder %v3725, 0
    %v6066 = vand.u32 %v3725, 2139095040
    %v6067 = vshrl.u32 %v6066, 23
    %v6068 = vsub.s32 %v6067, 127
    %v6069 = vand.u32 2147483647, %v3725
    %v6070 = vand.u32 %v6069, 8388607
    %v6071 = vor.u32 %v6070, 8388608
    %v6072 = vsub.s32 0, %v6071
    %v6073 = vadd.s32 %v6068, 1
    %vm6074 = vcmp.gt.s32.totalorder %v6073, 0
    %v6075 = vsel %vm6074, %v6073, 0
    %v6076 = vshrl.u32 %v6075, 5
    %v6077 = vand.u32 %v6075, 31
    %v6078 = vsub.s32 32, %v6077
    %v6079 = vshrl.u32 683565275, %v6078
    %v6080 = vshll.u32 683565275, %v6077
    %v6081 = vshrl.u32 2475754826, %v6078
    %v6082 = vor.u32 %v6080, %v6081
    %v6083 = vshll.u32 2475754826, %v6077
    %v6084 = vshrl.u32 2131351028, %v6078
    %v6085 = vor.u32 %v6083, %v6084
    %v6086 = vshll.u32 2131351028, %v6077
    %v6087 = vshrl.u32 2102212464, %v6078
    %v6088 = vor.u32 %v6086, %v6087
    %v6089 = vshll.u32 2102212464, %v6077
    %v6090 = vshrl.u32 920167782, %v6078
    %v6091 = vor.u32 %v6089, %v6090
    %v6092 = vshll.u32 920167782, %v6077
    %v6093 = vshrl.u32 1326507024, %v6078
    %v6094 = vor.u32 %v6092, %v6093
    %vm6095 = vcmp.lt.s32.totalorder %v6076, 1
    %vm6096 = vcmp.lt.s32.totalorder %v6076, 2
    %vm6097 = vcmp.lt.s32.totalorder %v6076, 3
    %vm6098 = vcmp.lt.s32.totalorder %v6076, 4
    %v6099 = vsel %vm6095, %v6079, %v6082
    %v6100 = vsel %vm6098, %v6088, 2102212464
    %v6101 = vsel %vm6097, %v6085, %v6100
    %v6102 = vsel %vm6096, %v6099, %v6101
    %v6103 = vsel %vm6095, %v6082, %v6085
    %v6104 = vsel %vm6098, %v6091, 920167782
    %v6105 = vsel %vm6097, %v6088, %v6104
    %v6106 = vsel %vm6096, %v6103, %v6105
    %v6107 = vsel %vm6095, %v6085, %v6088
    %v6108 = vsel %vm6098, %v6094, 1326507024
    %v6109 = vsel %vm6097, %v6091, %v6108
    %v6110 = vsel %vm6096, %v6107, %v6109
    %v6111 = vshll.u32 %v6071, 8
    %v6112 = vmul.u32.u64.compose %v6111, %v6110
    %v6113 = vextract.low.u32 %v6112
    %v6114 = vextract.high.u32 %v6112
    %v6115 = vmul.u32.u64.compose %v6111, %v6106
    %v6116 = vextract.low.u32 %v6115
    %v6117 = vextract.high.u32 %v6115
    %v6118 = vmul.u32 %v6111, %v6102
    %v6119 = vadd.s32 %v6114, %v6116
    %vm6120 = vc.u32 %v6114, %v6116
    %v6121 = vadd.s32 %v6117, 1
    %v6122 = vsel %vm6120, %v6121, %v6117
    %v6123 = vadd.s32 %v6118, %v6122
    %v6124 = vadd.s32 %v6123, 536870912
    %v6125 = vshrl.u32 %v6124, 30
    %v6126 = vshll.u32 %v6125, 30
    %v6127 = vsub.s32 %v6123, %v6126
    %vm6128 = vcmp.lt.s32.totalorder %v6127, 0
    %v6129 = vsub.s32 0, %v6127
    %v6130 = vsel %vm6128, %v6129, %v6127
    %v6131 = vclz %v6130
    %v6132 = vsub.s32 %v6131, 2
    %vm6133 = vcmp.gt.s32.totalorder 0, %v6132
    %v6134 = vsel %vm6133, 0, %v6132
    %v6135 = vsub.s32 32, %v6134
    %v6136 = vshll.u32 %v6127, %v6134
    %v6137 = vshrl.u32 %v6119, %v6135
    %v6138 = vor.u32 %v6136, %v6137
    %v6139 = vsub.s32 4294967266, %v6134
    %v6140 = vadd.s32 %v6139, 127
    %v6141 = vshll.u32 %v6140, 23
    %v6142 = vor.u32 4788187, %v6141
    %v6143 = vand.u32 2147483647, %v6142
    %v6145 = vcvt.s32.f32 %v6138
    %v6146 = vmul.f32 %v6145, %v6143
    %v6147 = vxor.u32 %v6146, 2147483648
    %v6148 = vsel %vm6065, %v6147, %v6146
    %v6149 = vsub.s32 4, %v6125
    %v6150 = vsel %vm6065, %v6149, %v6125
    %v6151 = vsel %vm6064, %v3725, %v6148
    %v6152 = vsel %vm6064, 0, %v6150
    %v6153 = vcosq.f32.pop %v6151
    %v6154 = vsinq.f32.pop %v6151
    %vm6155 = vweird.f32 %v3725
    %v6156 = vadd.s32 %v6152, 3
    %v6157 = vand.u32 %v6156, 3
    %vm6158 = vcmp.lt.s32.totalorder %v6157, 2
    %vm6159 = vcmp.eq.s32.totalorder %v6157, 0
    %v6160 = vxor.u32 %v6154, 2147483648
    %v6161 = vsel %vm6159, %v6153, %v6160
    %vm6162 = vcmp.eq.s32.totalorder %v6157, 2
    %v6163 = vxor.u32 %v6153, 2147483648
    %v6164 = vsel %vm6162, %v6163, %v6154
    %v6165 = vsel %vm6158, %v6161, %v6164
    %v6166 = vsel %vm6155, nan, %v6165
    %v6167 = vand.u32 2147483647, %v3727
    %vm6168 = vcmp.le.f32.partialorder %v6167, 0.7853982
    %vm6169 = vcmp.lt.s32.totalorder %v3727, 0
    %v6170 = vand.u32 %v3727, 2139095040
    %v6171 = vshrl.u32 %v6170, 23
    %v6172 = vsub.s32 %v6171, 127
    %v6173 = vand.u32 2147483647, %v3727
    %v6174 = vand.u32 %v6173, 8388607
    %v6175 = vor.u32 %v6174, 8388608
    %v6176 = vsub.s32 0, %v6175
    %v6177 = vadd.s32 %v6172, 1
    %vm6178 = vcmp.gt.s32.totalorder %v6177, 0
    %v6179 = vsel %vm6178, %v6177, 0
    %v6180 = vshrl.u32 %v6179, 5
    %v6181 = vand.u32 %v6179, 31
    %v6182 = vsub.s32 32, %v6181
    %v6183 = vshrl.u32 683565275, %v6182
    %v6184 = vshll.u32 683565275, %v6181
    %v6185 = vshrl.u32 2475754826, %v6182
    %v6186 = vor.u32 %v6184, %v6185
    %v6187 = vshll.u32 2475754826, %v6181
    %v6188 = vshrl.u32 2131351028, %v6182
    %v6189 = vor.u32 %v6187, %v6188
    %v6190 = vshll.u32 2131351028, %v6181
    %v6191 = vshrl.u32 2102212464, %v6182
    %v6192 = vor.u32 %v6190, %v6191
    %v6193 = vshll.u32 2102212464, %v6181
    %v6194 = vshrl.u32 920167782, %v6182
    %v6195 = vor.u32 %v6193, %v6194
    %v6196 = vshll.u32 920167782, %v6181
    %v6197 = vshrl.u32 1326507024, %v6182
    %v6198 = vor.u32 %v6196, %v6197
    %vm6199 = vcmp.lt.s32.totalorder %v6180, 1
    %vm6200 = vcmp.lt.s32.totalorder %v6180, 2
    %vm6201 = vcmp.lt.s32.totalorder %v6180, 3
    %vm6202 = vcmp.lt.s32.totalorder %v6180, 4
    %v6203 = vsel %vm6199, %v6183, %v6186
    %v6204 = vsel %vm6202, %v6192, 2102212464
    %v6205 = vsel %vm6201, %v6189, %v6204
    %v6206 = vsel %vm6200, %v6203, %v6205
    %v6207 = vsel %vm6199, %v6186, %v6189
    %v6208 = vsel %vm6202, %v6195, 920167782
    %v6209 = vsel %vm6201, %v6192, %v6208
    %v6210 = vsel %vm6200, %v6207, %v6209
    %v6211 = vsel %vm6199, %v6189, %v6192
    %v6212 = vsel %vm6202, %v6198, 1326507024
    %v6213 = vsel %vm6201, %v6195, %v6212
    %v6214 = vsel %vm6200, %v6211, %v6213
    %v6215 = vshll.u32 %v6175, 8
    %v6216 = vmul.u32.u64.compose %v6215, %v6214
    %v6217 = vextract.low.u32 %v6216
    %v6218 = vextract.high.u32 %v6216
    %v6219 = vmul.u32.u64.compose %v6215, %v6210
    %v6220 = vextract.low.u32 %v6219
    %v6221 = vextract.high.u32 %v6219
    %v6222 = vmul.u32 %v6215, %v6206
    %v6223 = vadd.s32 %v6218, %v6220
    %vm6224 = vc.u32 %v6218, %v6220
    %v6225 = vadd.s32 %v6221, 1
    %v6226 = vsel %vm6224, %v6225, %v6221
    %v6227 = vadd.s32 %v6222, %v6226
    %v6228 = vadd.s32 %v6227, 536870912
    %v6229 = vshrl.u32 %v6228, 30
    %v6230 = vshll.u32 %v6229, 30
    %v6231 = vsub.s32 %v6227, %v6230
    %vm6232 = vcmp.lt.s32.totalorder %v6231, 0
    %v6233 = vsub.s32 0, %v6231
    %v6234 = vsel %vm6232, %v6233, %v6231
    %v6235 = vclz %v6234
    %v6236 = vsub.s32 %v6235, 2
    %vm6237 = vcmp.gt.s32.totalorder 0, %v6236
    %v6238 = vsel %vm6237, 0, %v6236
    %v6239 = vsub.s32 32, %v6238
    %v6240 = vshll.u32 %v6231, %v6238
    %v6241 = vshrl.u32 %v6223, %v6239
    %v6242 = vor.u32 %v6240, %v6241
    %v6243 = vsub.s32 4294967266, %v6238
    %v6244 = vadd.s32 %v6243, 127
    %v6245 = vshll.u32 %v6244, 23
    %v6246 = vor.u32 4788187, %v6245
    %v6247 = vand.u32 2147483647, %v6246
    %v6249 = vcvt.s32.f32 %v6242
    %v6250 = vmul.f32 %v6249, %v6247
    %v6251 = vxor.u32 %v6250, 2147483648
    %v6252 = vsel %vm6169, %v6251, %v6250
    %v6253 = vsub.s32 4, %v6229
    %v6254 = vsel %vm6169, %v6253, %v6229
    %v6255 = vsel %vm6168, %v3727, %v6252
    %v6256 = vsel %vm6168, 0, %v6254
    %v6257 = vcosq.f32.pop %v6255
    %v6258 = vsinq.f32.pop %v6255
    %vm6259 = vweird.f32 %v3727
    %v6260 = vadd.s32 %v6256, 3
    %v6261 = vand.u32 %v6260, 3
    %vm6262 = vcmp.lt.s32.totalorder %v6261, 2
    %vm6263 = vcmp.eq.s32.totalorder %v6261, 0
    %v6264 = vxor.u32 %v6258, 2147483648
    %v6265 = vsel %vm6263, %v6257, %v6264
    %vm6266 = vcmp.eq.s32.totalorder %v6261, 2
    %v6267 = vxor.u32 %v6257, 2147483648
    %v6268 = vsel %vm6266, %v6267, %v6258
    %v6269 = vsel %vm6262, %v6265, %v6268
    %v6270 = vsel %vm6259, nan, %v6269
    %v6271 = vand.u32 2147483647, %v4580
    %vm6272 = vcmp.le.f32.partialorder %v6271, 0.7853982
    %vm6273 = vcmp.lt.s32.totalorder %v4580, 0
    %v6274 = vand.u32 %v4580, 2139095040
    %v6275 = vshrl.u32 %v6274, 23
    %v6276 = vsub.s32 %v6275, 127
    %v6277 = vand.u32 2147483647, %v4580
    %v6278 = vand.u32 %v6277, 8388607
    %v6279 = vor.u32 %v6278, 8388608
    %v6280 = vsub.s32 0, %v6279
    %v6281 = vadd.s32 %v6276, 1
    %vm6282 = vcmp.gt.s32.totalorder %v6281, 0
    %v6283 = vsel %vm6282, %v6281, 0
    %v6284 = vshrl.u32 %v6283, 5
    %v6285 = vand.u32 %v6283, 31
    %v6286 = vsub.s32 32, %v6285
    %v6287 = vshrl.u32 683565275, %v6286
    %v6288 = vshll.u32 683565275, %v6285
    %v6289 = vshrl.u32 2475754826, %v6286
    %v6290 = vor.u32 %v6288, %v6289
    %v6291 = vshll.u32 2475754826, %v6285
    %v6292 = vshrl.u32 2131351028, %v6286
    %v6293 = vor.u32 %v6291, %v6292
    %v6294 = vshll.u32 2131351028, %v6285
    %v6295 = vshrl.u32 2102212464, %v6286
    %v6296 = vor.u32 %v6294, %v6295
    %v6297 = vshll.u32 2102212464, %v6285
    %v6298 = vshrl.u32 920167782, %v6286
    %v6299 = vor.u32 %v6297, %v6298
    %v6300 = vshll.u32 920167782, %v6285
    %v6301 = vshrl.u32 1326507024, %v6286
    %v6302 = vor.u32 %v6300, %v6301
    %vm6303 = vcmp.lt.s32.totalorder %v6284, 1
    %vm6304 = vcmp.lt.s32.totalorder %v6284, 2
    %vm6305 = vcmp.lt.s32.totalorder %v6284, 3
    %vm6306 = vcmp.lt.s32.totalorder %v6284, 4
    %v6307 = vsel %vm6303, %v6287, %v6290
    %v6308 = vsel %vm6306, %v6296, 2102212464
    %v6309 = vsel %vm6305, %v6293, %v6308
    %v6310 = vsel %vm6304, %v6307, %v6309
    %v6311 = vsel %vm6303, %v6290, %v6293
    %v6312 = vsel %vm6306, %v6299, 920167782
    %v6313 = vsel %vm6305, %v6296, %v6312
    %v6314 = vsel %vm6304, %v6311, %v6313
    %v6315 = vsel %vm6303, %v6293, %v6296
    %v6316 = vsel %vm6306, %v6302, 1326507024
    %v6317 = vsel %vm6305, %v6299, %v6316
    %v6318 = vsel %vm6304, %v6315, %v6317
    %v6319 = vshll.u32 %v6279, 8
    %v6320 = vmul.u32.u64.compose %v6319, %v6318
    %v6321 = vextract.low.u32 %v6320
    %v6322 = vextract.high.u32 %v6320
    %v6323 = vmul.u32.u64.compose %v6319, %v6314
    %v6324 = vextract.low.u32 %v6323
    %v6325 = vextract.high.u32 %v6323
    %v6326 = vmul.u32 %v6319, %v6310
    %v6327 = vadd.s32 %v6322, %v6324
    %vm6328 = vc.u32 %v6322, %v6324
    %v6329 = vadd.s32 %v6325, 1
    %v6330 = vsel %vm6328, %v6329, %v6325
    %v6331 = vadd.s32 %v6326, %v6330
    %v6332 = vadd.s32 %v6331, 536870912
    %v6333 = vshrl.u32 %v6332, 30
    %v6334 = vshll.u32 %v6333, 30
    %v6335 = vsub.s32 %v6331, %v6334
    %vm6336 = vcmp.lt.s32.totalorder %v6335, 0
    %v6337 = vsub.s32 0, %v6335
    %v6338 = vsel %vm6336, %v6337, %v6335
    %v6339 = vclz %v6338
    %v6340 = vsub.s32 %v6339, 2
    %vm6341 = vcmp.gt.s32.totalorder 0, %v6340
    %v6342 = vsel %vm6341, 0, %v6340
    %v6343 = vsub.s32 32, %v6342
    %v6344 = vshll.u32 %v6335, %v6342
    %v6345 = vshrl.u32 %v6327, %v6343
    %v6346 = vor.u32 %v6344, %v6345
    %v6347 = vsub.s32 4294967266, %v6342
    %v6348 = vadd.s32 %v6347, 127
    %v6349 = vshll.u32 %v6348, 23
    %v6350 = vor.u32 4788187, %v6349
    %v6351 = vand.u32 2147483647, %v6350
    %v6353 = vcvt.s32.f32 %v6346
    %v6354 = vmul.f32 %v6353, %v6351
    %v6355 = vxor.u32 %v6354, 2147483648
    %v6356 = vsel %vm6273, %v6355, %v6354
    %v6357 = vsub.s32 4, %v6333
    %v6358 = vsel %vm6273, %v6357, %v6333
    %v6359 = vsel %vm6272, %v4580, %v6356
    %v6360 = vsel %vm6272, 0, %v6358
    %v6361 = vcosq.f32.pop %v6359
    %v6362 = vsinq.f32.pop %v6359
    %vm6363 = vweird.f32 %v4580
    %v6364 = vadd.s32 %v6360, 3
    %v6365 = vand.u32 %v6364, 3
    %vm6366 = vcmp.lt.s32.totalorder %v6365, 2
    %vm6367 = vcmp.eq.s32.totalorder %v6365, 0
    %v6368 = vxor.u32 %v6362, 2147483648
    %v6369 = vsel %vm6367, %v6361, %v6368
    %vm6370 = vcmp.eq.s32.totalorder %v6365, 2
    %v6371 = vxor.u32 %v6361, 2147483648
    %v6372 = vsel %vm6370, %v6371, %v6362
    %v6373 = vsel %vm6366, %v6369, %v6372
    %v6374 = vsel %vm6363, nan, %v6373
    %v6375 = vand.u32 2147483647, %v4582
    %vm6376 = vcmp.le.f32.partialorder %v6375, 0.7853982
    %vm6377 = vcmp.lt.s32.totalorder %v4582, 0
    %v6378 = vand.u32 %v4582, 2139095040
    %v6379 = vshrl.u32 %v6378, 23
    %v6380 = vsub.s32 %v6379, 127
    %v6381 = vand.u32 2147483647, %v4582
    %v6382 = vand.u32 %v6381, 8388607
    %v6383 = vor.u32 %v6382, 8388608
    %v6384 = vsub.s32 0, %v6383
    %v6385 = vadd.s32 %v6380, 1
    %vm6386 = vcmp.gt.s32.totalorder %v6385, 0
    %v6387 = vsel %vm6386, %v6385, 0
    %v6388 = vshrl.u32 %v6387, 5
    %v6389 = vand.u32 %v6387, 31
    %v6390 = vsub.s32 32, %v6389
    %v6391 = vshrl.u32 683565275, %v6390
    %v6392 = vshll.u32 683565275, %v6389
    %v6393 = vshrl.u32 2475754826, %v6390
    %v6394 = vor.u32 %v6392, %v6393
    %v6395 = vshll.u32 2475754826, %v6389
    %v6396 = vshrl.u32 2131351028, %v6390
    %v6397 = vor.u32 %v6395, %v6396
    %v6398 = vshll.u32 2131351028, %v6389
    %v6399 = vshrl.u32 2102212464, %v6390
    %v6400 = vor.u32 %v6398, %v6399
    %v6401 = vshll.u32 2102212464, %v6389
    %v6402 = vshrl.u32 920167782, %v6390
    %v6403 = vor.u32 %v6401, %v6402
    %v6404 = vshll.u32 920167782, %v6389
    %v6405 = vshrl.u32 1326507024, %v6390
    %v6406 = vor.u32 %v6404, %v6405
    %vm6407 = vcmp.lt.s32.totalorder %v6388, 1
    %vm6408 = vcmp.lt.s32.totalorder %v6388, 2
    %vm6409 = vcmp.lt.s32.totalorder %v6388, 3
    %vm6410 = vcmp.lt.s32.totalorder %v6388, 4
    %v6411 = vsel %vm6407, %v6391, %v6394
    %v6412 = vsel %vm6410, %v6400, 2102212464
    %v6413 = vsel %vm6409, %v6397, %v6412
    %v6414 = vsel %vm6408, %v6411, %v6413
    %v6415 = vsel %vm6407, %v6394, %v6397
    %v6416 = vsel %vm6410, %v6403, 920167782
    %v6417 = vsel %vm6409, %v6400, %v6416
    %v6418 = vsel %vm6408, %v6415, %v6417
    %v6419 = vsel %vm6407, %v6397, %v6400
    %v6420 = vsel %vm6410, %v6406, 1326507024
    %v6421 = vsel %vm6409, %v6403, %v6420
    %v6422 = vsel %vm6408, %v6419, %v6421
    %v6423 = vshll.u32 %v6383, 8
    %v6424 = vmul.u32.u64.compose %v6423, %v6422
    %v6425 = vextract.low.u32 %v6424
    %v6426 = vextract.high.u32 %v6424
    %v6427 = vmul.u32.u64.compose %v6423, %v6418
    %v6428 = vextract.low.u32 %v6427
    %v6429 = vextract.high.u32 %v6427
    %v6430 = vmul.u32 %v6423, %v6414
    %v6431 = vadd.s32 %v6426, %v6428
    %vm6432 = vc.u32 %v6426, %v6428
    %v6433 = vadd.s32 %v6429, 1
    %v6434 = vsel %vm6432, %v6433, %v6429
    %v6435 = vadd.s32 %v6430, %v6434
    %v6436 = vadd.s32 %v6435, 536870912
    %v6437 = vshrl.u32 %v6436, 30
    %v6438 = vshll.u32 %v6437, 30
    %v6439 = vsub.s32 %v6435, %v6438
    %vm6440 = vcmp.lt.s32.totalorder %v6439, 0
    %v6441 = vsub.s32 0, %v6439
    %v6442 = vsel %vm6440, %v6441, %v6439
    %v6443 = vclz %v6442
    %v6444 = vsub.s32 %v6443, 2
    %vm6445 = vcmp.gt.s32.totalorder 0, %v6444
    %v6446 = vsel %vm6445, 0, %v6444
    %v6447 = vsub.s32 32, %v6446
    %v6448 = vshll.u32 %v6439, %v6446
    %v6449 = vshrl.u32 %v6431, %v6447
    %v6450 = vor.u32 %v6448, %v6449
    %v6451 = vsub.s32 4294967266, %v6446
    %v6452 = vadd.s32 %v6451, 127
    %v6453 = vshll.u32 %v6452, 23
    %v6454 = vor.u32 4788187, %v6453
    %v6455 = vand.u32 2147483647, %v6454
    %v6457 = vcvt.s32.f32 %v6450
    %v6458 = vmul.f32 %v6457, %v6455
    %v6459 = vxor.u32 %v6458, 2147483648
    %v6460 = vsel %vm6377, %v6459, %v6458
    %v6461 = vsub.s32 4, %v6437
    %v6462 = vsel %vm6377, %v6461, %v6437
    %v6463 = vsel %vm6376, %v4582, %v6460
    %v6464 = vsel %vm6376, 0, %v6462
    %v6465 = vcosq.f32.pop %v6463
    %v6466 = vsinq.f32.pop %v6463
    %vm6467 = vweird.f32 %v4582
    %v6468 = vadd.s32 %v6464, 3
    %v6469 = vand.u32 %v6468, 3
    %vm6470 = vcmp.lt.s32.totalorder %v6469, 2
    %vm6471 = vcmp.eq.s32.totalorder %v6469, 0
    %v6472 = vxor.u32 %v6466, 2147483648
    %v6473 = vsel %vm6471, %v6465, %v6472
    %vm6474 = vcmp.eq.s32.totalorder %v6469, 2
    %v6475 = vxor.u32 %v6465, 2147483648
    %v6476 = vsel %vm6474, %v6475, %v6466
    %v6477 = vsel %vm6470, %v6473, %v6476
    %v6478 = vsel %vm6467, nan, %v6477
    %v6479 = vand.u32 2147483647, %v5435
    %vm6480 = vcmp.le.f32.partialorder %v6479, 0.7853982
    %vm6481 = vcmp.lt.s32.totalorder %v5435, 0
    %v6482 = vand.u32 %v5435, 2139095040
    %v6483 = vshrl.u32 %v6482, 23
    %v6484 = vsub.s32 %v6483, 127
    %v6485 = vand.u32 2147483647, %v5435
    %v6486 = vand.u32 %v6485, 8388607
    %v6487 = vor.u32 %v6486, 8388608
    %v6488 = vsub.s32 0, %v6487
    %v6489 = vadd.s32 %v6484, 1
    %vm6490 = vcmp.gt.s32.totalorder %v6489, 0
    %v6491 = vsel %vm6490, %v6489, 0
    %v6492 = vshrl.u32 %v6491, 5
    %v6493 = vand.u32 %v6491, 31
    %v6494 = vsub.s32 32, %v6493
    %v6495 = vshrl.u32 683565275, %v6494
    %v6496 = vshll.u32 683565275, %v6493
    %v6497 = vshrl.u32 2475754826, %v6494
    %v6498 = vor.u32 %v6496, %v6497
    %v6499 = vshll.u32 2475754826, %v6493
    %v6500 = vshrl.u32 2131351028, %v6494
    %v6501 = vor.u32 %v6499, %v6500
    %v6502 = vshll.u32 2131351028, %v6493
    %v6503 = vshrl.u32 2102212464, %v6494
    %v6504 = vor.u32 %v6502, %v6503
    %v6505 = vshll.u32 2102212464, %v6493
    %v6506 = vshrl.u32 920167782, %v6494
    %v6507 = vor.u32 %v6505, %v6506
    %v6508 = vshll.u32 920167782, %v6493
    %v6509 = vshrl.u32 1326507024, %v6494
    %v6510 = vor.u32 %v6508, %v6509
    %vm6511 = vcmp.lt.s32.totalorder %v6492, 1
    %vm6512 = vcmp.lt.s32.totalorder %v6492, 2
    %vm6513 = vcmp.lt.s32.totalorder %v6492, 3
    %vm6514 = vcmp.lt.s32.totalorder %v6492, 4
    %v6515 = vsel %vm6511, %v6495, %v6498
    %v6516 = vsel %vm6514, %v6504, 2102212464
    %v6517 = vsel %vm6513, %v6501, %v6516
    %v6518 = vsel %vm6512, %v6515, %v6517
    %v6519 = vsel %vm6511, %v6498, %v6501
    %v6520 = vsel %vm6514, %v6507, 920167782
    %v6521 = vsel %vm6513, %v6504, %v6520
    %v6522 = vsel %vm6512, %v6519, %v6521
    %v6523 = vsel %vm6511, %v6501, %v6504
    %v6524 = vsel %vm6514, %v6510, 1326507024
    %v6525 = vsel %vm6513, %v6507, %v6524
    %v6526 = vsel %vm6512, %v6523, %v6525
    %v6527 = vshll.u32 %v6487, 8
    %v6528 = vmul.u32.u64.compose %v6527, %v6526
    %v6529 = vextract.low.u32 %v6528
    %v6530 = vextract.high.u32 %v6528
    %v6531 = vmul.u32.u64.compose %v6527, %v6522
    %v6532 = vextract.low.u32 %v6531
    %v6533 = vextract.high.u32 %v6531
    %v6534 = vmul.u32 %v6527, %v6518
    %v6535 = vadd.s32 %v6530, %v6532
    %vm6536 = vc.u32 %v6530, %v6532
    %v6537 = vadd.s32 %v6533, 1
    %v6538 = vsel %vm6536, %v6537, %v6533
    %v6539 = vadd.s32 %v6534, %v6538
    %v6540 = vadd.s32 %v6539, 536870912
    %v6541 = vshrl.u32 %v6540, 30
    %v6542 = vshll.u32 %v6541, 30
    %v6543 = vsub.s32 %v6539, %v6542
    %vm6544 = vcmp.lt.s32.totalorder %v6543, 0
    %v6545 = vsub.s32 0, %v6543
    %v6546 = vsel %vm6544, %v6545, %v6543
    %v6547 = vclz %v6546
    %v6548 = vsub.s32 %v6547, 2
    %vm6549 = vcmp.gt.s32.totalorder 0, %v6548
    %v6550 = vsel %vm6549, 0, %v6548
    %v6551 = vsub.s32 32, %v6550
    %v6552 = vshll.u32 %v6543, %v6550
    %v6553 = vshrl.u32 %v6535, %v6551
    %v6554 = vor.u32 %v6552, %v6553
    %v6555 = vsub.s32 4294967266, %v6550
    %v6556 = vadd.s32 %v6555, 127
    %v6557 = vshll.u32 %v6556, 23
    %v6558 = vor.u32 4788187, %v6557
    %v6559 = vand.u32 2147483647, %v6558
    %v6561 = vcvt.s32.f32 %v6554
    %v6562 = vmul.f32 %v6561, %v6559
    %v6563 = vxor.u32 %v6562, 2147483648
    %v6564 = vsel %vm6481, %v6563, %v6562
    %v6565 = vsub.s32 4, %v6541
    %v6566 = vsel %vm6481, %v6565, %v6541
    %v6567 = vsel %vm6480, %v5435, %v6564
    %v6568 = vsel %vm6480, 0, %v6566
    %v6569 = vcosq.f32.pop %v6567
    %v6570 = vsinq.f32.pop %v6567
    %vm6571 = vweird.f32 %v5435
    %v6572 = vadd.s32 %v6568, 3
    %v6573 = vand.u32 %v6572, 3
    %vm6574 = vcmp.lt.s32.totalorder %v6573, 2
    %vm6575 = vcmp.eq.s32.totalorder %v6573, 0
    %v6576 = vxor.u32 %v6570, 2147483648
    %v6577 = vsel %vm6575, %v6569, %v6576
    %vm6578 = vcmp.eq.s32.totalorder %v6573, 2
    %v6579 = vxor.u32 %v6569, 2147483648
    %v6580 = vsel %vm6578, %v6579, %v6570
    %v6581 = vsel %vm6574, %v6577, %v6580
    %v6582 = vsel %vm6571, nan, %v6581
    %v6583 = vand.u32 2147483647, %v5437
    %vm6584 = vcmp.le.f32.partialorder %v6583, 0.7853982
    %vm6585 = vcmp.lt.s32.totalorder %v5437, 0
    %v6586 = vand.u32 %v5437, 2139095040
    %v6587 = vshrl.u32 %v6586, 23
    %v6588 = vsub.s32 %v6587, 127
    %v6589 = vand.u32 2147483647, %v5437
    %v6590 = vand.u32 %v6589, 8388607
    %v6591 = vor.u32 %v6590, 8388608
    %v6592 = vsub.s32 0, %v6591
    %v6593 = vadd.s32 %v6588, 1
    %vm6594 = vcmp.gt.s32.totalorder %v6593, 0
    %v6595 = vsel %vm6594, %v6593, 0
    %v6596 = vshrl.u32 %v6595, 5
    %v6597 = vand.u32 %v6595, 31
    %v6598 = vsub.s32 32, %v6597
    %v6599 = vshrl.u32 683565275, %v6598
    %v6600 = vshll.u32 683565275, %v6597
    %v6601 = vshrl.u32 2475754826, %v6598
    %v6602 = vor.u32 %v6600, %v6601
    %v6603 = vshll.u32 2475754826, %v6597
    %v6604 = vshrl.u32 2131351028, %v6598
    %v6605 = vor.u32 %v6603, %v6604
    %v6606 = vshll.u32 2131351028, %v6597
    %v6607 = vshrl.u32 2102212464, %v6598
    %v6608 = vor.u32 %v6606, %v6607
    %v6609 = vshll.u32 2102212464, %v6597
    %v6610 = vshrl.u32 920167782, %v6598
    %v6611 = vor.u32 %v6609, %v6610
    %v6612 = vshll.u32 920167782, %v6597
    %v6613 = vshrl.u32 1326507024, %v6598
    %v6614 = vor.u32 %v6612, %v6613
    %vm6615 = vcmp.lt.s32.totalorder %v6596, 1
    %vm6616 = vcmp.lt.s32.totalorder %v6596, 2
    %vm6617 = vcmp.lt.s32.totalorder %v6596, 3
    %vm6618 = vcmp.lt.s32.totalorder %v6596, 4
    %v6619 = vsel %vm6615, %v6599, %v6602
    %v6620 = vsel %vm6618, %v6608, 2102212464
    %v6621 = vsel %vm6617, %v6605, %v6620
    %v6622 = vsel %vm6616, %v6619, %v6621
    %v6623 = vsel %vm6615, %v6602, %v6605
    %v6624 = vsel %vm6618, %v6611, 920167782
    %v6625 = vsel %vm6617, %v6608, %v6624
    %v6626 = vsel %vm6616, %v6623, %v6625
    %v6627 = vsel %vm6615, %v6605, %v6608
    %v6628 = vsel %vm6618, %v6614, 1326507024
    %v6629 = vsel %vm6617, %v6611, %v6628
    %v6630 = vsel %vm6616, %v6627, %v6629
    %v6631 = vshll.u32 %v6591, 8
    %v6632 = vmul.u32.u64.compose %v6631, %v6630
    %v6633 = vextract.low.u32 %v6632
    %v6634 = vextract.high.u32 %v6632
    %v6635 = vmul.u32.u64.compose %v6631, %v6626
    %v6636 = vextract.low.u32 %v6635
    %v6637 = vextract.high.u32 %v6635
    %v6638 = vmul.u32 %v6631, %v6622
    %v6639 = vadd.s32 %v6634, %v6636
    %vm6640 = vc.u32 %v6634, %v6636
    %v6641 = vadd.s32 %v6637, 1
    %v6642 = vsel %vm6640, %v6641, %v6637
    %v6643 = vadd.s32 %v6638, %v6642
    %v6644 = vadd.s32 %v6643, 536870912
    %v6645 = vshrl.u32 %v6644, 30
    %v6646 = vshll.u32 %v6645, 30
    %v6647 = vsub.s32 %v6643, %v6646
    %vm6648 = vcmp.lt.s32.totalorder %v6647, 0
    %v6649 = vsub.s32 0, %v6647
    %v6650 = vsel %vm6648, %v6649, %v6647
    %v6651 = vclz %v6650
    %v6652 = vsub.s32 %v6651, 2
    %vm6653 = vcmp.gt.s32.totalorder 0, %v6652
    %v6654 = vsel %vm6653, 0, %v6652
    %v6655 = vsub.s32 32, %v6654
    %v6656 = vshll.u32 %v6647, %v6654
    %v6657 = vshrl.u32 %v6639, %v6655
    %v6658 = vor.u32 %v6656, %v6657
    %v6659 = vsub.s32 4294967266, %v6654
    %v6660 = vadd.s32 %v6659, 127
    %v6661 = vshll.u32 %v6660, 23
    %v6662 = vor.u32 4788187, %v6661
    %v6663 = vand.u32 2147483647, %v6662
    %v6665 = vcvt.s32.f32 %v6658
    %v6666 = vmul.f32 %v6665, %v6663
    %v6667 = vxor.u32 %v6666, 2147483648
    %v6668 = vsel %vm6585, %v6667, %v6666
    %v6669 = vsub.s32 4, %v6645
    %v6670 = vsel %vm6585, %v6669, %v6645
    %v6671 = vsel %vm6584, %v5437, %v6668
    %v6672 = vsel %vm6584, 0, %v6670
    %v6673 = vcosq.f32.pop %v6671
    %v6674 = vsinq.f32.pop %v6671
    %vm6675 = vweird.f32 %v5437
    %v6676 = vadd.s32 %v6672, 3
    %v6677 = vand.u32 %v6676, 3
    %vm6678 = vcmp.lt.s32.totalorder %v6677, 2
    %vm6679 = vcmp.eq.s32.totalorder %v6677, 0
    %v6680 = vxor.u32 %v6674, 2147483648
    %v6681 = vsel %vm6679, %v6673, %v6680
    %vm6682 = vcmp.eq.s32.totalorder %v6677, 2
    %v6683 = vxor.u32 %v6673, 2147483648
    %v6684 = vsel %vm6682, %v6683, %v6674
    %v6685 = vsel %vm6678, %v6681, %v6684
    %v6686 = vsel %vm6675, nan, %v6685
    %6687 = vst [vmem:[#allocation8] sm:$0xff] %v5542
    %6688 = vst [vmem:[#allocation8 + $0x8] sm:$0xff] %v5646
    %6689 = vst [vmem:[#allocation8 + $0x10] sm:$0xff] %v5750
    %6690 = vst [vmem:[#allocation8 + $0x18] sm:$0xff] %v5854
    %6691 = vst [vmem:[#allocation8 + $0x20] sm:$0xff] %v5958
    %6692 = vst [vmem:[#allocation8 + $0x28] sm:$0xff] %v6062
    %6693 = vst [vmem:[#allocation8 + $0x30] sm:$0xff] %v6166
    %6694 = vst [vmem:[#allocation8 + $0x38] sm:$0xff] %v6270
    %6695 = vst [vmem:[#allocation8 + $0x40] sm:$0xff] %v6374
    %6696 = vst [vmem:[#allocation8 + $0x48] sm:$0xff] %v6478
    %6697 = vst [vmem:[#allocation8 + $0x50] sm:$0xff] %v6582
    %6698 = vst [vmem:[#allocation8 + $0x58] sm:$0xff] %v6686
    // Predicated region
    $region26: #{tpu_custom_call.1} parent=1 // pred_check
      _
    $region27: #{tpu_custom_call.1} parent=1 // pred_check_branch
      %6700 = sbr.rel (0) target = $region29
    $region28: #{tpu_custom_call.1} parent=1 // pred_region
      %s6702 = ssub.s32 1536, 1536
      %6703 = vsyncadd [#allocation4], %s6702
      %s6705 = sshll.u32 [#allocation8], 4
      %s6706 = int_to_ptr.vmem [resolvable:$true] %s6705
      %6708 = dma.vmem_to_hbm [thread:$0]  %s6706, 1536, %s3, [#allocation4]
    $region29: #{tpu_custom_call.1} parent=1 // pred_fallthru
      _
    // Predicated region
    $region30: #{tpu_custom_call.1} parent=1 // pred_check
      _
    $region31: #{tpu_custom_call.1} parent=1 // pred_check_branch
      %6710 = sbr.rel (0) target = $region33
    $region32: #{tpu_custom_call.1} parent=1 // pred_region
      %6711 = dma.done [#allocation4], 1536
    $region33: #{tpu_custom_call.1} parent=1 // pred_fallthru
      _
    %6712 = vsyncpa [#allocation3], 1
    %6713 = vsyncpa [#allocation6], 1
    %6714 = vsyncpa [#allocation4], 1

</llo_original>
